<compile_context>
chip_gen: v6e
topology: v6e:2x2x1
jax: 0.10.0
libtpu: 0.0.40
codegen_flags: <defaults>
</compile_context>

<pallas_src>
import jax
import jax.numpy as jnp
from jax.experimental import pallas as pl
from jax.experimental.pallas import tpu as pltpu

# ---- module hyperparameters (from the PyTorch module) ----
EMBEDDING_DIM = 50
HIDDEN_DIM = 100
NUM_LAYERS = 2
OUTPUT_DIM = 13
BIDIRECTIONAL = True

# ---- small synthetic problem sizes ----
VOCAB_SIZE = 64
BATCH = 2
SEQ_LEN = 8

# ---- padded (lane-dense) sizes used inside the kernel ----
HP = 128            # hidden dim padded to one lane tile
EP = 128            # embedding dim padded to one lane tile
G4 = 4 * HP         # fused gate width per direction (i,f,o,g blocks of 128)
VOCAB_PAD = 128     # vocab padded to one lane tile (for the one-hot matmul)
OUT_PAD = 128       # FC output padded to one lane tile

# PyTorch gate order (i, f, g, o) -> packed column-block order (i, f, o, g)
GATE_SRC_TO_DST = (0, 1, 3, 2)


# ---------------------------------------------------------------------------
# The single fused Pallas kernel
# ---------------------------------------------------------------------------
def _model_kernel(tok_ref,                     # (T*B, VOCAB_PAD) int32, time-major, lane-broadcast
                  t0_ref,                      # (VOCAB_PAD, 2*G4) bf16: emb@W_ih0 + b0, [fwd|bwd]
                  w_hh0_f_ref, w_hh0_b_ref,    # (HP, G4) bf16
                  w_ih1_f_ref, w_ih1_b_ref,    # (2*HP, G4) bf16
                  w_hh1_f_ref,                 # (HP, G4) bf16
                  b1_f_ref, b1_b_ref,          # (1, G4) f32
                  fc_w_ref, fc_b_ref,          # (2*HP, OUT_PAD), (1, OUT_PAD) f32
                  out_ref,                     # (B, OUT_PAD) f32
                  xp0_scr,                     # (T*B, 2*G4) f32  layer-0 input proj
                  out0_scr,                    # (T*B, 2*HP) f32  layer-0 outputs
                  xp1_scr):                    # (T*B, G4)   f32  layer-1 fwd input proj
    B, T = BATCH, SEQ_LEN

    # -- 1) fused embedding gather + layer-0 input projection (one MXU op) ----
    vocab_iota = jax.lax.broadcasted_iota(jnp.int32, (T * B, VOCAB_PAD), 1)
    one_hot = jnp.where(tok_ref[...] == vocab_iota, 1.0, 0.0).astype(jnp.bfloat16)
    xp0_scr[...] = jnp.dot(one_hot, t0_ref[...],
                           preferred_element_type=jnp.float32)

    def cell(gates, c_prev):
        """LSTM cell from fused gates (B, 4*HP), packed gate order i, f, o, g."""
        sig = jax.nn.sigmoid(gates[:, 0:3 * HP])       # one contiguous EUP slice
        i_g = sig[:, 0 * HP:1 * HP]
        f_g = sig[:, 1 * HP:2 * HP]
        o_g = sig[:, 2 * HP:3 * HP]
        g_g = jnp.tanh(gates[:, 3 * HP:4 * HP])
        c_new = f_g * c_prev + i_g * g_g
        h_new = o_g * jnp.tanh(c_new)
        return h_new, c_new

    def hh(h, w_ref):
        """h @ W_hh with bf16 weights, f32 accumulation."""
        return jnp.dot(h.astype(jnp.bfloat16), w_ref[...],
                       preferred_element_type=jnp.float32)

    # -- 2) layer 0: fwd and bwd recurrences interleaved (independent chains) --
    h_f = jnp.zeros((B, HP), jnp.float32)
    c_f = jnp.zeros((B, HP), jnp.float32)
    h_b = jnp.zeros((B, HP), jnp.float32)
    c_b = jnp.zeros((B, HP), jnp.float32)
    for s in range(T):                                   # unrolled static loop
        tf, tb = s, T - 1 - s
        g_f = xp0_scr[tf * B:(tf + 1) * B, 0:G4] + hh(h_f, w_hh0_f_ref)
        g_b = xp0_scr[tb * B:(tb + 1) * B, G4:2 * G4] + hh(h_b, w_hh0_b_ref)
        h_f, c_f = cell(g_f, c_f)
        h_b, c_b = cell(g_b, c_b)
        out0_scr[tf * B:(tf + 1) * B, 0:HP] = h_f
        out0_scr[tb * B:(tb + 1) * B, HP:2 * HP] = h_b

    # -- 3) layer-1 forward input projection for all T (bwd half not needed) ---
    out0_bf = out0_scr[...].astype(jnp.bfloat16)
    xp1_scr[...] = (jnp.dot(out0_bf, w_ih1_f_ref[...],
                            preferred_element_type=jnp.float32) + b1_f_ref[...])

    # -- 4) layer-1 backward: exactly ONE step at t = T-1 from zero state ------
    # (h_prev = 0 so the hidden matmul vanishes.)
    g_b1 = (jnp.dot(out0_bf[(T - 1) * B:T * B, :], w_ih1_b_ref[...],
                    preferred_element_type=jnp.float32) + b1_b_ref[...])
    h1_b, _ = cell(g_b1, jnp.zeros((B, HP), jnp.float32))

    # -- 5) layer-1 forward recurrence: only the final h is needed -------------
    h1_f = jnp.zeros((B, HP), jnp.float32)
    c1_f = jnp.zeros((B, HP), jnp.float32)
    for t in range(T):
        g = xp1_scr[t * B:(t + 1) * B, :] + hh(h1_f, w_hh1_f_ref)
        h1_f, c1_f = cell(g, c1_f)

    # -- 6) FC head on [h1_f, h1_b]: split-weight matmuls, 128-lane output -----
    out_ref[...] = (
        jnp.dot(h1_f, fc_w_ref[0:HP, :], preferred_element_type=jnp.float32)
        + jnp.dot(h1_b, fc_w_ref[HP:2 * HP, :], preferred_element_type=jnp.float32)
        + fc_b_ref[...])


# ---------------------------------------------------------------------------
# Wrapper
# ---------------------------------------------------------------------------
@jax.jit
def simple_lstm_model(token_ids, kparams):
    """token_ids: (B, T) int32  ->  (B, OUTPUT_DIM) float32."""
    # Time-major flat row order r = t*B + b, lane-broadcast for the in-kernel
    # one-hot compare against broadcasted_iota.
    tok_tm = token_ids.astype(jnp.int32).T.reshape(SEQ_LEN * BATCH, 1)
    tok_tm = jnp.broadcast_to(tok_tm, (SEQ_LEN * BATCH, VOCAB_PAD))

    vmem = pl.BlockSpec(memory_space=pltpu.MemorySpace.VMEM)
    out_pad = pl.pallas_call(
        _model_kernel,
        out_shape=jax.ShapeDtypeStruct((BATCH, OUT_PAD), jnp.float32),
        in_specs=[vmem] * 11,
        out_specs=vmem,
        scratch_shapes=[
            pltpu.VMEM((SEQ_LEN * BATCH, 2 * G4), jnp.float32),   # xp0
            pltpu.VMEM((SEQ_LEN * BATCH, 2 * HP), jnp.float32),   # out0
            pltpu.VMEM((SEQ_LEN * BATCH, G4), jnp.float32),       # xp1 (fwd only)
        ],
    )(tok_tm, kparams["t0"],
      kparams["w_hh0_f"], kparams["w_hh0_b"],
      kparams["w_ih1_f"], kparams["w_ih1_b"],
      kparams["w_hh1_f"],
      kparams["b1_f"], kparams["b1_b"],
      kparams["fc_w"], kparams["fc_b"])
    return out_pad[:, :OUTPUT_DIM]


# ---------------------------------------------------------------------------
# Parameter packing: true (unpadded, gate-separated) params -> fused padded
# kernel layout.  Zero padding keeps padded h/c columns exactly 0.
# ---------------------------------------------------------------------------
def _pack_ih(w4, row_map, n_rows_pad):
    """(4, D_in, H) -> (n_rows_pad, 4*HP); gate block order i, f, o, g."""
    out = jnp.zeros((n_rows_pad, G4), jnp.float32)
    for k_src in range(4):
        kd = GATE_SRC_TO_DST[k_src]
        for (s0, s1, d0) in row_map:
            out = out.at[d0:d0 + (s1 - s0),
                         kd * HP:kd * HP + HIDDEN_DIM].set(w4[k_src, s0:s1])
    return out


def _pack_hh(w4):
    """(4, H, H) -> (HP, 4*HP); gate block order i, f, o, g."""
    out = jnp.zeros((HP, G4), jnp.float32)
    for k_src in range(4):
        kd = GATE_SRC_TO_DST[k_src]
        out = out.at[:HIDDEN_DIM, kd * HP:kd * HP + HIDDEN_DIM].set(w4[k_src])
    return out


def _pack_b(b4):
    """(4, H) -> (1, 4*HP); gate block order i, f, o, g."""
    out = jnp.zeros((1, G4), jnp.float32)
    for k_src in range(4):
        kd = GATE_SRC_TO_DST[k_src]
        out = out.at[0, kd * HP:kd * HP + HIDDEN_DIM].set(b4[k_src])
    return out


def pack_params(p):
    kp = {}
    rm0 = [(0, EMBEDDING_DIM, 0)]
    rm1 = [(0, HIDDEN_DIM, 0), (HIDDEN_DIM, 2 * HIDDEN_DIM, HP)]

    # Pack-time fused embedding-projection table:
    #   T0[v] = emb_pad[v] @ [W_ih0_fwd | W_ih0_bwd] + [b0_fwd | b0_bwd]
    emb_pad = jnp.zeros((VOCAB_PAD, EP), jnp.float32)
    emb_pad = emb_pad.at[:VOCAB_SIZE, :EMBEDDING_DIM].set(p["embedding"])
    w_ih0 = jnp.concatenate([_pack_ih(p["w_ih_l0_f"], rm0, EP),
                             _pack_ih(p["w_ih_l0_b"], rm0, EP)], axis=1)
    b0 = jnp.concatenate([_pack_b(p["b_l0_f"]), _pack_b(p["b_l0_b"])], axis=1)
    kp["t0"] = (emb_pad @ w_ih0 + b0).astype(jnp.bfloat16)   # (VOCAB_PAD, 2*G4)

    kp["w_hh0_f"] = _pack_hh(p["w_hh_l0_f"]).astype(jnp.bfloat16)
    kp["w_hh0_b"] = _pack_hh(p["w_hh_l0_b"]).astype(jnp.bfloat16)
    kp["w_hh1_f"] = _pack_hh(p["w_hh_l1_f"]).astype(jnp.bfloat16)
    # W_hh_l1_b is unused: the backward direction of layer 1 runs exactly one
    # step from a zero state at t = T-1.

    kp["w_ih1_f"] = _pack_ih(p["w_ih_l1_f"], rm1, 2 * HP).astype(jnp.bfloat16)
    kp["w_ih1_b"] = _pack_ih(p["w_ih_l1_b"], rm1, 2 * HP).astype(jnp.bfloat16)
    kp["b1_f"] = _pack_b(p["b_l1_f"])                         # f32 (1, G4)
    kp["b1_b"] = _pack_b(p["b_l1_b"])

    fcw = jnp.zeros((2 * HP, OUT_PAD), jnp.float32)
    fcw = fcw.at[:HIDDEN_DIM, :OUTPUT_DIM].set(p["fc_w"][:HIDDEN_DIM])
    fcw = fcw.at[HP:HP + HIDDEN_DIM, :OUTPUT_DIM].set(p["fc_w"][HIDDEN_DIM:])
    kp["fc_w"] = fcw
    fcb = jnp.zeros((1, OUT_PAD), jnp.float32)
    kp["fc_b"] = fcb.at[0, :OUTPUT_DIM].set(p["fc_b"])
    return kp


# ---------------------------------------------------------------------------
# Pure-JAX reference (unpadded f32 params) for correctness check
# ---------------------------------------------------------------------------
def _lstm_direction_ref(x_tbd, w_ih, w_hh, b, reverse):
    T, B, _ = x_tbd.shape
    H = w_hh.shape[-1]
    h = jnp.zeros((B, H), jnp.float32)
    c = jnp.zeros((B, H), jnp.float32)
    outs = [None] * T
    order = range(T - 1, -1, -1) if reverse else range(T)
    for t in order:
        g = [x_tbd[t] @ w_ih[k] + h @ w_hh[k] + b[k] for k in range(4)]
        i_g = jax.nn.sigmoid(g[0])
        f_g = jax.nn.sigmoid(g[1])
        g_g = jnp.tanh(g[2])
        o_g = jax.nn.sigmoid(g[3])
        c = f_g * c + i_g * g_g
        h = o_g * jnp.tanh(c)
        outs[t] = h
    return jnp.stack(outs, axis=0)


def simple_lstm_model_ref(token_ids, params):
    emb = jnp.take(params["embedding"], token_ids, axis=0)   # (B, T, E)
    h = jnp.transpose(emb, (1, 0, 2)).astype(jnp.float32)    # (T, B, E)
    for layer in range(NUM_LAYERS):
        fwd = _lstm_direction_ref(h, params[f"w_ih_l{layer}_f"],
                                  params[f"w_hh_l{layer}_f"],
                                  params[f"b_l{layer}_f"], False)
        bwd = _lstm_direction_ref(h, params[f"w_ih_l{layer}_b"],
                                  params[f"w_hh_l{layer}_b"],
                                  params[f"b_l{layer}_b"], True)
        h = jnp.concatenate([fwd, bwd], axis=-1)
    return h[-1] @ params["fc_w"] + params["fc_b"]


# ---------------------------------------------------------------------------
# Deterministic parameter init (true / unpadded shapes, gate order i, f, g, o)
# ---------------------------------------------------------------------------
def init_params(key):
    params = {}
    k = 1.0 / jnp.sqrt(HIDDEN_DIM)
    key, sub = jax.random.split(key)
    params["embedding"] = jax.random.normal(
        sub, (VOCAB_SIZE, EMBEDDING_DIM), jnp.float32)

    for layer in range(NUM_LAYERS):
        d_in = EMBEDDING_DIM if layer == 0 else 2 * HIDDEN_DIM
        for tag in ("f", "b"):
            key, k1, k2, k3 = jax.random.split(key, 4)
            params[f"w_ih_l{layer}_{tag}"] = jax.random.uniform(
                k1, (4, d_in, HIDDEN_DIM), jnp.float32, -k, k)
            params[f"w_hh_l{layer}_{tag}"] = jax.random.uniform(
                k2, (4, HIDDEN_DIM, HIDDEN_DIM), jnp.float32, -k, k)
            # combined b_ih + b_hh
            params[f"b_l{layer}_{tag}"] = jax.random.uniform(
                k3, (4, HIDDEN_DIM), jnp.float32, -2 * k, 2 * k)

    key, k1, k2 = jax.random.split(key, 3)
    fan_in = 2 * HIDDEN_DIM if BIDIRECTIONAL else HIDDEN_DIM
    kf = 1.0 / jnp.sqrt(fan_in)
    params["fc_w"] = jax.random.uniform(
        k1, (fan_in, OUTPUT_DIM), jnp.float32, -kf, kf)
    params["fc_b"] = jax.random.uniform(
        k2, (OUTPUT_DIM,), jnp.float32, -kf, kf)
    return params


# ---------------------------------------------------------------------------
if __name__ == "__main__":
    key = jax.random.PRNGKey(0)
    key, pkey, xkey = jax.random.split(key, 3)

    params = init_params(pkey)
    kparams = pack_params(params)
    token_ids = jax.random.randint(xkey, (BATCH, SEQ_LEN), 0, VOCAB_SIZE,
                                   dtype=jnp.int32)

    out = jax.block_until_ready(simple_lstm_model(token_ids, kparams))
    assert out.shape == (BATCH, OUTPUT_DIM), out.shape

    ref = jax.block_until_ready(simple_lstm_model_ref(token_ids, params))
    # bf16 weights (f32 activations / accumulation) -> loosened tolerance.
    assert jnp.allclose(out, ref, rtol=2e-2, atol=2e-2), (out, ref)

    print("KERNEL_OK")
</pallas_src>

<mosaic_0001>
module attributes {stable_mosaic.version = 11 : i64} {
  func.func @_model_kernel(%arg0: memref<16x128xi32, #tpu.memory_space<vmem>>, %arg1: memref<128x1024xbf16, #tpu.memory_space<vmem>>, %arg2: memref<128x512xbf16, #tpu.memory_space<vmem>>, %arg3: memref<128x512xbf16, #tpu.memory_space<vmem>>, %arg4: memref<256x512xbf16, #tpu.memory_space<vmem>>, %arg5: memref<256x512xbf16, #tpu.memory_space<vmem>>, %arg6: memref<128x512xbf16, #tpu.memory_space<vmem>>, %arg7: memref<1x512xf32, #tpu.memory_space<vmem>>, %arg8: memref<1x512xf32, #tpu.memory_space<vmem>>, %arg9: memref<256x128xf32, #tpu.memory_space<vmem>>, %arg10: memref<1x128xf32, #tpu.memory_space<vmem>>, %arg11: memref<2x128xf32, #tpu.memory_space<vmem>>, %arg12: memref<16x1024xf32, #tpu.memory_space<vmem>>, %arg13: memref<16x256xf32, #tpu.memory_space<vmem>>, %arg14: memref<16x512xf32, #tpu.memory_space<vmem>>) attributes {dimension_semantics = [], scalar_prefetch = 0 : i64, scratch_operands = 3 : i64, tpu.core_type = #tpu.core_type<tc>} {
    %0 = tpu.iota {dimensions = array<i32: 1>} : vector<16x128xi32>
    %c0 = arith.constant 0 : index
    %c0_0 = arith.constant 0 : index
    %1 = vector.load %arg0[%c0, %c0_0] : memref<16x128xi32, #tpu.memory_space<vmem>>, vector<16x128xi32>
    %2 = arith.cmpi eq, %1, %0 : vector<16x128xi32>
    %cst = arith.constant 1.000000e+00 : f32
    %cst_1 = arith.constant 0.000000e+00 : f32
    %3 = vector.broadcast %cst : f32 to vector<16x128xf32>
    %4 = vector.broadcast %cst_1 : f32 to vector<16x128xf32>
    %5 = arith.select %2, %3, %4 : vector<16x128xi1>, vector<16x128xf32>
    %6 = arith.truncf %5 : vector<16x128xf32> to vector<16x128xbf16>
    %c0_2 = arith.constant 0 : index
    %c0_3 = arith.constant 0 : index
    %7 = vector.load %arg1[%c0_2, %c0_3] : memref<128x1024xbf16, #tpu.memory_space<vmem>>, vector<128x1024xbf16>
    %cst_4 = arith.constant dense<0.000000e+00> : vector<16x1024xf32>
    %8 = tpu.matmul %6, %7, %cst_4 {dimension_numbers = #tpu.dot_dimension_numbers<[1], [0], [0], [1], [0, 0, 1, 1], [], []>} : vector<16x128xbf16>, vector<128x1024xbf16>, vector<16x1024xf32> -> vector<16x1024xf32>
    %c0_5 = arith.constant 0 : index
    %c0_6 = arith.constant 0 : index
    %9 = vector.load %arg12[%c0_5, %c0_6] : memref<16x1024xf32, #tpu.memory_space<vmem>>, vector<16x1024xf32>
    tpu.vector_store %arg12[%c0_5, %c0_6], %8 {strides = array<i32>} : memref<16x1024xf32, #tpu.memory_space<vmem>>, vector<16x1024xf32>,
    %cst_7 = arith.constant 0.000000e+00 : f32
    %10 = vector.broadcast %cst_7 : f32 to vector<2x128xf32>
    %cst_8 = arith.constant 0.000000e+00 : f32
    %11 = vector.broadcast %cst_8 : f32 to vector<2x128xf32>
    %cst_9 = arith.constant 0.000000e+00 : f32
    %12 = vector.broadcast %cst_9 : f32 to vector<2x128xf32>
    %cst_10 = arith.constant 0.000000e+00 : f32
    %13 = vector.broadcast %cst_10 : f32 to vector<2x128xf32>
    %c0_11 = arith.constant 0 : index
    %c0_12 = arith.constant 0 : index
    %14 = vector.load %arg12[%c0_11, %c0_12] : memref<16x1024xf32, #tpu.memory_space<vmem>>, vector<2x512xf32>
    %15 = arith.truncf %10 : vector<2x128xf32> to vector<2x128xbf16>
    %c0_13 = arith.constant 0 : index
    %c0_14 = arith.constant 0 : index
    %16 = vector.load %arg2[%c0_13, %c0_14] : memref<128x512xbf16, #tpu.memory_space<vmem>>, vector<128x512xbf16>
    %cst_15 = arith.constant dense<0.000000e+00> : vector<2x512xf32>
    %17 = tpu.matmul %15, %16, %cst_15 {dimension_numbers = #tpu.dot_dimension_numbers<[1], [0], [0], [1], [0, 0, 1, 1], [], []>} : vector<2x128xbf16>, vector<128x512xbf16>, vector<2x512xf32> -> vector<2x512xf32>
    %18 = arith.addf %14, %17 : vector<2x512xf32>
    %c14 = arith.constant 14 : index
    %c512 = arith.constant 512 : index
    %19 = vector.load %arg12[%c14, %c512] : memref<16x1024xf32, #tpu.memory_space<vmem>>, vector<2x512xf32>
    %20 = arith.truncf %12 : vector<2x128xf32> to vector<2x128xbf16>
    %c0_16 = arith.constant 0 : index
    %c0_17 = arith.constant 0 : index
    %21 = vector.load %arg3[%c0_16, %c0_17] : memref<128x512xbf16, #tpu.memory_space<vmem>>, vector<128x512xbf16>
    %cst_18 = arith.constant dense<0.000000e+00> : vector<2x512xf32>
    %22 = tpu.matmul %20, %21, %cst_18 {dimension_numbers = #tpu.dot_dimension_numbers<[1], [0], [0], [1], [0, 0, 1, 1], [], []>} : vector<2x128xbf16>, vector<128x512xbf16>, vector<2x512xf32> -> vector<2x512xf32>
    %23 = arith.addf %19, %22 : vector<2x512xf32>
    %24 = vector.extract_strided_slice %18 {offsets = [0, 0], sizes = [2, 384], strides = [1, 1]} : vector<2x512xf32> to vector<2x384xf32>
    %25 = arith.negf %24 : vector<2x384xf32>
    %26 = math.exp %25 : vector<2x384xf32>
    %cst_19 = arith.constant 1.000000e+00 : f32
    %27 = vector.broadcast %cst_19 : f32 to vector<2x384xf32>
    %28 = arith.addf %27, %26 : vector<2x384xf32>
    %29 = arith.divf %27, %28 : vector<2x384xf32>
    %30 = vector.extract_strided_slice %29 {offsets = [0, 0], sizes = [2, 128], strides = [1, 1]} : vector<2x384xf32> to vector<2x128xf32>
    %31 = vector.extract_strided_slice %29 {offsets = [0, 128], sizes = [2, 128], strides = [1, 1]} : vector<2x384xf32> to vector<2x128xf32>
    %32 = vector.extract_strided_slice %29 {offsets = [0, 256], sizes = [2, 128], strides = [1, 1]} : vector<2x384xf32> to vector<2x128xf32>
    %33 = vector.extract_strided_slice %18 {offsets = [0, 384], sizes = [2, 128], strides = [1, 1]} : vector<2x512xf32> to vector<2x128xf32>
    %34 = math.tanh %33 : vector<2x128xf32>
    %35 = arith.mulf %31, %11 : vector<2x128xf32>
    %36 = arith.mulf %30, %34 : vector<2x128xf32>
    %37 = arith.addf %35, %36 : vector<2x128xf32>
    %38 = math.tanh %37 : vector<2x128xf32>
    %39 = arith.mulf %32, %38 : vector<2x128xf32>
    %40 = vector.extract_strided_slice %23 {offsets = [0, 0], sizes = [2, 384], strides = [1, 1]} : vector<2x512xf32> to vector<2x384xf32>
    %41 = arith.negf %40 : vector<2x384xf32>
    %42 = math.exp %41 : vector<2x384xf32>
    %cst_20 = arith.constant 1.000000e+00 : f32
    %43 = vector.broadcast %cst_20 : f32 to vector<2x384xf32>
    %44 = arith.addf %43, %42 : vector<2x384xf32>
    %45 = arith.divf %43, %44 : vector<2x384xf32>
    %46 = vector.extract_strided_slice %45 {offsets = [0, 0], sizes = [2, 128], strides = [1, 1]} : vector<2x384xf32> to vector<2x128xf32>
    %47 = vector.extract_strided_slice %45 {offsets = [0, 128], sizes = [2, 128], strides = [1, 1]} : vector<2x384xf32> to vector<2x128xf32>
    %48 = vector.extract_strided_slice %45 {offsets = [0, 256], sizes = [2, 128], strides = [1, 1]} : vector<2x384xf32> to vector<2x128xf32>
    %49 = vector.extract_strided_slice %23 {offsets = [0, 384], sizes = [2, 128], strides = [1, 1]} : vector<2x512xf32> to vector<2x128xf32>
    %50 = math.tanh %49 : vector<2x128xf32>
    %51 = arith.mulf %47, %13 : vector<2x128xf32>
    %52 = arith.mulf %46, %50 : vector<2x128xf32>
    %53 = arith.addf %51, %52 : vector<2x128xf32>
    %54 = math.tanh %53 : vector<2x128xf32>
    %55 = arith.mulf %48, %54 : vector<2x128xf32>
    %c0_21 = arith.constant 0 : index
    %c0_22 = arith.constant 0 : index
    %56 = vector.load %arg13[%c0_21, %c0_22] : memref<16x256xf32, #tpu.memory_space<vmem>>, vector<2x128xf32>
    tpu.vector_store %arg13[%c0_21, %c0_22], %39 {strides = array<i32>} : memref<16x256xf32, #tpu.memory_space<vmem>>, vector<2x128xf32>,
    %c14_23 = arith.constant 14 : index
    %c128 = arith.constant 128 : index
    %57 = vector.load %arg13[%c14_23, %c128] : memref<16x256xf32, #tpu.memory_space<vmem>>, vector<2x128xf32>
    tpu.vector_store %arg13[%c14_23, %c128], %55 {strides = array<i32>} : memref<16x256xf32, #tpu.memory_space<vmem>>, vector<2x128xf32>,
    %c2 = arith.constant 2 : index
    %c0_24 = arith.constant 0 : index
    %58 = vector.load %arg12[%c2, %c0_24] : memref<16x1024xf32, #tpu.memory_space<vmem>>, vector<2x512xf32>
    %59 = arith.truncf %39 : vector<2x128xf32> to vector<2x128xbf16>
    %c0_25 = arith.constant 0 : index
    %c0_26 = arith.constant 0 : index
    %60 = vector.load %arg2[%c0_25, %c0_26] : memref<128x512xbf16, #tpu.memory_space<vmem>>, vector<128x512xbf16>
    %cst_27 = arith.constant dense<0.000000e+00> : vector<2x512xf32>
    %61 = tpu.matmul %59, %60, %cst_27 {dimension_numbers = #tpu.dot_dimension_numbers<[1], [0], [0], [1], [0, 0, 1, 1], [], []>} : vector<2x128xbf16>, vector<128x512xbf16>, vector<2x512xf32> -> vector<2x512xf32>
    %62 = arith.addf %58, %61 : vector<2x512xf32>
    %c12 = arith.constant 12 : index
    %c512_28 = arith.constant 512 : index
    %63 = vector.load %arg12[%c12, %c512_28] : memref<16x1024xf32, #tpu.memory_space<vmem>>, vector<2x512xf32>
    %64 = arith.truncf %55 : vector<2x128xf32> to vector<2x128xbf16>
    %c0_29 = arith.constant 0 : index
    %c0_30 = arith.constant 0 : index
    %65 = vector.load %arg3[%c0_29, %c0_30] : memref<128x512xbf16, #tpu.memory_space<vmem>>, vector<128x512xbf16>
    %cst_31 = arith.constant dense<0.000000e+00> : vector<2x512xf32>
    %66 = tpu.matmul %64, %65, %cst_31 {dimension_numbers = #tpu.dot_dimension_numbers<[1], [0], [0], [1], [0, 0, 1, 1], [], []>} : vector<2x128xbf16>, vector<128x512xbf16>, vector<2x512xf32> -> vector<2x512xf32>
    %67 = arith.addf %63, %66 : vector<2x512xf32>
    %68 = vector.extract_strided_slice %62 {offsets = [0, 0], sizes = [2, 384], strides = [1, 1]} : vector<2x512xf32> to vector<2x384xf32>
    %69 = arith.negf %68 : vector<2x384xf32>
    %70 = math.exp %69 : vector<2x384xf32>
    %cst_32 = arith.constant 1.000000e+00 : f32
    %71 = vector.broadcast %cst_32 : f32 to vector<2x384xf32>
    %72 = arith.addf %71, %70 : vector<2x384xf32>
    %73 = arith.divf %71, %72 : vector<2x384xf32>
    %74 = vector.extract_strided_slice %73 {offsets = [0, 0], sizes = [2, 128], strides = [1, 1]} : vector<2x384xf32> to vector<2x128xf32>
    %75 = vector.extract_strided_slice %73 {offsets = [0, 128], sizes = [2, 128], strides = [1, 1]} : vector<2x384xf32> to vector<2x128xf32>
    %76 = vector.extract_strided_slice %73 {offsets = [0, 256], sizes = [2, 128], strides = [1, 1]} : vector<2x384xf32> to vector<2x128xf32>
    %77 = vector.extract_strided_slice %62 {offsets = [0, 384], sizes = [2, 128], strides = [1, 1]} : vector<2x512xf32> to vector<2x128xf32>
    %78 = math.tanh %77 : vector<2x128xf32>
    %79 = arith.mulf %75, %37 : vector<2x128xf32>
    %80 = arith.mulf %74, %78 : vector<2x128xf32>
    %81 = arith.addf %79, %80 : vector<2x128xf32>
    %82 = math.tanh %81 : vector<2x128xf32>
    %83 = arith.mulf %76, %82 : vector<2x128xf32>
    %84 = vector.extract_strided_slice %67 {offsets = [0, 0], sizes = [2, 384], strides = [1, 1]} : vector<2x512xf32> to vector<2x384xf32>
    %85 = arith.negf %84 : vector<2x384xf32>
    %86 = math.exp %85 : vector<2x384xf32>
    %cst_33 = arith.constant 1.000000e+00 : f32
    %87 = vector.broadcast %cst_33 : f32 to vector<2x384xf32>
    %88 = arith.addf %87, %86 : vector<2x384xf32>
    %89 = arith.divf %87, %88 : vector<2x384xf32>
    %90 = vector.extract_strided_slice %89 {offsets = [0, 0], sizes = [2, 128], strides = [1, 1]} : vector<2x384xf32> to vector<2x128xf32>
    %91 = vector.extract_strided_slice %89 {offsets = [0, 128], sizes = [2, 128], strides = [1, 1]} : vector<2x384xf32> to vector<2x128xf32>
    %92 = vector.extract_strided_slice %89 {offsets = [0, 256], sizes = [2, 128], strides = [1, 1]} : vector<2x384xf32> to vector<2x128xf32>
    %93 = vector.extract_strided_slice %67 {offsets = [0, 384], sizes = [2, 128], strides = [1, 1]} : vector<2x512xf32> to vector<2x128xf32>
    %94 = math.tanh %93 : vector<2x128xf32>
    %95 = arith.mulf %91, %53 : vector<2x128xf32>
    %96 = arith.mulf %90, %94 : vector<2x128xf32>
    %97 = arith.addf %95, %96 : vector<2x128xf32>
    %98 = math.tanh %97 : vector<2x128xf32>
    %99 = arith.mulf %92, %98 : vector<2x128xf32>
    %c2_34 = arith.constant 2 : index
    %c0_35 = arith.constant 0 : index
    %100 = vector.load %arg13[%c2_34, %c0_35] : memref<16x256xf32, #tpu.memory_space<vmem>>, vector<2x128xf32>
    tpu.vector_store %arg13[%c2_34, %c0_35], %83 {strides = array<i32>} : memref<16x256xf32, #tpu.memory_space<vmem>>, vector<2x128xf32>,
    %c12_36 = arith.constant 12 : index
    %c128_37 = arith.constant 128 : index
    %101 = vector.load %arg13[%c12_36, %c128_37] : memref<16x256xf32, #tpu.memory_space<vmem>>, vector<2x128xf32>
    tpu.vector_store %arg13[%c12_36, %c128_37], %99 {strides = array<i32>} : memref<16x256xf32, #tpu.memory_space<vmem>>, vector<2x128xf32>,
    %c4 = arith.constant 4 : index
    %c0_38 = arith.constant 0 : index
    %102 = vector.load %arg12[%c4, %c0_38] : memref<16x1024xf32, #tpu.memory_space<vmem>>, vector<2x512xf32>
    %103 = arith.truncf %83 : vector<2x128xf32> to vector<2x128xbf16>
    %c0_39 = arith.constant 0 : index
    %c0_40 = arith.constant 0 : index
    %104 = vector.load %arg2[%c0_39, %c0_40] : memref<128x512xbf16, #tpu.memory_space<vmem>>, vector<128x512xbf16>
    %cst_41 = arith.constant dense<0.000000e+00> : vector<2x512xf32>
    %105 = tpu.matmul %103, %104, %cst_41 {dimension_numbers = #tpu.dot_dimension_numbers<[1], [0], [0], [1], [0, 0, 1, 1], [], []>} : vector<2x128xbf16>, vector<128x512xbf16>, vector<2x512xf32> -> vector<2x512xf32>
    %106 = arith.addf %102, %105 : vector<2x512xf32>
    %c10 = arith.constant 10 : index
    %c512_42 = arith.constant 512 : index
    %107 = vector.load %arg12[%c10, %c512_42] : memref<16x1024xf32, #tpu.memory_space<vmem>>, vector<2x512xf32>
    %108 = arith.truncf %99 : vector<2x128xf32> to vector<2x128xbf16>
    %c0_43 = arith.constant 0 : index
    %c0_44 = arith.constant 0 : index
    %109 = vector.load %arg3[%c0_43, %c0_44] : memref<128x512xbf16, #tpu.memory_space<vmem>>, vector<128x512xbf16>
    %cst_45 = arith.constant dense<0.000000e+00> : vector<2x512xf32>
    %110 = tpu.matmul %108, %109, %cst_45 {dimension_numbers = #tpu.dot_dimension_numbers<[1], [0], [0], [1], [0, 0, 1, 1], [], []>} : vector<2x128xbf16>, vector<128x512xbf16>, vector<2x512xf32> -> vector<2x512xf32>
    %111 = arith.addf %107, %110 : vector<2x512xf32>
    %112 = vector.extract_strided_slice %106 {offsets = [0, 0], sizes = [2, 384], strides = [1, 1]} : vector<2x512xf32> to vector<2x384xf32>
    %113 = arith.negf %112 : vector<2x384xf32>
    %114 = math.exp %113 : vector<2x384xf32>
    %cst_46 = arith.constant 1.000000e+00 : f32
    %115 = vector.broadcast %cst_46 : f32 to vector<2x384xf32>
    %116 = arith.addf %115, %114 : vector<2x384xf32>
    %117 = arith.divf %115, %116 : vector<2x384xf32>
    %118 = vector.extract_strided_slice %117 {offsets = [0, 0], sizes = [2, 128], strides = [1, 1]} : vector<2x384xf32> to vector<2x128xf32>
    %119 = vector.extract_strided_slice %117 {offsets = [0, 128], sizes = [2, 128], strides = [1, 1]} : vector<2x384xf32> to vector<2x128xf32>
    %120 = vector.extract_strided_slice %117 {offsets = [0, 256], sizes = [2, 128], strides = [1, 1]} : vector<2x384xf32> to vector<2x128xf32>
    %121 = vector.extract_strided_slice %106 {offsets = [0, 384], sizes = [2, 128], strides = [1, 1]} : vector<2x512xf32> to vector<2x128xf32>
    %122 = math.tanh %121 : vector<2x128xf32>
    %123 = arith.mulf %119, %81 : vector<2x128xf32>
    %124 = arith.mulf %118, %122 : vector<2x128xf32>
    %125 = arith.addf %123, %124 : vector<2x128xf32>
    %126 = math.tanh %125 : vector<2x128xf32>
    %127 = arith.mulf %120, %126 : vector<2x128xf32>
    %128 = vector.extract_strided_slice %111 {offsets = [0, 0], sizes = [2, 384], strides = [1, 1]} : vector<2x512xf32> to vector<2x384xf32>
    %129 = arith.negf %128 : vector<2x384xf32>
    %130 = math.exp %129 : vector<2x384xf32>
    %cst_47 = arith.constant 1.000000e+00 : f32
    %131 = vector.broadcast %cst_47 : f32 to vector<2x384xf32>
    %132 = arith.addf %131, %130 : vector<2x384xf32>
    %133 = arith.divf %131, %132 : vector<2x384xf32>
    %134 = vector.extract_strided_slice %133 {offsets = [0, 0], sizes = [2, 128], strides = [1, 1]} : vector<2x384xf32> to vector<2x128xf32>
    %135 = vector.extract_strided_slice %133 {offsets = [0, 128], sizes = [2, 128], strides = [1, 1]} : vector<2x384xf32> to vector<2x128xf32>
    %136 = vector.extract_strided_slice %133 {offsets = [0, 256], sizes = [2, 128], strides = [1, 1]} : vector<2x384xf32> to vector<2x128xf32>
    %137 = vector.extract_strided_slice %111 {offsets = [0, 384], sizes = [2, 128], strides = [1, 1]} : vector<2x512xf32> to vector<2x128xf32>
    %138 = math.tanh %137 : vector<2x128xf32>
    %139 = arith.mulf %135, %97 : vector<2x128xf32>
    %140 = arith.mulf %134, %138 : vector<2x128xf32>
    %141 = arith.addf %139, %140 : vector<2x128xf32>
    %142 = math.tanh %141 : vector<2x128xf32>
    %143 = arith.mulf %136, %142 : vector<2x128xf32>
    %c4_48 = arith.constant 4 : index
    %c0_49 = arith.constant 0 : index
    %144 = vector.load %arg13[%c4_48, %c0_49] : memref<16x256xf32, #tpu.memory_space<vmem>>, vector<2x128xf32>
    tpu.vector_store %arg13[%c4_48, %c0_49], %127 {strides = array<i32>} : memref<16x256xf32, #tpu.memory_space<vmem>>, vector<2x128xf32>,
    %c10_50 = arith.constant 10 : index
    %c128_51 = arith.constant 128 : index
    %145 = vector.load %arg13[%c10_50, %c128_51] : memref<16x256xf32, #tpu.memory_space<vmem>>, vector<2x128xf32>
    tpu.vector_store %arg13[%c10_50, %c128_51], %143 {strides = array<i32>} : memref<16x256xf32, #tpu.memory_space<vmem>>, vector<2x128xf32>,
    %c6 = arith.constant 6 : index
    %c0_52 = arith.constant 0 : index
    %146 = vector.load %arg12[%c6, %c0_52] : memref<16x1024xf32, #tpu.memory_space<vmem>>, vector<2x512xf32>
    %147 = arith.truncf %127 : vector<2x128xf32> to vector<2x128xbf16>
    %c0_53 = arith.constant 0 : index
    %c0_54 = arith.constant 0 : index
    %148 = vector.load %arg2[%c0_53, %c0_54] : memref<128x512xbf16, #tpu.memory_space<vmem>>, vector<128x512xbf16>
    %cst_55 = arith.constant dense<0.000000e+00> : vector<2x512xf32>
    %149 = tpu.matmul %147, %148, %cst_55 {dimension_numbers = #tpu.dot_dimension_numbers<[1], [0], [0], [1], [0, 0, 1, 1], [], []>} : vector<2x128xbf16>, vector<128x512xbf16>, vector<2x512xf32> -> vector<2x512xf32>
    %150 = arith.addf %146, %149 : vector<2x512xf32>
    %c8 = arith.constant 8 : index
    %c512_56 = arith.constant 512 : index
    %151 = vector.load %arg12[%c8, %c512_56] : memref<16x1024xf32, #tpu.memory_space<vmem>>, vector<2x512xf32>
    %152 = arith.truncf %143 : vector<2x128xf32> to vector<2x128xbf16>
    %c0_57 = arith.constant 0 : index
    %c0_58 = arith.constant 0 : index
    %153 = vector.load %arg3[%c0_57, %c0_58] : memref<128x512xbf16, #tpu.memory_space<vmem>>, vector<128x512xbf16>
    %cst_59 = arith.constant dense<0.000000e+00> : vector<2x512xf32>
    %154 = tpu.matmul %152, %153, %cst_59 {dimension_numbers = #tpu.dot_dimension_numbers<[1], [0], [0], [1], [0, 0, 1, 1], [], []>} : vector<2x128xbf16>, vector<128x512xbf16>, vector<2x512xf32> -> vector<2x512xf32>
    %155 = arith.addf %151, %154 : vector<2x512xf32>
    %156 = vector.extract_strided_slice %150 {offsets = [0, 0], sizes = [2, 384], strides = [1, 1]} : vector<2x512xf32> to vector<2x384xf32>
    %157 = arith.negf %156 : vector<2x384xf32>
    %158 = math.exp %157 : vector<2x384xf32>
    %cst_60 = arith.constant 1.000000e+00 : f32
    %159 = vector.broadcast %cst_60 : f32 to vector<2x384xf32>
    %160 = arith.addf %159, %158 : vector<2x384xf32>
    %161 = arith.divf %159, %160 : vector<2x384xf32>
    %162 = vector.extract_strided_slice %161 {offsets = [0, 0], sizes = [2, 128], strides = [1, 1]} : vector<2x384xf32> to vector<2x128xf32>
    %163 = vector.extract_strided_slice %161 {offsets = [0, 128], sizes = [2, 128], strides = [1, 1]} : vector<2x384xf32> to vector<2x128xf32>
    %164 = vector.extract_strided_slice %161 {offsets = [0, 256], sizes = [2, 128], strides = [1, 1]} : vector<2x384xf32> to vector<2x128xf32>
    %165 = vector.extract_strided_slice %150 {offsets = [0, 384], sizes = [2, 128], strides = [1, 1]} : vector<2x512xf32> to vector<2x128xf32>
    %166 = math.tanh %165 : vector<2x128xf32>
    %167 = arith.mulf %163, %125 : vector<2x128xf32>
    %168 = arith.mulf %162, %166 : vector<2x128xf32>
    %169 = arith.addf %167, %168 : vector<2x128xf32>
    %170 = math.tanh %169 : vector<2x128xf32>
    %171 = arith.mulf %164, %170 : vector<2x128xf32>
    %172 = vector.extract_strided_slice %155 {offsets = [0, 0], sizes = [2, 384], strides = [1, 1]} : vector<2x512xf32> to vector<2x384xf32>
    %173 = arith.negf %172 : vector<2x384xf32>
    %174 = math.exp %173 : vector<2x384xf32>
    %cst_61 = arith.constant 1.000000e+00 : f32
    %175 = vector.broadcast %cst_61 : f32 to vector<2x384xf32>
    %176 = arith.addf %175, %174 : vector<2x384xf32>
    %177 = arith.divf %175, %176 : vector<2x384xf32>
    %178 = vector.extract_strided_slice %177 {offsets = [0, 0], sizes = [2, 128], strides = [1, 1]} : vector<2x384xf32> to vector<2x128xf32>
    %179 = vector.extract_strided_slice %177 {offsets = [0, 128], sizes = [2, 128], strides = [1, 1]} : vector<2x384xf32> to vector<2x128xf32>
    %180 = vector.extract_strided_slice %177 {offsets = [0, 256], sizes = [2, 128], strides = [1, 1]} : vector<2x384xf32> to vector<2x128xf32>
    %181 = vector.extract_strided_slice %155 {offsets = [0, 384], sizes = [2, 128], strides = [1, 1]} : vector<2x512xf32> to vector<2x128xf32>
    %182 = math.tanh %181 : vector<2x128xf32>
    %183 = arith.mulf %179, %141 : vector<2x128xf32>
    %184 = arith.mulf %178, %182 : vector<2x128xf32>
    %185 = arith.addf %183, %184 : vector<2x128xf32>
    %186 = math.tanh %185 : vector<2x128xf32>
    %187 = arith.mulf %180, %186 : vector<2x128xf32>
    %c6_62 = arith.constant 6 : index
    %c0_63 = arith.constant 0 : index
    %188 = vector.load %arg13[%c6_62, %c0_63] : memref<16x256xf32, #tpu.memory_space<vmem>>, vector<2x128xf32>
    tpu.vector_store %arg13[%c6_62, %c0_63], %171 {strides = array<i32>} : memref<16x256xf32, #tpu.memory_space<vmem>>, vector<2x128xf32>,
    %c8_64 = arith.constant 8 : index
    %c128_65 = arith.constant 128 : index
    %189 = vector.load %arg13[%c8_64, %c128_65] : memref<16x256xf32, #tpu.memory_space<vmem>>, vector<2x128xf32>
    tpu.vector_store %arg13[%c8_64, %c128_65], %187 {strides = array<i32>} : memref<16x256xf32, #tpu.memory_space<vmem>>, vector<2x128xf32>,
    %c8_66 = arith.constant 8 : index
    %c0_67 = arith.constant 0 : index
    %190 = vector.load %arg12[%c8_66, %c0_67] : memref<16x1024xf32, #tpu.memory_space<vmem>>, vector<2x512xf32>
    %191 = arith.truncf %171 : vector<2x128xf32> to vector<2x128xbf16>
    %c0_68 = arith.constant 0 : index
    %c0_69 = arith.constant 0 : index
    %192 = vector.load %arg2[%c0_68, %c0_69] : memref<128x512xbf16, #tpu.memory_space<vmem>>, vector<128x512xbf16>
    %cst_70 = arith.constant dense<0.000000e+00> : vector<2x512xf32>
    %193 = tpu.matmul %191, %192, %cst_70 {dimension_numbers = #tpu.dot_dimension_numbers<[1], [0], [0], [1], [0, 0, 1, 1], [], []>} : vector<2x128xbf16>, vector<128x512xbf16>, vector<2x512xf32> -> vector<2x512xf32>
    %194 = arith.addf %190, %193 : vector<2x512xf32>
    %c6_71 = arith.constant 6 : index
    %c512_72 = arith.constant 512 : index
    %195 = vector.load %arg12[%c6_71, %c512_72] : memref<16x1024xf32, #tpu.memory_space<vmem>>, vector<2x512xf32>
    %196 = arith.truncf %187 : vector<2x128xf32> to vector<2x128xbf16>
    %c0_73 = arith.constant 0 : index
    %c0_74 = arith.constant 0 : index
    %197 = vector.load %arg3[%c0_73, %c0_74] : memref<128x512xbf16, #tpu.memory_space<vmem>>, vector<128x512xbf16>
    %cst_75 = arith.constant dense<0.000000e+00> : vector<2x512xf32>
    %198 = tpu.matmul %196, %197, %cst_75 {dimension_numbers = #tpu.dot_dimension_numbers<[1], [0], [0], [1], [0, 0, 1, 1], [], []>} : vector<2x128xbf16>, vector<128x512xbf16>, vector<2x512xf32> -> vector<2x512xf32>
    %199 = arith.addf %195, %198 : vector<2x512xf32>
    %200 = vector.extract_strided_slice %194 {offsets = [0, 0], sizes = [2, 384], strides = [1, 1]} : vector<2x512xf32> to vector<2x384xf32>
    %201 = arith.negf %200 : vector<2x384xf32>
    %202 = math.exp %201 : vector<2x384xf32>
    %cst_76 = arith.constant 1.000000e+00 : f32
    %203 = vector.broadcast %cst_76 : f32 to vector<2x384xf32>
    %204 = arith.addf %203, %202 : vector<2x384xf32>
    %205 = arith.divf %203, %204 : vector<2x384xf32>
    %206 = vector.extract_strided_slice %205 {offsets = [0, 0], sizes = [2, 128], strides = [1, 1]} : vector<2x384xf32> to vector<2x128xf32>
    %207 = vector.extract_strided_slice %205 {offsets = [0, 128], sizes = [2, 128], strides = [1, 1]} : vector<2x384xf32> to vector<2x128xf32>
    %208 = vector.extract_strided_slice %205 {offsets = [0, 256], sizes = [2, 128], strides = [1, 1]} : vector<2x384xf32> to vector<2x128xf32>
    %209 = vector.extract_strided_slice %194 {offsets = [0, 384], sizes = [2, 128], strides = [1, 1]} : vector<2x512xf32> to vector<2x128xf32>
    %210 = math.tanh %209 : vector<2x128xf32>
    %211 = arith.mulf %207, %169 : vector<2x128xf32>
    %212 = arith.mulf %206, %210 : vector<2x128xf32>
    %213 = arith.addf %211, %212 : vector<2x128xf32>
    %214 = math.tanh %213 : vector<2x128xf32>
    %215 = arith.mulf %208, %214 : vector<2x128xf32>
    %216 = vector.extract_strided_slice %199 {offsets = [0, 0], sizes = [2, 384], strides = [1, 1]} : vector<2x512xf32> to vector<2x384xf32>
    %217 = arith.negf %216 : vector<2x384xf32>
    %218 = math.exp %217 : vector<2x384xf32>
    %cst_77 = arith.constant 1.000000e+00 : f32
    %219 = vector.broadcast %cst_77 : f32 to vector<2x384xf32>
    %220 = arith.addf %219, %218 : vector<2x384xf32>
    %221 = arith.divf %219, %220 : vector<2x384xf32>
    %222 = vector.extract_strided_slice %221 {offsets = [0, 0], sizes = [2, 128], strides = [1, 1]} : vector<2x384xf32> to vector<2x128xf32>
    %223 = vector.extract_strided_slice %221 {offsets = [0, 128], sizes = [2, 128], strides = [1, 1]} : vector<2x384xf32> to vector<2x128xf32>
    %224 = vector.extract_strided_slice %221 {offsets = [0, 256], sizes = [2, 128], strides = [1, 1]} : vector<2x384xf32> to vector<2x128xf32>
    %225 = vector.extract_strided_slice %199 {offsets = [0, 384], sizes = [2, 128], strides = [1, 1]} : vector<2x512xf32> to vector<2x128xf32>
    %226 = math.tanh %225 : vector<2x128xf32>
    %227 = arith.mulf %223, %185 : vector<2x128xf32>
    %228 = arith.mulf %222, %226 : vector<2x128xf32>
    %229 = arith.addf %227, %228 : vector<2x128xf32>
    %230 = math.tanh %229 : vector<2x128xf32>
    %231 = arith.mulf %224, %230 : vector<2x128xf32>
    %c8_78 = arith.constant 8 : index
    %c0_79 = arith.constant 0 : index
    %232 = vector.load %arg13[%c8_78, %c0_79] : memref<16x256xf32, #tpu.memory_space<vmem>>, vector<2x128xf32>
    tpu.vector_store %arg13[%c8_78, %c0_79], %215 {strides = array<i32>} : memref<16x256xf32, #tpu.memory_space<vmem>>, vector<2x128xf32>,
    %c6_80 = arith.constant 6 : index
    %c128_81 = arith.constant 128 : index
    %233 = vector.load %arg13[%c6_80, %c128_81] : memref<16x256xf32, #tpu.memory_space<vmem>>, vector<2x128xf32>
    tpu.vector_store %arg13[%c6_80, %c128_81], %231 {strides = array<i32>} : memref<16x256xf32, #tpu.memory_space<vmem>>, vector<2x128xf32>,
    %c10_82 = arith.constant 10 : index
    %c0_83 = arith.constant 0 : index
    %234 = vector.load %arg12[%c10_82, %c0_83] : memref<16x1024xf32, #tpu.memory_space<vmem>>, vector<2x512xf32>
    %235 = arith.truncf %215 : vector<2x128xf32> to vector<2x128xbf16>
    %c0_84 = arith.constant 0 : index
    %c0_85 = arith.constant 0 : index
    %236 = vector.load %arg2[%c0_84, %c0_85] : memref<128x512xbf16, #tpu.memory_space<vmem>>, vector<128x512xbf16>
    %cst_86 = arith.constant dense<0.000000e+00> : vector<2x512xf32>
    %237 = tpu.matmul %235, %236, %cst_86 {dimension_numbers = #tpu.dot_dimension_numbers<[1], [0], [0], [1], [0, 0, 1, 1], [], []>} : vector<2x128xbf16>, vector<128x512xbf16>, vector<2x512xf32> -> vector<2x512xf32>
    %238 = arith.addf %234, %237 : vector<2x512xf32>
    %c4_87 = arith.constant 4 : index
    %c512_88 = arith.constant 512 : index
    %239 = vector.load %arg12[%c4_87, %c512_88] : memref<16x1024xf32, #tpu.memory_space<vmem>>, vector<2x512xf32>
    %240 = arith.truncf %231 : vector<2x128xf32> to vector<2x128xbf16>
    %c0_89 = arith.constant 0 : index
    %c0_90 = arith.constant 0 : index
    %241 = vector.load %arg3[%c0_89, %c0_90] : memref<128x512xbf16, #tpu.memory_space<vmem>>, vector<128x512xbf16>
    %cst_91 = arith.constant dense<0.000000e+00> : vector<2x512xf32>
    %242 = tpu.matmul %240, %241, %cst_91 {dimension_numbers = #tpu.dot_dimension_numbers<[1], [0], [0], [1], [0, 0, 1, 1], [], []>} : vector<2x128xbf16>, vector<128x512xbf16>, vector<2x512xf32> -> vector<2x512xf32>
    %243 = arith.addf %239, %242 : vector<2x512xf32>
    %244 = vector.extract_strided_slice %238 {offsets = [0, 0], sizes = [2, 384], strides = [1, 1]} : vector<2x512xf32> to vector<2x384xf32>
    %245 = arith.negf %244 : vector<2x384xf32>
    %246 = math.exp %245 : vector<2x384xf32>
    %cst_92 = arith.constant 1.000000e+00 : f32
    %247 = vector.broadcast %cst_92 : f32 to vector<2x384xf32>
    %248 = arith.addf %247, %246 : vector<2x384xf32>
    %249 = arith.divf %247, %248 : vector<2x384xf32>
    %250 = vector.extract_strided_slice %249 {offsets = [0, 0], sizes = [2, 128], strides = [1, 1]} : vector<2x384xf32> to vector<2x128xf32>
    %251 = vector.extract_strided_slice %249 {offsets = [0, 128], sizes = [2, 128], strides = [1, 1]} : vector<2x384xf32> to vector<2x128xf32>
    %252 = vector.extract_strided_slice %249 {offsets = [0, 256], sizes = [2, 128], strides = [1, 1]} : vector<2x384xf32> to vector<2x128xf32>
    %253 = vector.extract_strided_slice %238 {offsets = [0, 384], sizes = [2, 128], strides = [1, 1]} : vector<2x512xf32> to vector<2x128xf32>
    %254 = math.tanh %253 : vector<2x128xf32>
    %255 = arith.mulf %251, %213 : vector<2x128xf32>
    %256 = arith.mulf %250, %254 : vector<2x128xf32>
    %257 = arith.addf %255, %256 : vector<2x128xf32>
    %258 = math.tanh %257 : vector<2x128xf32>
    %259 = arith.mulf %252, %258 : vector<2x128xf32>
    %260 = vector.extract_strided_slice %243 {offsets = [0, 0], sizes = [2, 384], strides = [1, 1]} : vector<2x512xf32> to vector<2x384xf32>
    %261 = arith.negf %260 : vector<2x384xf32>
    %262 = math.exp %261 : vector<2x384xf32>
    %cst_93 = arith.constant 1.000000e+00 : f32
    %263 = vector.broadcast %cst_93 : f32 to vector<2x384xf32>
    %264 = arith.addf %263, %262 : vector<2x384xf32>
    %265 = arith.divf %263, %264 : vector<2x384xf32>
    %266 = vector.extract_strided_slice %265 {offsets = [0, 0], sizes = [2, 128], strides = [1, 1]} : vector<2x384xf32> to vector<2x128xf32>
    %267 = vector.extract_strided_slice %265 {offsets = [0, 128], sizes = [2, 128], strides = [1, 1]} : vector<2x384xf32> to vector<2x128xf32>
    %268 = vector.extract_strided_slice %265 {offsets = [0, 256], sizes = [2, 128], strides = [1, 1]} : vector<2x384xf32> to vector<2x128xf32>
    %269 = vector.extract_strided_slice %243 {offsets = [0, 384], sizes = [2, 128], strides = [1, 1]} : vector<2x512xf32> to vector<2x128xf32>
    %270 = math.tanh %269 : vector<2x128xf32>
    %271 = arith.mulf %267, %229 : vector<2x128xf32>
    %272 = arith.mulf %266, %270 : vector<2x128xf32>
    %273 = arith.addf %271, %272 : vector<2x128xf32>
    %274 = math.tanh %273 : vector<2x128xf32>
    %275 = arith.mulf %268, %274 : vector<2x128xf32>
    %c10_94 = arith.constant 10 : index
    %c0_95 = arith.constant 0 : index
    %276 = vector.load %arg13[%c10_94, %c0_95] : memref<16x256xf32, #tpu.memory_space<vmem>>, vector<2x128xf32>
    tpu.vector_store %arg13[%c10_94, %c0_95], %259 {strides = array<i32>} : memref<16x256xf32, #tpu.memory_space<vmem>>, vector<2x128xf32>,
    %c4_96 = arith.constant 4 : index
    %c128_97 = arith.constant 128 : index
    %277 = vector.load %arg13[%c4_96, %c128_97] : memref<16x256xf32, #tpu.memory_space<vmem>>, vector<2x128xf32>
    tpu.vector_store %arg13[%c4_96, %c128_97], %275 {strides = array<i32>} : memref<16x256xf32, #tpu.memory_space<vmem>>, vector<2x128xf32>,
    %c12_98 = arith.constant 12 : index
    %c0_99 = arith.constant 0 : index
    %278 = vector.load %arg12[%c12_98, %c0_99] : memref<16x1024xf32, #tpu.memory_space<vmem>>, vector<2x512xf32>
    %279 = arith.truncf %259 : vector<2x128xf32> to vector<2x128xbf16>
    %c0_100 = arith.constant 0 : index
    %c0_101 = arith.constant 0 : index
    %280 = vector.load %arg2[%c0_100, %c0_101] : memref<128x512xbf16, #tpu.memory_space<vmem>>, vector<128x512xbf16>
    %cst_102 = arith.constant dense<0.000000e+00> : vector<2x512xf32>
    %281 = tpu.matmul %279, %280, %cst_102 {dimension_numbers = #tpu.dot_dimension_numbers<[1], [0], [0], [1], [0, 0, 1, 1], [], []>} : vector<2x128xbf16>, vector<128x512xbf16>, vector<2x512xf32> -> vector<2x512xf32>
    %282 = arith.addf %278, %281 : vector<2x512xf32>
    %c2_103 = arith.constant 2 : index
    %c512_104 = arith.constant 512 : index
    %283 = vector.load %arg12[%c2_103, %c512_104] : memref<16x1024xf32, #tpu.memory_space<vmem>>, vector<2x512xf32>
    %284 = arith.truncf %275 : vector<2x128xf32> to vector<2x128xbf16>
    %c0_105 = arith.constant 0 : index
    %c0_106 = arith.constant 0 : index
    %285 = vector.load %arg3[%c0_105, %c0_106] : memref<128x512xbf16, #tpu.memory_space<vmem>>, vector<128x512xbf16>
    %cst_107 = arith.constant dense<0.000000e+00> : vector<2x512xf32>
    %286 = tpu.matmul %284, %285, %cst_107 {dimension_numbers = #tpu.dot_dimension_numbers<[1], [0], [0], [1], [0, 0, 1, 1], [], []>} : vector<2x128xbf16>, vector<128x512xbf16>, vector<2x512xf32> -> vector<2x512xf32>
    %287 = arith.addf %283, %286 : vector<2x512xf32>
    %288 = vector.extract_strided_slice %282 {offsets = [0, 0], sizes = [2, 384], strides = [1, 1]} : vector<2x512xf32> to vector<2x384xf32>
    %289 = arith.negf %288 : vector<2x384xf32>
    %290 = math.exp %289 : vector<2x384xf32>
    %cst_108 = arith.constant 1.000000e+00 : f32
    %291 = vector.broadcast %cst_108 : f32 to vector<2x384xf32>
    %292 = arith.addf %291, %290 : vector<2x384xf32>
    %293 = arith.divf %291, %292 : vector<2x384xf32>
    %294 = vector.extract_strided_slice %293 {offsets = [0, 0], sizes = [2, 128], strides = [1, 1]} : vector<2x384xf32> to vector<2x128xf32>
    %295 = vector.extract_strided_slice %293 {offsets = [0, 128], sizes = [2, 128], strides = [1, 1]} : vector<2x384xf32> to vector<2x128xf32>
    %296 = vector.extract_strided_slice %293 {offsets = [0, 256], sizes = [2, 128], strides = [1, 1]} : vector<2x384xf32> to vector<2x128xf32>
    %297 = vector.extract_strided_slice %282 {offsets = [0, 384], sizes = [2, 128], strides = [1, 1]} : vector<2x512xf32> to vector<2x128xf32>
    %298 = math.tanh %297 : vector<2x128xf32>
    %299 = arith.mulf %295, %257 : vector<2x128xf32>
    %300 = arith.mulf %294, %298 : vector<2x128xf32>
    %301 = arith.addf %299, %300 : vector<2x128xf32>
    %302 = math.tanh %301 : vector<2x128xf32>
    %303 = arith.mulf %296, %302 : vector<2x128xf32>
    %304 = vector.extract_strided_slice %287 {offsets = [0, 0], sizes = [2, 384], strides = [1, 1]} : vector<2x512xf32> to vector<2x384xf32>
    %305 = arith.negf %304 : vector<2x384xf32>
    %306 = math.exp %305 : vector<2x384xf32>
    %cst_109 = arith.constant 1.000000e+00 : f32
    %307 = vector.broadcast %cst_109 : f32 to vector<2x384xf32>
    %308 = arith.addf %307, %306 : vector<2x384xf32>
    %309 = arith.divf %307, %308 : vector<2x384xf32>
    %310 = vector.extract_strided_slice %309 {offsets = [0, 0], sizes = [2, 128], strides = [1, 1]} : vector<2x384xf32> to vector<2x128xf32>
    %311 = vector.extract_strided_slice %309 {offsets = [0, 128], sizes = [2, 128], strides = [1, 1]} : vector<2x384xf32> to vector<2x128xf32>
    %312 = vector.extract_strided_slice %309 {offsets = [0, 256], sizes = [2, 128], strides = [1, 1]} : vector<2x384xf32> to vector<2x128xf32>
    %313 = vector.extract_strided_slice %287 {offsets = [0, 384], sizes = [2, 128], strides = [1, 1]} : vector<2x512xf32> to vector<2x128xf32>
    %314 = math.tanh %313 : vector<2x128xf32>
    %315 = arith.mulf %311, %273 : vector<2x128xf32>
    %316 = arith.mulf %310, %314 : vector<2x128xf32>
    %317 = arith.addf %315, %316 : vector<2x128xf32>
    %318 = math.tanh %317 : vector<2x128xf32>
    %319 = arith.mulf %312, %318 : vector<2x128xf32>
    %c12_110 = arith.constant 12 : index
    %c0_111 = arith.constant 0 : index
    %320 = vector.load %arg13[%c12_110, %c0_111] : memref<16x256xf32, #tpu.memory_space<vmem>>, vector<2x128xf32>
    tpu.vector_store %arg13[%c12_110, %c0_111], %303 {strides = array<i32>} : memref<16x256xf32, #tpu.memory_space<vmem>>, vector<2x128xf32>,
    %c2_112 = arith.constant 2 : index
    %c128_113 = arith.constant 128 : index
    %321 = vector.load %arg13[%c2_112, %c128_113] : memref<16x256xf32, #tpu.memory_space<vmem>>, vector<2x128xf32>
    tpu.vector_store %arg13[%c2_112, %c128_113], %319 {strides = array<i32>} : memref<16x256xf32, #tpu.memory_space<vmem>>, vector<2x128xf32>,
    %c14_114 = arith.constant 14 : index
    %c0_115 = arith.constant 0 : index
    %322 = vector.load %arg12[%c14_114, %c0_115] : memref<16x1024xf32, #tpu.memory_space<vmem>>, vector<2x512xf32>
    %323 = arith.truncf %303 : vector<2x128xf32> to vector<2x128xbf16>
    %c0_116 = arith.constant 0 : index
    %c0_117 = arith.constant 0 : index
    %324 = vector.load %arg2[%c0_116, %c0_117] : memref<128x512xbf16, #tpu.memory_space<vmem>>, vector<128x512xbf16>
    %cst_118 = arith.constant dense<0.000000e+00> : vector<2x512xf32>
    %325 = tpu.matmul %323, %324, %cst_118 {dimension_numbers = #tpu.dot_dimension_numbers<[1], [0], [0], [1], [0, 0, 1, 1], [], []>} : vector<2x128xbf16>, vector<128x512xbf16>, vector<2x512xf32> -> vector<2x512xf32>
    %326 = arith.addf %322, %325 : vector<2x512xf32>
    %c0_119 = arith.constant 0 : index
    %c512_120 = arith.constant 512 : index
    %327 = vector.load %arg12[%c0_119, %c512_120] : memref<16x1024xf32, #tpu.memory_space<vmem>>, vector<2x512xf32>
    %328 = arith.truncf %319 : vector<2x128xf32> to vector<2x128xbf16>
    %c0_121 = arith.constant 0 : index
    %c0_122 = arith.constant 0 : index
    %329 = vector.load %arg3[%c0_121, %c0_122] : memref<128x512xbf16, #tpu.memory_space<vmem>>, vector<128x512xbf16>
    %cst_123 = arith.constant dense<0.000000e+00> : vector<2x512xf32>
    %330 = tpu.matmul %328, %329, %cst_123 {dimension_numbers = #tpu.dot_dimension_numbers<[1], [0], [0], [1], [0, 0, 1, 1], [], []>} : vector<2x128xbf16>, vector<128x512xbf16>, vector<2x512xf32> -> vector<2x512xf32>
    %331 = arith.addf %327, %330 : vector<2x512xf32>
    %332 = vector.extract_strided_slice %326 {offsets = [0, 0], sizes = [2, 384], strides = [1, 1]} : vector<2x512xf32> to vector<2x384xf32>
    %333 = arith.negf %332 : vector<2x384xf32>
    %334 = math.exp %333 : vector<2x384xf32>
    %cst_124 = arith.constant 1.000000e+00 : f32
    %335 = vector.broadcast %cst_124 : f32 to vector<2x384xf32>
    %336 = arith.addf %335, %334 : vector<2x384xf32>
    %337 = arith.divf %335, %336 : vector<2x384xf32>
    %338 = vector.extract_strided_slice %337 {offsets = [0, 0], sizes = [2, 128], strides = [1, 1]} : vector<2x384xf32> to vector<2x128xf32>
    %339 = vector.extract_strided_slice %337 {offsets = [0, 128], sizes = [2, 128], strides = [1, 1]} : vector<2x384xf32> to vector<2x128xf32>
    %340 = vector.extract_strided_slice %337 {offsets = [0, 256], sizes = [2, 128], strides = [1, 1]} : vector<2x384xf32> to vector<2x128xf32>
    %341 = vector.extract_strided_slice %326 {offsets = [0, 384], sizes = [2, 128], strides = [1, 1]} : vector<2x512xf32> to vector<2x128xf32>
    %342 = math.tanh %341 : vector<2x128xf32>
    %343 = arith.mulf %339, %301 : vector<2x128xf32>
    %344 = arith.mulf %338, %342 : vector<2x128xf32>
    %345 = arith.addf %343, %344 : vector<2x128xf32>
    %346 = math.tanh %345 : vector<2x128xf32>
    %347 = arith.mulf %340, %346 : vector<2x128xf32>
    %348 = vector.extract_strided_slice %331 {offsets = [0, 0], sizes = [2, 384], strides = [1, 1]} : vector<2x512xf32> to vector<2x384xf32>
    %349 = arith.negf %348 : vector<2x384xf32>
    %350 = math.exp %349 : vector<2x384xf32>
    %cst_125 = arith.constant 1.000000e+00 : f32
    %351 = vector.broadcast %cst_125 : f32 to vector<2x384xf32>
    %352 = arith.addf %351, %350 : vector<2x384xf32>
    %353 = arith.divf %351, %352 : vector<2x384xf32>
    %354 = vector.extract_strided_slice %353 {offsets = [0, 0], sizes = [2, 128], strides = [1, 1]} : vector<2x384xf32> to vector<2x128xf32>
    %355 = vector.extract_strided_slice %353 {offsets = [0, 128], sizes = [2, 128], strides = [1, 1]} : vector<2x384xf32> to vector<2x128xf32>
    %356 = vector.extract_strided_slice %353 {offsets = [0, 256], sizes = [2, 128], strides = [1, 1]} : vector<2x384xf32> to vector<2x128xf32>
    %357 = vector.extract_strided_slice %331 {offsets = [0, 384], sizes = [2, 128], strides = [1, 1]} : vector<2x512xf32> to vector<2x128xf32>
    %358 = math.tanh %357 : vector<2x128xf32>
    %359 = arith.mulf %355, %317 : vector<2x128xf32>
    %360 = arith.mulf %354, %358 : vector<2x128xf32>
    %361 = arith.addf %359, %360 : vector<2x128xf32>
    %362 = math.tanh %361 : vector<2x128xf32>
    %363 = arith.mulf %356, %362 : vector<2x128xf32>
    %c14_126 = arith.constant 14 : index
    %c0_127 = arith.constant 0 : index
    %364 = vector.load %arg13[%c14_126, %c0_127] : memref<16x256xf32, #tpu.memory_space<vmem>>, vector<2x128xf32>
    tpu.vector_store %arg13[%c14_126, %c0_127], %347 {strides = array<i32>} : memref<16x256xf32, #tpu.memory_space<vmem>>, vector<2x128xf32>,
    %c0_128 = arith.constant 0 : index
    %c128_129 = arith.constant 128 : index
    %365 = vector.load %arg13[%c0_128, %c128_129] : memref<16x256xf32, #tpu.memory_space<vmem>>, vector<2x128xf32>
    tpu.vector_store %arg13[%c0_128, %c128_129], %363 {strides = array<i32>} : memref<16x256xf32, #tpu.memory_space<vmem>>, vector<2x128xf32>,
    %c0_130 = arith.constant 0 : index
    %c0_131 = arith.constant 0 : index
    %366 = vector.load %arg13[%c0_130, %c0_131] : memref<16x256xf32, #tpu.memory_space<vmem>>, vector<16x256xf32>
    %367 = arith.truncf %366 : vector<16x256xf32> to vector<16x256xbf16>
    %c0_132 = arith.constant 0 : index
    %c0_133 = arith.constant 0 : index
    %368 = vector.load %arg4[%c0_132, %c0_133] : memref<256x512xbf16, #tpu.memory_space<vmem>>, vector<256x512xbf16>
    %cst_134 = arith.constant dense<0.000000e+00> : vector<16x512xf32>
    %369 = tpu.matmul %367, %368, %cst_134 {dimension_numbers = #tpu.dot_dimension_numbers<[1], [0], [0], [1], [0, 0, 1, 1], [], []>} : vector<16x256xbf16>, vector<256x512xbf16>, vector<16x512xf32> -> vector<16x512xf32>
    %c0_135 = arith.constant 0 : index
    %c0_136 = arith.constant 0 : index
    %370 = vector.load %arg7[%c0_135, %c0_136] : memref<1x512xf32, #tpu.memory_space<vmem>>, vector<1x512xf32>
    %371 = vector.broadcast %370 : vector<1x512xf32> to vector<16x512xf32>
    %372 = arith.addf %369, %371 : vector<16x512xf32>
    %c0_137 = arith.constant 0 : index
    %c0_138 = arith.constant 0 : index
    %373 = vector.load %arg14[%c0_137, %c0_138] : memref<16x512xf32, #tpu.memory_space<vmem>>, vector<16x512xf32>
    tpu.vector_store %arg14[%c0_137, %c0_138], %372 {strides = array<i32>} : memref<16x512xf32, #tpu.memory_space<vmem>>, vector<16x512xf32>,
    %374 = vector.extract_strided_slice %367 {offsets = [14, 0], sizes = [2, 256], strides = [1, 1]} : vector<16x256xbf16> to vector<2x256xbf16>
    %c0_139 = arith.constant 0 : index
    %c0_140 = arith.constant 0 : index
    %375 = vector.load %arg5[%c0_139, %c0_140] : memref<256x512xbf16, #tpu.memory_space<vmem>>, vector<256x512xbf16>
    %cst_141 = arith.constant dense<0.000000e+00> : vector<2x512xf32>
    %376 = tpu.matmul %374, %375, %cst_141 {dimension_numbers = #tpu.dot_dimension_numbers<[1], [0], [0], [1], [0, 0, 1, 1], [], []>} : vector<2x256xbf16>, vector<256x512xbf16>, vector<2x512xf32> -> vector<2x512xf32>
    %c0_142 = arith.constant 0 : index
    %c0_143 = arith.constant 0 : index
    %377 = vector.load %arg8[%c0_142, %c0_143] : memref<1x512xf32, #tpu.memory_space<vmem>>, vector<1x512xf32>
    %378 = vector.broadcast %377 : vector<1x512xf32> to vector<2x512xf32>
    %379 = arith.addf %376, %378 : vector<2x512xf32>
    %cst_144 = arith.constant 0.000000e+00 : f32
    %380 = vector.broadcast %cst_144 : f32 to vector<2x128xf32>
    %381 = vector.extract_strided_slice %379 {offsets = [0, 0], sizes = [2, 384], strides = [1, 1]} : vector<2x512xf32> to vector<2x384xf32>
    %382 = arith.negf %381 : vector<2x384xf32>
    %383 = math.exp %382 : vector<2x384xf32>
    %cst_145 = arith.constant 1.000000e+00 : f32
    %384 = vector.broadcast %cst_145 : f32 to vector<2x384xf32>
    %385 = arith.addf %384, %383 : vector<2x384xf32>
    %386 = arith.divf %384, %385 : vector<2x384xf32>
    %387 = vector.extract_strided_slice %386 {offsets = [0, 0], sizes = [2, 128], strides = [1, 1]} : vector<2x384xf32> to vector<2x128xf32>
    %388 = vector.extract_strided_slice %386 {offsets = [0, 128], sizes = [2, 128], strides = [1, 1]} : vector<2x384xf32> to vector<2x128xf32>
    %389 = vector.extract_strided_slice %386 {offsets = [0, 256], sizes = [2, 128], strides = [1, 1]} : vector<2x384xf32> to vector<2x128xf32>
    %390 = vector.extract_strided_slice %379 {offsets = [0, 384], sizes = [2, 128], strides = [1, 1]} : vector<2x512xf32> to vector<2x128xf32>
    %391 = math.tanh %390 : vector<2x128xf32>
    %392 = arith.mulf %388, %380 : vector<2x128xf32>
    %393 = arith.mulf %387, %391 : vector<2x128xf32>
    %394 = arith.addf %392, %393 : vector<2x128xf32>
    %395 = math.tanh %394 : vector<2x128xf32>
    %396 = arith.mulf %389, %395 : vector<2x128xf32>
    %cst_146 = arith.constant 0.000000e+00 : f32
    %397 = vector.broadcast %cst_146 : f32 to vector<2x128xf32>
    %cst_147 = arith.constant 0.000000e+00 : f32
    %398 = vector.broadcast %cst_147 : f32 to vector<2x128xf32>
    %c0_148 = arith.constant 0 : index
    %c0_149 = arith.constant 0 : index
    %399 = vector.load %arg14[%c0_148, %c0_149] : memref<16x512xf32, #tpu.memory_space<vmem>>, vector<2x512xf32>
    %400 = arith.truncf %397 : vector<2x128xf32> to vector<2x128xbf16>
    %c0_150 = arith.constant 0 : index
    %c0_151 = arith.constant 0 : index
    %401 = vector.load %arg6[%c0_150, %c0_151] : memref<128x512xbf16, #tpu.memory_space<vmem>>, vector<128x512xbf16>
    %cst_152 = arith.constant dense<0.000000e+00> : vector<2x512xf32>
    %402 = tpu.matmul %400, %401, %cst_152 {dimension_numbers = #tpu.dot_dimension_numbers<[1], [0], [0], [1], [0, 0, 1, 1], [], []>} : vector<2x128xbf16>, vector<128x512xbf16>, vector<2x512xf32> -> vector<2x512xf32>
    %403 = arith.addf %399, %402 : vector<2x512xf32>
    %404 = vector.extract_strided_slice %403 {offsets = [0, 0], sizes = [2, 384], strides = [1, 1]} : vector<2x512xf32> to vector<2x384xf32>
    %405 = arith.negf %404 : vector<2x384xf32>
    %406 = math.exp %405 : vector<2x384xf32>
    %cst_153 = arith.constant 1.000000e+00 : f32
    %407 = vector.broadcast %cst_153 : f32 to vector<2x384xf32>
    %408 = arith.addf %407, %406 : vector<2x384xf32>
    %409 = arith.divf %407, %408 : vector<2x384xf32>
    %410 = vector.extract_strided_slice %409 {offsets = [0, 0], sizes = [2, 128], strides = [1, 1]} : vector<2x384xf32> to vector<2x128xf32>
    %411 = vector.extract_strided_slice %409 {offsets = [0, 128], sizes = [2, 128], strides = [1, 1]} : vector<2x384xf32> to vector<2x128xf32>
    %412 = vector.extract_strided_slice %409 {offsets = [0, 256], sizes = [2, 128], strides = [1, 1]} : vector<2x384xf32> to vector<2x128xf32>
    %413 = vector.extract_strided_slice %403 {offsets = [0, 384], sizes = [2, 128], strides = [1, 1]} : vector<2x512xf32> to vector<2x128xf32>
    %414 = math.tanh %413 : vector<2x128xf32>
    %415 = arith.mulf %411, %398 : vector<2x128xf32>
    %416 = arith.mulf %410, %414 : vector<2x128xf32>
    %417 = arith.addf %415, %416 : vector<2x128xf32>
    %418 = math.tanh %417 : vector<2x128xf32>
    %419 = arith.mulf %412, %418 : vector<2x128xf32>
    %c2_154 = arith.constant 2 : index
    %c0_155 = arith.constant 0 : index
    %420 = vector.load %arg14[%c2_154, %c0_155] : memref<16x512xf32, #tpu.memory_space<vmem>>, vector<2x512xf32>
    %421 = arith.truncf %419 : vector<2x128xf32> to vector<2x128xbf16>
    %c0_156 = arith.constant 0 : index
    %c0_157 = arith.constant 0 : index
    %422 = vector.load %arg6[%c0_156, %c0_157] : memref<128x512xbf16, #tpu.memory_space<vmem>>, vector<128x512xbf16>
    %cst_158 = arith.constant dense<0.000000e+00> : vector<2x512xf32>
    %423 = tpu.matmul %421, %422, %cst_158 {dimension_numbers = #tpu.dot_dimension_numbers<[1], [0], [0], [1], [0, 0, 1, 1], [], []>} : vector<2x128xbf16>, vector<128x512xbf16>, vector<2x512xf32> -> vector<2x512xf32>
    %424 = arith.addf %420, %423 : vector<2x512xf32>
    %425 = vector.extract_strided_slice %424 {offsets = [0, 0], sizes = [2, 384], strides = [1, 1]} : vector<2x512xf32> to vector<2x384xf32>
    %426 = arith.negf %425 : vector<2x384xf32>
    %427 = math.exp %426 : vector<2x384xf32>
    %cst_159 = arith.constant 1.000000e+00 : f32
    %428 = vector.broadcast %cst_159 : f32 to vector<2x384xf32>
    %429 = arith.addf %428, %427 : vector<2x384xf32>
    %430 = arith.divf %428, %429 : vector<2x384xf32>
    %431 = vector.extract_strided_slice %430 {offsets = [0, 0], sizes = [2, 128], strides = [1, 1]} : vector<2x384xf32> to vector<2x128xf32>
    %432 = vector.extract_strided_slice %430 {offsets = [0, 128], sizes = [2, 128], strides = [1, 1]} : vector<2x384xf32> to vector<2x128xf32>
    %433 = vector.extract_strided_slice %430 {offsets = [0, 256], sizes = [2, 128], strides = [1, 1]} : vector<2x384xf32> to vector<2x128xf32>
    %434 = vector.extract_strided_slice %424 {offsets = [0, 384], sizes = [2, 128], strides = [1, 1]} : vector<2x512xf32> to vector<2x128xf32>
    %435 = math.tanh %434 : vector<2x128xf32>
    %436 = arith.mulf %432, %417 : vector<2x128xf32>
    %437 = arith.mulf %431, %435 : vector<2x128xf32>
    %438 = arith.addf %436, %437 : vector<2x128xf32>
    %439 = math.tanh %438 : vector<2x128xf32>
    %440 = arith.mulf %433, %439 : vector<2x128xf32>
    %c4_160 = arith.constant 4 : index
    %c0_161 = arith.constant 0 : index
    %441 = vector.load %arg14[%c4_160, %c0_161] : memref<16x512xf32, #tpu.memory_space<vmem>>, vector<2x512xf32>
    %442 = arith.truncf %440 : vector<2x128xf32> to vector<2x128xbf16>
    %c0_162 = arith.constant 0 : index
    %c0_163 = arith.constant 0 : index
    %443 = vector.load %arg6[%c0_162, %c0_163] : memref<128x512xbf16, #tpu.memory_space<vmem>>, vector<128x512xbf16>
    %cst_164 = arith.constant dense<0.000000e+00> : vector<2x512xf32>
    %444 = tpu.matmul %442, %443, %cst_164 {dimension_numbers = #tpu.dot_dimension_numbers<[1], [0], [0], [1], [0, 0, 1, 1], [], []>} : vector<2x128xbf16>, vector<128x512xbf16>, vector<2x512xf32> -> vector<2x512xf32>
    %445 = arith.addf %441, %444 : vector<2x512xf32>
    %446 = vector.extract_strided_slice %445 {offsets = [0, 0], sizes = [2, 384], strides = [1, 1]} : vector<2x512xf32> to vector<2x384xf32>
    %447 = arith.negf %446 : vector<2x384xf32>
    %448 = math.exp %447 : vector<2x384xf32>
    %cst_165 = arith.constant 1.000000e+00 : f32
    %449 = vector.broadcast %cst_165 : f32 to vector<2x384xf32>
    %450 = arith.addf %449, %448 : vector<2x384xf32>
    %451 = arith.divf %449, %450 : vector<2x384xf32>
    %452 = vector.extract_strided_slice %451 {offsets = [0, 0], sizes = [2, 128], strides = [1, 1]} : vector<2x384xf32> to vector<2x128xf32>
    %453 = vector.extract_strided_slice %451 {offsets = [0, 128], sizes = [2, 128], strides = [1, 1]} : vector<2x384xf32> to vector<2x128xf32>
    %454 = vector.extract_strided_slice %451 {offsets = [0, 256], sizes = [2, 128], strides = [1, 1]} : vector<2x384xf32> to vector<2x128xf32>
    %455 = vector.extract_strided_slice %445 {offsets = [0, 384], sizes = [2, 128], strides = [1, 1]} : vector<2x512xf32> to vector<2x128xf32>
    %456 = math.tanh %455 : vector<2x128xf32>
    %457 = arith.mulf %453, %438 : vector<2x128xf32>
    %458 = arith.mulf %452, %456 : vector<2x128xf32>
    %459 = arith.addf %457, %458 : vector<2x128xf32>
    %460 = math.tanh %459 : vector<2x128xf32>
    %461 = arith.mulf %454, %460 : vector<2x128xf32>
    %c6_166 = arith.constant 6 : index
    %c0_167 = arith.constant 0 : index
    %462 = vector.load %arg14[%c6_166, %c0_167] : memref<16x512xf32, #tpu.memory_space<vmem>>, vector<2x512xf32>
    %463 = arith.truncf %461 : vector<2x128xf32> to vector<2x128xbf16>
    %c0_168 = arith.constant 0 : index
    %c0_169 = arith.constant 0 : index
    %464 = vector.load %arg6[%c0_168, %c0_169] : memref<128x512xbf16, #tpu.memory_space<vmem>>, vector<128x512xbf16>
    %cst_170 = arith.constant dense<0.000000e+00> : vector<2x512xf32>
    %465 = tpu.matmul %463, %464, %cst_170 {dimension_numbers = #tpu.dot_dimension_numbers<[1], [0], [0], [1], [0, 0, 1, 1], [], []>} : vector<2x128xbf16>, vector<128x512xbf16>, vector<2x512xf32> -> vector<2x512xf32>
    %466 = arith.addf %462, %465 : vector<2x512xf32>
    %467 = vector.extract_strided_slice %466 {offsets = [0, 0], sizes = [2, 384], strides = [1, 1]} : vector<2x512xf32> to vector<2x384xf32>
    %468 = arith.negf %467 : vector<2x384xf32>
    %469 = math.exp %468 : vector<2x384xf32>
    %cst_171 = arith.constant 1.000000e+00 : f32
    %470 = vector.broadcast %cst_171 : f32 to vector<2x384xf32>
    %471 = arith.addf %470, %469 : vector<2x384xf32>
    %472 = arith.divf %470, %471 : vector<2x384xf32>
    %473 = vector.extract_strided_slice %472 {offsets = [0, 0], sizes = [2, 128], strides = [1, 1]} : vector<2x384xf32> to vector<2x128xf32>
    %474 = vector.extract_strided_slice %472 {offsets = [0, 128], sizes = [2, 128], strides = [1, 1]} : vector<2x384xf32> to vector<2x128xf32>
    %475 = vector.extract_strided_slice %472 {offsets = [0, 256], sizes = [2, 128], strides = [1, 1]} : vector<2x384xf32> to vector<2x128xf32>
    %476 = vector.extract_strided_slice %466 {offsets = [0, 384], sizes = [2, 128], strides = [1, 1]} : vector<2x512xf32> to vector<2x128xf32>
    %477 = math.tanh %476 : vector<2x128xf32>
    %478 = arith.mulf %474, %459 : vector<2x128xf32>
    %479 = arith.mulf %473, %477 : vector<2x128xf32>
    %480 = arith.addf %478, %479 : vector<2x128xf32>
    %481 = math.tanh %480 : vector<2x128xf32>
    %482 = arith.mulf %475, %481 : vector<2x128xf32>
    %c8_172 = arith.constant 8 : index
    %c0_173 = arith.constant 0 : index
    %483 = vector.load %arg14[%c8_172, %c0_173] : memref<16x512xf32, #tpu.memory_space<vmem>>, vector<2x512xf32>
    %484 = arith.truncf %482 : vector<2x128xf32> to vector<2x128xbf16>
    %c0_174 = arith.constant 0 : index
    %c0_175 = arith.constant 0 : index
    %485 = vector.load %arg6[%c0_174, %c0_175] : memref<128x512xbf16, #tpu.memory_space<vmem>>, vector<128x512xbf16>
    %cst_176 = arith.constant dense<0.000000e+00> : vector<2x512xf32>
    %486 = tpu.matmul %484, %485, %cst_176 {dimension_numbers = #tpu.dot_dimension_numbers<[1], [0], [0], [1], [0, 0, 1, 1], [], []>} : vector<2x128xbf16>, vector<128x512xbf16>, vector<2x512xf32> -> vector<2x512xf32>
    %487 = arith.addf %483, %486 : vector<2x512xf32>
    %488 = vector.extract_strided_slice %487 {offsets = [0, 0], sizes = [2, 384], strides = [1, 1]} : vector<2x512xf32> to vector<2x384xf32>
    %489 = arith.negf %488 : vector<2x384xf32>
    %490 = math.exp %489 : vector<2x384xf32>
    %cst_177 = arith.constant 1.000000e+00 : f32
    %491 = vector.broadcast %cst_177 : f32 to vector<2x384xf32>
    %492 = arith.addf %491, %490 : vector<2x384xf32>
    %493 = arith.divf %491, %492 : vector<2x384xf32>
    %494 = vector.extract_strided_slice %493 {offsets = [0, 0], sizes = [2, 128], strides = [1, 1]} : vector<2x384xf32> to vector<2x128xf32>
    %495 = vector.extract_strided_slice %493 {offsets = [0, 128], sizes = [2, 128], strides = [1, 1]} : vector<2x384xf32> to vector<2x128xf32>
    %496 = vector.extract_strided_slice %493 {offsets = [0, 256], sizes = [2, 128], strides = [1, 1]} : vector<2x384xf32> to vector<2x128xf32>
    %497 = vector.extract_strided_slice %487 {offsets = [0, 384], sizes = [2, 128], strides = [1, 1]} : vector<2x512xf32> to vector<2x128xf32>
    %498 = math.tanh %497 : vector<2x128xf32>
    %499 = arith.mulf %495, %480 : vector<2x128xf32>
    %500 = arith.mulf %494, %498 : vector<2x128xf32>
    %501 = arith.addf %499, %500 : vector<2x128xf32>
    %502 = math.tanh %501 : vector<2x128xf32>
    %503 = arith.mulf %496, %502 : vector<2x128xf32>
    %c10_178 = arith.constant 10 : index
    %c0_179 = arith.constant 0 : index
    %504 = vector.load %arg14[%c10_178, %c0_179] : memref<16x512xf32, #tpu.memory_space<vmem>>, vector<2x512xf32>
    %505 = arith.truncf %503 : vector<2x128xf32> to vector<2x128xbf16>
    %c0_180 = arith.constant 0 : index
    %c0_181 = arith.constant 0 : index
    %506 = vector.load %arg6[%c0_180, %c0_181] : memref<128x512xbf16, #tpu.memory_space<vmem>>, vector<128x512xbf16>
    %cst_182 = arith.constant dense<0.000000e+00> : vector<2x512xf32>
    %507 = tpu.matmul %505, %506, %cst_182 {dimension_numbers = #tpu.dot_dimension_numbers<[1], [0], [0], [1], [0, 0, 1, 1], [], []>} : vector<2x128xbf16>, vector<128x512xbf16>, vector<2x512xf32> -> vector<2x512xf32>
    %508 = arith.addf %504, %507 : vector<2x512xf32>
    %509 = vector.extract_strided_slice %508 {offsets = [0, 0], sizes = [2, 384], strides = [1, 1]} : vector<2x512xf32> to vector<2x384xf32>
    %510 = arith.negf %509 : vector<2x384xf32>
    %511 = math.exp %510 : vector<2x384xf32>
    %cst_183 = arith.constant 1.000000e+00 : f32
    %512 = vector.broadcast %cst_183 : f32 to vector<2x384xf32>
    %513 = arith.addf %512, %511 : vector<2x384xf32>
    %514 = arith.divf %512, %513 : vector<2x384xf32>
    %515 = vector.extract_strided_slice %514 {offsets = [0, 0], sizes = [2, 128], strides = [1, 1]} : vector<2x384xf32> to vector<2x128xf32>
    %516 = vector.extract_strided_slice %514 {offsets = [0, 128], sizes = [2, 128], strides = [1, 1]} : vector<2x384xf32> to vector<2x128xf32>
    %517 = vector.extract_strided_slice %514 {offsets = [0, 256], sizes = [2, 128], strides = [1, 1]} : vector<2x384xf32> to vector<2x128xf32>
    %518 = vector.extract_strided_slice %508 {offsets = [0, 384], sizes = [2, 128], strides = [1, 1]} : vector<2x512xf32> to vector<2x128xf32>
    %519 = math.tanh %518 : vector<2x128xf32>
    %520 = arith.mulf %516, %501 : vector<2x128xf32>
    %521 = arith.mulf %515, %519 : vector<2x128xf32>
    %522 = arith.addf %520, %521 : vector<2x128xf32>
    %523 = math.tanh %522 : vector<2x128xf32>
    %524 = arith.mulf %517, %523 : vector<2x128xf32>
    %c12_184 = arith.constant 12 : index
    %c0_185 = arith.constant 0 : index
    %525 = vector.load %arg14[%c12_184, %c0_185] : memref<16x512xf32, #tpu.memory_space<vmem>>, vector<2x512xf32>
    %526 = arith.truncf %524 : vector<2x128xf32> to vector<2x128xbf16>
    %c0_186 = arith.constant 0 : index
    %c0_187 = arith.constant 0 : index
    %527 = vector.load %arg6[%c0_186, %c0_187] : memref<128x512xbf16, #tpu.memory_space<vmem>>, vector<128x512xbf16>
    %cst_188 = arith.constant dense<0.000000e+00> : vector<2x512xf32>
    %528 = tpu.matmul %526, %527, %cst_188 {dimension_numbers = #tpu.dot_dimension_numbers<[1], [0], [0], [1], [0, 0, 1, 1], [], []>} : vector<2x128xbf16>, vector<128x512xbf16>, vector<2x512xf32> -> vector<2x512xf32>
    %529 = arith.addf %525, %528 : vector<2x512xf32>
    %530 = vector.extract_strided_slice %529 {offsets = [0, 0], sizes = [2, 384], strides = [1, 1]} : vector<2x512xf32> to vector<2x384xf32>
    %531 = arith.negf %530 : vector<2x384xf32>
    %532 = math.exp %531 : vector<2x384xf32>
    %cst_189 = arith.constant 1.000000e+00 : f32
    %533 = vector.broadcast %cst_189 : f32 to vector<2x384xf32>
    %534 = arith.addf %533, %532 : vector<2x384xf32>
    %535 = arith.divf %533, %534 : vector<2x384xf32>
    %536 = vector.extract_strided_slice %535 {offsets = [0, 0], sizes = [2, 128], strides = [1, 1]} : vector<2x384xf32> to vector<2x128xf32>
    %537 = vector.extract_strided_slice %535 {offsets = [0, 128], sizes = [2, 128], strides = [1, 1]} : vector<2x384xf32> to vector<2x128xf32>
    %538 = vector.extract_strided_slice %535 {offsets = [0, 256], sizes = [2, 128], strides = [1, 1]} : vector<2x384xf32> to vector<2x128xf32>
    %539 = vector.extract_strided_slice %529 {offsets = [0, 384], sizes = [2, 128], strides = [1, 1]} : vector<2x512xf32> to vector<2x128xf32>
    %540 = math.tanh %539 : vector<2x128xf32>
    %541 = arith.mulf %537, %522 : vector<2x128xf32>
    %542 = arith.mulf %536, %540 : vector<2x128xf32>
    %543 = arith.addf %541, %542 : vector<2x128xf32>
    %544 = math.tanh %543 : vector<2x128xf32>
    %545 = arith.mulf %538, %544 : vector<2x128xf32>
    %c14_190 = arith.constant 14 : index
    %c0_191 = arith.constant 0 : index
    %546 = vector.load %arg14[%c14_190, %c0_191] : memref<16x512xf32, #tpu.memory_space<vmem>>, vector<2x512xf32>
    %547 = arith.truncf %545 : vector<2x128xf32> to vector<2x128xbf16>
    %c0_192 = arith.constant 0 : index
    %c0_193 = arith.constant 0 : index
    %548 = vector.load %arg6[%c0_192, %c0_193] : memref<128x512xbf16, #tpu.memory_space<vmem>>, vector<128x512xbf16>
    %cst_194 = arith.constant dense<0.000000e+00> : vector<2x512xf32>
    %549 = tpu.matmul %547, %548, %cst_194 {dimension_numbers = #tpu.dot_dimension_numbers<[1], [0], [0], [1], [0, 0, 1, 1], [], []>} : vector<2x128xbf16>, vector<128x512xbf16>, vector<2x512xf32> -> vector<2x512xf32>
    %550 = arith.addf %546, %549 : vector<2x512xf32>
    %551 = vector.extract_strided_slice %550 {offsets = [0, 0], sizes = [2, 384], strides = [1, 1]} : vector<2x512xf32> to vector<2x384xf32>
    %552 = arith.negf %551 : vector<2x384xf32>
    %553 = math.exp %552 : vector<2x384xf32>
    %cst_195 = arith.constant 1.000000e+00 : f32
    %554 = vector.broadcast %cst_195 : f32 to vector<2x384xf32>
    %555 = arith.addf %554, %553 : vector<2x384xf32>
    %556 = arith.divf %554, %555 : vector<2x384xf32>
    %557 = vector.extract_strided_slice %556 {offsets = [0, 0], sizes = [2, 128], strides = [1, 1]} : vector<2x384xf32> to vector<2x128xf32>
    %558 = vector.extract_strided_slice %556 {offsets = [0, 128], sizes = [2, 128], strides = [1, 1]} : vector<2x384xf32> to vector<2x128xf32>
    %559 = vector.extract_strided_slice %556 {offsets = [0, 256], sizes = [2, 128], strides = [1, 1]} : vector<2x384xf32> to vector<2x128xf32>
    %560 = vector.extract_strided_slice %550 {offsets = [0, 384], sizes = [2, 128], strides = [1, 1]} : vector<2x512xf32> to vector<2x128xf32>
    %561 = math.tanh %560 : vector<2x128xf32>
    %562 = arith.mulf %558, %543 : vector<2x128xf32>
    %563 = arith.mulf %557, %561 : vector<2x128xf32>
    %564 = arith.addf %562, %563 : vector<2x128xf32>
    %565 = math.tanh %564 : vector<2x128xf32>
    %566 = arith.mulf %559, %565 : vector<2x128xf32>
    %c0_196 = arith.constant 0 : index
    %c0_197 = arith.constant 0 : index
    %567 = vector.load %arg9[%c0_196, %c0_197] : memref<256x128xf32, #tpu.memory_space<vmem>>, vector<128x128xf32>
    %cst_198 = arith.constant dense<0.000000e+00> : vector<2x128xf32>
    %568 = tpu.matmul %566, %567, %cst_198 {dimension_numbers = #tpu.dot_dimension_numbers<[1], [0], [0], [1], [0, 0, 1, 1], [], []>} : vector<2x128xf32>, vector<128x128xf32>, vector<2x128xf32> -> vector<2x128xf32>
    %c128_199 = arith.constant 128 : index
    %c0_200 = arith.constant 0 : index
    %569 = vector.load %arg9[%c128_199, %c0_200] : memref<256x128xf32, #tpu.memory_space<vmem>>, vector<128x128xf32>
    %cst_201 = arith.constant dense<0.000000e+00> : vector<2x128xf32>
    %570 = tpu.matmul %396, %569, %cst_201 {dimension_numbers = #tpu.dot_dimension_numbers<[1], [0], [0], [1], [0, 0, 1, 1], [], []>} : vector<2x128xf32>, vector<128x128xf32>, vector<2x128xf32> -> vector<2x128xf32>
    %571 = arith.addf %568, %570 : vector<2x128xf32>
    %c0_202 = arith.constant 0 : index
    %c0_203 = arith.constant 0 : index
    %572 = vector.load %arg10[%c0_202, %c0_203] : memref<1x128xf32, #tpu.memory_space<vmem>>, vector<1x128xf32>
    %573 = vector.broadcast %572 : vector<1x128xf32> to vector<2x128xf32>
    %574 = arith.addf %571, %573 : vector<2x128xf32>
    %c0_204 = arith.constant 0 : index
    %c0_205 = arith.constant 0 : index
    %575 = vector.load %arg11[%c0_204, %c0_205] : memref<2x128xf32, #tpu.memory_space<vmem>>, vector<2x128xf32>
    tpu.vector_store %arg11[%c0_204, %c0_205], %574 {strides = array<i32>} : memref<2x128xf32, #tpu.memory_space<vmem>>, vector<2x128xf32>,
    return
  }
}

</mosaic_0001>

<llo_original>
// kernel: simple_lstm_model.1
$region0: #{simple_lstm_model.1}
  #allocation0 [shape = 'u32[]', space=smem, size = 0x4, offset = 0x4, fixed_abs, tag = 'smem constant byte address 0x4 - core index']
  #allocation1 [shape = 'u32[144,128]{1,0:T(1,128)}', space=vmem, size = 0x12000, scoped, tag = 'internal scratch']
  #allocation2 [shape = 'f32[16,1024]{1,0:T(8,128)}', space=vmem, size = 0x10000, scoped, tag = 'scratch operand']
  #allocation3 [shape = 'f32[16,256]{1,0:T(8,128)}', space=vmem, size = 0x4000, scoped, tag = 'scratch operand']
  #allocation4 [shape = 'f32[16,512]{1,0:T(8,128)}', space=vmem, size = 0x8000, scoped, tag = 'scratch operand']
  %s0 = inlined_call_operand.vmem [shape: s32[16,128], index: 0, kind: input, shape index: {}]
  %s1 = inlined_call_operand.hbm [shape: bf16[128,1024], index: 1, kind: input, shape index: {}]
  %s2 = inlined_call_operand.hbm [shape: bf16[128,512], index: 2, kind: input, shape index: {}]
  %s3 = inlined_call_operand.hbm [shape: bf16[128,512], index: 3, kind: input, shape index: {}]
  %s4 = inlined_call_operand.hbm [shape: bf16[256,512], index: 4, kind: input, shape index: {}]
  %s5 = inlined_call_operand.hbm [shape: bf16[256,512], index: 5, kind: input, shape index: {}]
  %s6 = inlined_call_operand.hbm [shape: bf16[128,512], index: 6, kind: input, shape index: {}]
  %s7 = inlined_call_operand.vmem [shape: f32[1,512], index: 7, kind: input, shape index: {}]
  %s8 = inlined_call_operand.vmem [shape: f32[1,512], index: 8, kind: input, shape index: {}]
  %s9 = inlined_call_operand.hbm [shape: f32[256,128], index: 9, kind: input, shape index: {}]
  %s10 = inlined_call_operand.vmem [shape: f32[1,128], index: 10, kind: input, shape index: {}]
  %s11 = inlined_call_operand.hbm [shape: f32[2,128], index: 11, kind: output, shape index: {}]
  %s12 = sld [smem:[#allocation0]]
  $region82: #{simple_lstm_model.1} parent=0
    _
  %s14 = ssub.s32 1, %s12
  %s15 = scalar_select 0, %s14, %s12
  $region1: #{simple_lstm_model.1} parent=0
    #allocation5 [shape = 'u8[262144]{0}', space=vmem, size = 0x40000, scoped, tag = 'input window, operand 1, single buffered']
    #allocation6 [shape = 's32[1]{0}', space=sflag, size = 0x4, scoped, tag = 'scoped memory for simple_lstm_model.1']
    #allocation7 [shape = 's32[1]{0}', space=sflag, size = 0x4, scoped, tag = 'scoped memory for simple_lstm_model.1']
    #allocation8 [shape = 'u8[131072]{0}', space=vmem, size = 0x20000, scoped, tag = 'input window, operand 2, single buffered']
    #allocation9 [shape = 's32[1]{0}', space=sflag, size = 0x4, scoped, tag = 'scoped memory for simple_lstm_model.1']
    #allocation10 [shape = 'u8[131072]{0}', space=vmem, size = 0x20000, scoped, tag = 'input window, operand 3, single buffered']
    #allocation11 [shape = 'u8[262144]{0}', space=vmem, size = 0x40000, scoped, tag = 'input window, operand 4, single buffered']
    #allocation12 [shape = 's32[1]{0}', space=sflag, size = 0x4, scoped, tag = 'scoped memory for simple_lstm_model.1']
    #allocation13 [shape = 'u8[262144]{0}', space=vmem, size = 0x40000, scoped, tag = 'input window, operand 5, single buffered']
    #allocation14 [shape = 'u8[131072]{0}', space=vmem, size = 0x20000, scoped, tag = 'input window, operand 6, single buffered']
    #allocation15 [shape = 's32[1]{0}', space=sflag, size = 0x4, scoped, tag = 'scoped memory for simple_lstm_model.1']
    #allocation16 [shape = 'u8[131072]{0}', space=vmem, size = 0x20000, scoped, tag = 'input window, operand 9, single buffered']
    #allocation17 [shape = 'u8[1024]{0}', space=vmem, size = 0x400, scoped, tag = 'output window, operand 0, single buffered']
    %16 = vsyncpa [#allocation6], 0
    %17 = vsyncpa [#allocation9], 0
    %18 = vsyncpa [#allocation12], 0
    %19 = vsyncpa [#allocation15], 0
    %20 = vsyncpa [#allocation7], 0
    // Predicated region
    $region2: #{simple_lstm_model.1} parent=1 // pred_check
      _
    $region3: #{simple_lstm_model.1} parent=1 // pred_check_branch
      %22 = sbr.rel (0) target = $region5
    $region4: #{simple_lstm_model.1} parent=1 // pred_region
      _
    $region5: #{simple_lstm_model.1} parent=1 // pred_fallthru
      _
    // Predicated region
    $region6: #{simple_lstm_model.1} parent=1 // pred_check
      _
    $region7: #{simple_lstm_model.1} parent=1 // pred_check_branch
      %24 = sbr.rel (0) target = $region9
    $region8: #{simple_lstm_model.1} parent=1 // pred_region
      %s26 = ssub.s32 8192, 8192
      %27 = vsyncadd [#allocation6], %s26
      %s28 = sshll.u32 [#allocation5], 4
      %s29 = int_to_ptr.vmem [resolvable:$true] %s28
      %34 = dma.hbm_to_vmem [thread:$0]  %s1, 8192, %s29, [#allocation6], 512, 512, 32
    $region9: #{simple_lstm_model.1} parent=1 // pred_fallthru
      _
    // Predicated region
    $region10: #{simple_lstm_model.1} parent=1 // pred_check
      _
    $region11: #{simple_lstm_model.1} parent=1 // pred_check_branch
      %36 = sbr.rel (0) target = $region13
    $region12: #{simple_lstm_model.1} parent=1 // pred_region
      %s38 = ssub.s32 4096, 4096
      %39 = vsyncadd [#allocation9], %s38
      %s40 = sshll.u32 [#allocation8], 4
      %s41 = int_to_ptr.vmem [resolvable:$true] %s40
      %46 = dma.hbm_to_vmem [thread:$0]  %s2, 4096, %s41, [#allocation9], 256, 256, 16
    $region13: #{simple_lstm_model.1} parent=1 // pred_fallthru
      _
    // Predicated region
    $region14: #{simple_lstm_model.1} parent=1 // pred_check
      _
    $region15: #{simple_lstm_model.1} parent=1 // pred_check_branch
      %48 = sbr.rel (0) target = $region17
    $region16: #{simple_lstm_model.1} parent=1 // pred_region
      %s50 = ssub.s32 4096, 4096
      %51 = vsyncadd [#allocation9], %s50
      %s52 = sshll.u32 [#allocation10], 4
      %s53 = int_to_ptr.vmem [resolvable:$true] %s52
      %58 = dma.hbm_to_vmem [thread:$0]  %s3, 4096, %s53, [#allocation9], 256, 256, 16
    $region17: #{simple_lstm_model.1} parent=1 // pred_fallthru
      _
    // Predicated region
    $region18: #{simple_lstm_model.1} parent=1 // pred_check
      _
    $region19: #{simple_lstm_model.1} parent=1 // pred_check_branch
      %60 = sbr.rel (0) target = $region21
    $region20: #{simple_lstm_model.1} parent=1 // pred_region
      %s62 = ssub.s32 8192, 8192
      %63 = vsyncadd [#allocation12], %s62
      %s64 = sshll.u32 [#allocation11], 4
      %s65 = int_to_ptr.vmem [resolvable:$true] %s64
      %70 = dma.hbm_to_vmem [thread:$0]  %s4, 8192, %s65, [#allocation12], 256, 256, 16
    $region21: #{simple_lstm_model.1} parent=1 // pred_fallthru
      _
    // Predicated region
    $region22: #{simple_lstm_model.1} parent=1 // pred_check
      _
    $region23: #{simple_lstm_model.1} parent=1 // pred_check_branch
      %72 = sbr.rel (0) target = $region25
    $region24: #{simple_lstm_model.1} parent=1 // pred_region
      %s74 = ssub.s32 8192, 8192
      %75 = vsyncadd [#allocation12], %s74
      %s76 = sshll.u32 [#allocation13], 4
      %s77 = int_to_ptr.vmem [resolvable:$true] %s76
      %82 = dma.hbm_to_vmem [thread:$0]  %s5, 8192, %s77, [#allocation12], 256, 256, 16
    $region25: #{simple_lstm_model.1} parent=1 // pred_fallthru
      _
    // Predicated region
    $region26: #{simple_lstm_model.1} parent=1 // pred_check
      _
    $region27: #{simple_lstm_model.1} parent=1 // pred_check_branch
      %84 = sbr.rel (0) target = $region29
    $region28: #{simple_lstm_model.1} parent=1 // pred_region
      %s86 = ssub.s32 4096, 4096
      %87 = vsyncadd [#allocation15], %s86
      %s88 = sshll.u32 [#allocation14], 4
      %s89 = int_to_ptr.vmem [resolvable:$true] %s88
      %94 = dma.hbm_to_vmem [thread:$0]  %s6, 4096, %s89, [#allocation15], 256, 256, 16
    $region29: #{simple_lstm_model.1} parent=1 // pred_fallthru
      _
    // Predicated region
    $region30: #{simple_lstm_model.1} parent=1 // pred_check
      _
    $region31: #{simple_lstm_model.1} parent=1 // pred_check_branch
      %96 = sbr.rel (0) target = $region33
    $region32: #{simple_lstm_model.1} parent=1 // pred_region
      _
    $region33: #{simple_lstm_model.1} parent=1 // pred_fallthru
      _
    // Predicated region
    $region34: #{simple_lstm_model.1} parent=1 // pred_check
      _
    $region35: #{simple_lstm_model.1} parent=1 // pred_check_branch
      %98 = sbr.rel (0) target = $region37
    $region36: #{simple_lstm_model.1} parent=1 // pred_region
      _
    $region37: #{simple_lstm_model.1} parent=1 // pred_fallthru
      _
    // Predicated region
    $region38: #{simple_lstm_model.1} parent=1 // pred_check
      _
    $region39: #{simple_lstm_model.1} parent=1 // pred_check_branch
      %100 = sbr.rel (0) target = $region41
    $region40: #{simple_lstm_model.1} parent=1 // pred_region
      %s102 = ssub.s32 4096, 4096
      %103 = vsyncadd [#allocation15], %s102
      %s104 = sshll.u32 [#allocation16], 4
      %s105 = int_to_ptr.vmem [resolvable:$true] %s104
      %110 = dma.hbm_to_vmem [thread:$0]  %s9, 4096, %s105, [#allocation15], 128, 128, 8
    $region41: #{simple_lstm_model.1} parent=1 // pred_fallthru
      _
    // Predicated region
    $region42: #{simple_lstm_model.1} parent=1 // pred_check
      _
    $region43: #{simple_lstm_model.1} parent=1 // pred_check_branch
      %112 = sbr.rel (0) target = $region45
    $region44: #{simple_lstm_model.1} parent=1 // pred_region
      _
    $region45: #{simple_lstm_model.1} parent=1 // pred_fallthru
      _
    // Predicated region
    $region46: #{simple_lstm_model.1} parent=1 // pred_check
      _
    $region47: #{simple_lstm_model.1} parent=1 // pred_check_branch
      %114 = sbr.rel (0) target = $region49
    $region48: #{simple_lstm_model.1} parent=1 // pred_region
      %115 = dma.done [#allocation6], 8192
    $region49: #{simple_lstm_model.1} parent=1 // pred_fallthru
      _
    // Predicated region
    $region50: #{simple_lstm_model.1} parent=1 // pred_check
      _
    $region51: #{simple_lstm_model.1} parent=1 // pred_check_branch
      %117 = sbr.rel (0) target = $region53
    $region52: #{simple_lstm_model.1} parent=1 // pred_region
      %118 = dma.done [#allocation9], 4096
    $region53: #{simple_lstm_model.1} parent=1 // pred_fallthru
      _
    // Predicated region
    $region54: #{simple_lstm_model.1} parent=1 // pred_check
      _
    $region55: #{simple_lstm_model.1} parent=1 // pred_check_branch
      %120 = sbr.rel (0) target = $region57
    $region56: #{simple_lstm_model.1} parent=1 // pred_region
      %121 = dma.done [#allocation9], 4096
    $region57: #{simple_lstm_model.1} parent=1 // pred_fallthru
      _
    // Predicated region
    $region58: #{simple_lstm_model.1} parent=1 // pred_check
      _
    $region59: #{simple_lstm_model.1} parent=1 // pred_check_branch
      %123 = sbr.rel (0) target = $region61
    $region60: #{simple_lstm_model.1} parent=1 // pred_region
      %124 = dma.done [#allocation12], 8192
    $region61: #{simple_lstm_model.1} parent=1 // pred_fallthru
      _
    // Predicated region
    $region62: #{simple_lstm_model.1} parent=1 // pred_check
      _
    $region63: #{simple_lstm_model.1} parent=1 // pred_check_branch
      %126 = sbr.rel (0) target = $region65
    $region64: #{simple_lstm_model.1} parent=1 // pred_region
      %127 = dma.done [#allocation12], 8192
    $region65: #{simple_lstm_model.1} parent=1 // pred_fallthru
      _
    // Predicated region
    $region66: #{simple_lstm_model.1} parent=1 // pred_check
      _
    $region67: #{simple_lstm_model.1} parent=1 // pred_check_branch
      %129 = sbr.rel (0) target = $region69
    $region68: #{simple_lstm_model.1} parent=1 // pred_region
      %130 = dma.done [#allocation15], 4096
    $region69: #{simple_lstm_model.1} parent=1 // pred_fallthru
      _
    // Predicated region
    $region70: #{simple_lstm_model.1} parent=1 // pred_check
      _
    $region71: #{simple_lstm_model.1} parent=1 // pred_check_branch
      %132 = sbr.rel (0) target = $region73
    $region72: #{simple_lstm_model.1} parent=1 // pred_region
      %133 = dma.done [#allocation15], 4096
    $region73: #{simple_lstm_model.1} parent=1 // pred_fallthru
      _
    %v135 = vlaneseq
    %v136 = vand.u32 %v135, 127
    %v137 = vld [vmem:[%s0] sm:$0xff]
    %v138 = vld [vmem:[%s0 + $0x8] sm:$0xff]
    %vm139 = vcmp.eq.s32.totalorder %v137, %v136
    %vm140 = vcmp.eq.s32.totalorder %v138, %v136
    %v141 = vsel %vm139, 1.0, 0.0
    %v142 = vsel %vm140, 1.0, 0.0
    %v143 = vpack.c.bf16 %v142, %v141
    %v144 = vld [vmem:[#allocation5] sm:$0xff]
    %v145 = vld [vmem:[#allocation5 + $0x8] sm:$0xff]
    %v146 = vld [vmem:[#allocation5 + $0x10] sm:$0xff]
    %v147 = vld [vmem:[#allocation5 + $0x18] sm:$0xff]
    %v148 = vld [vmem:[#allocation5 + $0x20] sm:$0xff]
    %v149 = vld [vmem:[#allocation5 + $0x28] sm:$0xff]
    %v150 = vld [vmem:[#allocation5 + $0x30] sm:$0xff]
    %v151 = vld [vmem:[#allocation5 + $0x38] sm:$0xff]
    %v152 = vld [vmem:[#allocation5 + $0x40] sm:$0xff]
    %v153 = vld [vmem:[#allocation5 + $0x48] sm:$0xff]
    %v154 = vld [vmem:[#allocation5 + $0x50] sm:$0xff]
    %v155 = vld [vmem:[#allocation5 + $0x58] sm:$0xff]
    %v156 = vld [vmem:[#allocation5 + $0x60] sm:$0xff]
    %v157 = vld [vmem:[#allocation5 + $0x68] sm:$0xff]
    %v158 = vld [vmem:[#allocation5 + $0x70] sm:$0xff]
    %v159 = vld [vmem:[#allocation5 + $0x78] sm:$0xff]
    %v160 = vld [vmem:[#allocation5 + $0x80] sm:$0xff]
    %v161 = vld [vmem:[#allocation5 + $0x88] sm:$0xff]
    %v162 = vld [vmem:[#allocation5 + $0x90] sm:$0xff]
    %v163 = vld [vmem:[#allocation5 + $0x98] sm:$0xff]
    %v164 = vld [vmem:[#allocation5 + $0xa0] sm:$0xff]
    %v165 = vld [vmem:[#allocation5 + $0xa8] sm:$0xff]
    %v166 = vld [vmem:[#allocation5 + $0xb0] sm:$0xff]
    %v167 = vld [vmem:[#allocation5 + $0xb8] sm:$0xff]
    %v168 = vld [vmem:[#allocation5 + $0xc0] sm:$0xff]
    %v169 = vld [vmem:[#allocation5 + $0xc8] sm:$0xff]
    %v170 = vld [vmem:[#allocation5 + $0xd0] sm:$0xff]
    %v171 = vld [vmem:[#allocation5 + $0xd8] sm:$0xff]
    %v172 = vld [vmem:[#allocation5 + $0xe0] sm:$0xff]
    %v173 = vld [vmem:[#allocation5 + $0xe8] sm:$0xff]
    %v174 = vld [vmem:[#allocation5 + $0xf0] sm:$0xff]
    %v175 = vld [vmem:[#allocation5 + $0xf8] sm:$0xff]
    %v176 = vld [vmem:[#allocation5 + $0x100] sm:$0xff]
    %v177 = vld [vmem:[#allocation5 + $0x108] sm:$0xff]
    %v178 = vld [vmem:[#allocation5 + $0x110] sm:$0xff]
    %v179 = vld [vmem:[#allocation5 + $0x118] sm:$0xff]
    %v180 = vld [vmem:[#allocation5 + $0x120] sm:$0xff]
    %v181 = vld [vmem:[#allocation5 + $0x128] sm:$0xff]
    %v182 = vld [vmem:[#allocation5 + $0x130] sm:$0xff]
    %v183 = vld [vmem:[#allocation5 + $0x138] sm:$0xff]
    %v184 = vld [vmem:[#allocation5 + $0x140] sm:$0xff]
    %v185 = vld [vmem:[#allocation5 + $0x148] sm:$0xff]
    %v186 = vld [vmem:[#allocation5 + $0x150] sm:$0xff]
    %v187 = vld [vmem:[#allocation5 + $0x158] sm:$0xff]
    %v188 = vld [vmem:[#allocation5 + $0x160] sm:$0xff]
    %v189 = vld [vmem:[#allocation5 + $0x168] sm:$0xff]
    %v190 = vld [vmem:[#allocation5 + $0x170] sm:$0xff]
    %v191 = vld [vmem:[#allocation5 + $0x178] sm:$0xff]
    %v192 = vld [vmem:[#allocation5 + $0x180] sm:$0xff]
    %v193 = vld [vmem:[#allocation5 + $0x188] sm:$0xff]
    %v194 = vld [vmem:[#allocation5 + $0x190] sm:$0xff]
    %v195 = vld [vmem:[#allocation5 + $0x198] sm:$0xff]
    %v196 = vld [vmem:[#allocation5 + $0x1a0] sm:$0xff]
    %v197 = vld [vmem:[#allocation5 + $0x1a8] sm:$0xff]
    %v198 = vld [vmem:[#allocation5 + $0x1b0] sm:$0xff]
    %v199 = vld [vmem:[#allocation5 + $0x1b8] sm:$0xff]
    %v200 = vld [vmem:[#allocation5 + $0x1c0] sm:$0xff]
    %v201 = vld [vmem:[#allocation5 + $0x1c8] sm:$0xff]
    %v202 = vld [vmem:[#allocation5 + $0x1d0] sm:$0xff]
    %v203 = vld [vmem:[#allocation5 + $0x1d8] sm:$0xff]
    %v204 = vld [vmem:[#allocation5 + $0x1e0] sm:$0xff]
    %v205 = vld [vmem:[#allocation5 + $0x1e8] sm:$0xff]
    %v206 = vld [vmem:[#allocation5 + $0x1f0] sm:$0xff]
    %v207 = vld [vmem:[#allocation5 + $0x1f8] sm:$0xff]
    %v272 = vunpack.c.l.b16 %v144
    %v273 = vunpack.c.h.b16 %v144
    %v274 = vunpack.c.l.b16 %v145
    %v275 = vunpack.c.h.b16 %v145
    %v276 = vunpack.c.l.b16 %v146
    %v277 = vunpack.c.h.b16 %v146
    %v278 = vunpack.c.l.b16 %v147
    %v279 = vunpack.c.h.b16 %v147
    %v280 = vunpack.c.l.b16 %v148
    %v281 = vunpack.c.h.b16 %v148
    %v282 = vunpack.c.l.b16 %v149
    %v283 = vunpack.c.h.b16 %v149
    %v284 = vunpack.c.l.b16 %v150
    %v285 = vunpack.c.h.b16 %v150
    %v286 = vunpack.c.l.b16 %v151
    %v287 = vunpack.c.h.b16 %v151
    %v288 = vunpack.c.l.b16 %v152
    %v289 = vunpack.c.h.b16 %v152
    %v290 = vunpack.c.l.b16 %v153
    %v291 = vunpack.c.h.b16 %v153
    %v292 = vunpack.c.l.b16 %v154
    %v293 = vunpack.c.h.b16 %v154
    %v294 = vunpack.c.l.b16 %v155
    %v295 = vunpack.c.h.b16 %v155
    %v296 = vunpack.c.l.b16 %v156
    %v297 = vunpack.c.h.b16 %v156
    %v298 = vunpack.c.l.b16 %v157
    %v299 = vunpack.c.h.b16 %v157
    %v300 = vunpack.c.l.b16 %v158
    %v301 = vunpack.c.h.b16 %v158
    %v302 = vunpack.c.l.b16 %v159
    %v303 = vunpack.c.h.b16 %v159
    %v304 = vunpack.c.l.b16 %v160
    %v305 = vunpack.c.h.b16 %v160
    %v306 = vunpack.c.l.b16 %v161
    %v307 = vunpack.c.h.b16 %v161
    %v308 = vunpack.c.l.b16 %v162
    %v309 = vunpack.c.h.b16 %v162
    %v310 = vunpack.c.l.b16 %v163
    %v311 = vunpack.c.h.b16 %v163
    %v312 = vunpack.c.l.b16 %v164
    %v313 = vunpack.c.h.b16 %v164
    %v314 = vunpack.c.l.b16 %v165
    %v315 = vunpack.c.h.b16 %v165
    %v316 = vunpack.c.l.b16 %v166
    %v317 = vunpack.c.h.b16 %v166
    %v318 = vunpack.c.l.b16 %v167
    %v319 = vunpack.c.h.b16 %v167
    %v320 = vunpack.c.l.b16 %v168
    %v321 = vunpack.c.h.b16 %v168
    %v322 = vunpack.c.l.b16 %v169
    %v323 = vunpack.c.h.b16 %v169
    %v324 = vunpack.c.l.b16 %v170
    %v325 = vunpack.c.h.b16 %v170
    %v326 = vunpack.c.l.b16 %v171
    %v327 = vunpack.c.h.b16 %v171
    %v328 = vunpack.c.l.b16 %v172
    %v329 = vunpack.c.h.b16 %v172
    %v330 = vunpack.c.l.b16 %v173
    %v331 = vunpack.c.h.b16 %v173
    %v332 = vunpack.c.l.b16 %v174
    %v333 = vunpack.c.h.b16 %v174
    %v334 = vunpack.c.l.b16 %v175
    %v335 = vunpack.c.h.b16 %v175
    %v336 = vunpack.c.l.b16 %v176
    %v337 = vunpack.c.h.b16 %v176
    %v338 = vunpack.c.l.b16 %v177
    %v339 = vunpack.c.h.b16 %v177
    %v340 = vunpack.c.l.b16 %v178
    %v341 = vunpack.c.h.b16 %v178
    %v342 = vunpack.c.l.b16 %v179
    %v343 = vunpack.c.h.b16 %v179
    %v344 = vunpack.c.l.b16 %v180
    %v345 = vunpack.c.h.b16 %v180
    %v346 = vunpack.c.l.b16 %v181
    %v347 = vunpack.c.h.b16 %v181
    %v348 = vunpack.c.l.b16 %v182
    %v349 = vunpack.c.h.b16 %v182
    %v350 = vunpack.c.l.b16 %v183
    %v351 = vunpack.c.h.b16 %v183
    %v352 = vunpack.c.l.b16 %v184
    %v353 = vunpack.c.h.b16 %v184
    %v354 = vunpack.c.l.b16 %v185
    %v355 = vunpack.c.h.b16 %v185
    %v356 = vunpack.c.l.b16 %v186
    %v357 = vunpack.c.h.b16 %v186
    %v358 = vunpack.c.l.b16 %v187
    %v359 = vunpack.c.h.b16 %v187
    %v360 = vunpack.c.l.b16 %v188
    %v361 = vunpack.c.h.b16 %v188
    %v362 = vunpack.c.l.b16 %v189
    %v363 = vunpack.c.h.b16 %v189
    %v364 = vunpack.c.l.b16 %v190
    %v365 = vunpack.c.h.b16 %v190
    %v366 = vunpack.c.l.b16 %v191
    %v367 = vunpack.c.h.b16 %v191
    %v368 = vunpack.c.l.b16 %v192
    %v369 = vunpack.c.h.b16 %v192
    %v370 = vunpack.c.l.b16 %v193
    %v371 = vunpack.c.h.b16 %v193
    %v372 = vunpack.c.l.b16 %v194
    %v373 = vunpack.c.h.b16 %v194
    %v374 = vunpack.c.l.b16 %v195
    %v375 = vunpack.c.h.b16 %v195
    %v376 = vunpack.c.l.b16 %v196
    %v377 = vunpack.c.h.b16 %v196
    %v378 = vunpack.c.l.b16 %v197
    %v379 = vunpack.c.h.b16 %v197
    %v380 = vunpack.c.l.b16 %v198
    %v381 = vunpack.c.h.b16 %v198
    %v382 = vunpack.c.l.b16 %v199
    %v383 = vunpack.c.h.b16 %v199
    %v384 = vunpack.c.l.b16 %v200
    %v385 = vunpack.c.h.b16 %v200
    %v386 = vunpack.c.l.b16 %v201
    %v387 = vunpack.c.h.b16 %v201
    %v388 = vunpack.c.l.b16 %v202
    %v389 = vunpack.c.h.b16 %v202
    %v390 = vunpack.c.l.b16 %v203
    %v391 = vunpack.c.h.b16 %v203
    %v392 = vunpack.c.l.b16 %v204
    %v393 = vunpack.c.h.b16 %v204
    %v394 = vunpack.c.l.b16 %v205
    %v395 = vunpack.c.h.b16 %v205
    %v396 = vunpack.c.l.b16 %v206
    %v397 = vunpack.c.h.b16 %v206
    %v398 = vunpack.c.l.b16 %v207
    %v399 = vunpack.c.h.b16 %v207
    %v400 = vpack.c.b16 %v280, %v272
    %v401 = vpack.c.b16 %v281, %v273
    %v402 = vpack.c.b16 %v282, %v274
    %v403 = vpack.c.b16 %v283, %v275
    %v404 = vpack.c.b16 %v284, %v276
    %v405 = vpack.c.b16 %v285, %v277
    %v406 = vpack.c.b16 %v286, %v278
    %v407 = vpack.c.b16 %v287, %v279
    %v408 = vpack.c.b16 %v296, %v288
    %v409 = vpack.c.b16 %v297, %v289
    %v410 = vpack.c.b16 %v298, %v290
    %v411 = vpack.c.b16 %v299, %v291
    %v412 = vpack.c.b16 %v300, %v292
    %v413 = vpack.c.b16 %v301, %v293
    %v414 = vpack.c.b16 %v302, %v294
    %v415 = vpack.c.b16 %v303, %v295
    %v416 = vpack.c.b16 %v312, %v304
    %v417 = vpack.c.b16 %v313, %v305
    %v418 = vpack.c.b16 %v314, %v306
    %v419 = vpack.c.b16 %v315, %v307
    %v420 = vpack.c.b16 %v316, %v308
    %v421 = vpack.c.b16 %v317, %v309
    %v422 = vpack.c.b16 %v318, %v310
    %v423 = vpack.c.b16 %v319, %v311
    %v424 = vpack.c.b16 %v328, %v320
    %v425 = vpack.c.b16 %v329, %v321
    %v426 = vpack.c.b16 %v330, %v322
    %v427 = vpack.c.b16 %v331, %v323
    %v428 = vpack.c.b16 %v332, %v324
    %v429 = vpack.c.b16 %v333, %v325
    %v430 = vpack.c.b16 %v334, %v326
    %v431 = vpack.c.b16 %v335, %v327
    %v432 = vpack.c.b16 %v344, %v336
    %v433 = vpack.c.b16 %v345, %v337
    %v434 = vpack.c.b16 %v346, %v338
    %v435 = vpack.c.b16 %v347, %v339
    %v436 = vpack.c.b16 %v348, %v340
    %v437 = vpack.c.b16 %v349, %v341
    %v438 = vpack.c.b16 %v350, %v342
    %v439 = vpack.c.b16 %v351, %v343
    %v440 = vpack.c.b16 %v360, %v352
    %v441 = vpack.c.b16 %v361, %v353
    %v442 = vpack.c.b16 %v362, %v354
    %v443 = vpack.c.b16 %v363, %v355
    %v444 = vpack.c.b16 %v364, %v356
    %v445 = vpack.c.b16 %v365, %v357
    %v446 = vpack.c.b16 %v366, %v358
    %v447 = vpack.c.b16 %v367, %v359
    %v448 = vpack.c.b16 %v376, %v368
    %v449 = vpack.c.b16 %v377, %v369
    %v450 = vpack.c.b16 %v378, %v370
    %v451 = vpack.c.b16 %v379, %v371
    %v452 = vpack.c.b16 %v380, %v372
    %v453 = vpack.c.b16 %v381, %v373
    %v454 = vpack.c.b16 %v382, %v374
    %v455 = vpack.c.b16 %v383, %v375
    %v456 = vpack.c.b16 %v392, %v384
    %v457 = vpack.c.b16 %v393, %v385
    %v458 = vpack.c.b16 %v394, %v386
    %v459 = vpack.c.b16 %v395, %v387
    %v460 = vpack.c.b16 %v396, %v388
    %v461 = vpack.c.b16 %v397, %v389
    %v462 = vpack.c.b16 %v398, %v390
    %v463 = vpack.c.b16 %v399, %v391
    %528 = vmatprep.subr.bf16.mxu0 %v457
    %529 = vmatpush1.bf16.msra.mxu0 %v456
    %530 = vmatprep.subr.bf16.mxu0 %v449
    %531 = vmatpush1.bf16.msra.mxu0 %v448
    %532 = vmatprep.subr.bf16.mxu0 %v441
    %533 = vmatpush1.bf16.msra.mxu0 %v440
    %534 = vmatprep.subr.bf16.mxu0 %v433
    %535 = vmatpush1.bf16.msra.mxu0 %v432
    %536 = vmatprep.subr.bf16.mxu0 %v425
    %537 = vmatpush1.bf16.msra.mxu0 %v424
    %538 = vmatprep.subr.bf16.mxu0 %v417
    %539 = vmatpush1.bf16.msra.mxu0 %v416
    %540 = vmatprep.subr.bf16.mxu0 %v409
    %541 = vmatpush1.bf16.msra.mxu0 %v408
    %542 = vmatprep.subr.bf16.mxu0 %v401
    %543 = vmatpush1.bf16.msra.mxu0 %v400
    %544 = vmatprep.subr.bf16.mxu0 0
    %545 = vmatpush2.bf16.msra.mxu0 0
    %546 = vmatprep.subr.bf16.mxu0 0
    %547 = vmatpush2.bf16.msra.mxu0 0
    %548 = vmatprep.subr.bf16.mxu0 0
    %549 = vmatpush2.bf16.msra.mxu0 0
    %550 = vmatprep.subr.bf16.mxu0 0
    %551 = vmatpush2.bf16.msra.mxu0 0
    %552 = vmatprep.subr.bf16.mxu0 0
    %553 = vmatpush2.bf16.msra.mxu0 0
    %554 = vmatprep.subr.bf16.mxu0 0
    %555 = vmatpush2.bf16.msra.mxu0 0
    %556 = vmatprep.subr.bf16.mxu0 0
    %557 = vmatpush2.bf16.msra.mxu0 0
    %558 = vmatprep.subr.bf16.mxu0 0
    %559 = vmatpush2.bf16.msra.mxu0 0
    %560 = vmatprep.mubr.bf16.mxu0 0
    %561 = vmatmul.mubr.bf16.gmra.mxu0 %v143
    %v562 = vpop.f32.mrf.mxu0
    %v563 = vadd.f32 0.0, %v562
    %v564 = vpop.f32.mrf.mxu0
    %v565 = vadd.f32 0.0, %v564
    %v566 = vpop.f32.mrf.mxu0
    %v567 = vadd.f32 0.0, %v566
    %v568 = vpop.f32.mrf.mxu0
    %v569 = vadd.f32 0.0, %v568
    %570 = vdwg.mxu0
    %571 = vmatprep.subr.bf16.mxu0 %v459
    %572 = vmatpush1.bf16.msra.mxu0 %v458
    %573 = vmatprep.subr.bf16.mxu0 %v451
    %574 = vmatpush1.bf16.msra.mxu0 %v450
    %575 = vmatprep.subr.bf16.mxu0 %v443
    %576 = vmatpush1.bf16.msra.mxu0 %v442
    %577 = vmatprep.subr.bf16.mxu0 %v435
    %578 = vmatpush1.bf16.msra.mxu0 %v434
    %579 = vmatprep.subr.bf16.mxu0 %v427
    %580 = vmatpush1.bf16.msra.mxu0 %v426
    %581 = vmatprep.subr.bf16.mxu0 %v419
    %582 = vmatpush1.bf16.msra.mxu0 %v418
    %583 = vmatprep.subr.bf16.mxu0 %v411
    %584 = vmatpush1.bf16.msra.mxu0 %v410
    %585 = vmatprep.subr.bf16.mxu0 %v403
    %586 = vmatpush1.bf16.msra.mxu0 %v402
    %587 = vmatprep.subr.bf16.mxu0 0
    %588 = vmatpush2.bf16.msra.mxu0 0
    %589 = vmatprep.subr.bf16.mxu0 0
    %590 = vmatpush2.bf16.msra.mxu0 0
    %591 = vmatprep.subr.bf16.mxu0 0
    %592 = vmatpush2.bf16.msra.mxu0 0
    %593 = vmatprep.subr.bf16.mxu0 0
    %594 = vmatpush2.bf16.msra.mxu0 0
    %595 = vmatprep.subr.bf16.mxu0 0
    %596 = vmatpush2.bf16.msra.mxu0 0
    %597 = vmatprep.subr.bf16.mxu0 0
    %598 = vmatpush2.bf16.msra.mxu0 0
    %599 = vmatprep.subr.bf16.mxu0 0
    %600 = vmatpush2.bf16.msra.mxu0 0
    %601 = vmatprep.subr.bf16.mxu0 0
    %602 = vmatpush2.bf16.msra.mxu0 0
    %603 = vmatprep.mubr.bf16.mxu0 0
    %604 = vmatmul.mubr.bf16.gmra.mxu0 %v143
    %v605 = vpop.f32.mrf.mxu0
    %v606 = vadd.f32 0.0, %v605
    %v607 = vpop.f32.mrf.mxu0
    %v608 = vadd.f32 0.0, %v607
    %v609 = vpop.f32.mrf.mxu0
    %v610 = vadd.f32 0.0, %v609
    %v611 = vpop.f32.mrf.mxu0
    %v612 = vadd.f32 0.0, %v611
    %613 = vdwg.mxu0
    %614 = vmatprep.subr.bf16.mxu0 %v461
    %615 = vmatpush1.bf16.msra.mxu0 %v460
    %616 = vmatprep.subr.bf16.mxu0 %v453
    %617 = vmatpush1.bf16.msra.mxu0 %v452
    %618 = vmatprep.subr.bf16.mxu0 %v445
    %619 = vmatpush1.bf16.msra.mxu0 %v444
    %620 = vmatprep.subr.bf16.mxu0 %v437
    %621 = vmatpush1.bf16.msra.mxu0 %v436
    %622 = vmatprep.subr.bf16.mxu0 %v429
    %623 = vmatpush1.bf16.msra.mxu0 %v428
    %624 = vmatprep.subr.bf16.mxu0 %v421
    %625 = vmatpush1.bf16.msra.mxu0 %v420
    %626 = vmatprep.subr.bf16.mxu0 %v413
    %627 = vmatpush1.bf16.msra.mxu0 %v412
    %628 = vmatprep.subr.bf16.mxu0 %v405
    %629 = vmatpush1.bf16.msra.mxu0 %v404
    %630 = vmatprep.subr.bf16.mxu0 0
    %631 = vmatpush2.bf16.msra.mxu0 0
    %632 = vmatprep.subr.bf16.mxu0 0
    %633 = vmatpush2.bf16.msra.mxu0 0
    %634 = vmatprep.subr.bf16.mxu0 0
    %635 = vmatpush2.bf16.msra.mxu0 0
    %636 = vmatprep.subr.bf16.mxu0 0
    %637 = vmatpush2.bf16.msra.mxu0 0
    %638 = vmatprep.subr.bf16.mxu0 0
    %639 = vmatpush2.bf16.msra.mxu0 0
    %640 = vmatprep.subr.bf16.mxu0 0
    %641 = vmatpush2.bf16.msra.mxu0 0
    %642 = vmatprep.subr.bf16.mxu0 0
    %643 = vmatpush2.bf16.msra.mxu0 0
    %644 = vmatprep.subr.bf16.mxu0 0
    %645 = vmatpush2.bf16.msra.mxu0 0
    %646 = vmatprep.mubr.bf16.mxu0 0
    %647 = vmatmul.mubr.bf16.gmra.mxu0 %v143
    %v648 = vpop.f32.mrf.mxu0
    %v649 = vadd.f32 0.0, %v648
    %v650 = vpop.f32.mrf.mxu0
    %v651 = vadd.f32 0.0, %v650
    %v652 = vpop.f32.mrf.mxu0
    %v653 = vadd.f32 0.0, %v652
    %v654 = vpop.f32.mrf.mxu0
    %v655 = vadd.f32 0.0, %v654
    %656 = vdwg.mxu0
    %657 = vmatprep.subr.bf16.mxu0 %v463
    %658 = vmatpush1.bf16.msra.mxu0 %v462
    %659 = vmatprep.subr.bf16.mxu0 %v455
    %660 = vmatpush1.bf16.msra.mxu0 %v454
    %661 = vmatprep.subr.bf16.mxu0 %v447
    %662 = vmatpush1.bf16.msra.mxu0 %v446
    %663 = vmatprep.subr.bf16.mxu0 %v439
    %664 = vmatpush1.bf16.msra.mxu0 %v438
    %665 = vmatprep.subr.bf16.mxu0 %v431
    %666 = vmatpush1.bf16.msra.mxu0 %v430
    %667 = vmatprep.subr.bf16.mxu0 %v423
    %668 = vmatpush1.bf16.msra.mxu0 %v422
    %669 = vmatprep.subr.bf16.mxu0 %v415
    %670 = vmatpush1.bf16.msra.mxu0 %v414
    %671 = vmatprep.subr.bf16.mxu0 %v407
    %672 = vmatpush1.bf16.msra.mxu0 %v406
    %673 = vmatprep.subr.bf16.mxu0 0
    %674 = vmatpush2.bf16.msra.mxu0 0
    %675 = vmatprep.subr.bf16.mxu0 0
    %676 = vmatpush2.bf16.msra.mxu0 0
    %677 = vmatprep.subr.bf16.mxu0 0
    %678 = vmatpush2.bf16.msra.mxu0 0
    %679 = vmatprep.subr.bf16.mxu0 0
    %680 = vmatpush2.bf16.msra.mxu0 0
    %681 = vmatprep.subr.bf16.mxu0 0
    %682 = vmatpush2.bf16.msra.mxu0 0
    %683 = vmatprep.subr.bf16.mxu0 0
    %684 = vmatpush2.bf16.msra.mxu0 0
    %685 = vmatprep.subr.bf16.mxu0 0
    %686 = vmatpush2.bf16.msra.mxu0 0
    %687 = vmatprep.subr.bf16.mxu0 0
    %688 = vmatpush2.bf16.msra.mxu0 0
    %689 = vmatprep.mubr.bf16.mxu0 0
    %690 = vmatmul.mubr.bf16.gmra.mxu0 %v143
    %v691 = vpop.f32.mrf.mxu0
    %v692 = vadd.f32 0.0, %v691
    %v693 = vpop.f32.mrf.mxu0
    %v694 = vadd.f32 0.0, %v693
    %v695 = vpop.f32.mrf.mxu0
    %v696 = vadd.f32 0.0, %v695
    %v697 = vpop.f32.mrf.mxu0
    %v698 = vadd.f32 0.0, %v697
    %699 = vdwg.mxu0
    %700 = vst [vmem:[#allocation2] sm:$0xff] %v563
    %701 = vst [vmem:[#allocation2 + $0x8] sm:$0xff] %v565
    %702 = vst [vmem:[#allocation2 + $0x10] sm:$0xff] %v606
    %703 = vst [vmem:[#allocation2 + $0x18] sm:$0xff] %v608
    %704 = vst [vmem:[#allocation2 + $0x20] sm:$0xff] %v649
    %705 = vst [vmem:[#allocation2 + $0x28] sm:$0xff] %v651
    %706 = vst [vmem:[#allocation2 + $0x30] sm:$0xff] %v692
    %707 = vst [vmem:[#allocation2 + $0x38] sm:$0xff] %v694
    %708 = vst [vmem:[#allocation2 + $0x40] sm:$0xff] %v567
    %709 = vst [vmem:[#allocation2 + $0x48] sm:$0xff] %v569
    %710 = vst [vmem:[#allocation2 + $0x50] sm:$0xff] %v610
    %711 = vst [vmem:[#allocation2 + $0x58] sm:$0xff] %v612
    %712 = vst [vmem:[#allocation2 + $0x60] sm:$0xff] %v653
    %713 = vst [vmem:[#allocation2 + $0x68] sm:$0xff] %v655
    %714 = vst [vmem:[#allocation2 + $0x70] sm:$0xff] %v696
    %715 = vst [vmem:[#allocation2 + $0x78] sm:$0xff] %v698
    %v716 = vld [vmem:[#allocation2] sm:$0x3]
    %v717 = vld [vmem:[#allocation2 + $0x8] sm:$0x3]
    %v718 = vld [vmem:[#allocation2 + $0x10] sm:$0x3]
    %v719 = vld [vmem:[#allocation2 + $0x18] sm:$0x3]
    %v720 = vld [vmem:[#allocation8] sm:$0xff]
    %v721 = vld [vmem:[#allocation8 + $0x8] sm:$0xff]
    %v722 = vld [vmem:[#allocation8 + $0x10] sm:$0xff]
    %v723 = vld [vmem:[#allocation8 + $0x18] sm:$0xff]
    %v724 = vld [vmem:[#allocation8 + $0x20] sm:$0xff]
    %v725 = vld [vmem:[#allocation8 + $0x28] sm:$0xff]
    %v726 = vld [vmem:[#allocation8 + $0x30] sm:$0xff]
    %v727 = vld [vmem:[#allocation8 + $0x38] sm:$0xff]
    %v728 = vld [vmem:[#allocation8 + $0x40] sm:$0xff]
    %v729 = vld [vmem:[#allocation8 + $0x48] sm:$0xff]
    %v730 = vld [vmem:[#allocation8 + $0x50] sm:$0xff]
    %v731 = vld [vmem:[#allocation8 + $0x58] sm:$0xff]
    %v732 = vld [vmem:[#allocation8 + $0x60] sm:$0xff]
    %v733 = vld [vmem:[#allocation8 + $0x68] sm:$0xff]
    %v734 = vld [vmem:[#allocation8 + $0x70] sm:$0xff]
    %v735 = vld [vmem:[#allocation8 + $0x78] sm:$0xff]
    %v736 = vld [vmem:[#allocation8 + $0x80] sm:$0xff]
    %v737 = vld [vmem:[#allocation8 + $0x88] sm:$0xff]
    %v738 = vld [vmem:[#allocation8 + $0x90] sm:$0xff]
    %v739 = vld [vmem:[#allocation8 + $0x98] sm:$0xff]
    %v740 = vld [vmem:[#allocation8 + $0xa0] sm:$0xff]
    %v741 = vld [vmem:[#allocation8 + $0xa8] sm:$0xff]
    %v742 = vld [vmem:[#allocation8 + $0xb0] sm:$0xff]
    %v743 = vld [vmem:[#allocation8 + $0xb8] sm:$0xff]
    %v744 = vld [vmem:[#allocation8 + $0xc0] sm:$0xff]
    %v745 = vld [vmem:[#allocation8 + $0xc8] sm:$0xff]
    %v746 = vld [vmem:[#allocation8 + $0xd0] sm:$0xff]
    %v747 = vld [vmem:[#allocation8 + $0xd8] sm:$0xff]
    %v748 = vld [vmem:[#allocation8 + $0xe0] sm:$0xff]
    %v749 = vld [vmem:[#allocation8 + $0xe8] sm:$0xff]
    %v750 = vld [vmem:[#allocation8 + $0xf0] sm:$0xff]
    %v751 = vld [vmem:[#allocation8 + $0xf8] sm:$0xff]
    %v784 = vunpack.c.l.b16 %v720
    %v785 = vunpack.c.h.b16 %v720
    %v786 = vunpack.c.l.b16 %v721
    %v787 = vunpack.c.h.b16 %v721
    %v788 = vunpack.c.l.b16 %v722
    %v789 = vunpack.c.h.b16 %v722
    %v790 = vunpack.c.l.b16 %v723
    %v791 = vunpack.c.h.b16 %v723
    %v792 = vunpack.c.l.b16 %v724
    %v793 = vunpack.c.h.b16 %v724
    %v794 = vunpack.c.l.b16 %v725
    %v795 = vunpack.c.h.b16 %v725
    %v796 = vunpack.c.l.b16 %v726
    %v797 = vunpack.c.h.b16 %v726
    %v798 = vunpack.c.l.b16 %v727
    %v799 = vunpack.c.h.b16 %v727
    %v800 = vunpack.c.l.b16 %v728
    %v801 = vunpack.c.h.b16 %v728
    %v802 = vunpack.c.l.b16 %v729
    %v803 = vunpack.c.h.b16 %v729
    %v804 = vunpack.c.l.b16 %v730
    %v805 = vunpack.c.h.b16 %v730
    %v806 = vunpack.c.l.b16 %v731
    %v807 = vunpack.c.h.b16 %v731
    %v808 = vunpack.c.l.b16 %v732
    %v809 = vunpack.c.h.b16 %v732
    %v810 = vunpack.c.l.b16 %v733
    %v811 = vunpack.c.h.b16 %v733
    %v812 = vunpack.c.l.b16 %v734
    %v813 = vunpack.c.h.b16 %v734
    %v814 = vunpack.c.l.b16 %v735
    %v815 = vunpack.c.h.b16 %v735
    %v816 = vunpack.c.l.b16 %v736
    %v817 = vunpack.c.h.b16 %v736
    %v818 = vunpack.c.l.b16 %v737
    %v819 = vunpack.c.h.b16 %v737
    %v820 = vunpack.c.l.b16 %v738
    %v821 = vunpack.c.h.b16 %v738
    %v822 = vunpack.c.l.b16 %v739
    %v823 = vunpack.c.h.b16 %v739
    %v824 = vunpack.c.l.b16 %v740
    %v825 = vunpack.c.h.b16 %v740
    %v826 = vunpack.c.l.b16 %v741
    %v827 = vunpack.c.h.b16 %v741
    %v828 = vunpack.c.l.b16 %v742
    %v829 = vunpack.c.h.b16 %v742
    %v830 = vunpack.c.l.b16 %v743
    %v831 = vunpack.c.h.b16 %v743
    %v832 = vunpack.c.l.b16 %v744
    %v833 = vunpack.c.h.b16 %v744
    %v834 = vunpack.c.l.b16 %v745
    %v835 = vunpack.c.h.b16 %v745
    %v836 = vunpack.c.l.b16 %v746
    %v837 = vunpack.c.h.b16 %v746
    %v838 = vunpack.c.l.b16 %v747
    %v839 = vunpack.c.h.b16 %v747
    %v840 = vunpack.c.l.b16 %v748
    %v841 = vunpack.c.h.b16 %v748
    %v842 = vunpack.c.l.b16 %v749
    %v843 = vunpack.c.h.b16 %v749
    %v844 = vunpack.c.l.b16 %v750
    %v845 = vunpack.c.h.b16 %v750
    %v846 = vunpack.c.l.b16 %v751
    %v847 = vunpack.c.h.b16 %v751
    %v848 = vpack.c.b16 %v788, %v784
    %v849 = vpack.c.b16 %v789, %v785
    %v850 = vpack.c.b16 %v790, %v786
    %v851 = vpack.c.b16 %v791, %v787
    %v852 = vpack.c.b16 %v796, %v792
    %v853 = vpack.c.b16 %v797, %v793
    %v854 = vpack.c.b16 %v798, %v794
    %v855 = vpack.c.b16 %v799, %v795
    %v856 = vpack.c.b16 %v804, %v800
    %v857 = vpack.c.b16 %v805, %v801
    %v858 = vpack.c.b16 %v806, %v802
    %v859 = vpack.c.b16 %v807, %v803
    %v860 = vpack.c.b16 %v812, %v808
    %v861 = vpack.c.b16 %v813, %v809
    %v862 = vpack.c.b16 %v814, %v810
    %v863 = vpack.c.b16 %v815, %v811
    %v864 = vpack.c.b16 %v820, %v816
    %v865 = vpack.c.b16 %v821, %v817
    %v866 = vpack.c.b16 %v822, %v818
    %v867 = vpack.c.b16 %v823, %v819
    %v868 = vpack.c.b16 %v828, %v824
    %v869 = vpack.c.b16 %v829, %v825
    %v870 = vpack.c.b16 %v830, %v826
    %v871 = vpack.c.b16 %v831, %v827
    %v872 = vpack.c.b16 %v836, %v832
    %v873 = vpack.c.b16 %v837, %v833
    %v874 = vpack.c.b16 %v838, %v834
    %v875 = vpack.c.b16 %v839, %v835
    %v876 = vpack.c.b16 %v844, %v840
    %v877 = vpack.c.b16 %v845, %v841
    %v878 = vpack.c.b16 %v846, %v842
    %v879 = vpack.c.b16 %v847, %v843
    %912 = vmatprep.subr.bf16.mxu0 %v877
    %913 = vmatpush1.bf16.msra.mxu0 %v876
    %914 = vmatprep.subr.bf16.mxu0 %v873
    %915 = vmatpush1.bf16.msra.mxu0 %v872
    %916 = vmatprep.subr.bf16.mxu0 %v869
    %917 = vmatpush1.bf16.msra.mxu0 %v868
    %918 = vmatprep.subr.bf16.mxu0 %v865
    %919 = vmatpush1.bf16.msra.mxu0 %v864
    %920 = vmatprep.subr.bf16.mxu0 %v861
    %921 = vmatpush1.bf16.msra.mxu0 %v860
    %922 = vmatprep.subr.bf16.mxu0 %v857
    %923 = vmatpush1.bf16.msra.mxu0 %v856
    %924 = vmatprep.subr.bf16.mxu0 %v853
    %925 = vmatpush1.bf16.msra.mxu0 %v852
    %926 = vmatprep.subr.bf16.mxu0 %v849
    %927 = vmatpush1.bf16.msra.mxu0 %v848
    %928 = vmatprep.subr.bf16.mxu0 0
    %929 = vmatpush2.bf16.msra.mxu0 0
    %930 = vmatprep.subr.bf16.mxu0 0
    %931 = vmatpush2.bf16.msra.mxu0 0
    %932 = vmatprep.subr.bf16.mxu0 0
    %933 = vmatpush2.bf16.msra.mxu0 0
    %934 = vmatprep.subr.bf16.mxu0 0
    %935 = vmatpush2.bf16.msra.mxu0 0
    %936 = vmatprep.subr.bf16.mxu0 0
    %937 = vmatpush2.bf16.msra.mxu0 0
    %938 = vmatprep.subr.bf16.mxu0 0
    %939 = vmatpush2.bf16.msra.mxu0 0
    %940 = vmatprep.subr.bf16.mxu0 0
    %941 = vmatpush2.bf16.msra.mxu0 0
    %942 = vmatprep.subr.bf16.mxu0 0
    %943 = vmatpush2.bf16.msra.mxu0 0
    %944 = vmatprep.mubr.bf16.mxu0 0
    %945 = vmatmul.mubr.bf16.gmra.mxu0 0
    %v946 = vpop.f32.mrf.mxu0
    %v947 = vadd.f32 0.0, %v946
    %v948 = vpop.f32.mrf.mxu0
    %v949 = vadd.f32 0.0, %v948
    %v950 = vpop.f32.mrf.mxu0
    %v951 = vpop.f32.mrf.mxu0
    %952 = vdwg.mxu0
    %953 = vmatprep.subr.bf16.mxu0 %v879
    %954 = vmatpush1.bf16.msra.mxu0 %v878
    %955 = vmatprep.subr.bf16.mxu0 %v875
    %956 = vmatpush1.bf16.msra.mxu0 %v874
    %957 = vmatprep.subr.bf16.mxu0 %v871
    %958 = vmatpush1.bf16.msra.mxu0 %v870
    %959 = vmatprep.subr.bf16.mxu0 %v867
    %960 = vmatpush1.bf16.msra.mxu0 %v866
    %961 = vmatprep.subr.bf16.mxu0 %v863
    %962 = vmatpush1.bf16.msra.mxu0 %v862
    %963 = vmatprep.subr.bf16.mxu0 %v859
    %964 = vmatpush1.bf16.msra.mxu0 %v858
    %965 = vmatprep.subr.bf16.mxu0 %v855
    %966 = vmatpush1.bf16.msra.mxu0 %v854
    %967 = vmatprep.subr.bf16.mxu0 %v851
    %968 = vmatpush1.bf16.msra.mxu0 %v850
    %969 = vmatprep.subr.bf16.mxu0 0
    %970 = vmatpush2.bf16.msra.mxu0 0
    %971 = vmatprep.subr.bf16.mxu0 0
    %972 = vmatpush2.bf16.msra.mxu0 0
    %973 = vmatprep.subr.bf16.mxu0 0
    %974 = vmatpush2.bf16.msra.mxu0 0
    %975 = vmatprep.subr.bf16.mxu0 0
    %976 = vmatpush2.bf16.msra.mxu0 0
    %977 = vmatprep.subr.bf16.mxu0 0
    %978 = vmatpush2.bf16.msra.mxu0 0
    %979 = vmatprep.subr.bf16.mxu0 0
    %980 = vmatpush2.bf16.msra.mxu0 0
    %981 = vmatprep.subr.bf16.mxu0 0
    %982 = vmatpush2.bf16.msra.mxu0 0
    %983 = vmatprep.subr.bf16.mxu0 0
    %984 = vmatpush2.bf16.msra.mxu0 0
    %985 = vmatprep.mubr.bf16.mxu0 0
    %986 = vmatmul.mubr.bf16.gmra.mxu0 0
    %v987 = vpop.f32.mrf.mxu0
    %v988 = vadd.f32 0.0, %v987
    %v989 = vpop.f32.mrf.mxu0
    %v990 = vadd.f32 0.0, %v989
    %v991 = vpop.f32.mrf.mxu0
    %v992 = vpop.f32.mrf.mxu0
    %993 = vdwg.mxu0
    %v994 = vadd.f32 %v716, %v947
    %v995 = vadd.f32 %v717, %v949
    %v996 = vadd.f32 %v718, %v988
    %v997 = vadd.f32 %v719, %v990
    %v998 = vld [vmem:[#allocation2 + $0x60] sm:$0xc0]
    %v999 = vld [vmem:[#allocation2 + $0x68] sm:$0xc0]
    %v1000 = vld [vmem:[#allocation2 + $0x70] sm:$0xc0]
    %v1001 = vld [vmem:[#allocation2 + $0x78] sm:$0xc0]
    %v1002 = vld [vmem:[#allocation10] sm:$0xff]
    %v1003 = vld [vmem:[#allocation10 + $0x8] sm:$0xff]
    %v1004 = vld [vmem:[#allocation10 + $0x10] sm:$0xff]
    %v1005 = vld [vmem:[#allocation10 + $0x18] sm:$0xff]
    %v1006 = vld [vmem:[#allocation10 + $0x20] sm:$0xff]
    %v1007 = vld [vmem:[#allocation10 + $0x28] sm:$0xff]
    %v1008 = vld [vmem:[#allocation10 + $0x30] sm:$0xff]
    %v1009 = vld [vmem:[#allocation10 + $0x38] sm:$0xff]
    %v1010 = vld [vmem:[#allocation10 + $0x40] sm:$0xff]
    %v1011 = vld [vmem:[#allocation10 + $0x48] sm:$0xff]
    %v1012 = vld [vmem:[#allocation10 + $0x50] sm:$0xff]
    %v1013 = vld [vmem:[#allocation10 + $0x58] sm:$0xff]
    %v1014 = vld [vmem:[#allocation10 + $0x60] sm:$0xff]
    %v1015 = vld [vmem:[#allocation10 + $0x68] sm:$0xff]
    %v1016 = vld [vmem:[#allocation10 + $0x70] sm:$0xff]
    %v1017 = vld [vmem:[#allocation10 + $0x78] sm:$0xff]
    %v1018 = vld [vmem:[#allocation10 + $0x80] sm:$0xff]
    %v1019 = vld [vmem:[#allocation10 + $0x88] sm:$0xff]
    %v1020 = vld [vmem:[#allocation10 + $0x90] sm:$0xff]
    %v1021 = vld [vmem:[#allocation10 + $0x98] sm:$0xff]
    %v1022 = vld [vmem:[#allocation10 + $0xa0] sm:$0xff]
    %v1023 = vld [vmem:[#allocation10 + $0xa8] sm:$0xff]
    %v1024 = vld [vmem:[#allocation10 + $0xb0] sm:$0xff]
    %v1025 = vld [vmem:[#allocation10 + $0xb8] sm:$0xff]
    %v1026 = vld [vmem:[#allocation10 + $0xc0] sm:$0xff]
    %v1027 = vld [vmem:[#allocation10 + $0xc8] sm:$0xff]
    %v1028 = vld [vmem:[#allocation10 + $0xd0] sm:$0xff]
    %v1029 = vld [vmem:[#allocation10 + $0xd8] sm:$0xff]
    %v1030 = vld [vmem:[#allocation10 + $0xe0] sm:$0xff]
    %v1031 = vld [vmem:[#allocation10 + $0xe8] sm:$0xff]
    %v1032 = vld [vmem:[#allocation10 + $0xf0] sm:$0xff]
    %v1033 = vld [vmem:[#allocation10 + $0xf8] sm:$0xff]
    %v1066 = vunpack.c.l.b16 %v1002
    %v1067 = vunpack.c.h.b16 %v1002
    %v1068 = vunpack.c.l.b16 %v1003
    %v1069 = vunpack.c.h.b16 %v1003
    %v1070 = vunpack.c.l.b16 %v1004
    %v1071 = vunpack.c.h.b16 %v1004
    %v1072 = vunpack.c.l.b16 %v1005
    %v1073 = vunpack.c.h.b16 %v1005
    %v1074 = vunpack.c.l.b16 %v1006
    %v1075 = vunpack.c.h.b16 %v1006
    %v1076 = vunpack.c.l.b16 %v1007
    %v1077 = vunpack.c.h.b16 %v1007
    %v1078 = vunpack.c.l.b16 %v1008
    %v1079 = vunpack.c.h.b16 %v1008
    %v1080 = vunpack.c.l.b16 %v1009
    %v1081 = vunpack.c.h.b16 %v1009
    %v1082 = vunpack.c.l.b16 %v1010
    %v1083 = vunpack.c.h.b16 %v1010
    %v1084 = vunpack.c.l.b16 %v1011
    %v1085 = vunpack.c.h.b16 %v1011
    %v1086 = vunpack.c.l.b16 %v1012
    %v1087 = vunpack.c.h.b16 %v1012
    %v1088 = vunpack.c.l.b16 %v1013
    %v1089 = vunpack.c.h.b16 %v1013
    %v1090 = vunpack.c.l.b16 %v1014
    %v1091 = vunpack.c.h.b16 %v1014
    %v1092 = vunpack.c.l.b16 %v1015
    %v1093 = vunpack.c.h.b16 %v1015
    %v1094 = vunpack.c.l.b16 %v1016
    %v1095 = vunpack.c.h.b16 %v1016
    %v1096 = vunpack.c.l.b16 %v1017
    %v1097 = vunpack.c.h.b16 %v1017
    %v1098 = vunpack.c.l.b16 %v1018
    %v1099 = vunpack.c.h.b16 %v1018
    %v1100 = vunpack.c.l.b16 %v1019
    %v1101 = vunpack.c.h.b16 %v1019
    %v1102 = vunpack.c.l.b16 %v1020
    %v1103 = vunpack.c.h.b16 %v1020
    %v1104 = vunpack.c.l.b16 %v1021
    %v1105 = vunpack.c.h.b16 %v1021
    %v1106 = vunpack.c.l.b16 %v1022
    %v1107 = vunpack.c.h.b16 %v1022
    %v1108 = vunpack.c.l.b16 %v1023
    %v1109 = vunpack.c.h.b16 %v1023
    %v1110 = vunpack.c.l.b16 %v1024
    %v1111 = vunpack.c.h.b16 %v1024
    %v1112 = vunpack.c.l.b16 %v1025
    %v1113 = vunpack.c.h.b16 %v1025
    %v1114 = vunpack.c.l.b16 %v1026
    %v1115 = vunpack.c.h.b16 %v1026
    %v1116 = vunpack.c.l.b16 %v1027
    %v1117 = vunpack.c.h.b16 %v1027
    %v1118 = vunpack.c.l.b16 %v1028
    %v1119 = vunpack.c.h.b16 %v1028
    %v1120 = vunpack.c.l.b16 %v1029
    %v1121 = vunpack.c.h.b16 %v1029
    %v1122 = vunpack.c.l.b16 %v1030
    %v1123 = vunpack.c.h.b16 %v1030
    %v1124 = vunpack.c.l.b16 %v1031
    %v1125 = vunpack.c.h.b16 %v1031
    %v1126 = vunpack.c.l.b16 %v1032
    %v1127 = vunpack.c.h.b16 %v1032
    %v1128 = vunpack.c.l.b16 %v1033
    %v1129 = vunpack.c.h.b16 %v1033
    %v1130 = vpack.c.b16 %v1070, %v1066
    %v1131 = vpack.c.b16 %v1071, %v1067
    %v1132 = vpack.c.b16 %v1072, %v1068
    %v1133 = vpack.c.b16 %v1073, %v1069
    %v1134 = vpack.c.b16 %v1078, %v1074
    %v1135 = vpack.c.b16 %v1079, %v1075
    %v1136 = vpack.c.b16 %v1080, %v1076
    %v1137 = vpack.c.b16 %v1081, %v1077
    %v1138 = vpack.c.b16 %v1086, %v1082
    %v1139 = vpack.c.b16 %v1087, %v1083
    %v1140 = vpack.c.b16 %v1088, %v1084
    %v1141 = vpack.c.b16 %v1089, %v1085
    %v1142 = vpack.c.b16 %v1094, %v1090
    %v1143 = vpack.c.b16 %v1095, %v1091
    %v1144 = vpack.c.b16 %v1096, %v1092
    %v1145 = vpack.c.b16 %v1097, %v1093
    %v1146 = vpack.c.b16 %v1102, %v1098
    %v1147 = vpack.c.b16 %v1103, %v1099
    %v1148 = vpack.c.b16 %v1104, %v1100
    %v1149 = vpack.c.b16 %v1105, %v1101
    %v1150 = vpack.c.b16 %v1110, %v1106
    %v1151 = vpack.c.b16 %v1111, %v1107
    %v1152 = vpack.c.b16 %v1112, %v1108
    %v1153 = vpack.c.b16 %v1113, %v1109
    %v1154 = vpack.c.b16 %v1118, %v1114
    %v1155 = vpack.c.b16 %v1119, %v1115
    %v1156 = vpack.c.b16 %v1120, %v1116
    %v1157 = vpack.c.b16 %v1121, %v1117
    %v1158 = vpack.c.b16 %v1126, %v1122
    %v1159 = vpack.c.b16 %v1127, %v1123
    %v1160 = vpack.c.b16 %v1128, %v1124
    %v1161 = vpack.c.b16 %v1129, %v1125
    %1194 = vmatprep.subr.bf16.mxu0 %v1159
    %1195 = vmatpush1.bf16.msra.mxu0 %v1158
    %1196 = vmatprep.subr.bf16.mxu0 %v1155
    %1197 = vmatpush1.bf16.msra.mxu0 %v1154
    %1198 = vmatprep.subr.bf16.mxu0 %v1151
    %1199 = vmatpush1.bf16.msra.mxu0 %v1150
    %1200 = vmatprep.subr.bf16.mxu0 %v1147
    %1201 = vmatpush1.bf16.msra.mxu0 %v1146
    %1202 = vmatprep.subr.bf16.mxu0 %v1143
    %1203 = vmatpush1.bf16.msra.mxu0 %v1142
    %1204 = vmatprep.subr.bf16.mxu0 %v1139
    %1205 = vmatpush1.bf16.msra.mxu0 %v1138
    %1206 = vmatprep.subr.bf16.mxu0 %v1135
    %1207 = vmatpush1.bf16.msra.mxu0 %v1134
    %1208 = vmatprep.subr.bf16.mxu0 %v1131
    %1209 = vmatpush1.bf16.msra.mxu0 %v1130
    %1210 = vmatprep.subr.bf16.mxu0 0
    %1211 = vmatpush2.bf16.msra.mxu0 0
    %1212 = vmatprep.subr.bf16.mxu0 0
    %1213 = vmatpush2.bf16.msra.mxu0 0
    %1214 = vmatprep.subr.bf16.mxu0 0
    %1215 = vmatpush2.bf16.msra.mxu0 0
    %1216 = vmatprep.subr.bf16.mxu0 0
    %1217 = vmatpush2.bf16.msra.mxu0 0
    %1218 = vmatprep.subr.bf16.mxu0 0
    %1219 = vmatpush2.bf16.msra.mxu0 0
    %1220 = vmatprep.subr.bf16.mxu0 0
    %1221 = vmatpush2.bf16.msra.mxu0 0
    %1222 = vmatprep.subr.bf16.mxu0 0
    %1223 = vmatpush2.bf16.msra.mxu0 0
    %1224 = vmatprep.subr.bf16.mxu0 0
    %1225 = vmatpush2.bf16.msra.mxu0 0
    %1226 = vmatprep.mubr.bf16.mxu0 0
    %1227 = vmatmul.mubr.bf16.gmra.mxu0 0
    %v1228 = vpop.f32.mrf.mxu0
    %v1229 = vadd.f32 0.0, %v1228
    %v1230 = vpop.f32.mrf.mxu0
    %v1231 = vadd.f32 0.0, %v1230
    %v1232 = vpop.f32.mrf.mxu0
    %v1233 = vpop.f32.mrf.mxu0
    %1234 = vdwg.mxu0
    %1235 = vmatprep.subr.bf16.mxu0 %v1161
    %1236 = vmatpush1.bf16.msra.mxu0 %v1160
    %1237 = vmatprep.subr.bf16.mxu0 %v1157
    %1238 = vmatpush1.bf16.msra.mxu0 %v1156
    %1239 = vmatprep.subr.bf16.mxu0 %v1153
    %1240 = vmatpush1.bf16.msra.mxu0 %v1152
    %1241 = vmatprep.subr.bf16.mxu0 %v1149
    %1242 = vmatpush1.bf16.msra.mxu0 %v1148
    %1243 = vmatprep.subr.bf16.mxu0 %v1145
    %1244 = vmatpush1.bf16.msra.mxu0 %v1144
    %1245 = vmatprep.subr.bf16.mxu0 %v1141
    %1246 = vmatpush1.bf16.msra.mxu0 %v1140
    %1247 = vmatprep.subr.bf16.mxu0 %v1137
    %1248 = vmatpush1.bf16.msra.mxu0 %v1136
    %1249 = vmatprep.subr.bf16.mxu0 %v1133
    %1250 = vmatpush1.bf16.msra.mxu0 %v1132
    %1251 = vmatprep.subr.bf16.mxu0 0
    %1252 = vmatpush2.bf16.msra.mxu0 0
    %1253 = vmatprep.subr.bf16.mxu0 0
    %1254 = vmatpush2.bf16.msra.mxu0 0
    %1255 = vmatprep.subr.bf16.mxu0 0
    %1256 = vmatpush2.bf16.msra.mxu0 0
    %1257 = vmatprep.subr.bf16.mxu0 0
    %1258 = vmatpush2.bf16.msra.mxu0 0
    %1259 = vmatprep.subr.bf16.mxu0 0
    %1260 = vmatpush2.bf16.msra.mxu0 0
    %1261 = vmatprep.subr.bf16.mxu0 0
    %1262 = vmatpush2.bf16.msra.mxu0 0
    %1263 = vmatprep.subr.bf16.mxu0 0
    %1264 = vmatpush2.bf16.msra.mxu0 0
    %1265 = vmatprep.subr.bf16.mxu0 0
    %1266 = vmatpush2.bf16.msra.mxu0 0
    %1267 = vmatprep.mubr.bf16.mxu0 0
    %1268 = vmatmul.mubr.bf16.gmra.mxu0 0
    %v1269 = vpop.f32.mrf.mxu0
    %v1270 = vadd.f32 0.0, %v1269
    %v1271 = vpop.f32.mrf.mxu0
    %v1272 = vadd.f32 0.0, %v1271
    %v1273 = vpop.f32.mrf.mxu0
    %v1274 = vpop.f32.mrf.mxu0
    %1275 = vdwg.mxu0
    %v1280 = vrot.slane %v1229, 2
    %v1281 = vrot.slane %v1231, 2
    %v1282 = vrot.slane %v1270, 2
    %v1283 = vrot.slane %v1272, 2
    %v1288 = vadd.f32 %v998, %v1280
    %v1289 = vadd.f32 %v999, %v1281
    %v1290 = vadd.f32 %v1000, %v1282
    %v1291 = vadd.f32 %v1001, %v1283
    %v1292 = vxor.u32 %v994, 2147483648
    %v1293 = vxor.u32 %v995, 2147483648
    %v1294 = vxor.u32 %v996, 2147483648
    %v1295 = vmul.f32 %v1292, 1.442695
    %v1296 = vpow.pop %v1295
    %v1297 = vmul.f32 %v1293, 1.442695
    %v1298 = vpow.pop %v1297
    %v1299 = vmul.f32 %v1294, 1.442695
    %v1300 = vpow.pop %v1299
    %v1301 = vadd.f32 %v1296, 1.0
    %v1302 = vadd.f32 %v1298, 1.0
    %v1303 = vadd.f32 %v1300, 1.0
    %v1304 = vrcp.pop %v1301
    %v1305 = vmul.f32 1.0, %v1304
    %v1306 = vrcp.pop %v1302
    %v1307 = vmul.f32 1.0, %v1306
    %v1308 = vrcp.pop %v1303
    %v1309 = vmul.f32 1.0, %v1308
    %v1310 = vtanh.pop %v997
    %v1311 = vmul.f32 %v1307, 0.0
    %v1312 = vmul.f32 %v1305, %v1310
    %v1313 = vadd.f32 %v1311, %v1312
    %v1314 = vtanh.pop %v1313
    %v1315 = vmul.f32 %v1309, %v1314
    %v1316 = vxor.u32 %v1288, 2147483648
    %v1317 = vxor.u32 %v1289, 2147483648
    %v1318 = vxor.u32 %v1290, 2147483648
    %v1319 = vmul.f32 %v1316, 1.442695
    %v1320 = vpow.pop %v1319
    %v1321 = vmul.f32 %v1317, 1.442695
    %v1322 = vpow.pop %v1321
    %v1323 = vmul.f32 %v1318, 1.442695
    %v1324 = vpow.pop %v1323
    %v1325 = vadd.f32 %v1320, 1.0
    %v1326 = vadd.f32 %v1322, 1.0
    %v1327 = vadd.f32 %v1324, 1.0
    %v1328 = vrcp.pop %v1325
    %v1329 = vmul.f32 1.0, %v1328
    %v1330 = vrcp.pop %v1326
    %v1331 = vmul.f32 1.0, %v1330
    %v1332 = vrcp.pop %v1327
    %v1333 = vmul.f32 1.0, %v1332
    %v1334 = vtanh.pop %v1291
    %v1335 = vmul.f32 %v1331, 0.0
    %v1336 = vmul.f32 %v1329, %v1334
    %v1337 = vadd.f32 %v1335, %v1336
    %v1338 = vtanh.pop %v1337
    %v1339 = vmul.f32 %v1333, %v1338
    %1340 = vst [vmem:[#allocation3] sm:$0x3] %v1315
    %1341 = vst [vmem:[#allocation3 + $0x18] sm:$0xc0] %v1339
    %v1342 = vld [vmem:[#allocation2] sm:$0xc]
    %v1343 = vld [vmem:[#allocation2 + $0x8] sm:$0xc]
    %v1344 = vld [vmem:[#allocation2 + $0x10] sm:$0xc]
    %v1345 = vld [vmem:[#allocation2 + $0x18] sm:$0xc]
    %v1346 = vpack.c.bf16 %v1315, %v1315
    %v1347 = vld [vmem:[#allocation8] sm:$0xff]
    %v1348 = vld [vmem:[#allocation8 + $0x8] sm:$0xff]
    %v1349 = vld [vmem:[#allocation8 + $0x10] sm:$0xff]
    %v1350 = vld [vmem:[#allocation8 + $0x18] sm:$0xff]
    %v1351 = vld [vmem:[#allocation8 + $0x20] sm:$0xff]
    %v1352 = vld [vmem:[#allocation8 + $0x28] sm:$0xff]
    %v1353 = vld [vmem:[#allocation8 + $0x30] sm:$0xff]
    %v1354 = vld [vmem:[#allocation8 + $0x38] sm:$0xff]
    %v1355 = vld [vmem:[#allocation8 + $0x40] sm:$0xff]
    %v1356 = vld [vmem:[#allocation8 + $0x48] sm:$0xff]
    %v1357 = vld [vmem:[#allocation8 + $0x50] sm:$0xff]
    %v1358 = vld [vmem:[#allocation8 + $0x58] sm:$0xff]
    %v1359 = vld [vmem:[#allocation8 + $0x60] sm:$0xff]
    %v1360 = vld [vmem:[#allocation8 + $0x68] sm:$0xff]
    %v1361 = vld [vmem:[#allocation8 + $0x70] sm:$0xff]
    %v1362 = vld [vmem:[#allocation8 + $0x78] sm:$0xff]
    %v1363 = vld [vmem:[#allocation8 + $0x80] sm:$0xff]
    %v1364 = vld [vmem:[#allocation8 + $0x88] sm:$0xff]
    %v1365 = vld [vmem:[#allocation8 + $0x90] sm:$0xff]
    %v1366 = vld [vmem:[#allocation8 + $0x98] sm:$0xff]
    %v1367 = vld [vmem:[#allocation8 + $0xa0] sm:$0xff]
    %v1368 = vld [vmem:[#allocation8 + $0xa8] sm:$0xff]
    %v1369 = vld [vmem:[#allocation8 + $0xb0] sm:$0xff]
    %v1370 = vld [vmem:[#allocation8 + $0xb8] sm:$0xff]
    %v1371 = vld [vmem:[#allocation8 + $0xc0] sm:$0xff]
    %v1372 = vld [vmem:[#allocation8 + $0xc8] sm:$0xff]
    %v1373 = vld [vmem:[#allocation8 + $0xd0] sm:$0xff]
    %v1374 = vld [vmem:[#allocation8 + $0xd8] sm:$0xff]
    %v1375 = vld [vmem:[#allocation8 + $0xe0] sm:$0xff]
    %v1376 = vld [vmem:[#allocation8 + $0xe8] sm:$0xff]
    %v1377 = vld [vmem:[#allocation8 + $0xf0] sm:$0xff]
    %v1378 = vld [vmem:[#allocation8 + $0xf8] sm:$0xff]
    %v1411 = vunpack.c.l.b16 %v1347
    %v1412 = vunpack.c.h.b16 %v1347
    %v1413 = vunpack.c.l.b16 %v1348
    %v1414 = vunpack.c.h.b16 %v1348
    %v1415 = vunpack.c.l.b16 %v1349
    %v1416 = vunpack.c.h.b16 %v1349
    %v1417 = vunpack.c.l.b16 %v1350
    %v1418 = vunpack.c.h.b16 %v1350
    %v1419 = vunpack.c.l.b16 %v1351
    %v1420 = vunpack.c.h.b16 %v1351
    %v1421 = vunpack.c.l.b16 %v1352
    %v1422 = vunpack.c.h.b16 %v1352
    %v1423 = vunpack.c.l.b16 %v1353
    %v1424 = vunpack.c.h.b16 %v1353
    %v1425 = vunpack.c.l.b16 %v1354
    %v1426 = vunpack.c.h.b16 %v1354
    %v1427 = vunpack.c.l.b16 %v1355
    %v1428 = vunpack.c.h.b16 %v1355
    %v1429 = vunpack.c.l.b16 %v1356
    %v1430 = vunpack.c.h.b16 %v1356
    %v1431 = vunpack.c.l.b16 %v1357
    %v1432 = vunpack.c.h.b16 %v1357
    %v1433 = vunpack.c.l.b16 %v1358
    %v1434 = vunpack.c.h.b16 %v1358
    %v1435 = vunpack.c.l.b16 %v1359
    %v1436 = vunpack.c.h.b16 %v1359
    %v1437 = vunpack.c.l.b16 %v1360
    %v1438 = vunpack.c.h.b16 %v1360
    %v1439 = vunpack.c.l.b16 %v1361
    %v1440 = vunpack.c.h.b16 %v1361
    %v1441 = vunpack.c.l.b16 %v1362
    %v1442 = vunpack.c.h.b16 %v1362
    %v1443 = vunpack.c.l.b16 %v1363
    %v1444 = vunpack.c.h.b16 %v1363
    %v1445 = vunpack.c.l.b16 %v1364
    %v1446 = vunpack.c.h.b16 %v1364
    %v1447 = vunpack.c.l.b16 %v1365
    %v1448 = vunpack.c.h.b16 %v1365
    %v1449 = vunpack.c.l.b16 %v1366
    %v1450 = vunpack.c.h.b16 %v1366
    %v1451 = vunpack.c.l.b16 %v1367
    %v1452 = vunpack.c.h.b16 %v1367
    %v1453 = vunpack.c.l.b16 %v1368
    %v1454 = vunpack.c.h.b16 %v1368
    %v1455 = vunpack.c.l.b16 %v1369
    %v1456 = vunpack.c.h.b16 %v1369
    %v1457 = vunpack.c.l.b16 %v1370
    %v1458 = vunpack.c.h.b16 %v1370
    %v1459 = vunpack.c.l.b16 %v1371
    %v1460 = vunpack.c.h.b16 %v1371
    %v1461 = vunpack.c.l.b16 %v1372
    %v1462 = vunpack.c.h.b16 %v1372
    %v1463 = vunpack.c.l.b16 %v1373
    %v1464 = vunpack.c.h.b16 %v1373
    %v1465 = vunpack.c.l.b16 %v1374
    %v1466 = vunpack.c.h.b16 %v1374
    %v1467 = vunpack.c.l.b16 %v1375
    %v1468 = vunpack.c.h.b16 %v1375
    %v1469 = vunpack.c.l.b16 %v1376
    %v1470 = vunpack.c.h.b16 %v1376
    %v1471 = vunpack.c.l.b16 %v1377
    %v1472 = vunpack.c.h.b16 %v1377
    %v1473 = vunpack.c.l.b16 %v1378
    %v1474 = vunpack.c.h.b16 %v1378
    %v1475 = vpack.c.b16 %v1415, %v1411
    %v1476 = vpack.c.b16 %v1416, %v1412
    %v1477 = vpack.c.b16 %v1417, %v1413
    %v1478 = vpack.c.b16 %v1418, %v1414
    %v1479 = vpack.c.b16 %v1423, %v1419
    %v1480 = vpack.c.b16 %v1424, %v1420
    %v1481 = vpack.c.b16 %v1425, %v1421
    %v1482 = vpack.c.b16 %v1426, %v1422
    %v1483 = vpack.c.b16 %v1431, %v1427
    %v1484 = vpack.c.b16 %v1432, %v1428
    %v1485 = vpack.c.b16 %v1433, %v1429
    %v1486 = vpack.c.b16 %v1434, %v1430
    %v1487 = vpack.c.b16 %v1439, %v1435
    %v1488 = vpack.c.b16 %v1440, %v1436
    %v1489 = vpack.c.b16 %v1441, %v1437
    %v1490 = vpack.c.b16 %v1442, %v1438
    %v1491 = vpack.c.b16 %v1447, %v1443
    %v1492 = vpack.c.b16 %v1448, %v1444
    %v1493 = vpack.c.b16 %v1449, %v1445
    %v1494 = vpack.c.b16 %v1450, %v1446
    %v1495 = vpack.c.b16 %v1455, %v1451
    %v1496 = vpack.c.b16 %v1456, %v1452
    %v1497 = vpack.c.b16 %v1457, %v1453
    %v1498 = vpack.c.b16 %v1458, %v1454
    %v1499 = vpack.c.b16 %v1463, %v1459
    %v1500 = vpack.c.b16 %v1464, %v1460
    %v1501 = vpack.c.b16 %v1465, %v1461
    %v1502 = vpack.c.b16 %v1466, %v1462
    %v1503 = vpack.c.b16 %v1471, %v1467
    %v1504 = vpack.c.b16 %v1472, %v1468
    %v1505 = vpack.c.b16 %v1473, %v1469
    %v1506 = vpack.c.b16 %v1474, %v1470
    %1539 = vmatprep.subr.bf16.mxu0 %v1504
    %1540 = vmatpush1.bf16.msra.mxu0 %v1503
    %1541 = vmatprep.subr.bf16.mxu0 %v1500
    %1542 = vmatpush1.bf16.msra.mxu0 %v1499
    %1543 = vmatprep.subr.bf16.mxu0 %v1496
    %1544 = vmatpush1.bf16.msra.mxu0 %v1495
    %1545 = vmatprep.subr.bf16.mxu0 %v1492
    %1546 = vmatpush1.bf16.msra.mxu0 %v1491
    %1547 = vmatprep.subr.bf16.mxu0 %v1488
    %1548 = vmatpush1.bf16.msra.mxu0 %v1487
    %1549 = vmatprep.subr.bf16.mxu0 %v1484
    %1550 = vmatpush1.bf16.msra.mxu0 %v1483
    %1551 = vmatprep.subr.bf16.mxu0 %v1480
    %1552 = vmatpush1.bf16.msra.mxu0 %v1479
    %1553 = vmatprep.subr.bf16.mxu0 %v1476
    %1554 = vmatpush1.bf16.msra.mxu0 %v1475
    %1555 = vmatprep.subr.bf16.mxu0 0
    %1556 = vmatpush2.bf16.msra.mxu0 0
    %1557 = vmatprep.subr.bf16.mxu0 0
    %1558 = vmatpush2.bf16.msra.mxu0 0
    %1559 = vmatprep.subr.bf16.mxu0 0
    %1560 = vmatpush2.bf16.msra.mxu0 0
    %1561 = vmatprep.subr.bf16.mxu0 0
    %1562 = vmatpush2.bf16.msra.mxu0 0
    %1563 = vmatprep.subr.bf16.mxu0 0
    %1564 = vmatpush2.bf16.msra.mxu0 0
    %1565 = vmatprep.subr.bf16.mxu0 0
    %1566 = vmatpush2.bf16.msra.mxu0 0
    %1567 = vmatprep.subr.bf16.mxu0 0
    %1568 = vmatpush2.bf16.msra.mxu0 0
    %1569 = vmatprep.subr.bf16.mxu0 0
    %1570 = vmatpush2.bf16.msra.mxu0 0
    %1571 = vmatprep.mubr.bf16.mxu0 0
    %1572 = vmatmul.mubr.bf16.gmra.mxu0 %v1346
    %v1573 = vpop.f32.mrf.mxu0
    %v1574 = vadd.f32 0.0, %v1573
    %v1575 = vpop.f32.mrf.mxu0
    %v1576 = vadd.f32 0.0, %v1575
    %v1577 = vpop.f32.mrf.mxu0
    %v1578 = vpop.f32.mrf.mxu0
    %1579 = vdwg.mxu0
    %1580 = vmatprep.subr.bf16.mxu0 %v1506
    %1581 = vmatpush1.bf16.msra.mxu0 %v1505
    %1582 = vmatprep.subr.bf16.mxu0 %v1502
    %1583 = vmatpush1.bf16.msra.mxu0 %v1501
    %1584 = vmatprep.subr.bf16.mxu0 %v1498
    %1585 = vmatpush1.bf16.msra.mxu0 %v1497
    %1586 = vmatprep.subr.bf16.mxu0 %v1494
    %1587 = vmatpush1.bf16.msra.mxu0 %v1493
    %1588 = vmatprep.subr.bf16.mxu0 %v1490
    %1589 = vmatpush1.bf16.msra.mxu0 %v1489
    %1590 = vmatprep.subr.bf16.mxu0 %v1486
    %1591 = vmatpush1.bf16.msra.mxu0 %v1485
    %1592 = vmatprep.subr.bf16.mxu0 %v1482
    %1593 = vmatpush1.bf16.msra.mxu0 %v1481
    %1594 = vmatprep.subr.bf16.mxu0 %v1478
    %1595 = vmatpush1.bf16.msra.mxu0 %v1477
    %1596 = vmatprep.subr.bf16.mxu0 0
    %1597 = vmatpush2.bf16.msra.mxu0 0
    %1598 = vmatprep.subr.bf16.mxu0 0
    %1599 = vmatpush2.bf16.msra.mxu0 0
    %1600 = vmatprep.subr.bf16.mxu0 0
    %1601 = vmatpush2.bf16.msra.mxu0 0
    %1602 = vmatprep.subr.bf16.mxu0 0
    %1603 = vmatpush2.bf16.msra.mxu0 0
    %1604 = vmatprep.subr.bf16.mxu0 0
    %1605 = vmatpush2.bf16.msra.mxu0 0
    %1606 = vmatprep.subr.bf16.mxu0 0
    %1607 = vmatpush2.bf16.msra.mxu0 0
    %1608 = vmatprep.subr.bf16.mxu0 0
    %1609 = vmatpush2.bf16.msra.mxu0 0
    %1610 = vmatprep.subr.bf16.mxu0 0
    %1611 = vmatpush2.bf16.msra.mxu0 0
    %1612 = vmatprep.mubr.bf16.mxu0 0
    %1613 = vmatmul.mubr.bf16.gmra.mxu0 %v1346
    %v1614 = vpop.f32.mrf.mxu0
    %v1615 = vadd.f32 0.0, %v1614
    %v1616 = vpop.f32.mrf.mxu0
    %v1617 = vadd.f32 0.0, %v1616
    %v1618 = vpop.f32.mrf.mxu0
    %v1619 = vpop.f32.mrf.mxu0
    %1620 = vdwg.mxu0
    %v1625 = vrot.slane %v1574, 6
    %v1626 = vrot.slane %v1576, 6
    %v1627 = vrot.slane %v1615, 6
    %v1628 = vrot.slane %v1617, 6
    %v1633 = vadd.f32 %v1342, %v1625
    %v1634 = vadd.f32 %v1343, %v1626
    %v1635 = vadd.f32 %v1344, %v1627
    %v1636 = vadd.f32 %v1345, %v1628
    %v1637 = vld [vmem:[#allocation2 + $0x60] sm:$0x30]
    %v1638 = vld [vmem:[#allocation2 + $0x68] sm:$0x30]
    %v1639 = vld [vmem:[#allocation2 + $0x70] sm:$0x30]
    %v1640 = vld [vmem:[#allocation2 + $0x78] sm:$0x30]
    %v1641 = vpack.c.bf16 %v1339, %v1339
    %v1642 = vld [vmem:[#allocation10] sm:$0xff]
    %v1643 = vld [vmem:[#allocation10 + $0x8] sm:$0xff]
    %v1644 = vld [vmem:[#allocation10 + $0x10] sm:$0xff]
    %v1645 = vld [vmem:[#allocation10 + $0x18] sm:$0xff]
    %v1646 = vld [vmem:[#allocation10 + $0x20] sm:$0xff]
    %v1647 = vld [vmem:[#allocation10 + $0x28] sm:$0xff]
    %v1648 = vld [vmem:[#allocation10 + $0x30] sm:$0xff]
    %v1649 = vld [vmem:[#allocation10 + $0x38] sm:$0xff]
    %v1650 = vld [vmem:[#allocation10 + $0x40] sm:$0xff]
    %v1651 = vld [vmem:[#allocation10 + $0x48] sm:$0xff]
    %v1652 = vld [vmem:[#allocation10 + $0x50] sm:$0xff]
    %v1653 = vld [vmem:[#allocation10 + $0x58] sm:$0xff]
    %v1654 = vld [vmem:[#allocation10 + $0x60] sm:$0xff]
    %v1655 = vld [vmem:[#allocation10 + $0x68] sm:$0xff]
    %v1656 = vld [vmem:[#allocation10 + $0x70] sm:$0xff]
    %v1657 = vld [vmem:[#allocation10 + $0x78] sm:$0xff]
    %v1658 = vld [vmem:[#allocation10 + $0x80] sm:$0xff]
    %v1659 = vld [vmem:[#allocation10 + $0x88] sm:$0xff]
    %v1660 = vld [vmem:[#allocation10 + $0x90] sm:$0xff]
    %v1661 = vld [vmem:[#allocation10 + $0x98] sm:$0xff]
    %v1662 = vld [vmem:[#allocation10 + $0xa0] sm:$0xff]
    %v1663 = vld [vmem:[#allocation10 + $0xa8] sm:$0xff]
    %v1664 = vld [vmem:[#allocation10 + $0xb0] sm:$0xff]
    %v1665 = vld [vmem:[#allocation10 + $0xb8] sm:$0xff]
    %v1666 = vld [vmem:[#allocation10 + $0xc0] sm:$0xff]
    %v1667 = vld [vmem:[#allocation10 + $0xc8] sm:$0xff]
    %v1668 = vld [vmem:[#allocation10 + $0xd0] sm:$0xff]
    %v1669 = vld [vmem:[#allocation10 + $0xd8] sm:$0xff]
    %v1670 = vld [vmem:[#allocation10 + $0xe0] sm:$0xff]
    %v1671 = vld [vmem:[#allocation10 + $0xe8] sm:$0xff]
    %v1672 = vld [vmem:[#allocation10 + $0xf0] sm:$0xff]
    %v1673 = vld [vmem:[#allocation10 + $0xf8] sm:$0xff]
    %v1675 = vrot.slane %v1641, 3
    %v1709 = vunpack.c.l.b16 %v1642
    %v1710 = vunpack.c.h.b16 %v1642
    %v1711 = vunpack.c.l.b16 %v1643
    %v1712 = vunpack.c.h.b16 %v1643
    %v1713 = vunpack.c.l.b16 %v1644
    %v1714 = vunpack.c.h.b16 %v1644
    %v1715 = vunpack.c.l.b16 %v1645
    %v1716 = vunpack.c.h.b16 %v1645
    %v1717 = vunpack.c.l.b16 %v1646
    %v1718 = vunpack.c.h.b16 %v1646
    %v1719 = vunpack.c.l.b16 %v1647
    %v1720 = vunpack.c.h.b16 %v1647
    %v1721 = vunpack.c.l.b16 %v1648
    %v1722 = vunpack.c.h.b16 %v1648
    %v1723 = vunpack.c.l.b16 %v1649
    %v1724 = vunpack.c.h.b16 %v1649
    %v1725 = vunpack.c.l.b16 %v1650
    %v1726 = vunpack.c.h.b16 %v1650
    %v1727 = vunpack.c.l.b16 %v1651
    %v1728 = vunpack.c.h.b16 %v1651
    %v1729 = vunpack.c.l.b16 %v1652
    %v1730 = vunpack.c.h.b16 %v1652
    %v1731 = vunpack.c.l.b16 %v1653
    %v1732 = vunpack.c.h.b16 %v1653
    %v1733 = vunpack.c.l.b16 %v1654
    %v1734 = vunpack.c.h.b16 %v1654
    %v1735 = vunpack.c.l.b16 %v1655
    %v1736 = vunpack.c.h.b16 %v1655
    %v1737 = vunpack.c.l.b16 %v1656
    %v1738 = vunpack.c.h.b16 %v1656
    %v1739 = vunpack.c.l.b16 %v1657
    %v1740 = vunpack.c.h.b16 %v1657
    %v1741 = vunpack.c.l.b16 %v1658
    %v1742 = vunpack.c.h.b16 %v1658
    %v1743 = vunpack.c.l.b16 %v1659
    %v1744 = vunpack.c.h.b16 %v1659
    %v1745 = vunpack.c.l.b16 %v1660
    %v1746 = vunpack.c.h.b16 %v1660
    %v1747 = vunpack.c.l.b16 %v1661
    %v1748 = vunpack.c.h.b16 %v1661
    %v1749 = vunpack.c.l.b16 %v1662
    %v1750 = vunpack.c.h.b16 %v1662
    %v1751 = vunpack.c.l.b16 %v1663
    %v1752 = vunpack.c.h.b16 %v1663
    %v1753 = vunpack.c.l.b16 %v1664
    %v1754 = vunpack.c.h.b16 %v1664
    %v1755 = vunpack.c.l.b16 %v1665
    %v1756 = vunpack.c.h.b16 %v1665
    %v1757 = vunpack.c.l.b16 %v1666
    %v1758 = vunpack.c.h.b16 %v1666
    %v1759 = vunpack.c.l.b16 %v1667
    %v1760 = vunpack.c.h.b16 %v1667
    %v1761 = vunpack.c.l.b16 %v1668
    %v1762 = vunpack.c.h.b16 %v1668
    %v1763 = vunpack.c.l.b16 %v1669
    %v1764 = vunpack.c.h.b16 %v1669
    %v1765 = vunpack.c.l.b16 %v1670
    %v1766 = vunpack.c.h.b16 %v1670
    %v1767 = vunpack.c.l.b16 %v1671
    %v1768 = vunpack.c.h.b16 %v1671
    %v1769 = vunpack.c.l.b16 %v1672
    %v1770 = vunpack.c.h.b16 %v1672
    %v1771 = vunpack.c.l.b16 %v1673
    %v1772 = vunpack.c.h.b16 %v1673
    %v1773 = vpack.c.b16 %v1713, %v1709
    %v1774 = vpack.c.b16 %v1714, %v1710
    %v1775 = vpack.c.b16 %v1715, %v1711
    %v1776 = vpack.c.b16 %v1716, %v1712
    %v1777 = vpack.c.b16 %v1721, %v1717
    %v1778 = vpack.c.b16 %v1722, %v1718
    %v1779 = vpack.c.b16 %v1723, %v1719
    %v1780 = vpack.c.b16 %v1724, %v1720
    %v1781 = vpack.c.b16 %v1729, %v1725
    %v1782 = vpack.c.b16 %v1730, %v1726
    %v1783 = vpack.c.b16 %v1731, %v1727
    %v1784 = vpack.c.b16 %v1732, %v1728
    %v1785 = vpack.c.b16 %v1737, %v1733
    %v1786 = vpack.c.b16 %v1738, %v1734
    %v1787 = vpack.c.b16 %v1739, %v1735
    %v1788 = vpack.c.b16 %v1740, %v1736
    %v1789 = vpack.c.b16 %v1745, %v1741
    %v1790 = vpack.c.b16 %v1746, %v1742
    %v1791 = vpack.c.b16 %v1747, %v1743
    %v1792 = vpack.c.b16 %v1748, %v1744
    %v1793 = vpack.c.b16 %v1753, %v1749
    %v1794 = vpack.c.b16 %v1754, %v1750
    %v1795 = vpack.c.b16 %v1755, %v1751
    %v1796 = vpack.c.b16 %v1756, %v1752
    %v1797 = vpack.c.b16 %v1761, %v1757
    %v1798 = vpack.c.b16 %v1762, %v1758
    %v1799 = vpack.c.b16 %v1763, %v1759
    %v1800 = vpack.c.b16 %v1764, %v1760
    %v1801 = vpack.c.b16 %v1769, %v1765
    %v1802 = vpack.c.b16 %v1770, %v1766
    %v1803 = vpack.c.b16 %v1771, %v1767
    %v1804 = vpack.c.b16 %v1772, %v1768
    %1837 = vmatprep.subr.bf16.mxu0 %v1802
    %1838 = vmatpush1.bf16.msra.mxu0 %v1801
    %1839 = vmatprep.subr.bf16.mxu0 %v1798
    %1840 = vmatpush1.bf16.msra.mxu0 %v1797
    %1841 = vmatprep.subr.bf16.mxu0 %v1794
    %1842 = vmatpush1.bf16.msra.mxu0 %v1793
    %1843 = vmatprep.subr.bf16.mxu0 %v1790
    %1844 = vmatpush1.bf16.msra.mxu0 %v1789
    %1845 = vmatprep.subr.bf16.mxu0 %v1786
    %1846 = vmatpush1.bf16.msra.mxu0 %v1785
    %1847 = vmatprep.subr.bf16.mxu0 %v1782
    %1848 = vmatpush1.bf16.msra.mxu0 %v1781
    %1849 = vmatprep.subr.bf16.mxu0 %v1778
    %1850 = vmatpush1.bf16.msra.mxu0 %v1777
    %1851 = vmatprep.subr.bf16.mxu0 %v1774
    %1852 = vmatpush1.bf16.msra.mxu0 %v1773
    %1853 = vmatprep.subr.bf16.mxu0 0
    %1854 = vmatpush2.bf16.msra.mxu0 0
    %1855 = vmatprep.subr.bf16.mxu0 0
    %1856 = vmatpush2.bf16.msra.mxu0 0
    %1857 = vmatprep.subr.bf16.mxu0 0
    %1858 = vmatpush2.bf16.msra.mxu0 0
    %1859 = vmatprep.subr.bf16.mxu0 0
    %1860 = vmatpush2.bf16.msra.mxu0 0
    %1861 = vmatprep.subr.bf16.mxu0 0
    %1862 = vmatpush2.bf16.msra.mxu0 0
    %1863 = vmatprep.subr.bf16.mxu0 0
    %1864 = vmatpush2.bf16.msra.mxu0 0
    %1865 = vmatprep.subr.bf16.mxu0 0
    %1866 = vmatpush2.bf16.msra.mxu0 0
    %1867 = vmatprep.subr.bf16.mxu0 0
    %1868 = vmatpush2.bf16.msra.mxu0 0
    %1869 = vmatprep.mubr.bf16.mxu0 0
    %1870 = vmatmul.mubr.bf16.gmra.mxu0 %v1675
    %v1871 = vpop.f32.mrf.mxu0
    %v1872 = vadd.f32 0.0, %v1871
    %v1873 = vpop.f32.mrf.mxu0
    %v1874 = vadd.f32 0.0, %v1873
    %v1875 = vpop.f32.mrf.mxu0
    %v1876 = vpop.f32.mrf.mxu0
    %1877 = vdwg.mxu0
    %1878 = vmatprep.subr.bf16.mxu0 %v1804
    %1879 = vmatpush1.bf16.msra.mxu0 %v1803
    %1880 = vmatprep.subr.bf16.mxu0 %v1800
    %1881 = vmatpush1.bf16.msra.mxu0 %v1799
    %1882 = vmatprep.subr.bf16.mxu0 %v1796
    %1883 = vmatpush1.bf16.msra.mxu0 %v1795
    %1884 = vmatprep.subr.bf16.mxu0 %v1792
    %1885 = vmatpush1.bf16.msra.mxu0 %v1791
    %1886 = vmatprep.subr.bf16.mxu0 %v1788
    %1887 = vmatpush1.bf16.msra.mxu0 %v1787
    %1888 = vmatprep.subr.bf16.mxu0 %v1784
    %1889 = vmatpush1.bf16.msra.mxu0 %v1783
    %1890 = vmatprep.subr.bf16.mxu0 %v1780
    %1891 = vmatpush1.bf16.msra.mxu0 %v1779
    %1892 = vmatprep.subr.bf16.mxu0 %v1776
    %1893 = vmatpush1.bf16.msra.mxu0 %v1775
    %1894 = vmatprep.subr.bf16.mxu0 0
    %1895 = vmatpush2.bf16.msra.mxu0 0
    %1896 = vmatprep.subr.bf16.mxu0 0
    %1897 = vmatpush2.bf16.msra.mxu0 0
    %1898 = vmatprep.subr.bf16.mxu0 0
    %1899 = vmatpush2.bf16.msra.mxu0 0
    %1900 = vmatprep.subr.bf16.mxu0 0
    %1901 = vmatpush2.bf16.msra.mxu0 0
    %1902 = vmatprep.subr.bf16.mxu0 0
    %1903 = vmatpush2.bf16.msra.mxu0 0
    %1904 = vmatprep.subr.bf16.mxu0 0
    %1905 = vmatpush2.bf16.msra.mxu0 0
    %1906 = vmatprep.subr.bf16.mxu0 0
    %1907 = vmatpush2.bf16.msra.mxu0 0
    %1908 = vmatprep.subr.bf16.mxu0 0
    %1909 = vmatpush2.bf16.msra.mxu0 0
    %1910 = vmatprep.mubr.bf16.mxu0 0
    %1911 = vmatmul.mubr.bf16.gmra.mxu0 %v1675
    %v1912 = vpop.f32.mrf.mxu0
    %v1913 = vadd.f32 0.0, %v1912
    %v1914 = vpop.f32.mrf.mxu0
    %v1915 = vadd.f32 0.0, %v1914
    %v1916 = vpop.f32.mrf.mxu0
    %v1917 = vpop.f32.mrf.mxu0
    %1918 = vdwg.mxu0
    %v1923 = vrot.slane %v1872, 4
    %v1924 = vrot.slane %v1874, 4
    %v1925 = vrot.slane %v1913, 4
    %v1926 = vrot.slane %v1915, 4
    %v1931 = vadd.f32 %v1637, %v1923
    %v1932 = vadd.f32 %v1638, %v1924
    %v1933 = vadd.f32 %v1639, %v1925
    %v1934 = vadd.f32 %v1640, %v1926
    %v1935 = vxor.u32 %v1633, 2147483648
    %v1936 = vxor.u32 %v1634, 2147483648
    %v1937 = vxor.u32 %v1635, 2147483648
    %v1938 = vmul.f32 %v1935, 1.442695
    %v1939 = vpow.pop %v1938
    %v1940 = vmul.f32 %v1936, 1.442695
    %v1941 = vpow.pop %v1940
    %v1942 = vmul.f32 %v1937, 1.442695
    %v1943 = vpow.pop %v1942
    %v1944 = vadd.f32 %v1939, 1.0
    %v1945 = vadd.f32 %v1941, 1.0
    %v1946 = vadd.f32 %v1943, 1.0
    %v1947 = vrcp.pop %v1944
    %v1948 = vmul.f32 1.0, %v1947
    %v1949 = vrcp.pop %v1945
    %v1950 = vmul.f32 1.0, %v1949
    %v1951 = vrcp.pop %v1946
    %v1952 = vmul.f32 1.0, %v1951
    %v1953 = vtanh.pop %v1636
    %v1955 = vrot.slane %v1313, 6
    %v1957 = vmul.f32 %v1950, %v1955
    %v1958 = vmul.f32 %v1948, %v1953
    %v1959 = vadd.f32 %v1957, %v1958
    %v1960 = vtanh.pop %v1959
    %v1961 = vmul.f32 %v1952, %v1960
    %v1962 = vxor.u32 %v1931, 2147483648
    %v1963 = vxor.u32 %v1932, 2147483648
    %v1964 = vxor.u32 %v1933, 2147483648
    %v1965 = vmul.f32 %v1962, 1.442695
    %v1966 = vpow.pop %v1965
    %v1967 = vmul.f32 %v1963, 1.442695
    %v1968 = vpow.pop %v1967
    %v1969 = vmul.f32 %v1964, 1.442695
    %v1970 = vpow.pop %v1969
    %v1971 = vadd.f32 %v1966, 1.0
    %v1972 = vadd.f32 %v1968, 1.0
    %v1973 = vadd.f32 %v1970, 1.0
    %v1974 = vrcp.pop %v1971
    %v1975 = vmul.f32 1.0, %v1974
    %v1976 = vrcp.pop %v1972
    %v1977 = vmul.f32 1.0, %v1976
    %v1978 = vrcp.pop %v1973
    %v1979 = vmul.f32 1.0, %v1978
    %v1980 = vtanh.pop %v1934
    %v1982 = vrot.slane %v1337, 2
    %v1984 = vmul.f32 %v1977, %v1982
    %v1985 = vmul.f32 %v1975, %v1980
    %v1986 = vadd.f32 %v1984, %v1985
    %v1987 = vtanh.pop %v1986
    %v1988 = vmul.f32 %v1979, %v1987
    %1989 = vst [vmem:[#allocation3] sm:$0xc] %v1961
    %1990 = vst [vmem:[#allocation3 + $0x18] sm:$0x30] %v1988
    %v1991 = vld [vmem:[#allocation2] sm:$0x30]
    %v1992 = vld [vmem:[#allocation2 + $0x8] sm:$0x30]
    %v1993 = vld [vmem:[#allocation2 + $0x10] sm:$0x30]
    %v1994 = vld [vmem:[#allocation2 + $0x18] sm:$0x30]
    %v1995 = vpack.c.bf16 %v1961, %v1961
    %v1996 = vld [vmem:[#allocation8] sm:$0xff]
    %v1997 = vld [vmem:[#allocation8 + $0x8] sm:$0xff]
    %v1998 = vld [vmem:[#allocation8 + $0x10] sm:$0xff]
    %v1999 = vld [vmem:[#allocation8 + $0x18] sm:$0xff]
    %v2000 = vld [vmem:[#allocation8 + $0x20] sm:$0xff]
    %v2001 = vld [vmem:[#allocation8 + $0x28] sm:$0xff]
    %v2002 = vld [vmem:[#allocation8 + $0x30] sm:$0xff]
    %v2003 = vld [vmem:[#allocation8 + $0x38] sm:$0xff]
    %v2004 = vld [vmem:[#allocation8 + $0x40] sm:$0xff]
    %v2005 = vld [vmem:[#allocation8 + $0x48] sm:$0xff]
    %v2006 = vld [vmem:[#allocation8 + $0x50] sm:$0xff]
    %v2007 = vld [vmem:[#allocation8 + $0x58] sm:$0xff]
    %v2008 = vld [vmem:[#allocation8 + $0x60] sm:$0xff]
    %v2009 = vld [vmem:[#allocation8 + $0x68] sm:$0xff]
    %v2010 = vld [vmem:[#allocation8 + $0x70] sm:$0xff]
    %v2011 = vld [vmem:[#allocation8 + $0x78] sm:$0xff]
    %v2012 = vld [vmem:[#allocation8 + $0x80] sm:$0xff]
    %v2013 = vld [vmem:[#allocation8 + $0x88] sm:$0xff]
    %v2014 = vld [vmem:[#allocation8 + $0x90] sm:$0xff]
    %v2015 = vld [vmem:[#allocation8 + $0x98] sm:$0xff]
    %v2016 = vld [vmem:[#allocation8 + $0xa0] sm:$0xff]
    %v2017 = vld [vmem:[#allocation8 + $0xa8] sm:$0xff]
    %v2018 = vld [vmem:[#allocation8 + $0xb0] sm:$0xff]
    %v2019 = vld [vmem:[#allocation8 + $0xb8] sm:$0xff]
    %v2020 = vld [vmem:[#allocation8 + $0xc0] sm:$0xff]
    %v2021 = vld [vmem:[#allocation8 + $0xc8] sm:$0xff]
    %v2022 = vld [vmem:[#allocation8 + $0xd0] sm:$0xff]
    %v2023 = vld [vmem:[#allocation8 + $0xd8] sm:$0xff]
    %v2024 = vld [vmem:[#allocation8 + $0xe0] sm:$0xff]
    %v2025 = vld [vmem:[#allocation8 + $0xe8] sm:$0xff]
    %v2026 = vld [vmem:[#allocation8 + $0xf0] sm:$0xff]
    %v2027 = vld [vmem:[#allocation8 + $0xf8] sm:$0xff]
    %v2029 = vrot.slane %v1995, 1
    %v2063 = vunpack.c.l.b16 %v1996
    %v2064 = vunpack.c.h.b16 %v1996
    %v2065 = vunpack.c.l.b16 %v1997
    %v2066 = vunpack.c.h.b16 %v1997
    %v2067 = vunpack.c.l.b16 %v1998
    %v2068 = vunpack.c.h.b16 %v1998
    %v2069 = vunpack.c.l.b16 %v1999
    %v2070 = vunpack.c.h.b16 %v1999
    %v2071 = vunpack.c.l.b16 %v2000
    %v2072 = vunpack.c.h.b16 %v2000
    %v2073 = vunpack.c.l.b16 %v2001
    %v2074 = vunpack.c.h.b16 %v2001
    %v2075 = vunpack.c.l.b16 %v2002
    %v2076 = vunpack.c.h.b16 %v2002
    %v2077 = vunpack.c.l.b16 %v2003
    %v2078 = vunpack.c.h.b16 %v2003
    %v2079 = vunpack.c.l.b16 %v2004
    %v2080 = vunpack.c.h.b16 %v2004
    %v2081 = vunpack.c.l.b16 %v2005
    %v2082 = vunpack.c.h.b16 %v2005
    %v2083 = vunpack.c.l.b16 %v2006
    %v2084 = vunpack.c.h.b16 %v2006
    %v2085 = vunpack.c.l.b16 %v2007
    %v2086 = vunpack.c.h.b16 %v2007
    %v2087 = vunpack.c.l.b16 %v2008
    %v2088 = vunpack.c.h.b16 %v2008
    %v2089 = vunpack.c.l.b16 %v2009
    %v2090 = vunpack.c.h.b16 %v2009
    %v2091 = vunpack.c.l.b16 %v2010
    %v2092 = vunpack.c.h.b16 %v2010
    %v2093 = vunpack.c.l.b16 %v2011
    %v2094 = vunpack.c.h.b16 %v2011
    %v2095 = vunpack.c.l.b16 %v2012
    %v2096 = vunpack.c.h.b16 %v2012
    %v2097 = vunpack.c.l.b16 %v2013
    %v2098 = vunpack.c.h.b16 %v2013
    %v2099 = vunpack.c.l.b16 %v2014
    %v2100 = vunpack.c.h.b16 %v2014
    %v2101 = vunpack.c.l.b16 %v2015
    %v2102 = vunpack.c.h.b16 %v2015
    %v2103 = vunpack.c.l.b16 %v2016
    %v2104 = vunpack.c.h.b16 %v2016
    %v2105 = vunpack.c.l.b16 %v2017
    %v2106 = vunpack.c.h.b16 %v2017
    %v2107 = vunpack.c.l.b16 %v2018
    %v2108 = vunpack.c.h.b16 %v2018
    %v2109 = vunpack.c.l.b16 %v2019
    %v2110 = vunpack.c.h.b16 %v2019
    %v2111 = vunpack.c.l.b16 %v2020
    %v2112 = vunpack.c.h.b16 %v2020
    %v2113 = vunpack.c.l.b16 %v2021
    %v2114 = vunpack.c.h.b16 %v2021
    %v2115 = vunpack.c.l.b16 %v2022
    %v2116 = vunpack.c.h.b16 %v2022
    %v2117 = vunpack.c.l.b16 %v2023
    %v2118 = vunpack.c.h.b16 %v2023
    %v2119 = vunpack.c.l.b16 %v2024
    %v2120 = vunpack.c.h.b16 %v2024
    %v2121 = vunpack.c.l.b16 %v2025
    %v2122 = vunpack.c.h.b16 %v2025
    %v2123 = vunpack.c.l.b16 %v2026
    %v2124 = vunpack.c.h.b16 %v2026
    %v2125 = vunpack.c.l.b16 %v2027
    %v2126 = vunpack.c.h.b16 %v2027
    %v2127 = vpack.c.b16 %v2067, %v2063
    %v2128 = vpack.c.b16 %v2068, %v2064
    %v2129 = vpack.c.b16 %v2069, %v2065
    %v2130 = vpack.c.b16 %v2070, %v2066
    %v2131 = vpack.c.b16 %v2075, %v2071
    %v2132 = vpack.c.b16 %v2076, %v2072
    %v2133 = vpack.c.b16 %v2077, %v2073
    %v2134 = vpack.c.b16 %v2078, %v2074
    %v2135 = vpack.c.b16 %v2083, %v2079
    %v2136 = vpack.c.b16 %v2084, %v2080
    %v2137 = vpack.c.b16 %v2085, %v2081
    %v2138 = vpack.c.b16 %v2086, %v2082
    %v2139 = vpack.c.b16 %v2091, %v2087
    %v2140 = vpack.c.b16 %v2092, %v2088
    %v2141 = vpack.c.b16 %v2093, %v2089
    %v2142 = vpack.c.b16 %v2094, %v2090
    %v2143 = vpack.c.b16 %v2099, %v2095
    %v2144 = vpack.c.b16 %v2100, %v2096
    %v2145 = vpack.c.b16 %v2101, %v2097
    %v2146 = vpack.c.b16 %v2102, %v2098
    %v2147 = vpack.c.b16 %v2107, %v2103
    %v2148 = vpack.c.b16 %v2108, %v2104
    %v2149 = vpack.c.b16 %v2109, %v2105
    %v2150 = vpack.c.b16 %v2110, %v2106
    %v2151 = vpack.c.b16 %v2115, %v2111
    %v2152 = vpack.c.b16 %v2116, %v2112
    %v2153 = vpack.c.b16 %v2117, %v2113
    %v2154 = vpack.c.b16 %v2118, %v2114
    %v2155 = vpack.c.b16 %v2123, %v2119
    %v2156 = vpack.c.b16 %v2124, %v2120
    %v2157 = vpack.c.b16 %v2125, %v2121
    %v2158 = vpack.c.b16 %v2126, %v2122
    %2191 = vmatprep.subr.bf16.mxu0 %v2156
    %2192 = vmatpush1.bf16.msra.mxu0 %v2155
    %2193 = vmatprep.subr.bf16.mxu0 %v2152
    %2194 = vmatpush1.bf16.msra.mxu0 %v2151
    %2195 = vmatprep.subr.bf16.mxu0 %v2148
    %2196 = vmatpush1.bf16.msra.mxu0 %v2147
    %2197 = vmatprep.subr.bf16.mxu0 %v2144
    %2198 = vmatpush1.bf16.msra.mxu0 %v2143
    %2199 = vmatprep.subr.bf16.mxu0 %v2140
    %2200 = vmatpush1.bf16.msra.mxu0 %v2139
    %2201 = vmatprep.subr.bf16.mxu0 %v2136
    %2202 = vmatpush1.bf16.msra.mxu0 %v2135
    %2203 = vmatprep.subr.bf16.mxu0 %v2132
    %2204 = vmatpush1.bf16.msra.mxu0 %v2131
    %2205 = vmatprep.subr.bf16.mxu0 %v2128
    %2206 = vmatpush1.bf16.msra.mxu0 %v2127
    %2207 = vmatprep.subr.bf16.mxu0 0
    %2208 = vmatpush2.bf16.msra.mxu0 0
    %2209 = vmatprep.subr.bf16.mxu0 0
    %2210 = vmatpush2.bf16.msra.mxu0 0
    %2211 = vmatprep.subr.bf16.mxu0 0
    %2212 = vmatpush2.bf16.msra.mxu0 0
    %2213 = vmatprep.subr.bf16.mxu0 0
    %2214 = vmatpush2.bf16.msra.mxu0 0
    %2215 = vmatprep.subr.bf16.mxu0 0
    %2216 = vmatpush2.bf16.msra.mxu0 0
    %2217 = vmatprep.subr.bf16.mxu0 0
    %2218 = vmatpush2.bf16.msra.mxu0 0
    %2219 = vmatprep.subr.bf16.mxu0 0
    %2220 = vmatpush2.bf16.msra.mxu0 0
    %2221 = vmatprep.subr.bf16.mxu0 0
    %2222 = vmatpush2.bf16.msra.mxu0 0
    %2223 = vmatprep.mubr.bf16.mxu0 0
    %2224 = vmatmul.mubr.bf16.gmra.mxu0 %v2029
    %v2225 = vpop.f32.mrf.mxu0
    %v2226 = vadd.f32 0.0, %v2225
    %v2227 = vpop.f32.mrf.mxu0
    %v2228 = vadd.f32 0.0, %v2227
    %v2229 = vpop.f32.mrf.mxu0
    %v2230 = vpop.f32.mrf.mxu0
    %2231 = vdwg.mxu0
    %2232 = vmatprep.subr.bf16.mxu0 %v2158
    %2233 = vmatpush1.bf16.msra.mxu0 %v2157
    %2234 = vmatprep.subr.bf16.mxu0 %v2154
    %2235 = vmatpush1.bf16.msra.mxu0 %v2153
    %2236 = vmatprep.subr.bf16.mxu0 %v2150
    %2237 = vmatpush1.bf16.msra.mxu0 %v2149
    %2238 = vmatprep.subr.bf16.mxu0 %v2146
    %2239 = vmatpush1.bf16.msra.mxu0 %v2145
    %2240 = vmatprep.subr.bf16.mxu0 %v2142
    %2241 = vmatpush1.bf16.msra.mxu0 %v2141
    %2242 = vmatprep.subr.bf16.mxu0 %v2138
    %2243 = vmatpush1.bf16.msra.mxu0 %v2137
    %2244 = vmatprep.subr.bf16.mxu0 %v2134
    %2245 = vmatpush1.bf16.msra.mxu0 %v2133
    %2246 = vmatprep.subr.bf16.mxu0 %v2130
    %2247 = vmatpush1.bf16.msra.mxu0 %v2129
    %2248 = vmatprep.subr.bf16.mxu0 0
    %2249 = vmatpush2.bf16.msra.mxu0 0
    %2250 = vmatprep.subr.bf16.mxu0 0
    %2251 = vmatpush2.bf16.msra.mxu0 0
    %2252 = vmatprep.subr.bf16.mxu0 0
    %2253 = vmatpush2.bf16.msra.mxu0 0
    %2254 = vmatprep.subr.bf16.mxu0 0
    %2255 = vmatpush2.bf16.msra.mxu0 0
    %2256 = vmatprep.subr.bf16.mxu0 0
    %2257 = vmatpush2.bf16.msra.mxu0 0
    %2258 = vmatprep.subr.bf16.mxu0 0
    %2259 = vmatpush2.bf16.msra.mxu0 0
    %2260 = vmatprep.subr.bf16.mxu0 0
    %2261 = vmatpush2.bf16.msra.mxu0 0
    %2262 = vmatprep.subr.bf16.mxu0 0
    %2263 = vmatpush2.bf16.msra.mxu0 0
    %2264 = vmatprep.mubr.bf16.mxu0 0
    %2265 = vmatmul.mubr.bf16.gmra.mxu0 %v2029
    %v2266 = vpop.f32.mrf.mxu0
    %v2267 = vadd.f32 0.0, %v2266
    %v2268 = vpop.f32.mrf.mxu0
    %v2269 = vadd.f32 0.0, %v2268
    %v2270 = vpop.f32.mrf.mxu0
    %v2271 = vpop.f32.mrf.mxu0
    %2272 = vdwg.mxu0
    %v2277 = vrot.slane %v2226, 4
    %v2278 = vrot.slane %v2228, 4
    %v2279 = vrot.slane %v2267, 4
    %v2280 = vrot.slane %v2269, 4
    %v2285 = vadd.f32 %v1991, %v2277
    %v2286 = vadd.f32 %v1992, %v2278
    %v2287 = vadd.f32 %v1993, %v2279
    %v2288 = vadd.f32 %v1994, %v2280
    %v2289 = vld [vmem:[#allocation2 + $0x60] sm:$0xc]
    %v2290 = vld [vmem:[#allocation2 + $0x68] sm:$0xc]
    %v2291 = vld [vmem:[#allocation2 + $0x70] sm:$0xc]
    %v2292 = vld [vmem:[#allocation2 + $0x78] sm:$0xc]
    %v2293 = vpack.c.bf16 %v1988, %v1988
    %v2294 = vld [vmem:[#allocation10] sm:$0xff]
    %v2295 = vld [vmem:[#allocation10 + $0x8] sm:$0xff]
    %v2296 = vld [vmem:[#allocation10 + $0x10] sm:$0xff]
    %v2297 = vld [vmem:[#allocation10 + $0x18] sm:$0xff]
    %v2298 = vld [vmem:[#allocation10 + $0x20] sm:$0xff]
    %v2299 = vld [vmem:[#allocation10 + $0x28] sm:$0xff]
    %v2300 = vld [vmem:[#allocation10 + $0x30] sm:$0xff]
    %v2301 = vld [vmem:[#allocation10 + $0x38] sm:$0xff]
    %v2302 = vld [vmem:[#allocation10 + $0x40] sm:$0xff]
    %v2303 = vld [vmem:[#allocation10 + $0x48] sm:$0xff]
    %v2304 = vld [vmem:[#allocation10 + $0x50] sm:$0xff]
    %v2305 = vld [vmem:[#allocation10 + $0x58] sm:$0xff]
    %v2306 = vld [vmem:[#allocation10 + $0x60] sm:$0xff]
    %v2307 = vld [vmem:[#allocation10 + $0x68] sm:$0xff]
    %v2308 = vld [vmem:[#allocation10 + $0x70] sm:$0xff]
    %v2309 = vld [vmem:[#allocation10 + $0x78] sm:$0xff]
    %v2310 = vld [vmem:[#allocation10 + $0x80] sm:$0xff]
    %v2311 = vld [vmem:[#allocation10 + $0x88] sm:$0xff]
    %v2312 = vld [vmem:[#allocation10 + $0x90] sm:$0xff]
    %v2313 = vld [vmem:[#allocation10 + $0x98] sm:$0xff]
    %v2314 = vld [vmem:[#allocation10 + $0xa0] sm:$0xff]
    %v2315 = vld [vmem:[#allocation10 + $0xa8] sm:$0xff]
    %v2316 = vld [vmem:[#allocation10 + $0xb0] sm:$0xff]
    %v2317 = vld [vmem:[#allocation10 + $0xb8] sm:$0xff]
    %v2318 = vld [vmem:[#allocation10 + $0xc0] sm:$0xff]
    %v2319 = vld [vmem:[#allocation10 + $0xc8] sm:$0xff]
    %v2320 = vld [vmem:[#allocation10 + $0xd0] sm:$0xff]
    %v2321 = vld [vmem:[#allocation10 + $0xd8] sm:$0xff]
    %v2322 = vld [vmem:[#allocation10 + $0xe0] sm:$0xff]
    %v2323 = vld [vmem:[#allocation10 + $0xe8] sm:$0xff]
    %v2324 = vld [vmem:[#allocation10 + $0xf0] sm:$0xff]
    %v2325 = vld [vmem:[#allocation10 + $0xf8] sm:$0xff]
    %v2327 = vrot.slane %v2293, 2
    %v2361 = vunpack.c.l.b16 %v2294
    %v2362 = vunpack.c.h.b16 %v2294
    %v2363 = vunpack.c.l.b16 %v2295
    %v2364 = vunpack.c.h.b16 %v2295
    %v2365 = vunpack.c.l.b16 %v2296
    %v2366 = vunpack.c.h.b16 %v2296
    %v2367 = vunpack.c.l.b16 %v2297
    %v2368 = vunpack.c.h.b16 %v2297
    %v2369 = vunpack.c.l.b16 %v2298
    %v2370 = vunpack.c.h.b16 %v2298
    %v2371 = vunpack.c.l.b16 %v2299
    %v2372 = vunpack.c.h.b16 %v2299
    %v2373 = vunpack.c.l.b16 %v2300
    %v2374 = vunpack.c.h.b16 %v2300
    %v2375 = vunpack.c.l.b16 %v2301
    %v2376 = vunpack.c.h.b16 %v2301
    %v2377 = vunpack.c.l.b16 %v2302
    %v2378 = vunpack.c.h.b16 %v2302
    %v2379 = vunpack.c.l.b16 %v2303
    %v2380 = vunpack.c.h.b16 %v2303
    %v2381 = vunpack.c.l.b16 %v2304
    %v2382 = vunpack.c.h.b16 %v2304
    %v2383 = vunpack.c.l.b16 %v2305
    %v2384 = vunpack.c.h.b16 %v2305
    %v2385 = vunpack.c.l.b16 %v2306
    %v2386 = vunpack.c.h.b16 %v2306
    %v2387 = vunpack.c.l.b16 %v2307
    %v2388 = vunpack.c.h.b16 %v2307
    %v2389 = vunpack.c.l.b16 %v2308
    %v2390 = vunpack.c.h.b16 %v2308
    %v2391 = vunpack.c.l.b16 %v2309
    %v2392 = vunpack.c.h.b16 %v2309
    %v2393 = vunpack.c.l.b16 %v2310
    %v2394 = vunpack.c.h.b16 %v2310
    %v2395 = vunpack.c.l.b16 %v2311
    %v2396 = vunpack.c.h.b16 %v2311
    %v2397 = vunpack.c.l.b16 %v2312
    %v2398 = vunpack.c.h.b16 %v2312
    %v2399 = vunpack.c.l.b16 %v2313
    %v2400 = vunpack.c.h.b16 %v2313
    %v2401 = vunpack.c.l.b16 %v2314
    %v2402 = vunpack.c.h.b16 %v2314
    %v2403 = vunpack.c.l.b16 %v2315
    %v2404 = vunpack.c.h.b16 %v2315
    %v2405 = vunpack.c.l.b16 %v2316
    %v2406 = vunpack.c.h.b16 %v2316
    %v2407 = vunpack.c.l.b16 %v2317
    %v2408 = vunpack.c.h.b16 %v2317
    %v2409 = vunpack.c.l.b16 %v2318
    %v2410 = vunpack.c.h.b16 %v2318
    %v2411 = vunpack.c.l.b16 %v2319
    %v2412 = vunpack.c.h.b16 %v2319
    %v2413 = vunpack.c.l.b16 %v2320
    %v2414 = vunpack.c.h.b16 %v2320
    %v2415 = vunpack.c.l.b16 %v2321
    %v2416 = vunpack.c.h.b16 %v2321
    %v2417 = vunpack.c.l.b16 %v2322
    %v2418 = vunpack.c.h.b16 %v2322
    %v2419 = vunpack.c.l.b16 %v2323
    %v2420 = vunpack.c.h.b16 %v2323
    %v2421 = vunpack.c.l.b16 %v2324
    %v2422 = vunpack.c.h.b16 %v2324
    %v2423 = vunpack.c.l.b16 %v2325
    %v2424 = vunpack.c.h.b16 %v2325
    %v2425 = vpack.c.b16 %v2365, %v2361
    %v2426 = vpack.c.b16 %v2366, %v2362
    %v2427 = vpack.c.b16 %v2367, %v2363
    %v2428 = vpack.c.b16 %v2368, %v2364
    %v2429 = vpack.c.b16 %v2373, %v2369
    %v2430 = vpack.c.b16 %v2374, %v2370
    %v2431 = vpack.c.b16 %v2375, %v2371
    %v2432 = vpack.c.b16 %v2376, %v2372
    %v2433 = vpack.c.b16 %v2381, %v2377
    %v2434 = vpack.c.b16 %v2382, %v2378
    %v2435 = vpack.c.b16 %v2383, %v2379
    %v2436 = vpack.c.b16 %v2384, %v2380
    %v2437 = vpack.c.b16 %v2389, %v2385
    %v2438 = vpack.c.b16 %v2390, %v2386
    %v2439 = vpack.c.b16 %v2391, %v2387
    %v2440 = vpack.c.b16 %v2392, %v2388
    %v2441 = vpack.c.b16 %v2397, %v2393
    %v2442 = vpack.c.b16 %v2398, %v2394
    %v2443 = vpack.c.b16 %v2399, %v2395
    %v2444 = vpack.c.b16 %v2400, %v2396
    %v2445 = vpack.c.b16 %v2405, %v2401
    %v2446 = vpack.c.b16 %v2406, %v2402
    %v2447 = vpack.c.b16 %v2407, %v2403
    %v2448 = vpack.c.b16 %v2408, %v2404
    %v2449 = vpack.c.b16 %v2413, %v2409
    %v2450 = vpack.c.b16 %v2414, %v2410
    %v2451 = vpack.c.b16 %v2415, %v2411
    %v2452 = vpack.c.b16 %v2416, %v2412
    %v2453 = vpack.c.b16 %v2421, %v2417
    %v2454 = vpack.c.b16 %v2422, %v2418
    %v2455 = vpack.c.b16 %v2423, %v2419
    %v2456 = vpack.c.b16 %v2424, %v2420
    %2489 = vmatprep.subr.bf16.mxu0 %v2454
    %2490 = vmatpush1.bf16.msra.mxu0 %v2453
    %2491 = vmatprep.subr.bf16.mxu0 %v2450
    %2492 = vmatpush1.bf16.msra.mxu0 %v2449
    %2493 = vmatprep.subr.bf16.mxu0 %v2446
    %2494 = vmatpush1.bf16.msra.mxu0 %v2445
    %2495 = vmatprep.subr.bf16.mxu0 %v2442
    %2496 = vmatpush1.bf16.msra.mxu0 %v2441
    %2497 = vmatprep.subr.bf16.mxu0 %v2438
    %2498 = vmatpush1.bf16.msra.mxu0 %v2437
    %2499 = vmatprep.subr.bf16.mxu0 %v2434
    %2500 = vmatpush1.bf16.msra.mxu0 %v2433
    %2501 = vmatprep.subr.bf16.mxu0 %v2430
    %2502 = vmatpush1.bf16.msra.mxu0 %v2429
    %2503 = vmatprep.subr.bf16.mxu0 %v2426
    %2504 = vmatpush1.bf16.msra.mxu0 %v2425
    %2505 = vmatprep.subr.bf16.mxu0 0
    %2506 = vmatpush2.bf16.msra.mxu0 0
    %2507 = vmatprep.subr.bf16.mxu0 0
    %2508 = vmatpush2.bf16.msra.mxu0 0
    %2509 = vmatprep.subr.bf16.mxu0 0
    %2510 = vmatpush2.bf16.msra.mxu0 0
    %2511 = vmatprep.subr.bf16.mxu0 0
    %2512 = vmatpush2.bf16.msra.mxu0 0
    %2513 = vmatprep.subr.bf16.mxu0 0
    %2514 = vmatpush2.bf16.msra.mxu0 0
    %2515 = vmatprep.subr.bf16.mxu0 0
    %2516 = vmatpush2.bf16.msra.mxu0 0
    %2517 = vmatprep.subr.bf16.mxu0 0
    %2518 = vmatpush2.bf16.msra.mxu0 0
    %2519 = vmatprep.subr.bf16.mxu0 0
    %2520 = vmatpush2.bf16.msra.mxu0 0
    %2521 = vmatprep.mubr.bf16.mxu0 0
    %2522 = vmatmul.mubr.bf16.gmra.mxu0 %v2327
    %v2523 = vpop.f32.mrf.mxu0
    %v2524 = vadd.f32 0.0, %v2523
    %v2525 = vpop.f32.mrf.mxu0
    %v2526 = vadd.f32 0.0, %v2525
    %v2527 = vpop.f32.mrf.mxu0
    %v2528 = vpop.f32.mrf.mxu0
    %2529 = vdwg.mxu0
    %2530 = vmatprep.subr.bf16.mxu0 %v2456
    %2531 = vmatpush1.bf16.msra.mxu0 %v2455
    %2532 = vmatprep.subr.bf16.mxu0 %v2452
    %2533 = vmatpush1.bf16.msra.mxu0 %v2451
    %2534 = vmatprep.subr.bf16.mxu0 %v2448
    %2535 = vmatpush1.bf16.msra.mxu0 %v2447
    %2536 = vmatprep.subr.bf16.mxu0 %v2444
    %2537 = vmatpush1.bf16.msra.mxu0 %v2443
    %2538 = vmatprep.subr.bf16.mxu0 %v2440
    %2539 = vmatpush1.bf16.msra.mxu0 %v2439
    %2540 = vmatprep.subr.bf16.mxu0 %v2436
    %2541 = vmatpush1.bf16.msra.mxu0 %v2435
    %2542 = vmatprep.subr.bf16.mxu0 %v2432
    %2543 = vmatpush1.bf16.msra.mxu0 %v2431
    %2544 = vmatprep.subr.bf16.mxu0 %v2428
    %2545 = vmatpush1.bf16.msra.mxu0 %v2427
    %2546 = vmatprep.subr.bf16.mxu0 0
    %2547 = vmatpush2.bf16.msra.mxu0 0
    %2548 = vmatprep.subr.bf16.mxu0 0
    %2549 = vmatpush2.bf16.msra.mxu0 0
    %2550 = vmatprep.subr.bf16.mxu0 0
    %2551 = vmatpush2.bf16.msra.mxu0 0
    %2552 = vmatprep.subr.bf16.mxu0 0
    %2553 = vmatpush2.bf16.msra.mxu0 0
    %2554 = vmatprep.subr.bf16.mxu0 0
    %2555 = vmatpush2.bf16.msra.mxu0 0
    %2556 = vmatprep.subr.bf16.mxu0 0
    %2557 = vmatpush2.bf16.msra.mxu0 0
    %2558 = vmatprep.subr.bf16.mxu0 0
    %2559 = vmatpush2.bf16.msra.mxu0 0
    %2560 = vmatprep.subr.bf16.mxu0 0
    %2561 = vmatpush2.bf16.msra.mxu0 0
    %2562 = vmatprep.mubr.bf16.mxu0 0
    %2563 = vmatmul.mubr.bf16.gmra.mxu0 %v2327
    %v2564 = vpop.f32.mrf.mxu0
    %v2565 = vadd.f32 0.0, %v2564
    %v2566 = vpop.f32.mrf.mxu0
    %v2567 = vadd.f32 0.0, %v2566
    %v2568 = vpop.f32.mrf.mxu0
    %v2569 = vpop.f32.mrf.mxu0
    %2570 = vdwg.mxu0
    %v2575 = vrot.slane %v2524, 6
    %v2576 = vrot.slane %v2526, 6
    %v2577 = vrot.slane %v2565, 6
    %v2578 = vrot.slane %v2567, 6
    %v2583 = vadd.f32 %v2289, %v2575
    %v2584 = vadd.f32 %v2290, %v2576
    %v2585 = vadd.f32 %v2291, %v2577
    %v2586 = vadd.f32 %v2292, %v2578
    %v2587 = vxor.u32 %v2285, 2147483648
    %v2588 = vxor.u32 %v2286, 2147483648
    %v2589 = vxor.u32 %v2287, 2147483648
    %v2590 = vmul.f32 %v2587, 1.442695
    %v2591 = vpow.pop %v2590
    %v2592 = vmul.f32 %v2588, 1.442695
    %v2593 = vpow.pop %v2592
    %v2594 = vmul.f32 %v2589, 1.442695
    %v2595 = vpow.pop %v2594
    %v2596 = vadd.f32 %v2591, 1.0
    %v2597 = vadd.f32 %v2593, 1.0
    %v2598 = vadd.f32 %v2595, 1.0
    %v2599 = vrcp.pop %v2596
    %v2600 = vmul.f32 1.0, %v2599
    %v2601 = vrcp.pop %v2597
    %v2602 = vmul.f32 1.0, %v2601
    %v2603 = vrcp.pop %v2598
    %v2604 = vmul.f32 1.0, %v2603
    %v2605 = vtanh.pop %v2288
    %v2607 = vrot.slane %v1959, 6
    %v2609 = vmul.f32 %v2602, %v2607
    %v2610 = vmul.f32 %v2600, %v2605
    %v2611 = vadd.f32 %v2609, %v2610
    %v2612 = vtanh.pop %v2611
    %v2613 = vmul.f32 %v2604, %v2612
    %v2614 = vxor.u32 %v2583, 2147483648
    %v2615 = vxor.u32 %v2584, 2147483648
    %v2616 = vxor.u32 %v2585, 2147483648
    %v2617 = vmul.f32 %v2614, 1.442695
    %v2618 = vpow.pop %v2617
    %v2619 = vmul.f32 %v2615, 1.442695
    %v2620 = vpow.pop %v2619
    %v2621 = vmul.f32 %v2616, 1.442695
    %v2622 = vpow.pop %v2621
    %v2623 = vadd.f32 %v2618, 1.0
    %v2624 = vadd.f32 %v2620, 1.0
    %v2625 = vadd.f32 %v2622, 1.0
    %v2626 = vrcp.pop %v2623
    %v2627 = vmul.f32 1.0, %v2626
    %v2628 = vrcp.pop %v2624
    %v2629 = vmul.f32 1.0, %v2628
    %v2630 = vrcp.pop %v2625
    %v2631 = vmul.f32 1.0, %v2630
    %v2632 = vtanh.pop %v2586
    %v2634 = vrot.slane %v1986, 2
    %v2636 = vmul.f32 %v2629, %v2634
    %v2637 = vmul.f32 %v2627, %v2632
    %v2638 = vadd.f32 %v2636, %v2637
    %v2639 = vtanh.pop %v2638
    %v2640 = vmul.f32 %v2631, %v2639
    %2641 = vst [vmem:[#allocation3] sm:$0x30] %v2613
    %2642 = vst [vmem:[#allocation3 + $0x18] sm:$0xc] %v2640
    %v2643 = vld [vmem:[#allocation2] sm:$0xc0]
    %v2644 = vld [vmem:[#allocation2 + $0x8] sm:$0xc0]
    %v2645 = vld [vmem:[#allocation2 + $0x10] sm:$0xc0]
    %v2646 = vld [vmem:[#allocation2 + $0x18] sm:$0xc0]
    %v2647 = vpack.c.bf16 %v2613, %v2613
    %v2648 = vld [vmem:[#allocation8] sm:$0xff]
    %v2649 = vld [vmem:[#allocation8 + $0x8] sm:$0xff]
    %v2650 = vld [vmem:[#allocation8 + $0x10] sm:$0xff]
    %v2651 = vld [vmem:[#allocation8 + $0x18] sm:$0xff]
    %v2652 = vld [vmem:[#allocation8 + $0x20] sm:$0xff]
    %v2653 = vld [vmem:[#allocation8 + $0x28] sm:$0xff]
    %v2654 = vld [vmem:[#allocation8 + $0x30] sm:$0xff]
    %v2655 = vld [vmem:[#allocation8 + $0x38] sm:$0xff]
    %v2656 = vld [vmem:[#allocation8 + $0x40] sm:$0xff]
    %v2657 = vld [vmem:[#allocation8 + $0x48] sm:$0xff]
    %v2658 = vld [vmem:[#allocation8 + $0x50] sm:$0xff]
    %v2659 = vld [vmem:[#allocation8 + $0x58] sm:$0xff]
    %v2660 = vld [vmem:[#allocation8 + $0x60] sm:$0xff]
    %v2661 = vld [vmem:[#allocation8 + $0x68] sm:$0xff]
    %v2662 = vld [vmem:[#allocation8 + $0x70] sm:$0xff]
    %v2663 = vld [vmem:[#allocation8 + $0x78] sm:$0xff]
    %v2664 = vld [vmem:[#allocation8 + $0x80] sm:$0xff]
    %v2665 = vld [vmem:[#allocation8 + $0x88] sm:$0xff]
    %v2666 = vld [vmem:[#allocation8 + $0x90] sm:$0xff]
    %v2667 = vld [vmem:[#allocation8 + $0x98] sm:$0xff]
    %v2668 = vld [vmem:[#allocation8 + $0xa0] sm:$0xff]
    %v2669 = vld [vmem:[#allocation8 + $0xa8] sm:$0xff]
    %v2670 = vld [vmem:[#allocation8 + $0xb0] sm:$0xff]
    %v2671 = vld [vmem:[#allocation8 + $0xb8] sm:$0xff]
    %v2672 = vld [vmem:[#allocation8 + $0xc0] sm:$0xff]
    %v2673 = vld [vmem:[#allocation8 + $0xc8] sm:$0xff]
    %v2674 = vld [vmem:[#allocation8 + $0xd0] sm:$0xff]
    %v2675 = vld [vmem:[#allocation8 + $0xd8] sm:$0xff]
    %v2676 = vld [vmem:[#allocation8 + $0xe0] sm:$0xff]
    %v2677 = vld [vmem:[#allocation8 + $0xe8] sm:$0xff]
    %v2678 = vld [vmem:[#allocation8 + $0xf0] sm:$0xff]
    %v2679 = vld [vmem:[#allocation8 + $0xf8] sm:$0xff]
    %v2681 = vrot.slane %v2647, 2
    %v2715 = vunpack.c.l.b16 %v2648
    %v2716 = vunpack.c.h.b16 %v2648
    %v2717 = vunpack.c.l.b16 %v2649
    %v2718 = vunpack.c.h.b16 %v2649
    %v2719 = vunpack.c.l.b16 %v2650
    %v2720 = vunpack.c.h.b16 %v2650
    %v2721 = vunpack.c.l.b16 %v2651
    %v2722 = vunpack.c.h.b16 %v2651
    %v2723 = vunpack.c.l.b16 %v2652
    %v2724 = vunpack.c.h.b16 %v2652
    %v2725 = vunpack.c.l.b16 %v2653
    %v2726 = vunpack.c.h.b16 %v2653
    %v2727 = vunpack.c.l.b16 %v2654
    %v2728 = vunpack.c.h.b16 %v2654
    %v2729 = vunpack.c.l.b16 %v2655
    %v2730 = vunpack.c.h.b16 %v2655
    %v2731 = vunpack.c.l.b16 %v2656
    %v2732 = vunpack.c.h.b16 %v2656
    %v2733 = vunpack.c.l.b16 %v2657
    %v2734 = vunpack.c.h.b16 %v2657
    %v2735 = vunpack.c.l.b16 %v2658
    %v2736 = vunpack.c.h.b16 %v2658
    %v2737 = vunpack.c.l.b16 %v2659
    %v2738 = vunpack.c.h.b16 %v2659
    %v2739 = vunpack.c.l.b16 %v2660
    %v2740 = vunpack.c.h.b16 %v2660
    %v2741 = vunpack.c.l.b16 %v2661
    %v2742 = vunpack.c.h.b16 %v2661
    %v2743 = vunpack.c.l.b16 %v2662
    %v2744 = vunpack.c.h.b16 %v2662
    %v2745 = vunpack.c.l.b16 %v2663
    %v2746 = vunpack.c.h.b16 %v2663
    %v2747 = vunpack.c.l.b16 %v2664
    %v2748 = vunpack.c.h.b16 %v2664
    %v2749 = vunpack.c.l.b16 %v2665
    %v2750 = vunpack.c.h.b16 %v2665
    %v2751 = vunpack.c.l.b16 %v2666
    %v2752 = vunpack.c.h.b16 %v2666
    %v2753 = vunpack.c.l.b16 %v2667
    %v2754 = vunpack.c.h.b16 %v2667
    %v2755 = vunpack.c.l.b16 %v2668
    %v2756 = vunpack.c.h.b16 %v2668
    %v2757 = vunpack.c.l.b16 %v2669
    %v2758 = vunpack.c.h.b16 %v2669
    %v2759 = vunpack.c.l.b16 %v2670
    %v2760 = vunpack.c.h.b16 %v2670
    %v2761 = vunpack.c.l.b16 %v2671
    %v2762 = vunpack.c.h.b16 %v2671
    %v2763 = vunpack.c.l.b16 %v2672
    %v2764 = vunpack.c.h.b16 %v2672
    %v2765 = vunpack.c.l.b16 %v2673
    %v2766 = vunpack.c.h.b16 %v2673
    %v2767 = vunpack.c.l.b16 %v2674
    %v2768 = vunpack.c.h.b16 %v2674
    %v2769 = vunpack.c.l.b16 %v2675
    %v2770 = vunpack.c.h.b16 %v2675
    %v2771 = vunpack.c.l.b16 %v2676
    %v2772 = vunpack.c.h.b16 %v2676
    %v2773 = vunpack.c.l.b16 %v2677
    %v2774 = vunpack.c.h.b16 %v2677
    %v2775 = vunpack.c.l.b16 %v2678
    %v2776 = vunpack.c.h.b16 %v2678
    %v2777 = vunpack.c.l.b16 %v2679
    %v2778 = vunpack.c.h.b16 %v2679
    %v2779 = vpack.c.b16 %v2719, %v2715
    %v2780 = vpack.c.b16 %v2720, %v2716
    %v2781 = vpack.c.b16 %v2721, %v2717
    %v2782 = vpack.c.b16 %v2722, %v2718
    %v2783 = vpack.c.b16 %v2727, %v2723
    %v2784 = vpack.c.b16 %v2728, %v2724
    %v2785 = vpack.c.b16 %v2729, %v2725
    %v2786 = vpack.c.b16 %v2730, %v2726
    %v2787 = vpack.c.b16 %v2735, %v2731
    %v2788 = vpack.c.b16 %v2736, %v2732
    %v2789 = vpack.c.b16 %v2737, %v2733
    %v2790 = vpack.c.b16 %v2738, %v2734
    %v2791 = vpack.c.b16 %v2743, %v2739
    %v2792 = vpack.c.b16 %v2744, %v2740
    %v2793 = vpack.c.b16 %v2745, %v2741
    %v2794 = vpack.c.b16 %v2746, %v2742
    %v2795 = vpack.c.b16 %v2751, %v2747
    %v2796 = vpack.c.b16 %v2752, %v2748
    %v2797 = vpack.c.b16 %v2753, %v2749
    %v2798 = vpack.c.b16 %v2754, %v2750
    %v2799 = vpack.c.b16 %v2759, %v2755
    %v2800 = vpack.c.b16 %v2760, %v2756
    %v2801 = vpack.c.b16 %v2761, %v2757
    %v2802 = vpack.c.b16 %v2762, %v2758
    %v2803 = vpack.c.b16 %v2767, %v2763
    %v2804 = vpack.c.b16 %v2768, %v2764
    %v2805 = vpack.c.b16 %v2769, %v2765
    %v2806 = vpack.c.b16 %v2770, %v2766
    %v2807 = vpack.c.b16 %v2775, %v2771
    %v2808 = vpack.c.b16 %v2776, %v2772
    %v2809 = vpack.c.b16 %v2777, %v2773
    %v2810 = vpack.c.b16 %v2778, %v2774
    %2843 = vmatprep.subr.bf16.mxu0 %v2808
    %2844 = vmatpush1.bf16.msra.mxu0 %v2807
    %2845 = vmatprep.subr.bf16.mxu0 %v2804
    %2846 = vmatpush1.bf16.msra.mxu0 %v2803
    %2847 = vmatprep.subr.bf16.mxu0 %v2800
    %2848 = vmatpush1.bf16.msra.mxu0 %v2799
    %2849 = vmatprep.subr.bf16.mxu0 %v2796
    %2850 = vmatpush1.bf16.msra.mxu0 %v2795
    %2851 = vmatprep.subr.bf16.mxu0 %v2792
    %2852 = vmatpush1.bf16.msra.mxu0 %v2791
    %2853 = vmatprep.subr.bf16.mxu0 %v2788
    %2854 = vmatpush1.bf16.msra.mxu0 %v2787
    %2855 = vmatprep.subr.bf16.mxu0 %v2784
    %2856 = vmatpush1.bf16.msra.mxu0 %v2783
    %2857 = vmatprep.subr.bf16.mxu0 %v2780
    %2858 = vmatpush1.bf16.msra.mxu0 %v2779
    %2859 = vmatprep.subr.bf16.mxu0 0
    %2860 = vmatpush2.bf16.msra.mxu0 0
    %2861 = vmatprep.subr.bf16.mxu0 0
    %2862 = vmatpush2.bf16.msra.mxu0 0
    %2863 = vmatprep.subr.bf16.mxu0 0
    %2864 = vmatpush2.bf16.msra.mxu0 0
    %2865 = vmatprep.subr.bf16.mxu0 0
    %2866 = vmatpush2.bf16.msra.mxu0 0
    %2867 = vmatprep.subr.bf16.mxu0 0
    %2868 = vmatpush2.bf16.msra.mxu0 0
    %2869 = vmatprep.subr.bf16.mxu0 0
    %2870 = vmatpush2.bf16.msra.mxu0 0
    %2871 = vmatprep.subr.bf16.mxu0 0
    %2872 = vmatpush2.bf16.msra.mxu0 0
    %2873 = vmatprep.subr.bf16.mxu0 0
    %2874 = vmatpush2.bf16.msra.mxu0 0
    %2875 = vmatprep.mubr.bf16.mxu0 0
    %2876 = vmatmul.mubr.bf16.gmra.mxu0 %v2681
    %v2877 = vpop.f32.mrf.mxu0
    %v2878 = vadd.f32 0.0, %v2877
    %v2879 = vpop.f32.mrf.mxu0
    %v2880 = vadd.f32 0.0, %v2879
    %v2881 = vpop.f32.mrf.mxu0
    %v2882 = vpop.f32.mrf.mxu0
    %2883 = vdwg.mxu0
    %2884 = vmatprep.subr.bf16.mxu0 %v2810
    %2885 = vmatpush1.bf16.msra.mxu0 %v2809
    %2886 = vmatprep.subr.bf16.mxu0 %v2806
    %2887 = vmatpush1.bf16.msra.mxu0 %v2805
    %2888 = vmatprep.subr.bf16.mxu0 %v2802
    %2889 = vmatpush1.bf16.msra.mxu0 %v2801
    %2890 = vmatprep.subr.bf16.mxu0 %v2798
    %2891 = vmatpush1.bf16.msra.mxu0 %v2797
    %2892 = vmatprep.subr.bf16.mxu0 %v2794
    %2893 = vmatpush1.bf16.msra.mxu0 %v2793
    %2894 = vmatprep.subr.bf16.mxu0 %v2790
    %2895 = vmatpush1.bf16.msra.mxu0 %v2789
    %2896 = vmatprep.subr.bf16.mxu0 %v2786
    %2897 = vmatpush1.bf16.msra.mxu0 %v2785
    %2898 = vmatprep.subr.bf16.mxu0 %v2782
    %2899 = vmatpush1.bf16.msra.mxu0 %v2781
    %2900 = vmatprep.subr.bf16.mxu0 0
    %2901 = vmatpush2.bf16.msra.mxu0 0
    %2902 = vmatprep.subr.bf16.mxu0 0
    %2903 = vmatpush2.bf16.msra.mxu0 0
    %2904 = vmatprep.subr.bf16.mxu0 0
    %2905 = vmatpush2.bf16.msra.mxu0 0
    %2906 = vmatprep.subr.bf16.mxu0 0
    %2907 = vmatpush2.bf16.msra.mxu0 0
    %2908 = vmatprep.subr.bf16.mxu0 0
    %2909 = vmatpush2.bf16.msra.mxu0 0
    %2910 = vmatprep.subr.bf16.mxu0 0
    %2911 = vmatpush2.bf16.msra.mxu0 0
    %2912 = vmatprep.subr.bf16.mxu0 0
    %2913 = vmatpush2.bf16.msra.mxu0 0
    %2914 = vmatprep.subr.bf16.mxu0 0
    %2915 = vmatpush2.bf16.msra.mxu0 0
    %2916 = vmatprep.mubr.bf16.mxu0 0
    %2917 = vmatmul.mubr.bf16.gmra.mxu0 %v2681
    %v2918 = vpop.f32.mrf.mxu0
    %v2919 = vadd.f32 0.0, %v2918
    %v2920 = vpop.f32.mrf.mxu0
    %v2921 = vadd.f32 0.0, %v2920
    %v2922 = vpop.f32.mrf.mxu0
    %v2923 = vpop.f32.mrf.mxu0
    %2924 = vdwg.mxu0
    %v2929 = vrot.slane %v2878, 2
    %v2930 = vrot.slane %v2880, 2
    %v2931 = vrot.slane %v2919, 2
    %v2932 = vrot.slane %v2921, 2
    %v2937 = vadd.f32 %v2643, %v2929
    %v2938 = vadd.f32 %v2644, %v2930
    %v2939 = vadd.f32 %v2645, %v2931
    %v2940 = vadd.f32 %v2646, %v2932
    %v2941 = vld [vmem:[#allocation2 + $0x60] sm:$0x3]
    %v2942 = vld [vmem:[#allocation2 + $0x68] sm:$0x3]
    %v2943 = vld [vmem:[#allocation2 + $0x70] sm:$0x3]
    %v2944 = vld [vmem:[#allocation2 + $0x78] sm:$0x3]
    %v2945 = vpack.c.bf16 %v2640, %v2640
    %v2946 = vld [vmem:[#allocation10] sm:$0xff]
    %v2947 = vld [vmem:[#allocation10 + $0x8] sm:$0xff]
    %v2948 = vld [vmem:[#allocation10 + $0x10] sm:$0xff]
    %v2949 = vld [vmem:[#allocation10 + $0x18] sm:$0xff]
    %v2950 = vld [vmem:[#allocation10 + $0x20] sm:$0xff]
    %v2951 = vld [vmem:[#allocation10 + $0x28] sm:$0xff]
    %v2952 = vld [vmem:[#allocation10 + $0x30] sm:$0xff]
    %v2953 = vld [vmem:[#allocation10 + $0x38] sm:$0xff]
    %v2954 = vld [vmem:[#allocation10 + $0x40] sm:$0xff]
    %v2955 = vld [vmem:[#allocation10 + $0x48] sm:$0xff]
    %v2956 = vld [vmem:[#allocation10 + $0x50] sm:$0xff]
    %v2957 = vld [vmem:[#allocation10 + $0x58] sm:$0xff]
    %v2958 = vld [vmem:[#allocation10 + $0x60] sm:$0xff]
    %v2959 = vld [vmem:[#allocation10 + $0x68] sm:$0xff]
    %v2960 = vld [vmem:[#allocation10 + $0x70] sm:$0xff]
    %v2961 = vld [vmem:[#allocation10 + $0x78] sm:$0xff]
    %v2962 = vld [vmem:[#allocation10 + $0x80] sm:$0xff]
    %v2963 = vld [vmem:[#allocation10 + $0x88] sm:$0xff]
    %v2964 = vld [vmem:[#allocation10 + $0x90] sm:$0xff]
    %v2965 = vld [vmem:[#allocation10 + $0x98] sm:$0xff]
    %v2966 = vld [vmem:[#allocation10 + $0xa0] sm:$0xff]
    %v2967 = vld [vmem:[#allocation10 + $0xa8] sm:$0xff]
    %v2968 = vld [vmem:[#allocation10 + $0xb0] sm:$0xff]
    %v2969 = vld [vmem:[#allocation10 + $0xb8] sm:$0xff]
    %v2970 = vld [vmem:[#allocation10 + $0xc0] sm:$0xff]
    %v2971 = vld [vmem:[#allocation10 + $0xc8] sm:$0xff]
    %v2972 = vld [vmem:[#allocation10 + $0xd0] sm:$0xff]
    %v2973 = vld [vmem:[#allocation10 + $0xd8] sm:$0xff]
    %v2974 = vld [vmem:[#allocation10 + $0xe0] sm:$0xff]
    %v2975 = vld [vmem:[#allocation10 + $0xe8] sm:$0xff]
    %v2976 = vld [vmem:[#allocation10 + $0xf0] sm:$0xff]
    %v2977 = vld [vmem:[#allocation10 + $0xf8] sm:$0xff]
    %v2979 = vrot.slane %v2945, 1
    %v3013 = vunpack.c.l.b16 %v2946
    %v3014 = vunpack.c.h.b16 %v2946
    %v3015 = vunpack.c.l.b16 %v2947
    %v3016 = vunpack.c.h.b16 %v2947
    %v3017 = vunpack.c.l.b16 %v2948
    %v3018 = vunpack.c.h.b16 %v2948
    %v3019 = vunpack.c.l.b16 %v2949
    %v3020 = vunpack.c.h.b16 %v2949
    %v3021 = vunpack.c.l.b16 %v2950
    %v3022 = vunpack.c.h.b16 %v2950
    %v3023 = vunpack.c.l.b16 %v2951
    %v3024 = vunpack.c.h.b16 %v2951
    %v3025 = vunpack.c.l.b16 %v2952
    %v3026 = vunpack.c.h.b16 %v2952
    %v3027 = vunpack.c.l.b16 %v2953
    %v3028 = vunpack.c.h.b16 %v2953
    %v3029 = vunpack.c.l.b16 %v2954
    %v3030 = vunpack.c.h.b16 %v2954
    %v3031 = vunpack.c.l.b16 %v2955
    %v3032 = vunpack.c.h.b16 %v2955
    %v3033 = vunpack.c.l.b16 %v2956
    %v3034 = vunpack.c.h.b16 %v2956
    %v3035 = vunpack.c.l.b16 %v2957
    %v3036 = vunpack.c.h.b16 %v2957
    %v3037 = vunpack.c.l.b16 %v2958
    %v3038 = vunpack.c.h.b16 %v2958
    %v3039 = vunpack.c.l.b16 %v2959
    %v3040 = vunpack.c.h.b16 %v2959
    %v3041 = vunpack.c.l.b16 %v2960
    %v3042 = vunpack.c.h.b16 %v2960
    %v3043 = vunpack.c.l.b16 %v2961
    %v3044 = vunpack.c.h.b16 %v2961
    %v3045 = vunpack.c.l.b16 %v2962
    %v3046 = vunpack.c.h.b16 %v2962
    %v3047 = vunpack.c.l.b16 %v2963
    %v3048 = vunpack.c.h.b16 %v2963
    %v3049 = vunpack.c.l.b16 %v2964
    %v3050 = vunpack.c.h.b16 %v2964
    %v3051 = vunpack.c.l.b16 %v2965
    %v3052 = vunpack.c.h.b16 %v2965
    %v3053 = vunpack.c.l.b16 %v2966
    %v3054 = vunpack.c.h.b16 %v2966
    %v3055 = vunpack.c.l.b16 %v2967
    %v3056 = vunpack.c.h.b16 %v2967
    %v3057 = vunpack.c.l.b16 %v2968
    %v3058 = vunpack.c.h.b16 %v2968
    %v3059 = vunpack.c.l.b16 %v2969
    %v3060 = vunpack.c.h.b16 %v2969
    %v3061 = vunpack.c.l.b16 %v2970
    %v3062 = vunpack.c.h.b16 %v2970
    %v3063 = vunpack.c.l.b16 %v2971
    %v3064 = vunpack.c.h.b16 %v2971
    %v3065 = vunpack.c.l.b16 %v2972
    %v3066 = vunpack.c.h.b16 %v2972
    %v3067 = vunpack.c.l.b16 %v2973
    %v3068 = vunpack.c.h.b16 %v2973
    %v3069 = vunpack.c.l.b16 %v2974
    %v3070 = vunpack.c.h.b16 %v2974
    %v3071 = vunpack.c.l.b16 %v2975
    %v3072 = vunpack.c.h.b16 %v2975
    %v3073 = vunpack.c.l.b16 %v2976
    %v3074 = vunpack.c.h.b16 %v2976
    %v3075 = vunpack.c.l.b16 %v2977
    %v3076 = vunpack.c.h.b16 %v2977
    %v3077 = vpack.c.b16 %v3017, %v3013
    %v3078 = vpack.c.b16 %v3018, %v3014
    %v3079 = vpack.c.b16 %v3019, %v3015
    %v3080 = vpack.c.b16 %v3020, %v3016
    %v3081 = vpack.c.b16 %v3025, %v3021
    %v3082 = vpack.c.b16 %v3026, %v3022
    %v3083 = vpack.c.b16 %v3027, %v3023
    %v3084 = vpack.c.b16 %v3028, %v3024
    %v3085 = vpack.c.b16 %v3033, %v3029
    %v3086 = vpack.c.b16 %v3034, %v3030
    %v3087 = vpack.c.b16 %v3035, %v3031
    %v3088 = vpack.c.b16 %v3036, %v3032
    %v3089 = vpack.c.b16 %v3041, %v3037
    %v3090 = vpack.c.b16 %v3042, %v3038
    %v3091 = vpack.c.b16 %v3043, %v3039
    %v3092 = vpack.c.b16 %v3044, %v3040
    %v3093 = vpack.c.b16 %v3049, %v3045
    %v3094 = vpack.c.b16 %v3050, %v3046
    %v3095 = vpack.c.b16 %v3051, %v3047
    %v3096 = vpack.c.b16 %v3052, %v3048
    %v3097 = vpack.c.b16 %v3057, %v3053
    %v3098 = vpack.c.b16 %v3058, %v3054
    %v3099 = vpack.c.b16 %v3059, %v3055
    %v3100 = vpack.c.b16 %v3060, %v3056
    %v3101 = vpack.c.b16 %v3065, %v3061
    %v3102 = vpack.c.b16 %v3066, %v3062
    %v3103 = vpack.c.b16 %v3067, %v3063
    %v3104 = vpack.c.b16 %v3068, %v3064
    %v3105 = vpack.c.b16 %v3073, %v3069
    %v3106 = vpack.c.b16 %v3074, %v3070
    %v3107 = vpack.c.b16 %v3075, %v3071
    %v3108 = vpack.c.b16 %v3076, %v3072
    %3141 = vmatprep.subr.bf16.mxu0 %v3106
    %3142 = vmatpush1.bf16.msra.mxu0 %v3105
    %3143 = vmatprep.subr.bf16.mxu0 %v3102
    %3144 = vmatpush1.bf16.msra.mxu0 %v3101
    %3145 = vmatprep.subr.bf16.mxu0 %v3098
    %3146 = vmatpush1.bf16.msra.mxu0 %v3097
    %3147 = vmatprep.subr.bf16.mxu0 %v3094
    %3148 = vmatpush1.bf16.msra.mxu0 %v3093
    %3149 = vmatprep.subr.bf16.mxu0 %v3090
    %3150 = vmatpush1.bf16.msra.mxu0 %v3089
    %3151 = vmatprep.subr.bf16.mxu0 %v3086
    %3152 = vmatpush1.bf16.msra.mxu0 %v3085
    %3153 = vmatprep.subr.bf16.mxu0 %v3082
    %3154 = vmatpush1.bf16.msra.mxu0 %v3081
    %3155 = vmatprep.subr.bf16.mxu0 %v3078
    %3156 = vmatpush1.bf16.msra.mxu0 %v3077
    %3157 = vmatprep.subr.bf16.mxu0 0
    %3158 = vmatpush2.bf16.msra.mxu0 0
    %3159 = vmatprep.subr.bf16.mxu0 0
    %3160 = vmatpush2.bf16.msra.mxu0 0
    %3161 = vmatprep.subr.bf16.mxu0 0
    %3162 = vmatpush2.bf16.msra.mxu0 0
    %3163 = vmatprep.subr.bf16.mxu0 0
    %3164 = vmatpush2.bf16.msra.mxu0 0
    %3165 = vmatprep.subr.bf16.mxu0 0
    %3166 = vmatpush2.bf16.msra.mxu0 0
    %3167 = vmatprep.subr.bf16.mxu0 0
    %3168 = vmatpush2.bf16.msra.mxu0 0
    %3169 = vmatprep.subr.bf16.mxu0 0
    %3170 = vmatpush2.bf16.msra.mxu0 0
    %3171 = vmatprep.subr.bf16.mxu0 0
    %3172 = vmatpush2.bf16.msra.mxu0 0
    %3173 = vmatprep.mubr.bf16.mxu0 0
    %3174 = vmatmul.mubr.bf16.gmra.mxu0 %v2979
    %v3175 = vpop.f32.mrf.mxu0
    %v3176 = vadd.f32 0.0, %v3175
    %v3177 = vpop.f32.mrf.mxu0
    %v3178 = vadd.f32 0.0, %v3177
    %v3179 = vpop.f32.mrf.mxu0
    %v3180 = vpop.f32.mrf.mxu0
    %3181 = vdwg.mxu0
    %3182 = vmatprep.subr.bf16.mxu0 %v3108
    %3183 = vmatpush1.bf16.msra.mxu0 %v3107
    %3184 = vmatprep.subr.bf16.mxu0 %v3104
    %3185 = vmatpush1.bf16.msra.mxu0 %v3103
    %3186 = vmatprep.subr.bf16.mxu0 %v3100
    %3187 = vmatpush1.bf16.msra.mxu0 %v3099
    %3188 = vmatprep.subr.bf16.mxu0 %v3096
    %3189 = vmatpush1.bf16.msra.mxu0 %v3095
    %3190 = vmatprep.subr.bf16.mxu0 %v3092
    %3191 = vmatpush1.bf16.msra.mxu0 %v3091
    %3192 = vmatprep.subr.bf16.mxu0 %v3088
    %3193 = vmatpush1.bf16.msra.mxu0 %v3087
    %3194 = vmatprep.subr.bf16.mxu0 %v3084
    %3195 = vmatpush1.bf16.msra.mxu0 %v3083
    %3196 = vmatprep.subr.bf16.mxu0 %v3080
    %3197 = vmatpush1.bf16.msra.mxu0 %v3079
    %3198 = vmatprep.subr.bf16.mxu0 0
    %3199 = vmatpush2.bf16.msra.mxu0 0
    %3200 = vmatprep.subr.bf16.mxu0 0
    %3201 = vmatpush2.bf16.msra.mxu0 0
    %3202 = vmatprep.subr.bf16.mxu0 0
    %3203 = vmatpush2.bf16.msra.mxu0 0
    %3204 = vmatprep.subr.bf16.mxu0 0
    %3205 = vmatpush2.bf16.msra.mxu0 0
    %3206 = vmatprep.subr.bf16.mxu0 0
    %3207 = vmatpush2.bf16.msra.mxu0 0
    %3208 = vmatprep.subr.bf16.mxu0 0
    %3209 = vmatpush2.bf16.msra.mxu0 0
    %3210 = vmatprep.subr.bf16.mxu0 0
    %3211 = vmatpush2.bf16.msra.mxu0 0
    %3212 = vmatprep.subr.bf16.mxu0 0
    %3213 = vmatpush2.bf16.msra.mxu0 0
    %3214 = vmatprep.mubr.bf16.mxu0 0
    %3215 = vmatmul.mubr.bf16.gmra.mxu0 %v2979
    %v3216 = vpop.f32.mrf.mxu0
    %v3217 = vadd.f32 0.0, %v3216
    %v3218 = vpop.f32.mrf.mxu0
    %v3219 = vadd.f32 0.0, %v3218
    %v3220 = vpop.f32.mrf.mxu0
    %v3221 = vpop.f32.mrf.mxu0
    %3222 = vdwg.mxu0
    %v3223 = vadd.f32 %v2941, %v3176
    %v3224 = vadd.f32 %v2942, %v3178
    %v3225 = vadd.f32 %v2943, %v3217
    %v3226 = vadd.f32 %v2944, %v3219
    %v3227 = vxor.u32 %v2937, 2147483648
    %v3228 = vxor.u32 %v2938, 2147483648
    %v3229 = vxor.u32 %v2939, 2147483648
    %v3230 = vmul.f32 %v3227, 1.442695
    %v3231 = vpow.pop %v3230
    %v3232 = vmul.f32 %v3228, 1.442695
    %v3233 = vpow.pop %v3232
    %v3234 = vmul.f32 %v3229, 1.442695
    %v3235 = vpow.pop %v3234
    %v3236 = vadd.f32 %v3231, 1.0
    %v3237 = vadd.f32 %v3233, 1.0
    %v3238 = vadd.f32 %v3235, 1.0
    %v3239 = vrcp.pop %v3236
    %v3240 = vmul.f32 1.0, %v3239
    %v3241 = vrcp.pop %v3237
    %v3242 = vmul.f32 1.0, %v3241
    %v3243 = vrcp.pop %v3238
    %v3244 = vmul.f32 1.0, %v3243
    %v3245 = vtanh.pop %v2940
    %v3247 = vrot.slane %v2611, 6
    %v3249 = vmul.f32 %v3242, %v3247
    %v3250 = vmul.f32 %v3240, %v3245
    %v3251 = vadd.f32 %v3249, %v3250
    %v3252 = vtanh.pop %v3251
    %v3253 = vmul.f32 %v3244, %v3252
    %v3254 = vxor.u32 %v3223, 2147483648
    %v3255 = vxor.u32 %v3224, 2147483648
    %v3256 = vxor.u32 %v3225, 2147483648
    %v3257 = vmul.f32 %v3254, 1.442695
    %v3258 = vpow.pop %v3257
    %v3259 = vmul.f32 %v3255, 1.442695
    %v3260 = vpow.pop %v3259
    %v3261 = vmul.f32 %v3256, 1.442695
    %v3262 = vpow.pop %v3261
    %v3263 = vadd.f32 %v3258, 1.0
    %v3264 = vadd.f32 %v3260, 1.0
    %v3265 = vadd.f32 %v3262, 1.0
    %v3266 = vrcp.pop %v3263
    %v3267 = vmul.f32 1.0, %v3266
    %v3268 = vrcp.pop %v3264
    %v3269 = vmul.f32 1.0, %v3268
    %v3270 = vrcp.pop %v3265
    %v3271 = vmul.f32 1.0, %v3270
    %v3272 = vtanh.pop %v3226
    %v3274 = vrot.slane %v2638, 2
    %v3276 = vmul.f32 %v3269, %v3274
    %v3277 = vmul.f32 %v3267, %v3272
    %v3278 = vadd.f32 %v3276, %v3277
    %v3279 = vtanh.pop %v3278
    %v3280 = vmul.f32 %v3271, %v3279
    %3281 = vst [vmem:[#allocation3] sm:$0xc0] %v3253
    %3282 = vst [vmem:[#allocation3 + $0x18] sm:$0x3] %v3280
    %v3283 = vld [vmem:[#allocation2 + $0x40] sm:$0x3]
    %v3284 = vld [vmem:[#allocation2 + $0x48] sm:$0x3]
    %v3285 = vld [vmem:[#allocation2 + $0x50] sm:$0x3]
    %v3286 = vld [vmem:[#allocation2 + $0x58] sm:$0x3]
    %v3287 = vpack.c.bf16 %v3253, %v3253
    %v3288 = vld [vmem:[#allocation8] sm:$0xff]
    %v3289 = vld [vmem:[#allocation8 + $0x8] sm:$0xff]
    %v3290 = vld [vmem:[#allocation8 + $0x10] sm:$0xff]
    %v3291 = vld [vmem:[#allocation8 + $0x18] sm:$0xff]
    %v3292 = vld [vmem:[#allocation8 + $0x20] sm:$0xff]
    %v3293 = vld [vmem:[#allocation8 + $0x28] sm:$0xff]
    %v3294 = vld [vmem:[#allocation8 + $0x30] sm:$0xff]
    %v3295 = vld [vmem:[#allocation8 + $0x38] sm:$0xff]
    %v3296 = vld [vmem:[#allocation8 + $0x40] sm:$0xff]
    %v3297 = vld [vmem:[#allocation8 + $0x48] sm:$0xff]
    %v3298 = vld [vmem:[#allocation8 + $0x50] sm:$0xff]
    %v3299 = vld [vmem:[#allocation8 + $0x58] sm:$0xff]
    %v3300 = vld [vmem:[#allocation8 + $0x60] sm:$0xff]
    %v3301 = vld [vmem:[#allocation8 + $0x68] sm:$0xff]
    %v3302 = vld [vmem:[#allocation8 + $0x70] sm:$0xff]
    %v3303 = vld [vmem:[#allocation8 + $0x78] sm:$0xff]
    %v3304 = vld [vmem:[#allocation8 + $0x80] sm:$0xff]
    %v3305 = vld [vmem:[#allocation8 + $0x88] sm:$0xff]
    %v3306 = vld [vmem:[#allocation8 + $0x90] sm:$0xff]
    %v3307 = vld [vmem:[#allocation8 + $0x98] sm:$0xff]
    %v3308 = vld [vmem:[#allocation8 + $0xa0] sm:$0xff]
    %v3309 = vld [vmem:[#allocation8 + $0xa8] sm:$0xff]
    %v3310 = vld [vmem:[#allocation8 + $0xb0] sm:$0xff]
    %v3311 = vld [vmem:[#allocation8 + $0xb8] sm:$0xff]
    %v3312 = vld [vmem:[#allocation8 + $0xc0] sm:$0xff]
    %v3313 = vld [vmem:[#allocation8 + $0xc8] sm:$0xff]
    %v3314 = vld [vmem:[#allocation8 + $0xd0] sm:$0xff]
    %v3315 = vld [vmem:[#allocation8 + $0xd8] sm:$0xff]
    %v3316 = vld [vmem:[#allocation8 + $0xe0] sm:$0xff]
    %v3317 = vld [vmem:[#allocation8 + $0xe8] sm:$0xff]
    %v3318 = vld [vmem:[#allocation8 + $0xf0] sm:$0xff]
    %v3319 = vld [vmem:[#allocation8 + $0xf8] sm:$0xff]
    %v3321 = vrot.slane %v3287, 3
    %v3355 = vunpack.c.l.b16 %v3288
    %v3356 = vunpack.c.h.b16 %v3288
    %v3357 = vunpack.c.l.b16 %v3289
    %v3358 = vunpack.c.h.b16 %v3289
    %v3359 = vunpack.c.l.b16 %v3290
    %v3360 = vunpack.c.h.b16 %v3290
    %v3361 = vunpack.c.l.b16 %v3291
    %v3362 = vunpack.c.h.b16 %v3291
    %v3363 = vunpack.c.l.b16 %v3292
    %v3364 = vunpack.c.h.b16 %v3292
    %v3365 = vunpack.c.l.b16 %v3293
    %v3366 = vunpack.c.h.b16 %v3293
    %v3367 = vunpack.c.l.b16 %v3294
    %v3368 = vunpack.c.h.b16 %v3294
    %v3369 = vunpack.c.l.b16 %v3295
    %v3370 = vunpack.c.h.b16 %v3295
    %v3371 = vunpack.c.l.b16 %v3296
    %v3372 = vunpack.c.h.b16 %v3296
    %v3373 = vunpack.c.l.b16 %v3297
    %v3374 = vunpack.c.h.b16 %v3297
    %v3375 = vunpack.c.l.b16 %v3298
    %v3376 = vunpack.c.h.b16 %v3298
    %v3377 = vunpack.c.l.b16 %v3299
    %v3378 = vunpack.c.h.b16 %v3299
    %v3379 = vunpack.c.l.b16 %v3300
    %v3380 = vunpack.c.h.b16 %v3300
    %v3381 = vunpack.c.l.b16 %v3301
    %v3382 = vunpack.c.h.b16 %v3301
    %v3383 = vunpack.c.l.b16 %v3302
    %v3384 = vunpack.c.h.b16 %v3302
    %v3385 = vunpack.c.l.b16 %v3303
    %v3386 = vunpack.c.h.b16 %v3303
    %v3387 = vunpack.c.l.b16 %v3304
    %v3388 = vunpack.c.h.b16 %v3304
    %v3389 = vunpack.c.l.b16 %v3305
    %v3390 = vunpack.c.h.b16 %v3305
    %v3391 = vunpack.c.l.b16 %v3306
    %v3392 = vunpack.c.h.b16 %v3306
    %v3393 = vunpack.c.l.b16 %v3307
    %v3394 = vunpack.c.h.b16 %v3307
    %v3395 = vunpack.c.l.b16 %v3308
    %v3396 = vunpack.c.h.b16 %v3308
    %v3397 = vunpack.c.l.b16 %v3309
    %v3398 = vunpack.c.h.b16 %v3309
    %v3399 = vunpack.c.l.b16 %v3310
    %v3400 = vunpack.c.h.b16 %v3310
    %v3401 = vunpack.c.l.b16 %v3311
    %v3402 = vunpack.c.h.b16 %v3311
    %v3403 = vunpack.c.l.b16 %v3312
    %v3404 = vunpack.c.h.b16 %v3312
    %v3405 = vunpack.c.l.b16 %v3313
    %v3406 = vunpack.c.h.b16 %v3313
    %v3407 = vunpack.c.l.b16 %v3314
    %v3408 = vunpack.c.h.b16 %v3314
    %v3409 = vunpack.c.l.b16 %v3315
    %v3410 = vunpack.c.h.b16 %v3315
    %v3411 = vunpack.c.l.b16 %v3316
    %v3412 = vunpack.c.h.b16 %v3316
    %v3413 = vunpack.c.l.b16 %v3317
    %v3414 = vunpack.c.h.b16 %v3317
    %v3415 = vunpack.c.l.b16 %v3318
    %v3416 = vunpack.c.h.b16 %v3318
    %v3417 = vunpack.c.l.b16 %v3319
    %v3418 = vunpack.c.h.b16 %v3319
    %v3419 = vpack.c.b16 %v3359, %v3355
    %v3420 = vpack.c.b16 %v3360, %v3356
    %v3421 = vpack.c.b16 %v3361, %v3357
    %v3422 = vpack.c.b16 %v3362, %v3358
    %v3423 = vpack.c.b16 %v3367, %v3363
    %v3424 = vpack.c.b16 %v3368, %v3364
    %v3425 = vpack.c.b16 %v3369, %v3365
    %v3426 = vpack.c.b16 %v3370, %v3366
    %v3427 = vpack.c.b16 %v3375, %v3371
    %v3428 = vpack.c.b16 %v3376, %v3372
    %v3429 = vpack.c.b16 %v3377, %v3373
    %v3430 = vpack.c.b16 %v3378, %v3374
    %v3431 = vpack.c.b16 %v3383, %v3379
    %v3432 = vpack.c.b16 %v3384, %v3380
    %v3433 = vpack.c.b16 %v3385, %v3381
    %v3434 = vpack.c.b16 %v3386, %v3382
    %v3435 = vpack.c.b16 %v3391, %v3387
    %v3436 = vpack.c.b16 %v3392, %v3388
    %v3437 = vpack.c.b16 %v3393, %v3389
    %v3438 = vpack.c.b16 %v3394, %v3390
    %v3439 = vpack.c.b16 %v3399, %v3395
    %v3440 = vpack.c.b16 %v3400, %v3396
    %v3441 = vpack.c.b16 %v3401, %v3397
    %v3442 = vpack.c.b16 %v3402, %v3398
    %v3443 = vpack.c.b16 %v3407, %v3403
    %v3444 = vpack.c.b16 %v3408, %v3404
    %v3445 = vpack.c.b16 %v3409, %v3405
    %v3446 = vpack.c.b16 %v3410, %v3406
    %v3447 = vpack.c.b16 %v3415, %v3411
    %v3448 = vpack.c.b16 %v3416, %v3412
    %v3449 = vpack.c.b16 %v3417, %v3413
    %v3450 = vpack.c.b16 %v3418, %v3414
    %3483 = vmatprep.subr.bf16.mxu0 %v3448
    %3484 = vmatpush1.bf16.msra.mxu0 %v3447
    %3485 = vmatprep.subr.bf16.mxu0 %v3444
    %3486 = vmatpush1.bf16.msra.mxu0 %v3443
    %3487 = vmatprep.subr.bf16.mxu0 %v3440
    %3488 = vmatpush1.bf16.msra.mxu0 %v3439
    %3489 = vmatprep.subr.bf16.mxu0 %v3436
    %3490 = vmatpush1.bf16.msra.mxu0 %v3435
    %3491 = vmatprep.subr.bf16.mxu0 %v3432
    %3492 = vmatpush1.bf16.msra.mxu0 %v3431
    %3493 = vmatprep.subr.bf16.mxu0 %v3428
    %3494 = vmatpush1.bf16.msra.mxu0 %v3427
    %3495 = vmatprep.subr.bf16.mxu0 %v3424
    %3496 = vmatpush1.bf16.msra.mxu0 %v3423
    %3497 = vmatprep.subr.bf16.mxu0 %v3420
    %3498 = vmatpush1.bf16.msra.mxu0 %v3419
    %3499 = vmatprep.subr.bf16.mxu0 0
    %3500 = vmatpush2.bf16.msra.mxu0 0
    %3501 = vmatprep.subr.bf16.mxu0 0
    %3502 = vmatpush2.bf16.msra.mxu0 0
    %3503 = vmatprep.subr.bf16.mxu0 0
    %3504 = vmatpush2.bf16.msra.mxu0 0
    %3505 = vmatprep.subr.bf16.mxu0 0
    %3506 = vmatpush2.bf16.msra.mxu0 0
    %3507 = vmatprep.subr.bf16.mxu0 0
    %3508 = vmatpush2.bf16.msra.mxu0 0
    %3509 = vmatprep.subr.bf16.mxu0 0
    %3510 = vmatpush2.bf16.msra.mxu0 0
    %3511 = vmatprep.subr.bf16.mxu0 0
    %3512 = vmatpush2.bf16.msra.mxu0 0
    %3513 = vmatprep.subr.bf16.mxu0 0
    %3514 = vmatpush2.bf16.msra.mxu0 0
    %3515 = vmatprep.mubr.bf16.mxu0 0
    %3516 = vmatmul.mubr.bf16.gmra.mxu0 %v3321
    %v3517 = vpop.f32.mrf.mxu0
    %v3518 = vadd.f32 0.0, %v3517
    %v3519 = vpop.f32.mrf.mxu0
    %v3520 = vadd.f32 0.0, %v3519
    %v3521 = vpop.f32.mrf.mxu0
    %v3522 = vpop.f32.mrf.mxu0
    %3523 = vdwg.mxu0
    %3524 = vmatprep.subr.bf16.mxu0 %v3450
    %3525 = vmatpush1.bf16.msra.mxu0 %v3449
    %3526 = vmatprep.subr.bf16.mxu0 %v3446
    %3527 = vmatpush1.bf16.msra.mxu0 %v3445
    %3528 = vmatprep.subr.bf16.mxu0 %v3442
    %3529 = vmatpush1.bf16.msra.mxu0 %v3441
    %3530 = vmatprep.subr.bf16.mxu0 %v3438
    %3531 = vmatpush1.bf16.msra.mxu0 %v3437
    %3532 = vmatprep.subr.bf16.mxu0 %v3434
    %3533 = vmatpush1.bf16.msra.mxu0 %v3433
    %3534 = vmatprep.subr.bf16.mxu0 %v3430
    %3535 = vmatpush1.bf16.msra.mxu0 %v3429
    %3536 = vmatprep.subr.bf16.mxu0 %v3426
    %3537 = vmatpush1.bf16.msra.mxu0 %v3425
    %3538 = vmatprep.subr.bf16.mxu0 %v3422
    %3539 = vmatpush1.bf16.msra.mxu0 %v3421
    %3540 = vmatprep.subr.bf16.mxu0 0
    %3541 = vmatpush2.bf16.msra.mxu0 0
    %3542 = vmatprep.subr.bf16.mxu0 0
    %3543 = vmatpush2.bf16.msra.mxu0 0
    %3544 = vmatprep.subr.bf16.mxu0 0
    %3545 = vmatpush2.bf16.msra.mxu0 0
    %3546 = vmatprep.subr.bf16.mxu0 0
    %3547 = vmatpush2.bf16.msra.mxu0 0
    %3548 = vmatprep.subr.bf16.mxu0 0
    %3549 = vmatpush2.bf16.msra.mxu0 0
    %3550 = vmatprep.subr.bf16.mxu0 0
    %3551 = vmatpush2.bf16.msra.mxu0 0
    %3552 = vmatprep.subr.bf16.mxu0 0
    %3553 = vmatpush2.bf16.msra.mxu0 0
    %3554 = vmatprep.subr.bf16.mxu0 0
    %3555 = vmatpush2.bf16.msra.mxu0 0
    %3556 = vmatprep.mubr.bf16.mxu0 0
    %3557 = vmatmul.mubr.bf16.gmra.mxu0 %v3321
    %v3558 = vpop.f32.mrf.mxu0
    %v3559 = vadd.f32 0.0, %v3558
    %v3560 = vpop.f32.mrf.mxu0
    %v3561 = vadd.f32 0.0, %v3560
    %v3562 = vpop.f32.mrf.mxu0
    %v3563 = vpop.f32.mrf.mxu0
    %3564 = vdwg.mxu0
    %v3565 = vadd.f32 %v3283, %v3518
    %v3566 = vadd.f32 %v3284, %v3520
    %v3567 = vadd.f32 %v3285, %v3559
    %v3568 = vadd.f32 %v3286, %v3561
    %v3569 = vld [vmem:[#allocation2 + $0x20] sm:$0xc0]
    %v3570 = vld [vmem:[#allocation2 + $0x28] sm:$0xc0]
    %v3571 = vld [vmem:[#allocation2 + $0x30] sm:$0xc0]
    %v3572 = vld [vmem:[#allocation2 + $0x38] sm:$0xc0]
    %v3573 = vpack.c.bf16 %v3280, %v3280
    %v3574 = vld [vmem:[#allocation10] sm:$0xff]
    %v3575 = vld [vmem:[#allocation10 + $0x8] sm:$0xff]
    %v3576 = vld [vmem:[#allocation10 + $0x10] sm:$0xff]
    %v3577 = vld [vmem:[#allocation10 + $0x18] sm:$0xff]
    %v3578 = vld [vmem:[#allocation10 + $0x20] sm:$0xff]
    %v3579 = vld [vmem:[#allocation10 + $0x28] sm:$0xff]
    %v3580 = vld [vmem:[#allocation10 + $0x30] sm:$0xff]
    %v3581 = vld [vmem:[#allocation10 + $0x38] sm:$0xff]
    %v3582 = vld [vmem:[#allocation10 + $0x40] sm:$0xff]
    %v3583 = vld [vmem:[#allocation10 + $0x48] sm:$0xff]
    %v3584 = vld [vmem:[#allocation10 + $0x50] sm:$0xff]
    %v3585 = vld [vmem:[#allocation10 + $0x58] sm:$0xff]
    %v3586 = vld [vmem:[#allocation10 + $0x60] sm:$0xff]
    %v3587 = vld [vmem:[#allocation10 + $0x68] sm:$0xff]
    %v3588 = vld [vmem:[#allocation10 + $0x70] sm:$0xff]
    %v3589 = vld [vmem:[#allocation10 + $0x78] sm:$0xff]
    %v3590 = vld [vmem:[#allocation10 + $0x80] sm:$0xff]
    %v3591 = vld [vmem:[#allocation10 + $0x88] sm:$0xff]
    %v3592 = vld [vmem:[#allocation10 + $0x90] sm:$0xff]
    %v3593 = vld [vmem:[#allocation10 + $0x98] sm:$0xff]
    %v3594 = vld [vmem:[#allocation10 + $0xa0] sm:$0xff]
    %v3595 = vld [vmem:[#allocation10 + $0xa8] sm:$0xff]
    %v3596 = vld [vmem:[#allocation10 + $0xb0] sm:$0xff]
    %v3597 = vld [vmem:[#allocation10 + $0xb8] sm:$0xff]
    %v3598 = vld [vmem:[#allocation10 + $0xc0] sm:$0xff]
    %v3599 = vld [vmem:[#allocation10 + $0xc8] sm:$0xff]
    %v3600 = vld [vmem:[#allocation10 + $0xd0] sm:$0xff]
    %v3601 = vld [vmem:[#allocation10 + $0xd8] sm:$0xff]
    %v3602 = vld [vmem:[#allocation10 + $0xe0] sm:$0xff]
    %v3603 = vld [vmem:[#allocation10 + $0xe8] sm:$0xff]
    %v3604 = vld [vmem:[#allocation10 + $0xf0] sm:$0xff]
    %v3605 = vld [vmem:[#allocation10 + $0xf8] sm:$0xff]
    %v3638 = vunpack.c.l.b16 %v3574
    %v3639 = vunpack.c.h.b16 %v3574
    %v3640 = vunpack.c.l.b16 %v3575
    %v3641 = vunpack.c.h.b16 %v3575
    %v3642 = vunpack.c.l.b16 %v3576
    %v3643 = vunpack.c.h.b16 %v3576
    %v3644 = vunpack.c.l.b16 %v3577
    %v3645 = vunpack.c.h.b16 %v3577
    %v3646 = vunpack.c.l.b16 %v3578
    %v3647 = vunpack.c.h.b16 %v3578
    %v3648 = vunpack.c.l.b16 %v3579
    %v3649 = vunpack.c.h.b16 %v3579
    %v3650 = vunpack.c.l.b16 %v3580
    %v3651 = vunpack.c.h.b16 %v3580
    %v3652 = vunpack.c.l.b16 %v3581
    %v3653 = vunpack.c.h.b16 %v3581
    %v3654 = vunpack.c.l.b16 %v3582
    %v3655 = vunpack.c.h.b16 %v3582
    %v3656 = vunpack.c.l.b16 %v3583
    %v3657 = vunpack.c.h.b16 %v3583
    %v3658 = vunpack.c.l.b16 %v3584
    %v3659 = vunpack.c.h.b16 %v3584
    %v3660 = vunpack.c.l.b16 %v3585
    %v3661 = vunpack.c.h.b16 %v3585
    %v3662 = vunpack.c.l.b16 %v3586
    %v3663 = vunpack.c.h.b16 %v3586
    %v3664 = vunpack.c.l.b16 %v3587
    %v3665 = vunpack.c.h.b16 %v3587
    %v3666 = vunpack.c.l.b16 %v3588
    %v3667 = vunpack.c.h.b16 %v3588
    %v3668 = vunpack.c.l.b16 %v3589
    %v3669 = vunpack.c.h.b16 %v3589
    %v3670 = vunpack.c.l.b16 %v3590
    %v3671 = vunpack.c.h.b16 %v3590
    %v3672 = vunpack.c.l.b16 %v3591
    %v3673 = vunpack.c.h.b16 %v3591
    %v3674 = vunpack.c.l.b16 %v3592
    %v3675 = vunpack.c.h.b16 %v3592
    %v3676 = vunpack.c.l.b16 %v3593
    %v3677 = vunpack.c.h.b16 %v3593
    %v3678 = vunpack.c.l.b16 %v3594
    %v3679 = vunpack.c.h.b16 %v3594
    %v3680 = vunpack.c.l.b16 %v3595
    %v3681 = vunpack.c.h.b16 %v3595
    %v3682 = vunpack.c.l.b16 %v3596
    %v3683 = vunpack.c.h.b16 %v3596
    %v3684 = vunpack.c.l.b16 %v3597
    %v3685 = vunpack.c.h.b16 %v3597
    %v3686 = vunpack.c.l.b16 %v3598
    %v3687 = vunpack.c.h.b16 %v3598
    %v3688 = vunpack.c.l.b16 %v3599
    %v3689 = vunpack.c.h.b16 %v3599
    %v3690 = vunpack.c.l.b16 %v3600
    %v3691 = vunpack.c.h.b16 %v3600
    %v3692 = vunpack.c.l.b16 %v3601
    %v3693 = vunpack.c.h.b16 %v3601
    %v3694 = vunpack.c.l.b16 %v3602
    %v3695 = vunpack.c.h.b16 %v3602
    %v3696 = vunpack.c.l.b16 %v3603
    %v3697 = vunpack.c.h.b16 %v3603
    %v3698 = vunpack.c.l.b16 %v3604
    %v3699 = vunpack.c.h.b16 %v3604
    %v3700 = vunpack.c.l.b16 %v3605
    %v3701 = vunpack.c.h.b16 %v3605
    %v3702 = vpack.c.b16 %v3642, %v3638
    %v3703 = vpack.c.b16 %v3643, %v3639
    %v3704 = vpack.c.b16 %v3644, %v3640
    %v3705 = vpack.c.b16 %v3645, %v3641
    %v3706 = vpack.c.b16 %v3650, %v3646
    %v3707 = vpack.c.b16 %v3651, %v3647
    %v3708 = vpack.c.b16 %v3652, %v3648
    %v3709 = vpack.c.b16 %v3653, %v3649
    %v3710 = vpack.c.b16 %v3658, %v3654
    %v3711 = vpack.c.b16 %v3659, %v3655
    %v3712 = vpack.c.b16 %v3660, %v3656
    %v3713 = vpack.c.b16 %v3661, %v3657
    %v3714 = vpack.c.b16 %v3666, %v3662
    %v3715 = vpack.c.b16 %v3667, %v3663
    %v3716 = vpack.c.b16 %v3668, %v3664
    %v3717 = vpack.c.b16 %v3669, %v3665
    %v3718 = vpack.c.b16 %v3674, %v3670
    %v3719 = vpack.c.b16 %v3675, %v3671
    %v3720 = vpack.c.b16 %v3676, %v3672
    %v3721 = vpack.c.b16 %v3677, %v3673
    %v3722 = vpack.c.b16 %v3682, %v3678
    %v3723 = vpack.c.b16 %v3683, %v3679
    %v3724 = vpack.c.b16 %v3684, %v3680
    %v3725 = vpack.c.b16 %v3685, %v3681
    %v3726 = vpack.c.b16 %v3690, %v3686
    %v3727 = vpack.c.b16 %v3691, %v3687
    %v3728 = vpack.c.b16 %v3692, %v3688
    %v3729 = vpack.c.b16 %v3693, %v3689
    %v3730 = vpack.c.b16 %v3698, %v3694
    %v3731 = vpack.c.b16 %v3699, %v3695
    %v3732 = vpack.c.b16 %v3700, %v3696
    %v3733 = vpack.c.b16 %v3701, %v3697
    %3766 = vmatprep.subr.bf16.mxu0 %v3731
    %3767 = vmatpush1.bf16.msra.mxu0 %v3730
    %3768 = vmatprep.subr.bf16.mxu0 %v3727
    %3769 = vmatpush1.bf16.msra.mxu0 %v3726
    %3770 = vmatprep.subr.bf16.mxu0 %v3723
    %3771 = vmatpush1.bf16.msra.mxu0 %v3722
    %3772 = vmatprep.subr.bf16.mxu0 %v3719
    %3773 = vmatpush1.bf16.msra.mxu0 %v3718
    %3774 = vmatprep.subr.bf16.mxu0 %v3715
    %3775 = vmatpush1.bf16.msra.mxu0 %v3714
    %3776 = vmatprep.subr.bf16.mxu0 %v3711
    %3777 = vmatpush1.bf16.msra.mxu0 %v3710
    %3778 = vmatprep.subr.bf16.mxu0 %v3707
    %3779 = vmatpush1.bf16.msra.mxu0 %v3706
    %3780 = vmatprep.subr.bf16.mxu0 %v3703
    %3781 = vmatpush1.bf16.msra.mxu0 %v3702
    %3782 = vmatprep.subr.bf16.mxu0 0
    %3783 = vmatpush2.bf16.msra.mxu0 0
    %3784 = vmatprep.subr.bf16.mxu0 0
    %3785 = vmatpush2.bf16.msra.mxu0 0
    %3786 = vmatprep.subr.bf16.mxu0 0
    %3787 = vmatpush2.bf16.msra.mxu0 0
    %3788 = vmatprep.subr.bf16.mxu0 0
    %3789 = vmatpush2.bf16.msra.mxu0 0
    %3790 = vmatprep.subr.bf16.mxu0 0
    %3791 = vmatpush2.bf16.msra.mxu0 0
    %3792 = vmatprep.subr.bf16.mxu0 0
    %3793 = vmatpush2.bf16.msra.mxu0 0
    %3794 = vmatprep.subr.bf16.mxu0 0
    %3795 = vmatpush2.bf16.msra.mxu0 0
    %3796 = vmatprep.subr.bf16.mxu0 0
    %3797 = vmatpush2.bf16.msra.mxu0 0
    %3798 = vmatprep.mubr.bf16.mxu0 0
    %3799 = vmatmul.mubr.bf16.gmra.mxu0 %v3573
    %v3800 = vpop.f32.mrf.mxu0
    %v3801 = vadd.f32 0.0, %v3800
    %v3802 = vpop.f32.mrf.mxu0
    %v3803 = vadd.f32 0.0, %v3802
    %v3804 = vpop.f32.mrf.mxu0
    %v3805 = vpop.f32.mrf.mxu0
    %3806 = vdwg.mxu0
    %3807 = vmatprep.subr.bf16.mxu0 %v3733
    %3808 = vmatpush1.bf16.msra.mxu0 %v3732
    %3809 = vmatprep.subr.bf16.mxu0 %v3729
    %3810 = vmatpush1.bf16.msra.mxu0 %v3728
    %3811 = vmatprep.subr.bf16.mxu0 %v3725
    %3812 = vmatpush1.bf16.msra.mxu0 %v3724
    %3813 = vmatprep.subr.bf16.mxu0 %v3721
    %3814 = vmatpush1.bf16.msra.mxu0 %v3720
    %3815 = vmatprep.subr.bf16.mxu0 %v3717
    %3816 = vmatpush1.bf16.msra.mxu0 %v3716
    %3817 = vmatprep.subr.bf16.mxu0 %v3713
    %3818 = vmatpush1.bf16.msra.mxu0 %v3712
    %3819 = vmatprep.subr.bf16.mxu0 %v3709
    %3820 = vmatpush1.bf16.msra.mxu0 %v3708
    %3821 = vmatprep.subr.bf16.mxu0 %v3705
    %3822 = vmatpush1.bf16.msra.mxu0 %v3704
    %3823 = vmatprep.subr.bf16.mxu0 0
    %3824 = vmatpush2.bf16.msra.mxu0 0
    %3825 = vmatprep.subr.bf16.mxu0 0
    %3826 = vmatpush2.bf16.msra.mxu0 0
    %3827 = vmatprep.subr.bf16.mxu0 0
    %3828 = vmatpush2.bf16.msra.mxu0 0
    %3829 = vmatprep.subr.bf16.mxu0 0
    %3830 = vmatpush2.bf16.msra.mxu0 0
    %3831 = vmatprep.subr.bf16.mxu0 0
    %3832 = vmatpush2.bf16.msra.mxu0 0
    %3833 = vmatprep.subr.bf16.mxu0 0
    %3834 = vmatpush2.bf16.msra.mxu0 0
    %3835 = vmatprep.subr.bf16.mxu0 0
    %3836 = vmatpush2.bf16.msra.mxu0 0
    %3837 = vmatprep.subr.bf16.mxu0 0
    %3838 = vmatpush2.bf16.msra.mxu0 0
    %3839 = vmatprep.mubr.bf16.mxu0 0
    %3840 = vmatmul.mubr.bf16.gmra.mxu0 %v3573
    %v3841 = vpop.f32.mrf.mxu0
    %v3842 = vadd.f32 0.0, %v3841
    %v3843 = vpop.f32.mrf.mxu0
    %v3844 = vadd.f32 0.0, %v3843
    %v3845 = vpop.f32.mrf.mxu0
    %v3846 = vpop.f32.mrf.mxu0
    %3847 = vdwg.mxu0
    %v3852 = vrot.slane %v3801, 2
    %v3853 = vrot.slane %v3803, 2
    %v3854 = vrot.slane %v3842, 2
    %v3855 = vrot.slane %v3844, 2
    %v3860 = vadd.f32 %v3569, %v3852
    %v3861 = vadd.f32 %v3570, %v3853
    %v3862 = vadd.f32 %v3571, %v3854
    %v3863 = vadd.f32 %v3572, %v3855
    %v3864 = vxor.u32 %v3565, 2147483648
    %v3865 = vxor.u32 %v3566, 2147483648
    %v3866 = vxor.u32 %v3567, 2147483648
    %v3867 = vmul.f32 %v3864, 1.442695
    %v3868 = vpow.pop %v3867
    %v3869 = vmul.f32 %v3865, 1.442695
    %v3870 = vpow.pop %v3869
    %v3871 = vmul.f32 %v3866, 1.442695
    %v3872 = vpow.pop %v3871
    %v3873 = vadd.f32 %v3868, 1.0
    %v3874 = vadd.f32 %v3870, 1.0
    %v3875 = vadd.f32 %v3872, 1.0
    %v3876 = vrcp.pop %v3873
    %v3877 = vmul.f32 1.0, %v3876
    %v3878 = vrcp.pop %v3874
    %v3879 = vmul.f32 1.0, %v3878
    %v3880 = vrcp.pop %v3875
    %v3881 = vmul.f32 1.0, %v3880
    %v3882 = vtanh.pop %v3568
    %v3884 = vrot.slane %v3251, 6
    %v3886 = vmul.f32 %v3879, %v3884
    %v3887 = vmul.f32 %v3877, %v3882
    %v3888 = vadd.f32 %v3886, %v3887
    %v3889 = vtanh.pop %v3888
    %v3890 = vmul.f32 %v3881, %v3889
    %v3891 = vxor.u32 %v3860, 2147483648
    %v3892 = vxor.u32 %v3861, 2147483648
    %v3893 = vxor.u32 %v3862, 2147483648
    %v3894 = vmul.f32 %v3891, 1.442695
    %v3895 = vpow.pop %v3894
    %v3896 = vmul.f32 %v3892, 1.442695
    %v3897 = vpow.pop %v3896
    %v3898 = vmul.f32 %v3893, 1.442695
    %v3899 = vpow.pop %v3898
    %v3900 = vadd.f32 %v3895, 1.0
    %v3901 = vadd.f32 %v3897, 1.0
    %v3902 = vadd.f32 %v3899, 1.0
    %v3903 = vrcp.pop %v3900
    %v3904 = vmul.f32 1.0, %v3903
    %v3905 = vrcp.pop %v3901
    %v3906 = vmul.f32 1.0, %v3905
    %v3907 = vrcp.pop %v3902
    %v3908 = vmul.f32 1.0, %v3907
    %v3909 = vtanh.pop %v3863
    %v3911 = vrot.slane %v3278, 2
    %v3913 = vmul.f32 %v3906, %v3911
    %v3914 = vmul.f32 %v3904, %v3909
    %v3915 = vadd.f32 %v3913, %v3914
    %v3916 = vtanh.pop %v3915
    %v3917 = vmul.f32 %v3908, %v3916
    %3918 = vst [vmem:[#allocation3 + $0x10] sm:$0x3] %v3890
    %3919 = vst [vmem:[#allocation3 + $0x8] sm:$0xc0] %v3917
    %v3920 = vld [vmem:[#allocation2 + $0x40] sm:$0xc]
    %v3921 = vld [vmem:[#allocation2 + $0x48] sm:$0xc]
    %v3922 = vld [vmem:[#allocation2 + $0x50] sm:$0xc]
    %v3923 = vld [vmem:[#allocation2 + $0x58] sm:$0xc]
    %v3924 = vpack.c.bf16 %v3890, %v3890
    %v3925 = vld [vmem:[#allocation8] sm:$0xff]
    %v3926 = vld [vmem:[#allocation8 + $0x8] sm:$0xff]
    %v3927 = vld [vmem:[#allocation8 + $0x10] sm:$0xff]
    %v3928 = vld [vmem:[#allocation8 + $0x18] sm:$0xff]
    %v3929 = vld [vmem:[#allocation8 + $0x20] sm:$0xff]
    %v3930 = vld [vmem:[#allocation8 + $0x28] sm:$0xff]
    %v3931 = vld [vmem:[#allocation8 + $0x30] sm:$0xff]
    %v3932 = vld [vmem:[#allocation8 + $0x38] sm:$0xff]
    %v3933 = vld [vmem:[#allocation8 + $0x40] sm:$0xff]
    %v3934 = vld [vmem:[#allocation8 + $0x48] sm:$0xff]
    %v3935 = vld [vmem:[#allocation8 + $0x50] sm:$0xff]
    %v3936 = vld [vmem:[#allocation8 + $0x58] sm:$0xff]
    %v3937 = vld [vmem:[#allocation8 + $0x60] sm:$0xff]
    %v3938 = vld [vmem:[#allocation8 + $0x68] sm:$0xff]
    %v3939 = vld [vmem:[#allocation8 + $0x70] sm:$0xff]
    %v3940 = vld [vmem:[#allocation8 + $0x78] sm:$0xff]
    %v3941 = vld [vmem:[#allocation8 + $0x80] sm:$0xff]
    %v3942 = vld [vmem:[#allocation8 + $0x88] sm:$0xff]
    %v3943 = vld [vmem:[#allocation8 + $0x90] sm:$0xff]
    %v3944 = vld [vmem:[#allocation8 + $0x98] sm:$0xff]
    %v3945 = vld [vmem:[#allocation8 + $0xa0] sm:$0xff]
    %v3946 = vld [vmem:[#allocation8 + $0xa8] sm:$0xff]
    %v3947 = vld [vmem:[#allocation8 + $0xb0] sm:$0xff]
    %v3948 = vld [vmem:[#allocation8 + $0xb8] sm:$0xff]
    %v3949 = vld [vmem:[#allocation8 + $0xc0] sm:$0xff]
    %v3950 = vld [vmem:[#allocation8 + $0xc8] sm:$0xff]
    %v3951 = vld [vmem:[#allocation8 + $0xd0] sm:$0xff]
    %v3952 = vld [vmem:[#allocation8 + $0xd8] sm:$0xff]
    %v3953 = vld [vmem:[#allocation8 + $0xe0] sm:$0xff]
    %v3954 = vld [vmem:[#allocation8 + $0xe8] sm:$0xff]
    %v3955 = vld [vmem:[#allocation8 + $0xf0] sm:$0xff]
    %v3956 = vld [vmem:[#allocation8 + $0xf8] sm:$0xff]
    %v3989 = vunpack.c.l.b16 %v3925
    %v3990 = vunpack.c.h.b16 %v3925
    %v3991 = vunpack.c.l.b16 %v3926
    %v3992 = vunpack.c.h.b16 %v3926
    %v3993 = vunpack.c.l.b16 %v3927
    %v3994 = vunpack.c.h.b16 %v3927
    %v3995 = vunpack.c.l.b16 %v3928
    %v3996 = vunpack.c.h.b16 %v3928
    %v3997 = vunpack.c.l.b16 %v3929
    %v3998 = vunpack.c.h.b16 %v3929
    %v3999 = vunpack.c.l.b16 %v3930
    %v4000 = vunpack.c.h.b16 %v3930
    %v4001 = vunpack.c.l.b16 %v3931
    %v4002 = vunpack.c.h.b16 %v3931
    %v4003 = vunpack.c.l.b16 %v3932
    %v4004 = vunpack.c.h.b16 %v3932
    %v4005 = vunpack.c.l.b16 %v3933
    %v4006 = vunpack.c.h.b16 %v3933
    %v4007 = vunpack.c.l.b16 %v3934
    %v4008 = vunpack.c.h.b16 %v3934
    %v4009 = vunpack.c.l.b16 %v3935
    %v4010 = vunpack.c.h.b16 %v3935
    %v4011 = vunpack.c.l.b16 %v3936
    %v4012 = vunpack.c.h.b16 %v3936
    %v4013 = vunpack.c.l.b16 %v3937
    %v4014 = vunpack.c.h.b16 %v3937
    %v4015 = vunpack.c.l.b16 %v3938
    %v4016 = vunpack.c.h.b16 %v3938
    %v4017 = vunpack.c.l.b16 %v3939
    %v4018 = vunpack.c.h.b16 %v3939
    %v4019 = vunpack.c.l.b16 %v3940
    %v4020 = vunpack.c.h.b16 %v3940
    %v4021 = vunpack.c.l.b16 %v3941
    %v4022 = vunpack.c.h.b16 %v3941
    %v4023 = vunpack.c.l.b16 %v3942
    %v4024 = vunpack.c.h.b16 %v3942
    %v4025 = vunpack.c.l.b16 %v3943
    %v4026 = vunpack.c.h.b16 %v3943
    %v4027 = vunpack.c.l.b16 %v3944
    %v4028 = vunpack.c.h.b16 %v3944
    %v4029 = vunpack.c.l.b16 %v3945
    %v4030 = vunpack.c.h.b16 %v3945
    %v4031 = vunpack.c.l.b16 %v3946
    %v4032 = vunpack.c.h.b16 %v3946
    %v4033 = vunpack.c.l.b16 %v3947
    %v4034 = vunpack.c.h.b16 %v3947
    %v4035 = vunpack.c.l.b16 %v3948
    %v4036 = vunpack.c.h.b16 %v3948
    %v4037 = vunpack.c.l.b16 %v3949
    %v4038 = vunpack.c.h.b16 %v3949
    %v4039 = vunpack.c.l.b16 %v3950
    %v4040 = vunpack.c.h.b16 %v3950
    %v4041 = vunpack.c.l.b16 %v3951
    %v4042 = vunpack.c.h.b16 %v3951
    %v4043 = vunpack.c.l.b16 %v3952
    %v4044 = vunpack.c.h.b16 %v3952
    %v4045 = vunpack.c.l.b16 %v3953
    %v4046 = vunpack.c.h.b16 %v3953
    %v4047 = vunpack.c.l.b16 %v3954
    %v4048 = vunpack.c.h.b16 %v3954
    %v4049 = vunpack.c.l.b16 %v3955
    %v4050 = vunpack.c.h.b16 %v3955
    %v4051 = vunpack.c.l.b16 %v3956
    %v4052 = vunpack.c.h.b16 %v3956
    %v4053 = vpack.c.b16 %v3993, %v3989
    %v4054 = vpack.c.b16 %v3994, %v3990
    %v4055 = vpack.c.b16 %v3995, %v3991
    %v4056 = vpack.c.b16 %v3996, %v3992
    %v4057 = vpack.c.b16 %v4001, %v3997
    %v4058 = vpack.c.b16 %v4002, %v3998
    %v4059 = vpack.c.b16 %v4003, %v3999
    %v4060 = vpack.c.b16 %v4004, %v4000
    %v4061 = vpack.c.b16 %v4009, %v4005
    %v4062 = vpack.c.b16 %v4010, %v4006
    %v4063 = vpack.c.b16 %v4011, %v4007
    %v4064 = vpack.c.b16 %v4012, %v4008
    %v4065 = vpack.c.b16 %v4017, %v4013
    %v4066 = vpack.c.b16 %v4018, %v4014
    %v4067 = vpack.c.b16 %v4019, %v4015
    %v4068 = vpack.c.b16 %v4020, %v4016
    %v4069 = vpack.c.b16 %v4025, %v4021
    %v4070 = vpack.c.b16 %v4026, %v4022
    %v4071 = vpack.c.b16 %v4027, %v4023
    %v4072 = vpack.c.b16 %v4028, %v4024
    %v4073 = vpack.c.b16 %v4033, %v4029
    %v4074 = vpack.c.b16 %v4034, %v4030
    %v4075 = vpack.c.b16 %v4035, %v4031
    %v4076 = vpack.c.b16 %v4036, %v4032
    %v4077 = vpack.c.b16 %v4041, %v4037
    %v4078 = vpack.c.b16 %v4042, %v4038
    %v4079 = vpack.c.b16 %v4043, %v4039
    %v4080 = vpack.c.b16 %v4044, %v4040
    %v4081 = vpack.c.b16 %v4049, %v4045
    %v4082 = vpack.c.b16 %v4050, %v4046
    %v4083 = vpack.c.b16 %v4051, %v4047
    %v4084 = vpack.c.b16 %v4052, %v4048
    %4117 = vmatprep.subr.bf16.mxu0 %v4082
    %4118 = vmatpush1.bf16.msra.mxu0 %v4081
    %4119 = vmatprep.subr.bf16.mxu0 %v4078
    %4120 = vmatpush1.bf16.msra.mxu0 %v4077
    %4121 = vmatprep.subr.bf16.mxu0 %v4074
    %4122 = vmatpush1.bf16.msra.mxu0 %v4073
    %4123 = vmatprep.subr.bf16.mxu0 %v4070
    %4124 = vmatpush1.bf16.msra.mxu0 %v4069
    %4125 = vmatprep.subr.bf16.mxu0 %v4066
    %4126 = vmatpush1.bf16.msra.mxu0 %v4065
    %4127 = vmatprep.subr.bf16.mxu0 %v4062
    %4128 = vmatpush1.bf16.msra.mxu0 %v4061
    %4129 = vmatprep.subr.bf16.mxu0 %v4058
    %4130 = vmatpush1.bf16.msra.mxu0 %v4057
    %4131 = vmatprep.subr.bf16.mxu0 %v4054
    %4132 = vmatpush1.bf16.msra.mxu0 %v4053
    %4133 = vmatprep.subr.bf16.mxu0 0
    %4134 = vmatpush2.bf16.msra.mxu0 0
    %4135 = vmatprep.subr.bf16.mxu0 0
    %4136 = vmatpush2.bf16.msra.mxu0 0
    %4137 = vmatprep.subr.bf16.mxu0 0
    %4138 = vmatpush2.bf16.msra.mxu0 0
    %4139 = vmatprep.subr.bf16.mxu0 0
    %4140 = vmatpush2.bf16.msra.mxu0 0
    %4141 = vmatprep.subr.bf16.mxu0 0
    %4142 = vmatpush2.bf16.msra.mxu0 0
    %4143 = vmatprep.subr.bf16.mxu0 0
    %4144 = vmatpush2.bf16.msra.mxu0 0
    %4145 = vmatprep.subr.bf16.mxu0 0
    %4146 = vmatpush2.bf16.msra.mxu0 0
    %4147 = vmatprep.subr.bf16.mxu0 0
    %4148 = vmatpush2.bf16.msra.mxu0 0
    %4149 = vmatprep.mubr.bf16.mxu0 0
    %4150 = vmatmul.mubr.bf16.gmra.mxu0 %v3924
    %v4151 = vpop.f32.mrf.mxu0
    %v4152 = vadd.f32 0.0, %v4151
    %v4153 = vpop.f32.mrf.mxu0
    %v4154 = vadd.f32 0.0, %v4153
    %v4155 = vpop.f32.mrf.mxu0
    %v4156 = vpop.f32.mrf.mxu0
    %4157 = vdwg.mxu0
    %4158 = vmatprep.subr.bf16.mxu0 %v4084
    %4159 = vmatpush1.bf16.msra.mxu0 %v4083
    %4160 = vmatprep.subr.bf16.mxu0 %v4080
    %4161 = vmatpush1.bf16.msra.mxu0 %v4079
    %4162 = vmatprep.subr.bf16.mxu0 %v4076
    %4163 = vmatpush1.bf16.msra.mxu0 %v4075
    %4164 = vmatprep.subr.bf16.mxu0 %v4072
    %4165 = vmatpush1.bf16.msra.mxu0 %v4071
    %4166 = vmatprep.subr.bf16.mxu0 %v4068
    %4167 = vmatpush1.bf16.msra.mxu0 %v4067
    %4168 = vmatprep.subr.bf16.mxu0 %v4064
    %4169 = vmatpush1.bf16.msra.mxu0 %v4063
    %4170 = vmatprep.subr.bf16.mxu0 %v4060
    %4171 = vmatpush1.bf16.msra.mxu0 %v4059
    %4172 = vmatprep.subr.bf16.mxu0 %v4056
    %4173 = vmatpush1.bf16.msra.mxu0 %v4055
    %4174 = vmatprep.subr.bf16.mxu0 0
    %4175 = vmatpush2.bf16.msra.mxu0 0
    %4176 = vmatprep.subr.bf16.mxu0 0
    %4177 = vmatpush2.bf16.msra.mxu0 0
    %4178 = vmatprep.subr.bf16.mxu0 0
    %4179 = vmatpush2.bf16.msra.mxu0 0
    %4180 = vmatprep.subr.bf16.mxu0 0
    %4181 = vmatpush2.bf16.msra.mxu0 0
    %4182 = vmatprep.subr.bf16.mxu0 0
    %4183 = vmatpush2.bf16.msra.mxu0 0
    %4184 = vmatprep.subr.bf16.mxu0 0
    %4185 = vmatpush2.bf16.msra.mxu0 0
    %4186 = vmatprep.subr.bf16.mxu0 0
    %4187 = vmatpush2.bf16.msra.mxu0 0
    %4188 = vmatprep.subr.bf16.mxu0 0
    %4189 = vmatpush2.bf16.msra.mxu0 0
    %4190 = vmatprep.mubr.bf16.mxu0 0
    %4191 = vmatmul.mubr.bf16.gmra.mxu0 %v3924
    %v4192 = vpop.f32.mrf.mxu0
    %v4193 = vadd.f32 0.0, %v4192
    %v4194 = vpop.f32.mrf.mxu0
    %v4195 = vadd.f32 0.0, %v4194
    %v4196 = vpop.f32.mrf.mxu0
    %v4197 = vpop.f32.mrf.mxu0
    %4198 = vdwg.mxu0
    %v4203 = vrot.slane %v4152, 6
    %v4204 = vrot.slane %v4154, 6
    %v4205 = vrot.slane %v4193, 6
    %v4206 = vrot.slane %v4195, 6
    %v4211 = vadd.f32 %v3920, %v4203
    %v4212 = vadd.f32 %v3921, %v4204
    %v4213 = vadd.f32 %v3922, %v4205
    %v4214 = vadd.f32 %v3923, %v4206
    %v4215 = vld [vmem:[#allocation2 + $0x20] sm:$0x30]
    %v4216 = vld [vmem:[#allocation2 + $0x28] sm:$0x30]
    %v4217 = vld [vmem:[#allocation2 + $0x30] sm:$0x30]
    %v4218 = vld [vmem:[#allocation2 + $0x38] sm:$0x30]
    %v4219 = vpack.c.bf16 %v3917, %v3917
    %v4220 = vld [vmem:[#allocation10] sm:$0xff]
    %v4221 = vld [vmem:[#allocation10 + $0x8] sm:$0xff]
    %v4222 = vld [vmem:[#allocation10 + $0x10] sm:$0xff]
    %v4223 = vld [vmem:[#allocation10 + $0x18] sm:$0xff]
    %v4224 = vld [vmem:[#allocation10 + $0x20] sm:$0xff]
    %v4225 = vld [vmem:[#allocation10 + $0x28] sm:$0xff]
    %v4226 = vld [vmem:[#allocation10 + $0x30] sm:$0xff]
    %v4227 = vld [vmem:[#allocation10 + $0x38] sm:$0xff]
    %v4228 = vld [vmem:[#allocation10 + $0x40] sm:$0xff]
    %v4229 = vld [vmem:[#allocation10 + $0x48] sm:$0xff]
    %v4230 = vld [vmem:[#allocation10 + $0x50] sm:$0xff]
    %v4231 = vld [vmem:[#allocation10 + $0x58] sm:$0xff]
    %v4232 = vld [vmem:[#allocation10 + $0x60] sm:$0xff]
    %v4233 = vld [vmem:[#allocation10 + $0x68] sm:$0xff]
    %v4234 = vld [vmem:[#allocation10 + $0x70] sm:$0xff]
    %v4235 = vld [vmem:[#allocation10 + $0x78] sm:$0xff]
    %v4236 = vld [vmem:[#allocation10 + $0x80] sm:$0xff]
    %v4237 = vld [vmem:[#allocation10 + $0x88] sm:$0xff]
    %v4238 = vld [vmem:[#allocation10 + $0x90] sm:$0xff]
    %v4239 = vld [vmem:[#allocation10 + $0x98] sm:$0xff]
    %v4240 = vld [vmem:[#allocation10 + $0xa0] sm:$0xff]
    %v4241 = vld [vmem:[#allocation10 + $0xa8] sm:$0xff]
    %v4242 = vld [vmem:[#allocation10 + $0xb0] sm:$0xff]
    %v4243 = vld [vmem:[#allocation10 + $0xb8] sm:$0xff]
    %v4244 = vld [vmem:[#allocation10 + $0xc0] sm:$0xff]
    %v4245 = vld [vmem:[#allocation10 + $0xc8] sm:$0xff]
    %v4246 = vld [vmem:[#allocation10 + $0xd0] sm:$0xff]
    %v4247 = vld [vmem:[#allocation10 + $0xd8] sm:$0xff]
    %v4248 = vld [vmem:[#allocation10 + $0xe0] sm:$0xff]
    %v4249 = vld [vmem:[#allocation10 + $0xe8] sm:$0xff]
    %v4250 = vld [vmem:[#allocation10 + $0xf0] sm:$0xff]
    %v4251 = vld [vmem:[#allocation10 + $0xf8] sm:$0xff]
    %v4253 = vrot.slane %v4219, 3
    %v4287 = vunpack.c.l.b16 %v4220
    %v4288 = vunpack.c.h.b16 %v4220
    %v4289 = vunpack.c.l.b16 %v4221
    %v4290 = vunpack.c.h.b16 %v4221
    %v4291 = vunpack.c.l.b16 %v4222
    %v4292 = vunpack.c.h.b16 %v4222
    %v4293 = vunpack.c.l.b16 %v4223
    %v4294 = vunpack.c.h.b16 %v4223
    %v4295 = vunpack.c.l.b16 %v4224
    %v4296 = vunpack.c.h.b16 %v4224
    %v4297 = vunpack.c.l.b16 %v4225
    %v4298 = vunpack.c.h.b16 %v4225
    %v4299 = vunpack.c.l.b16 %v4226
    %v4300 = vunpack.c.h.b16 %v4226
    %v4301 = vunpack.c.l.b16 %v4227
    %v4302 = vunpack.c.h.b16 %v4227
    %v4303 = vunpack.c.l.b16 %v4228
    %v4304 = vunpack.c.h.b16 %v4228
    %v4305 = vunpack.c.l.b16 %v4229
    %v4306 = vunpack.c.h.b16 %v4229
    %v4307 = vunpack.c.l.b16 %v4230
    %v4308 = vunpack.c.h.b16 %v4230
    %v4309 = vunpack.c.l.b16 %v4231
    %v4310 = vunpack.c.h.b16 %v4231
    %v4311 = vunpack.c.l.b16 %v4232
    %v4312 = vunpack.c.h.b16 %v4232
    %v4313 = vunpack.c.l.b16 %v4233
    %v4314 = vunpack.c.h.b16 %v4233
    %v4315 = vunpack.c.l.b16 %v4234
    %v4316 = vunpack.c.h.b16 %v4234
    %v4317 = vunpack.c.l.b16 %v4235
    %v4318 = vunpack.c.h.b16 %v4235
    %v4319 = vunpack.c.l.b16 %v4236
    %v4320 = vunpack.c.h.b16 %v4236
    %v4321 = vunpack.c.l.b16 %v4237
    %v4322 = vunpack.c.h.b16 %v4237
    %v4323 = vunpack.c.l.b16 %v4238
    %v4324 = vunpack.c.h.b16 %v4238
    %v4325 = vunpack.c.l.b16 %v4239
    %v4326 = vunpack.c.h.b16 %v4239
    %v4327 = vunpack.c.l.b16 %v4240
    %v4328 = vunpack.c.h.b16 %v4240
    %v4329 = vunpack.c.l.b16 %v4241
    %v4330 = vunpack.c.h.b16 %v4241
    %v4331 = vunpack.c.l.b16 %v4242
    %v4332 = vunpack.c.h.b16 %v4242
    %v4333 = vunpack.c.l.b16 %v4243
    %v4334 = vunpack.c.h.b16 %v4243
    %v4335 = vunpack.c.l.b16 %v4244
    %v4336 = vunpack.c.h.b16 %v4244
    %v4337 = vunpack.c.l.b16 %v4245
    %v4338 = vunpack.c.h.b16 %v4245
    %v4339 = vunpack.c.l.b16 %v4246
    %v4340 = vunpack.c.h.b16 %v4246
    %v4341 = vunpack.c.l.b16 %v4247
    %v4342 = vunpack.c.h.b16 %v4247
    %v4343 = vunpack.c.l.b16 %v4248
    %v4344 = vunpack.c.h.b16 %v4248
    %v4345 = vunpack.c.l.b16 %v4249
    %v4346 = vunpack.c.h.b16 %v4249
    %v4347 = vunpack.c.l.b16 %v4250
    %v4348 = vunpack.c.h.b16 %v4250
    %v4349 = vunpack.c.l.b16 %v4251
    %v4350 = vunpack.c.h.b16 %v4251
    %v4351 = vpack.c.b16 %v4291, %v4287
    %v4352 = vpack.c.b16 %v4292, %v4288
    %v4353 = vpack.c.b16 %v4293, %v4289
    %v4354 = vpack.c.b16 %v4294, %v4290
    %v4355 = vpack.c.b16 %v4299, %v4295
    %v4356 = vpack.c.b16 %v4300, %v4296
    %v4357 = vpack.c.b16 %v4301, %v4297
    %v4358 = vpack.c.b16 %v4302, %v4298
    %v4359 = vpack.c.b16 %v4307, %v4303
    %v4360 = vpack.c.b16 %v4308, %v4304
    %v4361 = vpack.c.b16 %v4309, %v4305
    %v4362 = vpack.c.b16 %v4310, %v4306
    %v4363 = vpack.c.b16 %v4315, %v4311
    %v4364 = vpack.c.b16 %v4316, %v4312
    %v4365 = vpack.c.b16 %v4317, %v4313
    %v4366 = vpack.c.b16 %v4318, %v4314
    %v4367 = vpack.c.b16 %v4323, %v4319
    %v4368 = vpack.c.b16 %v4324, %v4320
    %v4369 = vpack.c.b16 %v4325, %v4321
    %v4370 = vpack.c.b16 %v4326, %v4322
    %v4371 = vpack.c.b16 %v4331, %v4327
    %v4372 = vpack.c.b16 %v4332, %v4328
    %v4373 = vpack.c.b16 %v4333, %v4329
    %v4374 = vpack.c.b16 %v4334, %v4330
    %v4375 = vpack.c.b16 %v4339, %v4335
    %v4376 = vpack.c.b16 %v4340, %v4336
    %v4377 = vpack.c.b16 %v4341, %v4337
    %v4378 = vpack.c.b16 %v4342, %v4338
    %v4379 = vpack.c.b16 %v4347, %v4343
    %v4380 = vpack.c.b16 %v4348, %v4344
    %v4381 = vpack.c.b16 %v4349, %v4345
    %v4382 = vpack.c.b16 %v4350, %v4346
    %4415 = vmatprep.subr.bf16.mxu0 %v4380
    %4416 = vmatpush1.bf16.msra.mxu0 %v4379
    %4417 = vmatprep.subr.bf16.mxu0 %v4376
    %4418 = vmatpush1.bf16.msra.mxu0 %v4375
    %4419 = vmatprep.subr.bf16.mxu0 %v4372
    %4420 = vmatpush1.bf16.msra.mxu0 %v4371
    %4421 = vmatprep.subr.bf16.mxu0 %v4368
    %4422 = vmatpush1.bf16.msra.mxu0 %v4367
    %4423 = vmatprep.subr.bf16.mxu0 %v4364
    %4424 = vmatpush1.bf16.msra.mxu0 %v4363
    %4425 = vmatprep.subr.bf16.mxu0 %v4360
    %4426 = vmatpush1.bf16.msra.mxu0 %v4359
    %4427 = vmatprep.subr.bf16.mxu0 %v4356
    %4428 = vmatpush1.bf16.msra.mxu0 %v4355
    %4429 = vmatprep.subr.bf16.mxu0 %v4352
    %4430 = vmatpush1.bf16.msra.mxu0 %v4351
    %4431 = vmatprep.subr.bf16.mxu0 0
    %4432 = vmatpush2.bf16.msra.mxu0 0
    %4433 = vmatprep.subr.bf16.mxu0 0
    %4434 = vmatpush2.bf16.msra.mxu0 0
    %4435 = vmatprep.subr.bf16.mxu0 0
    %4436 = vmatpush2.bf16.msra.mxu0 0
    %4437 = vmatprep.subr.bf16.mxu0 0
    %4438 = vmatpush2.bf16.msra.mxu0 0
    %4439 = vmatprep.subr.bf16.mxu0 0
    %4440 = vmatpush2.bf16.msra.mxu0 0
    %4441 = vmatprep.subr.bf16.mxu0 0
    %4442 = vmatpush2.bf16.msra.mxu0 0
    %4443 = vmatprep.subr.bf16.mxu0 0
    %4444 = vmatpush2.bf16.msra.mxu0 0
    %4445 = vmatprep.subr.bf16.mxu0 0
    %4446 = vmatpush2.bf16.msra.mxu0 0
    %4447 = vmatprep.mubr.bf16.mxu0 0
    %4448 = vmatmul.mubr.bf16.gmra.mxu0 %v4253
    %v4449 = vpop.f32.mrf.mxu0
    %v4450 = vadd.f32 0.0, %v4449
    %v4451 = vpop.f32.mrf.mxu0
    %v4452 = vadd.f32 0.0, %v4451
    %v4453 = vpop.f32.mrf.mxu0
    %v4454 = vpop.f32.mrf.mxu0
    %4455 = vdwg.mxu0
    %4456 = vmatprep.subr.bf16.mxu0 %v4382
    %4457 = vmatpush1.bf16.msra.mxu0 %v4381
    %4458 = vmatprep.subr.bf16.mxu0 %v4378
    %4459 = vmatpush1.bf16.msra.mxu0 %v4377
    %4460 = vmatprep.subr.bf16.mxu0 %v4374
    %4461 = vmatpush1.bf16.msra.mxu0 %v4373
    %4462 = vmatprep.subr.bf16.mxu0 %v4370
    %4463 = vmatpush1.bf16.msra.mxu0 %v4369
    %4464 = vmatprep.subr.bf16.mxu0 %v4366
    %4465 = vmatpush1.bf16.msra.mxu0 %v4365
    %4466 = vmatprep.subr.bf16.mxu0 %v4362
    %4467 = vmatpush1.bf16.msra.mxu0 %v4361
    %4468 = vmatprep.subr.bf16.mxu0 %v4358
    %4469 = vmatpush1.bf16.msra.mxu0 %v4357
    %4470 = vmatprep.subr.bf16.mxu0 %v4354
    %4471 = vmatpush1.bf16.msra.mxu0 %v4353
    %4472 = vmatprep.subr.bf16.mxu0 0
    %4473 = vmatpush2.bf16.msra.mxu0 0
    %4474 = vmatprep.subr.bf16.mxu0 0
    %4475 = vmatpush2.bf16.msra.mxu0 0
    %4476 = vmatprep.subr.bf16.mxu0 0
    %4477 = vmatpush2.bf16.msra.mxu0 0
    %4478 = vmatprep.subr.bf16.mxu0 0
    %4479 = vmatpush2.bf16.msra.mxu0 0
    %4480 = vmatprep.subr.bf16.mxu0 0
    %4481 = vmatpush2.bf16.msra.mxu0 0
    %4482 = vmatprep.subr.bf16.mxu0 0
    %4483 = vmatpush2.bf16.msra.mxu0 0
    %4484 = vmatprep.subr.bf16.mxu0 0
    %4485 = vmatpush2.bf16.msra.mxu0 0
    %4486 = vmatprep.subr.bf16.mxu0 0
    %4487 = vmatpush2.bf16.msra.mxu0 0
    %4488 = vmatprep.mubr.bf16.mxu0 0
    %4489 = vmatmul.mubr.bf16.gmra.mxu0 %v4253
    %v4490 = vpop.f32.mrf.mxu0
    %v4491 = vadd.f32 0.0, %v4490
    %v4492 = vpop.f32.mrf.mxu0
    %v4493 = vadd.f32 0.0, %v4492
    %v4494 = vpop.f32.mrf.mxu0
    %v4495 = vpop.f32.mrf.mxu0
    %4496 = vdwg.mxu0
    %v4501 = vrot.slane %v4450, 4
    %v4502 = vrot.slane %v4452, 4
    %v4503 = vrot.slane %v4491, 4
    %v4504 = vrot.slane %v4493, 4
    %v4509 = vadd.f32 %v4215, %v4501
    %v4510 = vadd.f32 %v4216, %v4502
    %v4511 = vadd.f32 %v4217, %v4503
    %v4512 = vadd.f32 %v4218, %v4504
    %v4513 = vxor.u32 %v4211, 2147483648
    %v4514 = vxor.u32 %v4212, 2147483648
    %v4515 = vxor.u32 %v4213, 2147483648
    %v4516 = vmul.f32 %v4513, 1.442695
    %v4517 = vpow.pop %v4516
    %v4518 = vmul.f32 %v4514, 1.442695
    %v4519 = vpow.pop %v4518
    %v4520 = vmul.f32 %v4515, 1.442695
    %v4521 = vpow.pop %v4520
    %v4522 = vadd.f32 %v4517, 1.0
    %v4523 = vadd.f32 %v4519, 1.0
    %v4524 = vadd.f32 %v4521, 1.0
    %v4525 = vrcp.pop %v4522
    %v4526 = vmul.f32 1.0, %v4525
    %v4527 = vrcp.pop %v4523
    %v4528 = vmul.f32 1.0, %v4527
    %v4529 = vrcp.pop %v4524
    %v4530 = vmul.f32 1.0, %v4529
    %v4531 = vtanh.pop %v4214
    %v4533 = vrot.slane %v3888, 6
    %v4535 = vmul.f32 %v4528, %v4533
    %v4536 = vmul.f32 %v4526, %v4531
    %v4537 = vadd.f32 %v4535, %v4536
    %v4538 = vtanh.pop %v4537
    %v4539 = vmul.f32 %v4530, %v4538
    %v4540 = vxor.u32 %v4509, 2147483648
    %v4541 = vxor.u32 %v4510, 2147483648
    %v4542 = vxor.u32 %v4511, 2147483648
    %v4543 = vmul.f32 %v4540, 1.442695
    %v4544 = vpow.pop %v4543
    %v4545 = vmul.f32 %v4541, 1.442695
    %v4546 = vpow.pop %v4545
    %v4547 = vmul.f32 %v4542, 1.442695
    %v4548 = vpow.pop %v4547
    %v4549 = vadd.f32 %v4544, 1.0
    %v4550 = vadd.f32 %v4546, 1.0
    %v4551 = vadd.f32 %v4548, 1.0
    %v4552 = vrcp.pop %v4549
    %v4553 = vmul.f32 1.0, %v4552
    %v4554 = vrcp.pop %v4550
    %v4555 = vmul.f32 1.0, %v4554
    %v4556 = vrcp.pop %v4551
    %v4557 = vmul.f32 1.0, %v4556
    %v4558 = vtanh.pop %v4512
    %v4560 = vrot.slane %v3915, 2
    %v4562 = vmul.f32 %v4555, %v4560
    %v4563 = vmul.f32 %v4553, %v4558
    %v4564 = vadd.f32 %v4562, %v4563
    %v4565 = vtanh.pop %v4564
    %v4566 = vmul.f32 %v4557, %v4565
    %4567 = vst [vmem:[#allocation3 + $0x10] sm:$0xc] %v4539
    %4568 = vst [vmem:[#allocation3 + $0x8] sm:$0x30] %v4566
    %v4569 = vld [vmem:[#allocation2 + $0x40] sm:$0x30]
    %v4570 = vld [vmem:[#allocation2 + $0x48] sm:$0x30]
    %v4571 = vld [vmem:[#allocation2 + $0x50] sm:$0x30]
    %v4572 = vld [vmem:[#allocation2 + $0x58] sm:$0x30]
    %v4573 = vpack.c.bf16 %v4539, %v4539
    %v4574 = vld [vmem:[#allocation8] sm:$0xff]
    %v4575 = vld [vmem:[#allocation8 + $0x8] sm:$0xff]
    %v4576 = vld [vmem:[#allocation8 + $0x10] sm:$0xff]
    %v4577 = vld [vmem:[#allocation8 + $0x18] sm:$0xff]
    %v4578 = vld [vmem:[#allocation8 + $0x20] sm:$0xff]
    %v4579 = vld [vmem:[#allocation8 + $0x28] sm:$0xff]
    %v4580 = vld [vmem:[#allocation8 + $0x30] sm:$0xff]
    %v4581 = vld [vmem:[#allocation8 + $0x38] sm:$0xff]
    %v4582 = vld [vmem:[#allocation8 + $0x40] sm:$0xff]
    %v4583 = vld [vmem:[#allocation8 + $0x48] sm:$0xff]
    %v4584 = vld [vmem:[#allocation8 + $0x50] sm:$0xff]
    %v4585 = vld [vmem:[#allocation8 + $0x58] sm:$0xff]
    %v4586 = vld [vmem:[#allocation8 + $0x60] sm:$0xff]
    %v4587 = vld [vmem:[#allocation8 + $0x68] sm:$0xff]
    %v4588 = vld [vmem:[#allocation8 + $0x70] sm:$0xff]
    %v4589 = vld [vmem:[#allocation8 + $0x78] sm:$0xff]
    %v4590 = vld [vmem:[#allocation8 + $0x80] sm:$0xff]
    %v4591 = vld [vmem:[#allocation8 + $0x88] sm:$0xff]
    %v4592 = vld [vmem:[#allocation8 + $0x90] sm:$0xff]
    %v4593 = vld [vmem:[#allocation8 + $0x98] sm:$0xff]
    %v4594 = vld [vmem:[#allocation8 + $0xa0] sm:$0xff]
    %v4595 = vld [vmem:[#allocation8 + $0xa8] sm:$0xff]
    %v4596 = vld [vmem:[#allocation8 + $0xb0] sm:$0xff]
    %v4597 = vld [vmem:[#allocation8 + $0xb8] sm:$0xff]
    %v4598 = vld [vmem:[#allocation8 + $0xc0] sm:$0xff]
    %v4599 = vld [vmem:[#allocation8 + $0xc8] sm:$0xff]
    %v4600 = vld [vmem:[#allocation8 + $0xd0] sm:$0xff]
    %v4601 = vld [vmem:[#allocation8 + $0xd8] sm:$0xff]
    %v4602 = vld [vmem:[#allocation8 + $0xe0] sm:$0xff]
    %v4603 = vld [vmem:[#allocation8 + $0xe8] sm:$0xff]
    %v4604 = vld [vmem:[#allocation8 + $0xf0] sm:$0xff]
    %v4605 = vld [vmem:[#allocation8 + $0xf8] sm:$0xff]
    %v4607 = vrot.slane %v4573, 1
    %v4641 = vunpack.c.l.b16 %v4574
    %v4642 = vunpack.c.h.b16 %v4574
    %v4643 = vunpack.c.l.b16 %v4575
    %v4644 = vunpack.c.h.b16 %v4575
    %v4645 = vunpack.c.l.b16 %v4576
    %v4646 = vunpack.c.h.b16 %v4576
    %v4647 = vunpack.c.l.b16 %v4577
    %v4648 = vunpack.c.h.b16 %v4577
    %v4649 = vunpack.c.l.b16 %v4578
    %v4650 = vunpack.c.h.b16 %v4578
    %v4651 = vunpack.c.l.b16 %v4579
    %v4652 = vunpack.c.h.b16 %v4579
    %v4653 = vunpack.c.l.b16 %v4580
    %v4654 = vunpack.c.h.b16 %v4580
    %v4655 = vunpack.c.l.b16 %v4581
    %v4656 = vunpack.c.h.b16 %v4581
    %v4657 = vunpack.c.l.b16 %v4582
    %v4658 = vunpack.c.h.b16 %v4582
    %v4659 = vunpack.c.l.b16 %v4583
    %v4660 = vunpack.c.h.b16 %v4583
    %v4661 = vunpack.c.l.b16 %v4584
    %v4662 = vunpack.c.h.b16 %v4584
    %v4663 = vunpack.c.l.b16 %v4585
    %v4664 = vunpack.c.h.b16 %v4585
    %v4665 = vunpack.c.l.b16 %v4586
    %v4666 = vunpack.c.h.b16 %v4586
    %v4667 = vunpack.c.l.b16 %v4587
    %v4668 = vunpack.c.h.b16 %v4587
    %v4669 = vunpack.c.l.b16 %v4588
    %v4670 = vunpack.c.h.b16 %v4588
    %v4671 = vunpack.c.l.b16 %v4589
    %v4672 = vunpack.c.h.b16 %v4589
    %v4673 = vunpack.c.l.b16 %v4590
    %v4674 = vunpack.c.h.b16 %v4590
    %v4675 = vunpack.c.l.b16 %v4591
    %v4676 = vunpack.c.h.b16 %v4591
    %v4677 = vunpack.c.l.b16 %v4592
    %v4678 = vunpack.c.h.b16 %v4592
    %v4679 = vunpack.c.l.b16 %v4593
    %v4680 = vunpack.c.h.b16 %v4593
    %v4681 = vunpack.c.l.b16 %v4594
    %v4682 = vunpack.c.h.b16 %v4594
    %v4683 = vunpack.c.l.b16 %v4595
    %v4684 = vunpack.c.h.b16 %v4595
    %v4685 = vunpack.c.l.b16 %v4596
    %v4686 = vunpack.c.h.b16 %v4596
    %v4687 = vunpack.c.l.b16 %v4597
    %v4688 = vunpack.c.h.b16 %v4597
    %v4689 = vunpack.c.l.b16 %v4598
    %v4690 = vunpack.c.h.b16 %v4598
    %v4691 = vunpack.c.l.b16 %v4599
    %v4692 = vunpack.c.h.b16 %v4599
    %v4693 = vunpack.c.l.b16 %v4600
    %v4694 = vunpack.c.h.b16 %v4600
    %v4695 = vunpack.c.l.b16 %v4601
    %v4696 = vunpack.c.h.b16 %v4601
    %v4697 = vunpack.c.l.b16 %v4602
    %v4698 = vunpack.c.h.b16 %v4602
    %v4699 = vunpack.c.l.b16 %v4603
    %v4700 = vunpack.c.h.b16 %v4603
    %v4701 = vunpack.c.l.b16 %v4604
    %v4702 = vunpack.c.h.b16 %v4604
    %v4703 = vunpack.c.l.b16 %v4605
    %v4704 = vunpack.c.h.b16 %v4605
    %v4705 = vpack.c.b16 %v4645, %v4641
    %v4706 = vpack.c.b16 %v4646, %v4642
    %v4707 = vpack.c.b16 %v4647, %v4643
    %v4708 = vpack.c.b16 %v4648, %v4644
    %v4709 = vpack.c.b16 %v4653, %v4649
    %v4710 = vpack.c.b16 %v4654, %v4650
    %v4711 = vpack.c.b16 %v4655, %v4651
    %v4712 = vpack.c.b16 %v4656, %v4652
    %v4713 = vpack.c.b16 %v4661, %v4657
    %v4714 = vpack.c.b16 %v4662, %v4658
    %v4715 = vpack.c.b16 %v4663, %v4659
    %v4716 = vpack.c.b16 %v4664, %v4660
    %v4717 = vpack.c.b16 %v4669, %v4665
    %v4718 = vpack.c.b16 %v4670, %v4666
    %v4719 = vpack.c.b16 %v4671, %v4667
    %v4720 = vpack.c.b16 %v4672, %v4668
    %v4721 = vpack.c.b16 %v4677, %v4673
    %v4722 = vpack.c.b16 %v4678, %v4674
    %v4723 = vpack.c.b16 %v4679, %v4675
    %v4724 = vpack.c.b16 %v4680, %v4676
    %v4725 = vpack.c.b16 %v4685, %v4681
    %v4726 = vpack.c.b16 %v4686, %v4682
    %v4727 = vpack.c.b16 %v4687, %v4683
    %v4728 = vpack.c.b16 %v4688, %v4684
    %v4729 = vpack.c.b16 %v4693, %v4689
    %v4730 = vpack.c.b16 %v4694, %v4690
    %v4731 = vpack.c.b16 %v4695, %v4691
    %v4732 = vpack.c.b16 %v4696, %v4692
    %v4733 = vpack.c.b16 %v4701, %v4697
    %v4734 = vpack.c.b16 %v4702, %v4698
    %v4735 = vpack.c.b16 %v4703, %v4699
    %v4736 = vpack.c.b16 %v4704, %v4700
    %4769 = vmatprep.subr.bf16.mxu0 %v4734
    %4770 = vmatpush1.bf16.msra.mxu0 %v4733
    %4771 = vmatprep.subr.bf16.mxu0 %v4730
    %4772 = vmatpush1.bf16.msra.mxu0 %v4729
    %4773 = vmatprep.subr.bf16.mxu0 %v4726
    %4774 = vmatpush1.bf16.msra.mxu0 %v4725
    %4775 = vmatprep.subr.bf16.mxu0 %v4722
    %4776 = vmatpush1.bf16.msra.mxu0 %v4721
    %4777 = vmatprep.subr.bf16.mxu0 %v4718
    %4778 = vmatpush1.bf16.msra.mxu0 %v4717
    %4779 = vmatprep.subr.bf16.mxu0 %v4714
    %4780 = vmatpush1.bf16.msra.mxu0 %v4713
    %4781 = vmatprep.subr.bf16.mxu0 %v4710
    %4782 = vmatpush1.bf16.msra.mxu0 %v4709
    %4783 = vmatprep.subr.bf16.mxu0 %v4706
    %4784 = vmatpush1.bf16.msra.mxu0 %v4705
    %4785 = vmatprep.subr.bf16.mxu0 0
    %4786 = vmatpush2.bf16.msra.mxu0 0
    %4787 = vmatprep.subr.bf16.mxu0 0
    %4788 = vmatpush2.bf16.msra.mxu0 0
    %4789 = vmatprep.subr.bf16.mxu0 0
    %4790 = vmatpush2.bf16.msra.mxu0 0
    %4791 = vmatprep.subr.bf16.mxu0 0
    %4792 = vmatpush2.bf16.msra.mxu0 0
    %4793 = vmatprep.subr.bf16.mxu0 0
    %4794 = vmatpush2.bf16.msra.mxu0 0
    %4795 = vmatprep.subr.bf16.mxu0 0
    %4796 = vmatpush2.bf16.msra.mxu0 0
    %4797 = vmatprep.subr.bf16.mxu0 0
    %4798 = vmatpush2.bf16.msra.mxu0 0
    %4799 = vmatprep.subr.bf16.mxu0 0
    %4800 = vmatpush2.bf16.msra.mxu0 0
    %4801 = vmatprep.mubr.bf16.mxu0 0
    %4802 = vmatmul.mubr.bf16.gmra.mxu0 %v4607
    %v4803 = vpop.f32.mrf.mxu0
    %v4804 = vadd.f32 0.0, %v4803
    %v4805 = vpop.f32.mrf.mxu0
    %v4806 = vadd.f32 0.0, %v4805
    %v4807 = vpop.f32.mrf.mxu0
    %v4808 = vpop.f32.mrf.mxu0
    %4809 = vdwg.mxu0
    %4810 = vmatprep.subr.bf16.mxu0 %v4736
    %4811 = vmatpush1.bf16.msra.mxu0 %v4735
    %4812 = vmatprep.subr.bf16.mxu0 %v4732
    %4813 = vmatpush1.bf16.msra.mxu0 %v4731
    %4814 = vmatprep.subr.bf16.mxu0 %v4728
    %4815 = vmatpush1.bf16.msra.mxu0 %v4727
    %4816 = vmatprep.subr.bf16.mxu0 %v4724
    %4817 = vmatpush1.bf16.msra.mxu0 %v4723
    %4818 = vmatprep.subr.bf16.mxu0 %v4720
    %4819 = vmatpush1.bf16.msra.mxu0 %v4719
    %4820 = vmatprep.subr.bf16.mxu0 %v4716
    %4821 = vmatpush1.bf16.msra.mxu0 %v4715
    %4822 = vmatprep.subr.bf16.mxu0 %v4712
    %4823 = vmatpush1.bf16.msra.mxu0 %v4711
    %4824 = vmatprep.subr.bf16.mxu0 %v4708
    %4825 = vmatpush1.bf16.msra.mxu0 %v4707
    %4826 = vmatprep.subr.bf16.mxu0 0
    %4827 = vmatpush2.bf16.msra.mxu0 0
    %4828 = vmatprep.subr.bf16.mxu0 0
    %4829 = vmatpush2.bf16.msra.mxu0 0
    %4830 = vmatprep.subr.bf16.mxu0 0
    %4831 = vmatpush2.bf16.msra.mxu0 0
    %4832 = vmatprep.subr.bf16.mxu0 0
    %4833 = vmatpush2.bf16.msra.mxu0 0
    %4834 = vmatprep.subr.bf16.mxu0 0
    %4835 = vmatpush2.bf16.msra.mxu0 0
    %4836 = vmatprep.subr.bf16.mxu0 0
    %4837 = vmatpush2.bf16.msra.mxu0 0
    %4838 = vmatprep.subr.bf16.mxu0 0
    %4839 = vmatpush2.bf16.msra.mxu0 0
    %4840 = vmatprep.subr.bf16.mxu0 0
    %4841 = vmatpush2.bf16.msra.mxu0 0
    %4842 = vmatprep.mubr.bf16.mxu0 0
    %4843 = vmatmul.mubr.bf16.gmra.mxu0 %v4607
    %v4844 = vpop.f32.mrf.mxu0
    %v4845 = vadd.f32 0.0, %v4844
    %v4846 = vpop.f32.mrf.mxu0
    %v4847 = vadd.f32 0.0, %v4846
    %v4848 = vpop.f32.mrf.mxu0
    %v4849 = vpop.f32.mrf.mxu0
    %4850 = vdwg.mxu0
    %v4855 = vrot.slane %v4804, 4
    %v4856 = vrot.slane %v4806, 4
    %v4857 = vrot.slane %v4845, 4
    %v4858 = vrot.slane %v4847, 4
    %v4863 = vadd.f32 %v4569, %v4855
    %v4864 = vadd.f32 %v4570, %v4856
    %v4865 = vadd.f32 %v4571, %v4857
    %v4866 = vadd.f32 %v4572, %v4858
    %v4867 = vld [vmem:[#allocation2 + $0x20] sm:$0xc]
    %v4868 = vld [vmem:[#allocation2 + $0x28] sm:$0xc]
    %v4869 = vld [vmem:[#allocation2 + $0x30] sm:$0xc]
    %v4870 = vld [vmem:[#allocation2 + $0x38] sm:$0xc]
    %v4871 = vpack.c.bf16 %v4566, %v4566
    %v4872 = vld [vmem:[#allocation10] sm:$0xff]
    %v4873 = vld [vmem:[#allocation10 + $0x8] sm:$0xff]
    %v4874 = vld [vmem:[#allocation10 + $0x10] sm:$0xff]
    %v4875 = vld [vmem:[#allocation10 + $0x18] sm:$0xff]
    %v4876 = vld [vmem:[#allocation10 + $0x20] sm:$0xff]
    %v4877 = vld [vmem:[#allocation10 + $0x28] sm:$0xff]
    %v4878 = vld [vmem:[#allocation10 + $0x30] sm:$0xff]
    %v4879 = vld [vmem:[#allocation10 + $0x38] sm:$0xff]
    %v4880 = vld [vmem:[#allocation10 + $0x40] sm:$0xff]
    %v4881 = vld [vmem:[#allocation10 + $0x48] sm:$0xff]
    %v4882 = vld [vmem:[#allocation10 + $0x50] sm:$0xff]
    %v4883 = vld [vmem:[#allocation10 + $0x58] sm:$0xff]
    %v4884 = vld [vmem:[#allocation10 + $0x60] sm:$0xff]
    %v4885 = vld [vmem:[#allocation10 + $0x68] sm:$0xff]
    %v4886 = vld [vmem:[#allocation10 + $0x70] sm:$0xff]
    %v4887 = vld [vmem:[#allocation10 + $0x78] sm:$0xff]
    %v4888 = vld [vmem:[#allocation10 + $0x80] sm:$0xff]
    %v4889 = vld [vmem:[#allocation10 + $0x88] sm:$0xff]
    %v4890 = vld [vmem:[#allocation10 + $0x90] sm:$0xff]
    %v4891 = vld [vmem:[#allocation10 + $0x98] sm:$0xff]
    %v4892 = vld [vmem:[#allocation10 + $0xa0] sm:$0xff]
    %v4893 = vld [vmem:[#allocation10 + $0xa8] sm:$0xff]
    %v4894 = vld [vmem:[#allocation10 + $0xb0] sm:$0xff]
    %v4895 = vld [vmem:[#allocation10 + $0xb8] sm:$0xff]
    %v4896 = vld [vmem:[#allocation10 + $0xc0] sm:$0xff]
    %v4897 = vld [vmem:[#allocation10 + $0xc8] sm:$0xff]
    %v4898 = vld [vmem:[#allocation10 + $0xd0] sm:$0xff]
    %v4899 = vld [vmem:[#allocation10 + $0xd8] sm:$0xff]
    %v4900 = vld [vmem:[#allocation10 + $0xe0] sm:$0xff]
    %v4901 = vld [vmem:[#allocation10 + $0xe8] sm:$0xff]
    %v4902 = vld [vmem:[#allocation10 + $0xf0] sm:$0xff]
    %v4903 = vld [vmem:[#allocation10 + $0xf8] sm:$0xff]
    %v4905 = vrot.slane %v4871, 2
    %v4939 = vunpack.c.l.b16 %v4872
    %v4940 = vunpack.c.h.b16 %v4872
    %v4941 = vunpack.c.l.b16 %v4873
    %v4942 = vunpack.c.h.b16 %v4873
    %v4943 = vunpack.c.l.b16 %v4874
    %v4944 = vunpack.c.h.b16 %v4874
    %v4945 = vunpack.c.l.b16 %v4875
    %v4946 = vunpack.c.h.b16 %v4875
    %v4947 = vunpack.c.l.b16 %v4876
    %v4948 = vunpack.c.h.b16 %v4876
    %v4949 = vunpack.c.l.b16 %v4877
    %v4950 = vunpack.c.h.b16 %v4877
    %v4951 = vunpack.c.l.b16 %v4878
    %v4952 = vunpack.c.h.b16 %v4878
    %v4953 = vunpack.c.l.b16 %v4879
    %v4954 = vunpack.c.h.b16 %v4879
    %v4955 = vunpack.c.l.b16 %v4880
    %v4956 = vunpack.c.h.b16 %v4880
    %v4957 = vunpack.c.l.b16 %v4881
    %v4958 = vunpack.c.h.b16 %v4881
    %v4959 = vunpack.c.l.b16 %v4882
    %v4960 = vunpack.c.h.b16 %v4882
    %v4961 = vunpack.c.l.b16 %v4883
    %v4962 = vunpack.c.h.b16 %v4883
    %v4963 = vunpack.c.l.b16 %v4884
    %v4964 = vunpack.c.h.b16 %v4884
    %v4965 = vunpack.c.l.b16 %v4885
    %v4966 = vunpack.c.h.b16 %v4885
    %v4967 = vunpack.c.l.b16 %v4886
    %v4968 = vunpack.c.h.b16 %v4886
    %v4969 = vunpack.c.l.b16 %v4887
    %v4970 = vunpack.c.h.b16 %v4887
    %v4971 = vunpack.c.l.b16 %v4888
    %v4972 = vunpack.c.h.b16 %v4888
    %v4973 = vunpack.c.l.b16 %v4889
    %v4974 = vunpack.c.h.b16 %v4889
    %v4975 = vunpack.c.l.b16 %v4890
    %v4976 = vunpack.c.h.b16 %v4890
    %v4977 = vunpack.c.l.b16 %v4891
    %v4978 = vunpack.c.h.b16 %v4891
    %v4979 = vunpack.c.l.b16 %v4892
    %v4980 = vunpack.c.h.b16 %v4892
    %v4981 = vunpack.c.l.b16 %v4893
    %v4982 = vunpack.c.h.b16 %v4893
    %v4983 = vunpack.c.l.b16 %v4894
    %v4984 = vunpack.c.h.b16 %v4894
    %v4985 = vunpack.c.l.b16 %v4895
    %v4986 = vunpack.c.h.b16 %v4895
    %v4987 = vunpack.c.l.b16 %v4896
    %v4988 = vunpack.c.h.b16 %v4896
    %v4989 = vunpack.c.l.b16 %v4897
    %v4990 = vunpack.c.h.b16 %v4897
    %v4991 = vunpack.c.l.b16 %v4898
    %v4992 = vunpack.c.h.b16 %v4898
    %v4993 = vunpack.c.l.b16 %v4899
    %v4994 = vunpack.c.h.b16 %v4899
    %v4995 = vunpack.c.l.b16 %v4900
    %v4996 = vunpack.c.h.b16 %v4900
    %v4997 = vunpack.c.l.b16 %v4901
    %v4998 = vunpack.c.h.b16 %v4901
    %v4999 = vunpack.c.l.b16 %v4902
    %v5000 = vunpack.c.h.b16 %v4902
    %v5001 = vunpack.c.l.b16 %v4903
    %v5002 = vunpack.c.h.b16 %v4903
    %v5003 = vpack.c.b16 %v4943, %v4939
    %v5004 = vpack.c.b16 %v4944, %v4940
    %v5005 = vpack.c.b16 %v4945, %v4941
    %v5006 = vpack.c.b16 %v4946, %v4942
    %v5007 = vpack.c.b16 %v4951, %v4947
    %v5008 = vpack.c.b16 %v4952, %v4948
    %v5009 = vpack.c.b16 %v4953, %v4949
    %v5010 = vpack.c.b16 %v4954, %v4950
    %v5011 = vpack.c.b16 %v4959, %v4955
    %v5012 = vpack.c.b16 %v4960, %v4956
    %v5013 = vpack.c.b16 %v4961, %v4957
    %v5014 = vpack.c.b16 %v4962, %v4958
    %v5015 = vpack.c.b16 %v4967, %v4963
    %v5016 = vpack.c.b16 %v4968, %v4964
    %v5017 = vpack.c.b16 %v4969, %v4965
    %v5018 = vpack.c.b16 %v4970, %v4966
    %v5019 = vpack.c.b16 %v4975, %v4971
    %v5020 = vpack.c.b16 %v4976, %v4972
    %v5021 = vpack.c.b16 %v4977, %v4973
    %v5022 = vpack.c.b16 %v4978, %v4974
    %v5023 = vpack.c.b16 %v4983, %v4979
    %v5024 = vpack.c.b16 %v4984, %v4980
    %v5025 = vpack.c.b16 %v4985, %v4981
    %v5026 = vpack.c.b16 %v4986, %v4982
    %v5027 = vpack.c.b16 %v4991, %v4987
    %v5028 = vpack.c.b16 %v4992, %v4988
    %v5029 = vpack.c.b16 %v4993, %v4989
    %v5030 = vpack.c.b16 %v4994, %v4990
    %v5031 = vpack.c.b16 %v4999, %v4995
    %v5032 = vpack.c.b16 %v5000, %v4996
    %v5033 = vpack.c.b16 %v5001, %v4997
    %v5034 = vpack.c.b16 %v5002, %v4998
    %5067 = vmatprep.subr.bf16.mxu0 %v5032
    %5068 = vmatpush1.bf16.msra.mxu0 %v5031
    %5069 = vmatprep.subr.bf16.mxu0 %v5028
    %5070 = vmatpush1.bf16.msra.mxu0 %v5027
    %5071 = vmatprep.subr.bf16.mxu0 %v5024
    %5072 = vmatpush1.bf16.msra.mxu0 %v5023
    %5073 = vmatprep.subr.bf16.mxu0 %v5020
    %5074 = vmatpush1.bf16.msra.mxu0 %v5019
    %5075 = vmatprep.subr.bf16.mxu0 %v5016
    %5076 = vmatpush1.bf16.msra.mxu0 %v5015
    %5077 = vmatprep.subr.bf16.mxu0 %v5012
    %5078 = vmatpush1.bf16.msra.mxu0 %v5011
    %5079 = vmatprep.subr.bf16.mxu0 %v5008
    %5080 = vmatpush1.bf16.msra.mxu0 %v5007
    %5081 = vmatprep.subr.bf16.mxu0 %v5004
    %5082 = vmatpush1.bf16.msra.mxu0 %v5003
    %5083 = vmatprep.subr.bf16.mxu0 0
    %5084 = vmatpush2.bf16.msra.mxu0 0
    %5085 = vmatprep.subr.bf16.mxu0 0
    %5086 = vmatpush2.bf16.msra.mxu0 0
    %5087 = vmatprep.subr.bf16.mxu0 0
    %5088 = vmatpush2.bf16.msra.mxu0 0
    %5089 = vmatprep.subr.bf16.mxu0 0
    %5090 = vmatpush2.bf16.msra.mxu0 0
    %5091 = vmatprep.subr.bf16.mxu0 0
    %5092 = vmatpush2.bf16.msra.mxu0 0
    %5093 = vmatprep.subr.bf16.mxu0 0
    %5094 = vmatpush2.bf16.msra.mxu0 0
    %5095 = vmatprep.subr.bf16.mxu0 0
    %5096 = vmatpush2.bf16.msra.mxu0 0
    %5097 = vmatprep.subr.bf16.mxu0 0
    %5098 = vmatpush2.bf16.msra.mxu0 0
    %5099 = vmatprep.mubr.bf16.mxu0 0
    %5100 = vmatmul.mubr.bf16.gmra.mxu0 %v4905
    %v5101 = vpop.f32.mrf.mxu0
    %v5102 = vadd.f32 0.0, %v5101
    %v5103 = vpop.f32.mrf.mxu0
    %v5104 = vadd.f32 0.0, %v5103
    %v5105 = vpop.f32.mrf.mxu0
    %v5106 = vpop.f32.mrf.mxu0
    %5107 = vdwg.mxu0
    %5108 = vmatprep.subr.bf16.mxu0 %v5034
    %5109 = vmatpush1.bf16.msra.mxu0 %v5033
    %5110 = vmatprep.subr.bf16.mxu0 %v5030
    %5111 = vmatpush1.bf16.msra.mxu0 %v5029
    %5112 = vmatprep.subr.bf16.mxu0 %v5026
    %5113 = vmatpush1.bf16.msra.mxu0 %v5025
    %5114 = vmatprep.subr.bf16.mxu0 %v5022
    %5115 = vmatpush1.bf16.msra.mxu0 %v5021
    %5116 = vmatprep.subr.bf16.mxu0 %v5018
    %5117 = vmatpush1.bf16.msra.mxu0 %v5017
    %5118 = vmatprep.subr.bf16.mxu0 %v5014
    %5119 = vmatpush1.bf16.msra.mxu0 %v5013
    %5120 = vmatprep.subr.bf16.mxu0 %v5010
    %5121 = vmatpush1.bf16.msra.mxu0 %v5009
    %5122 = vmatprep.subr.bf16.mxu0 %v5006
    %5123 = vmatpush1.bf16.msra.mxu0 %v5005
    %5124 = vmatprep.subr.bf16.mxu0 0
    %5125 = vmatpush2.bf16.msra.mxu0 0
    %5126 = vmatprep.subr.bf16.mxu0 0
    %5127 = vmatpush2.bf16.msra.mxu0 0
    %5128 = vmatprep.subr.bf16.mxu0 0
    %5129 = vmatpush2.bf16.msra.mxu0 0
    %5130 = vmatprep.subr.bf16.mxu0 0
    %5131 = vmatpush2.bf16.msra.mxu0 0
    %5132 = vmatprep.subr.bf16.mxu0 0
    %5133 = vmatpush2.bf16.msra.mxu0 0
    %5134 = vmatprep.subr.bf16.mxu0 0
    %5135 = vmatpush2.bf16.msra.mxu0 0
    %5136 = vmatprep.subr.bf16.mxu0 0
    %5137 = vmatpush2.bf16.msra.mxu0 0
    %5138 = vmatprep.subr.bf16.mxu0 0
    %5139 = vmatpush2.bf16.msra.mxu0 0
    %5140 = vmatprep.mubr.bf16.mxu0 0
    %5141 = vmatmul.mubr.bf16.gmra.mxu0 %v4905
    %v5142 = vpop.f32.mrf.mxu0
    %v5143 = vadd.f32 0.0, %v5142
    %v5144 = vpop.f32.mrf.mxu0
    %v5145 = vadd.f32 0.0, %v5144
    %v5146 = vpop.f32.mrf.mxu0
    %v5147 = vpop.f32.mrf.mxu0
    %5148 = vdwg.mxu0
    %v5153 = vrot.slane %v5102, 6
    %v5154 = vrot.slane %v5104, 6
    %v5155 = vrot.slane %v5143, 6
    %v5156 = vrot.slane %v5145, 6
    %v5161 = vadd.f32 %v4867, %v5153
    %v5162 = vadd.f32 %v4868, %v5154
    %v5163 = vadd.f32 %v4869, %v5155
    %v5164 = vadd.f32 %v4870, %v5156
    %v5165 = vxor.u32 %v4863, 2147483648
    %v5166 = vxor.u32 %v4864, 2147483648
    %v5167 = vxor.u32 %v4865, 2147483648
    %v5168 = vmul.f32 %v5165, 1.442695
    %v5169 = vpow.pop %v5168
    %v5170 = vmul.f32 %v5166, 1.442695
    %v5171 = vpow.pop %v5170
    %v5172 = vmul.f32 %v5167, 1.442695
    %v5173 = vpow.pop %v5172
    %v5174 = vadd.f32 %v5169, 1.0
    %v5175 = vadd.f32 %v5171, 1.0
    %v5176 = vadd.f32 %v5173, 1.0
    %v5177 = vrcp.pop %v5174
    %v5178 = vmul.f32 1.0, %v5177
    %v5179 = vrcp.pop %v5175
    %v5180 = vmul.f32 1.0, %v5179
    %v5181 = vrcp.pop %v5176
    %v5182 = vmul.f32 1.0, %v5181
    %v5183 = vtanh.pop %v4866
    %v5185 = vrot.slane %v4537, 6
    %v5187 = vmul.f32 %v5180, %v5185
    %v5188 = vmul.f32 %v5178, %v5183
    %v5189 = vadd.f32 %v5187, %v5188
    %v5190 = vtanh.pop %v5189
    %v5191 = vmul.f32 %v5182, %v5190
    %v5192 = vxor.u32 %v5161, 2147483648
    %v5193 = vxor.u32 %v5162, 2147483648
    %v5194 = vxor.u32 %v5163, 2147483648
    %v5195 = vmul.f32 %v5192, 1.442695
    %v5196 = vpow.pop %v5195
    %v5197 = vmul.f32 %v5193, 1.442695
    %v5198 = vpow.pop %v5197
    %v5199 = vmul.f32 %v5194, 1.442695
    %v5200 = vpow.pop %v5199
    %v5201 = vadd.f32 %v5196, 1.0
    %v5202 = vadd.f32 %v5198, 1.0
    %v5203 = vadd.f32 %v5200, 1.0
    %v5204 = vrcp.pop %v5201
    %v5205 = vmul.f32 1.0, %v5204
    %v5206 = vrcp.pop %v5202
    %v5207 = vmul.f32 1.0, %v5206
    %v5208 = vrcp.pop %v5203
    %v5209 = vmul.f32 1.0, %v5208
    %v5210 = vtanh.pop %v5164
    %v5212 = vrot.slane %v4564, 2
    %v5214 = vmul.f32 %v5207, %v5212
    %v5215 = vmul.f32 %v5205, %v5210
    %v5216 = vadd.f32 %v5214, %v5215
    %v5217 = vtanh.pop %v5216
    %v5218 = vmul.f32 %v5209, %v5217
    %5219 = vst [vmem:[#allocation3 + $0x10] sm:$0x30] %v5191
    %5220 = vst [vmem:[#allocation3 + $0x8] sm:$0xc] %v5218
    %v5221 = vld [vmem:[#allocation2 + $0x40] sm:$0xc0]
    %v5222 = vld [vmem:[#allocation2 + $0x48] sm:$0xc0]
    %v5223 = vld [vmem:[#allocation2 + $0x50] sm:$0xc0]
    %v5224 = vld [vmem:[#allocation2 + $0x58] sm:$0xc0]
    %v5225 = vpack.c.bf16 %v5191, %v5191
    %v5226 = vld [vmem:[#allocation8] sm:$0xff]
    %v5227 = vld [vmem:[#allocation8 + $0x8] sm:$0xff]
    %v5228 = vld [vmem:[#allocation8 + $0x10] sm:$0xff]
    %v5229 = vld [vmem:[#allocation8 + $0x18] sm:$0xff]
    %v5230 = vld [vmem:[#allocation8 + $0x20] sm:$0xff]
    %v5231 = vld [vmem:[#allocation8 + $0x28] sm:$0xff]
    %v5232 = vld [vmem:[#allocation8 + $0x30] sm:$0xff]
    %v5233 = vld [vmem:[#allocation8 + $0x38] sm:$0xff]
    %v5234 = vld [vmem:[#allocation8 + $0x40] sm:$0xff]
    %v5235 = vld [vmem:[#allocation8 + $0x48] sm:$0xff]
    %v5236 = vld [vmem:[#allocation8 + $0x50] sm:$0xff]
    %v5237 = vld [vmem:[#allocation8 + $0x58] sm:$0xff]
    %v5238 = vld [vmem:[#allocation8 + $0x60] sm:$0xff]
    %v5239 = vld [vmem:[#allocation8 + $0x68] sm:$0xff]
    %v5240 = vld [vmem:[#allocation8 + $0x70] sm:$0xff]
    %v5241 = vld [vmem:[#allocation8 + $0x78] sm:$0xff]
    %v5242 = vld [vmem:[#allocation8 + $0x80] sm:$0xff]
    %v5243 = vld [vmem:[#allocation8 + $0x88] sm:$0xff]
    %v5244 = vld [vmem:[#allocation8 + $0x90] sm:$0xff]
    %v5245 = vld [vmem:[#allocation8 + $0x98] sm:$0xff]
    %v5246 = vld [vmem:[#allocation8 + $0xa0] sm:$0xff]
    %v5247 = vld [vmem:[#allocation8 + $0xa8] sm:$0xff]
    %v5248 = vld [vmem:[#allocation8 + $0xb0] sm:$0xff]
    %v5249 = vld [vmem:[#allocation8 + $0xb8] sm:$0xff]
    %v5250 = vld [vmem:[#allocation8 + $0xc0] sm:$0xff]
    %v5251 = vld [vmem:[#allocation8 + $0xc8] sm:$0xff]
    %v5252 = vld [vmem:[#allocation8 + $0xd0] sm:$0xff]
    %v5253 = vld [vmem:[#allocation8 + $0xd8] sm:$0xff]
    %v5254 = vld [vmem:[#allocation8 + $0xe0] sm:$0xff]
    %v5255 = vld [vmem:[#allocation8 + $0xe8] sm:$0xff]
    %v5256 = vld [vmem:[#allocation8 + $0xf0] sm:$0xff]
    %v5257 = vld [vmem:[#allocation8 + $0xf8] sm:$0xff]
    %v5259 = vrot.slane %v5225, 2
    %v5293 = vunpack.c.l.b16 %v5226
    %v5294 = vunpack.c.h.b16 %v5226
    %v5295 = vunpack.c.l.b16 %v5227
    %v5296 = vunpack.c.h.b16 %v5227
    %v5297 = vunpack.c.l.b16 %v5228
    %v5298 = vunpack.c.h.b16 %v5228
    %v5299 = vunpack.c.l.b16 %v5229
    %v5300 = vunpack.c.h.b16 %v5229
    %v5301 = vunpack.c.l.b16 %v5230
    %v5302 = vunpack.c.h.b16 %v5230
    %v5303 = vunpack.c.l.b16 %v5231
    %v5304 = vunpack.c.h.b16 %v5231
    %v5305 = vunpack.c.l.b16 %v5232
    %v5306 = vunpack.c.h.b16 %v5232
    %v5307 = vunpack.c.l.b16 %v5233
    %v5308 = vunpack.c.h.b16 %v5233
    %v5309 = vunpack.c.l.b16 %v5234
    %v5310 = vunpack.c.h.b16 %v5234
    %v5311 = vunpack.c.l.b16 %v5235
    %v5312 = vunpack.c.h.b16 %v5235
    %v5313 = vunpack.c.l.b16 %v5236
    %v5314 = vunpack.c.h.b16 %v5236
    %v5315 = vunpack.c.l.b16 %v5237
    %v5316 = vunpack.c.h.b16 %v5237
    %v5317 = vunpack.c.l.b16 %v5238
    %v5318 = vunpack.c.h.b16 %v5238
    %v5319 = vunpack.c.l.b16 %v5239
    %v5320 = vunpack.c.h.b16 %v5239
    %v5321 = vunpack.c.l.b16 %v5240
    %v5322 = vunpack.c.h.b16 %v5240
    %v5323 = vunpack.c.l.b16 %v5241
    %v5324 = vunpack.c.h.b16 %v5241
    %v5325 = vunpack.c.l.b16 %v5242
    %v5326 = vunpack.c.h.b16 %v5242
    %v5327 = vunpack.c.l.b16 %v5243
    %v5328 = vunpack.c.h.b16 %v5243
    %v5329 = vunpack.c.l.b16 %v5244
    %v5330 = vunpack.c.h.b16 %v5244
    %v5331 = vunpack.c.l.b16 %v5245
    %v5332 = vunpack.c.h.b16 %v5245
    %v5333 = vunpack.c.l.b16 %v5246
    %v5334 = vunpack.c.h.b16 %v5246
    %v5335 = vunpack.c.l.b16 %v5247
    %v5336 = vunpack.c.h.b16 %v5247
    %v5337 = vunpack.c.l.b16 %v5248
    %v5338 = vunpack.c.h.b16 %v5248
    %v5339 = vunpack.c.l.b16 %v5249
    %v5340 = vunpack.c.h.b16 %v5249
    %v5341 = vunpack.c.l.b16 %v5250
    %v5342 = vunpack.c.h.b16 %v5250
    %v5343 = vunpack.c.l.b16 %v5251
    %v5344 = vunpack.c.h.b16 %v5251
    %v5345 = vunpack.c.l.b16 %v5252
    %v5346 = vunpack.c.h.b16 %v5252
    %v5347 = vunpack.c.l.b16 %v5253
    %v5348 = vunpack.c.h.b16 %v5253
    %v5349 = vunpack.c.l.b16 %v5254
    %v5350 = vunpack.c.h.b16 %v5254
    %v5351 = vunpack.c.l.b16 %v5255
    %v5352 = vunpack.c.h.b16 %v5255
    %v5353 = vunpack.c.l.b16 %v5256
    %v5354 = vunpack.c.h.b16 %v5256
    %v5355 = vunpack.c.l.b16 %v5257
    %v5356 = vunpack.c.h.b16 %v5257
    %v5357 = vpack.c.b16 %v5297, %v5293
    %v5358 = vpack.c.b16 %v5298, %v5294
    %v5359 = vpack.c.b16 %v5299, %v5295
    %v5360 = vpack.c.b16 %v5300, %v5296
    %v5361 = vpack.c.b16 %v5305, %v5301
    %v5362 = vpack.c.b16 %v5306, %v5302
    %v5363 = vpack.c.b16 %v5307, %v5303
    %v5364 = vpack.c.b16 %v5308, %v5304
    %v5365 = vpack.c.b16 %v5313, %v5309
    %v5366 = vpack.c.b16 %v5314, %v5310
    %v5367 = vpack.c.b16 %v5315, %v5311
    %v5368 = vpack.c.b16 %v5316, %v5312
    %v5369 = vpack.c.b16 %v5321, %v5317
    %v5370 = vpack.c.b16 %v5322, %v5318
    %v5371 = vpack.c.b16 %v5323, %v5319
    %v5372 = vpack.c.b16 %v5324, %v5320
    %v5373 = vpack.c.b16 %v5329, %v5325
    %v5374 = vpack.c.b16 %v5330, %v5326
    %v5375 = vpack.c.b16 %v5331, %v5327
    %v5376 = vpack.c.b16 %v5332, %v5328
    %v5377 = vpack.c.b16 %v5337, %v5333
    %v5378 = vpack.c.b16 %v5338, %v5334
    %v5379 = vpack.c.b16 %v5339, %v5335
    %v5380 = vpack.c.b16 %v5340, %v5336
    %v5381 = vpack.c.b16 %v5345, %v5341
    %v5382 = vpack.c.b16 %v5346, %v5342
    %v5383 = vpack.c.b16 %v5347, %v5343
    %v5384 = vpack.c.b16 %v5348, %v5344
    %v5385 = vpack.c.b16 %v5353, %v5349
    %v5386 = vpack.c.b16 %v5354, %v5350
    %v5387 = vpack.c.b16 %v5355, %v5351
    %v5388 = vpack.c.b16 %v5356, %v5352
    %5421 = vmatprep.subr.bf16.mxu0 %v5386
    %5422 = vmatpush1.bf16.msra.mxu0 %v5385
    %5423 = vmatprep.subr.bf16.mxu0 %v5382
    %5424 = vmatpush1.bf16.msra.mxu0 %v5381
    %5425 = vmatprep.subr.bf16.mxu0 %v5378
    %5426 = vmatpush1.bf16.msra.mxu0 %v5377
    %5427 = vmatprep.subr.bf16.mxu0 %v5374
    %5428 = vmatpush1.bf16.msra.mxu0 %v5373
    %5429 = vmatprep.subr.bf16.mxu0 %v5370
    %5430 = vmatpush1.bf16.msra.mxu0 %v5369
    %5431 = vmatprep.subr.bf16.mxu0 %v5366
    %5432 = vmatpush1.bf16.msra.mxu0 %v5365
    %5433 = vmatprep.subr.bf16.mxu0 %v5362
    %5434 = vmatpush1.bf16.msra.mxu0 %v5361
    %5435 = vmatprep.subr.bf16.mxu0 %v5358
    %5436 = vmatpush1.bf16.msra.mxu0 %v5357
    %5437 = vmatprep.subr.bf16.mxu0 0
    %5438 = vmatpush2.bf16.msra.mxu0 0
    %5439 = vmatprep.subr.bf16.mxu0 0
    %5440 = vmatpush2.bf16.msra.mxu0 0
    %5441 = vmatprep.subr.bf16.mxu0 0
    %5442 = vmatpush2.bf16.msra.mxu0 0
    %5443 = vmatprep.subr.bf16.mxu0 0
    %5444 = vmatpush2.bf16.msra.mxu0 0
    %5445 = vmatprep.subr.bf16.mxu0 0
    %5446 = vmatpush2.bf16.msra.mxu0 0
    %5447 = vmatprep.subr.bf16.mxu0 0
    %5448 = vmatpush2.bf16.msra.mxu0 0
    %5449 = vmatprep.subr.bf16.mxu0 0
    %5450 = vmatpush2.bf16.msra.mxu0 0
    %5451 = vmatprep.subr.bf16.mxu0 0
    %5452 = vmatpush2.bf16.msra.mxu0 0
    %5453 = vmatprep.mubr.bf16.mxu0 0
    %5454 = vmatmul.mubr.bf16.gmra.mxu0 %v5259
    %v5455 = vpop.f32.mrf.mxu0
    %v5456 = vadd.f32 0.0, %v5455
    %v5457 = vpop.f32.mrf.mxu0
    %v5458 = vadd.f32 0.0, %v5457
    %v5459 = vpop.f32.mrf.mxu0
    %v5460 = vpop.f32.mrf.mxu0
    %5461 = vdwg.mxu0
    %5462 = vmatprep.subr.bf16.mxu0 %v5388
    %5463 = vmatpush1.bf16.msra.mxu0 %v5387
    %5464 = vmatprep.subr.bf16.mxu0 %v5384
    %5465 = vmatpush1.bf16.msra.mxu0 %v5383
    %5466 = vmatprep.subr.bf16.mxu0 %v5380
    %5467 = vmatpush1.bf16.msra.mxu0 %v5379
    %5468 = vmatprep.subr.bf16.mxu0 %v5376
    %5469 = vmatpush1.bf16.msra.mxu0 %v5375
    %5470 = vmatprep.subr.bf16.mxu0 %v5372
    %5471 = vmatpush1.bf16.msra.mxu0 %v5371
    %5472 = vmatprep.subr.bf16.mxu0 %v5368
    %5473 = vmatpush1.bf16.msra.mxu0 %v5367
    %5474 = vmatprep.subr.bf16.mxu0 %v5364
    %5475 = vmatpush1.bf16.msra.mxu0 %v5363
    %5476 = vmatprep.subr.bf16.mxu0 %v5360
    %5477 = vmatpush1.bf16.msra.mxu0 %v5359
    %5478 = vmatprep.subr.bf16.mxu0 0
    %5479 = vmatpush2.bf16.msra.mxu0 0
    %5480 = vmatprep.subr.bf16.mxu0 0
    %5481 = vmatpush2.bf16.msra.mxu0 0
    %5482 = vmatprep.subr.bf16.mxu0 0
    %5483 = vmatpush2.bf16.msra.mxu0 0
    %5484 = vmatprep.subr.bf16.mxu0 0
    %5485 = vmatpush2.bf16.msra.mxu0 0
    %5486 = vmatprep.subr.bf16.mxu0 0
    %5487 = vmatpush2.bf16.msra.mxu0 0
    %5488 = vmatprep.subr.bf16.mxu0 0
    %5489 = vmatpush2.bf16.msra.mxu0 0
    %5490 = vmatprep.subr.bf16.mxu0 0
    %5491 = vmatpush2.bf16.msra.mxu0 0
    %5492 = vmatprep.subr.bf16.mxu0 0
    %5493 = vmatpush2.bf16.msra.mxu0 0
    %5494 = vmatprep.mubr.bf16.mxu0 0
    %5495 = vmatmul.mubr.bf16.gmra.mxu0 %v5259
    %v5496 = vpop.f32.mrf.mxu0
    %v5497 = vadd.f32 0.0, %v5496
    %v5498 = vpop.f32.mrf.mxu0
    %v5499 = vadd.f32 0.0, %v5498
    %v5500 = vpop.f32.mrf.mxu0
    %v5501 = vpop.f32.mrf.mxu0
    %5502 = vdwg.mxu0
    %v5507 = vrot.slane %v5456, 2
    %v5508 = vrot.slane %v5458, 2
    %v5509 = vrot.slane %v5497, 2
    %v5510 = vrot.slane %v5499, 2
    %v5515 = vadd.f32 %v5221, %v5507
    %v5516 = vadd.f32 %v5222, %v5508
    %v5517 = vadd.f32 %v5223, %v5509
    %v5518 = vadd.f32 %v5224, %v5510
    %v5519 = vld [vmem:[#allocation2 + $0x20] sm:$0x3]
    %v5520 = vld [vmem:[#allocation2 + $0x28] sm:$0x3]
    %v5521 = vld [vmem:[#allocation2 + $0x30] sm:$0x3]
    %v5522 = vld [vmem:[#allocation2 + $0x38] sm:$0x3]
    %v5523 = vpack.c.bf16 %v5218, %v5218
    %v5524 = vld [vmem:[#allocation10] sm:$0xff]
    %v5525 = vld [vmem:[#allocation10 + $0x8] sm:$0xff]
    %v5526 = vld [vmem:[#allocation10 + $0x10] sm:$0xff]
    %v5527 = vld [vmem:[#allocation10 + $0x18] sm:$0xff]
    %v5528 = vld [vmem:[#allocation10 + $0x20] sm:$0xff]
    %v5529 = vld [vmem:[#allocation10 + $0x28] sm:$0xff]
    %v5530 = vld [vmem:[#allocation10 + $0x30] sm:$0xff]
    %v5531 = vld [vmem:[#allocation10 + $0x38] sm:$0xff]
    %v5532 = vld [vmem:[#allocation10 + $0x40] sm:$0xff]
    %v5533 = vld [vmem:[#allocation10 + $0x48] sm:$0xff]
    %v5534 = vld [vmem:[#allocation10 + $0x50] sm:$0xff]
    %v5535 = vld [vmem:[#allocation10 + $0x58] sm:$0xff]
    %v5536 = vld [vmem:[#allocation10 + $0x60] sm:$0xff]
    %v5537 = vld [vmem:[#allocation10 + $0x68] sm:$0xff]
    %v5538 = vld [vmem:[#allocation10 + $0x70] sm:$0xff]
    %v5539 = vld [vmem:[#allocation10 + $0x78] sm:$0xff]
    %v5540 = vld [vmem:[#allocation10 + $0x80] sm:$0xff]
    %v5541 = vld [vmem:[#allocation10 + $0x88] sm:$0xff]
    %v5542 = vld [vmem:[#allocation10 + $0x90] sm:$0xff]
    %v5543 = vld [vmem:[#allocation10 + $0x98] sm:$0xff]
    %v5544 = vld [vmem:[#allocation10 + $0xa0] sm:$0xff]
    %v5545 = vld [vmem:[#allocation10 + $0xa8] sm:$0xff]
    %v5546 = vld [vmem:[#allocation10 + $0xb0] sm:$0xff]
    %v5547 = vld [vmem:[#allocation10 + $0xb8] sm:$0xff]
    %v5548 = vld [vmem:[#allocation10 + $0xc0] sm:$0xff]
    %v5549 = vld [vmem:[#allocation10 + $0xc8] sm:$0xff]
    %v5550 = vld [vmem:[#allocation10 + $0xd0] sm:$0xff]
    %v5551 = vld [vmem:[#allocation10 + $0xd8] sm:$0xff]
    %v5552 = vld [vmem:[#allocation10 + $0xe0] sm:$0xff]
    %v5553 = vld [vmem:[#allocation10 + $0xe8] sm:$0xff]
    %v5554 = vld [vmem:[#allocation10 + $0xf0] sm:$0xff]
    %v5555 = vld [vmem:[#allocation10 + $0xf8] sm:$0xff]
    %v5557 = vrot.slane %v5523, 1
    %v5591 = vunpack.c.l.b16 %v5524
    %v5592 = vunpack.c.h.b16 %v5524
    %v5593 = vunpack.c.l.b16 %v5525
    %v5594 = vunpack.c.h.b16 %v5525
    %v5595 = vunpack.c.l.b16 %v5526
    %v5596 = vunpack.c.h.b16 %v5526
    %v5597 = vunpack.c.l.b16 %v5527
    %v5598 = vunpack.c.h.b16 %v5527
    %v5599 = vunpack.c.l.b16 %v5528
    %v5600 = vunpack.c.h.b16 %v5528
    %v5601 = vunpack.c.l.b16 %v5529
    %v5602 = vunpack.c.h.b16 %v5529
    %v5603 = vunpack.c.l.b16 %v5530
    %v5604 = vunpack.c.h.b16 %v5530
    %v5605 = vunpack.c.l.b16 %v5531
    %v5606 = vunpack.c.h.b16 %v5531
    %v5607 = vunpack.c.l.b16 %v5532
    %v5608 = vunpack.c.h.b16 %v5532
    %v5609 = vunpack.c.l.b16 %v5533
    %v5610 = vunpack.c.h.b16 %v5533
    %v5611 = vunpack.c.l.b16 %v5534
    %v5612 = vunpack.c.h.b16 %v5534
    %v5613 = vunpack.c.l.b16 %v5535
    %v5614 = vunpack.c.h.b16 %v5535
    %v5615 = vunpack.c.l.b16 %v5536
    %v5616 = vunpack.c.h.b16 %v5536
    %v5617 = vunpack.c.l.b16 %v5537
    %v5618 = vunpack.c.h.b16 %v5537
    %v5619 = vunpack.c.l.b16 %v5538
    %v5620 = vunpack.c.h.b16 %v5538
    %v5621 = vunpack.c.l.b16 %v5539
    %v5622 = vunpack.c.h.b16 %v5539
    %v5623 = vunpack.c.l.b16 %v5540
    %v5624 = vunpack.c.h.b16 %v5540
    %v5625 = vunpack.c.l.b16 %v5541
    %v5626 = vunpack.c.h.b16 %v5541
    %v5627 = vunpack.c.l.b16 %v5542
    %v5628 = vunpack.c.h.b16 %v5542
    %v5629 = vunpack.c.l.b16 %v5543
    %v5630 = vunpack.c.h.b16 %v5543
    %v5631 = vunpack.c.l.b16 %v5544
    %v5632 = vunpack.c.h.b16 %v5544
    %v5633 = vunpack.c.l.b16 %v5545
    %v5634 = vunpack.c.h.b16 %v5545
    %v5635 = vunpack.c.l.b16 %v5546
    %v5636 = vunpack.c.h.b16 %v5546
    %v5637 = vunpack.c.l.b16 %v5547
    %v5638 = vunpack.c.h.b16 %v5547
    %v5639 = vunpack.c.l.b16 %v5548
    %v5640 = vunpack.c.h.b16 %v5548
    %v5641 = vunpack.c.l.b16 %v5549
    %v5642 = vunpack.c.h.b16 %v5549
    %v5643 = vunpack.c.l.b16 %v5550
    %v5644 = vunpack.c.h.b16 %v5550
    %v5645 = vunpack.c.l.b16 %v5551
    %v5646 = vunpack.c.h.b16 %v5551
    %v5647 = vunpack.c.l.b16 %v5552
    %v5648 = vunpack.c.h.b16 %v5552
    %v5649 = vunpack.c.l.b16 %v5553
    %v5650 = vunpack.c.h.b16 %v5553
    %v5651 = vunpack.c.l.b16 %v5554
    %v5652 = vunpack.c.h.b16 %v5554
    %v5653 = vunpack.c.l.b16 %v5555
    %v5654 = vunpack.c.h.b16 %v5555
    %v5655 = vpack.c.b16 %v5595, %v5591
    %v5656 = vpack.c.b16 %v5596, %v5592
    %v5657 = vpack.c.b16 %v5597, %v5593
    %v5658 = vpack.c.b16 %v5598, %v5594
    %v5659 = vpack.c.b16 %v5603, %v5599
    %v5660 = vpack.c.b16 %v5604, %v5600
    %v5661 = vpack.c.b16 %v5605, %v5601
    %v5662 = vpack.c.b16 %v5606, %v5602
    %v5663 = vpack.c.b16 %v5611, %v5607
    %v5664 = vpack.c.b16 %v5612, %v5608
    %v5665 = vpack.c.b16 %v5613, %v5609
    %v5666 = vpack.c.b16 %v5614, %v5610
    %v5667 = vpack.c.b16 %v5619, %v5615
    %v5668 = vpack.c.b16 %v5620, %v5616
    %v5669 = vpack.c.b16 %v5621, %v5617
    %v5670 = vpack.c.b16 %v5622, %v5618
    %v5671 = vpack.c.b16 %v5627, %v5623
    %v5672 = vpack.c.b16 %v5628, %v5624
    %v5673 = vpack.c.b16 %v5629, %v5625
    %v5674 = vpack.c.b16 %v5630, %v5626
    %v5675 = vpack.c.b16 %v5635, %v5631
    %v5676 = vpack.c.b16 %v5636, %v5632
    %v5677 = vpack.c.b16 %v5637, %v5633
    %v5678 = vpack.c.b16 %v5638, %v5634
    %v5679 = vpack.c.b16 %v5643, %v5639
    %v5680 = vpack.c.b16 %v5644, %v5640
    %v5681 = vpack.c.b16 %v5645, %v5641
    %v5682 = vpack.c.b16 %v5646, %v5642
    %v5683 = vpack.c.b16 %v5651, %v5647
    %v5684 = vpack.c.b16 %v5652, %v5648
    %v5685 = vpack.c.b16 %v5653, %v5649
    %v5686 = vpack.c.b16 %v5654, %v5650
    %5719 = vmatprep.subr.bf16.mxu0 %v5684
    %5720 = vmatpush1.bf16.msra.mxu0 %v5683
    %5721 = vmatprep.subr.bf16.mxu0 %v5680
    %5722 = vmatpush1.bf16.msra.mxu0 %v5679
    %5723 = vmatprep.subr.bf16.mxu0 %v5676
    %5724 = vmatpush1.bf16.msra.mxu0 %v5675
    %5725 = vmatprep.subr.bf16.mxu0 %v5672
    %5726 = vmatpush1.bf16.msra.mxu0 %v5671
    %5727 = vmatprep.subr.bf16.mxu0 %v5668
    %5728 = vmatpush1.bf16.msra.mxu0 %v5667
    %5729 = vmatprep.subr.bf16.mxu0 %v5664
    %5730 = vmatpush1.bf16.msra.mxu0 %v5663
    %5731 = vmatprep.subr.bf16.mxu0 %v5660
    %5732 = vmatpush1.bf16.msra.mxu0 %v5659
    %5733 = vmatprep.subr.bf16.mxu0 %v5656
    %5734 = vmatpush1.bf16.msra.mxu0 %v5655
    %5735 = vmatprep.subr.bf16.mxu0 0
    %5736 = vmatpush2.bf16.msra.mxu0 0
    %5737 = vmatprep.subr.bf16.mxu0 0
    %5738 = vmatpush2.bf16.msra.mxu0 0
    %5739 = vmatprep.subr.bf16.mxu0 0
    %5740 = vmatpush2.bf16.msra.mxu0 0
    %5741 = vmatprep.subr.bf16.mxu0 0
    %5742 = vmatpush2.bf16.msra.mxu0 0
    %5743 = vmatprep.subr.bf16.mxu0 0
    %5744 = vmatpush2.bf16.msra.mxu0 0
    %5745 = vmatprep.subr.bf16.mxu0 0
    %5746 = vmatpush2.bf16.msra.mxu0 0
    %5747 = vmatprep.subr.bf16.mxu0 0
    %5748 = vmatpush2.bf16.msra.mxu0 0
    %5749 = vmatprep.subr.bf16.mxu0 0
    %5750 = vmatpush2.bf16.msra.mxu0 0
    %5751 = vmatprep.mubr.bf16.mxu0 0
    %5752 = vmatmul.mubr.bf16.gmra.mxu0 %v5557
    %v5753 = vpop.f32.mrf.mxu0
    %v5754 = vadd.f32 0.0, %v5753
    %v5755 = vpop.f32.mrf.mxu0
    %v5756 = vadd.f32 0.0, %v5755
    %v5757 = vpop.f32.mrf.mxu0
    %v5758 = vpop.f32.mrf.mxu0
    %5759 = vdwg.mxu0
    %5760 = vmatprep.subr.bf16.mxu0 %v5686
    %5761 = vmatpush1.bf16.msra.mxu0 %v5685
    %5762 = vmatprep.subr.bf16.mxu0 %v5682
    %5763 = vmatpush1.bf16.msra.mxu0 %v5681
    %5764 = vmatprep.subr.bf16.mxu0 %v5678
    %5765 = vmatpush1.bf16.msra.mxu0 %v5677
    %5766 = vmatprep.subr.bf16.mxu0 %v5674
    %5767 = vmatpush1.bf16.msra.mxu0 %v5673
    %5768 = vmatprep.subr.bf16.mxu0 %v5670
    %5769 = vmatpush1.bf16.msra.mxu0 %v5669
    %5770 = vmatprep.subr.bf16.mxu0 %v5666
    %5771 = vmatpush1.bf16.msra.mxu0 %v5665
    %5772 = vmatprep.subr.bf16.mxu0 %v5662
    %5773 = vmatpush1.bf16.msra.mxu0 %v5661
    %5774 = vmatprep.subr.bf16.mxu0 %v5658
    %5775 = vmatpush1.bf16.msra.mxu0 %v5657
    %5776 = vmatprep.subr.bf16.mxu0 0
    %5777 = vmatpush2.bf16.msra.mxu0 0
    %5778 = vmatprep.subr.bf16.mxu0 0
    %5779 = vmatpush2.bf16.msra.mxu0 0
    %5780 = vmatprep.subr.bf16.mxu0 0
    %5781 = vmatpush2.bf16.msra.mxu0 0
    %5782 = vmatprep.subr.bf16.mxu0 0
    %5783 = vmatpush2.bf16.msra.mxu0 0
    %5784 = vmatprep.subr.bf16.mxu0 0
    %5785 = vmatpush2.bf16.msra.mxu0 0
    %5786 = vmatprep.subr.bf16.mxu0 0
    %5787 = vmatpush2.bf16.msra.mxu0 0
    %5788 = vmatprep.subr.bf16.mxu0 0
    %5789 = vmatpush2.bf16.msra.mxu0 0
    %5790 = vmatprep.subr.bf16.mxu0 0
    %5791 = vmatpush2.bf16.msra.mxu0 0
    %5792 = vmatprep.mubr.bf16.mxu0 0
    %5793 = vmatmul.mubr.bf16.gmra.mxu0 %v5557
    %v5794 = vpop.f32.mrf.mxu0
    %v5795 = vadd.f32 0.0, %v5794
    %v5796 = vpop.f32.mrf.mxu0
    %v5797 = vadd.f32 0.0, %v5796
    %v5798 = vpop.f32.mrf.mxu0
    %v5799 = vpop.f32.mrf.mxu0
    %5800 = vdwg.mxu0
    %v5801 = vadd.f32 %v5519, %v5754
    %v5802 = vadd.f32 %v5520, %v5756
    %v5803 = vadd.f32 %v5521, %v5795
    %v5804 = vadd.f32 %v5522, %v5797
    %v5805 = vxor.u32 %v5515, 2147483648
    %v5806 = vxor.u32 %v5516, 2147483648
    %v5807 = vxor.u32 %v5517, 2147483648
    %v5808 = vmul.f32 %v5805, 1.442695
    %v5809 = vpow.pop %v5808
    %v5810 = vmul.f32 %v5806, 1.442695
    %v5811 = vpow.pop %v5810
    %v5812 = vmul.f32 %v5807, 1.442695
    %v5813 = vpow.pop %v5812
    %v5814 = vadd.f32 %v5809, 1.0
    %v5815 = vadd.f32 %v5811, 1.0
    %v5816 = vadd.f32 %v5813, 1.0
    %v5817 = vrcp.pop %v5814
    %v5818 = vmul.f32 1.0, %v5817
    %v5819 = vrcp.pop %v5815
    %v5820 = vmul.f32 1.0, %v5819
    %v5821 = vrcp.pop %v5816
    %v5822 = vmul.f32 1.0, %v5821
    %v5823 = vtanh.pop %v5518
    %v5825 = vrot.slane %v5189, 6
    %v5827 = vmul.f32 %v5820, %v5825
    %v5828 = vmul.f32 %v5818, %v5823
    %v5829 = vadd.f32 %v5827, %v5828
    %v5830 = vtanh.pop %v5829
    %v5831 = vmul.f32 %v5822, %v5830
    %v5832 = vxor.u32 %v5801, 2147483648
    %v5833 = vxor.u32 %v5802, 2147483648
    %v5834 = vxor.u32 %v5803, 2147483648
    %v5835 = vmul.f32 %v5832, 1.442695
    %v5836 = vpow.pop %v5835
    %v5837 = vmul.f32 %v5833, 1.442695
    %v5838 = vpow.pop %v5837
    %v5839 = vmul.f32 %v5834, 1.442695
    %v5840 = vpow.pop %v5839
    %v5841 = vadd.f32 %v5836, 1.0
    %v5842 = vadd.f32 %v5838, 1.0
    %v5843 = vadd.f32 %v5840, 1.0
    %v5844 = vrcp.pop %v5841
    %v5845 = vmul.f32 1.0, %v5844
    %v5846 = vrcp.pop %v5842
    %v5847 = vmul.f32 1.0, %v5846
    %v5848 = vrcp.pop %v5843
    %v5849 = vmul.f32 1.0, %v5848
    %v5850 = vtanh.pop %v5804
    %v5852 = vrot.slane %v5216, 2
    %v5854 = vmul.f32 %v5847, %v5852
    %v5855 = vmul.f32 %v5845, %v5850
    %v5856 = vadd.f32 %v5854, %v5855
    %v5857 = vtanh.pop %v5856
    %v5858 = vmul.f32 %v5849, %v5857
    %5859 = vst [vmem:[#allocation3 + $0x10] sm:$0xc0] %v5831
    %5860 = vst [vmem:[#allocation3 + $0x8] sm:$0x3] %v5858
    %v5861 = vld [vmem:[#allocation3] sm:$0xff]
    %v5862 = vld [vmem:[#allocation3 + $0x8] sm:$0xff]
    %v5863 = vld [vmem:[#allocation3 + $0x10] sm:$0xff]
    %v5864 = vld [vmem:[#allocation3 + $0x18] sm:$0xff]
    %v5865 = vpack.c.bf16 %v5863, %v5861
    %v5866 = vpack.c.bf16 %v5864, %v5862
    %v5867 = vld [vmem:[#allocation11] sm:$0xff]
    %v5868 = vld [vmem:[#allocation11 + $0x8] sm:$0xff]
    %v5869 = vld [vmem:[#allocation11 + $0x10] sm:$0xff]
    %v5870 = vld [vmem:[#allocation11 + $0x18] sm:$0xff]
    %v5871 = vld [vmem:[#allocation11 + $0x20] sm:$0xff]
    %v5872 = vld [vmem:[#allocation11 + $0x28] sm:$0xff]
    %v5873 = vld [vmem:[#allocation11 + $0x30] sm:$0xff]
    %v5874 = vld [vmem:[#allocation11 + $0x38] sm:$0xff]
    %v5875 = vld [vmem:[#allocation11 + $0x40] sm:$0xff]
    %v5876 = vld [vmem:[#allocation11 + $0x48] sm:$0xff]
    %v5877 = vld [vmem:[#allocation11 + $0x50] sm:$0xff]
    %v5878 = vld [vmem:[#allocation11 + $0x58] sm:$0xff]
    %v5879 = vld [vmem:[#allocation11 + $0x60] sm:$0xff]
    %v5880 = vld [vmem:[#allocation11 + $0x68] sm:$0xff]
    %v5881 = vld [vmem:[#allocation11 + $0x70] sm:$0xff]
    %v5882 = vld [vmem:[#allocation11 + $0x78] sm:$0xff]
    %v5883 = vld [vmem:[#allocation11 + $0x80] sm:$0xff]
    %v5884 = vld [vmem:[#allocation11 + $0x88] sm:$0xff]
    %v5885 = vld [vmem:[#allocation11 + $0x90] sm:$0xff]
    %v5886 = vld [vmem:[#allocation11 + $0x98] sm:$0xff]
    %v5887 = vld [vmem:[#allocation11 + $0xa0] sm:$0xff]
    %v5888 = vld [vmem:[#allocation11 + $0xa8] sm:$0xff]
    %v5889 = vld [vmem:[#allocation11 + $0xb0] sm:$0xff]
    %v5890 = vld [vmem:[#allocation11 + $0xb8] sm:$0xff]
    %v5891 = vld [vmem:[#allocation11 + $0xc0] sm:$0xff]
    %v5892 = vld [vmem:[#allocation11 + $0xc8] sm:$0xff]
    %v5893 = vld [vmem:[#allocation11 + $0xd0] sm:$0xff]
    %v5894 = vld [vmem:[#allocation11 + $0xd8] sm:$0xff]
    %v5895 = vld [vmem:[#allocation11 + $0xe0] sm:$0xff]
    %v5896 = vld [vmem:[#allocation11 + $0xe8] sm:$0xff]
    %v5897 = vld [vmem:[#allocation11 + $0xf0] sm:$0xff]
    %v5898 = vld [vmem:[#allocation11 + $0xf8] sm:$0xff]
    %v5899 = vld [vmem:[#allocation11 + $0x100] sm:$0xff]
    %v5900 = vld [vmem:[#allocation11 + $0x108] sm:$0xff]
    %v5901 = vld [vmem:[#allocation11 + $0x110] sm:$0xff]
    %v5902 = vld [vmem:[#allocation11 + $0x118] sm:$0xff]
    %v5903 = vld [vmem:[#allocation11 + $0x120] sm:$0xff]
    %v5904 = vld [vmem:[#allocation11 + $0x128] sm:$0xff]
    %v5905 = vld [vmem:[#allocation11 + $0x130] sm:$0xff]
    %v5906 = vld [vmem:[#allocation11 + $0x138] sm:$0xff]
    %v5907 = vld [vmem:[#allocation11 + $0x140] sm:$0xff]
    %v5908 = vld [vmem:[#allocation11 + $0x148] sm:$0xff]
    %v5909 = vld [vmem:[#allocation11 + $0x150] sm:$0xff]
    %v5910 = vld [vmem:[#allocation11 + $0x158] sm:$0xff]
    %v5911 = vld [vmem:[#allocation11 + $0x160] sm:$0xff]
    %v5912 = vld [vmem:[#allocation11 + $0x168] sm:$0xff]
    %v5913 = vld [vmem:[#allocation11 + $0x170] sm:$0xff]
    %v5914 = vld [vmem:[#allocation11 + $0x178] sm:$0xff]
    %v5915 = vld [vmem:[#allocation11 + $0x180] sm:$0xff]
    %v5916 = vld [vmem:[#allocation11 + $0x188] sm:$0xff]
    %v5917 = vld [vmem:[#allocation11 + $0x190] sm:$0xff]
    %v5918 = vld [vmem:[#allocation11 + $0x198] sm:$0xff]
    %v5919 = vld [vmem:[#allocation11 + $0x1a0] sm:$0xff]
    %v5920 = vld [vmem:[#allocation11 + $0x1a8] sm:$0xff]
    %v5921 = vld [vmem:[#allocation11 + $0x1b0] sm:$0xff]
    %v5922 = vld [vmem:[#allocation11 + $0x1b8] sm:$0xff]
    %v5923 = vld [vmem:[#allocation11 + $0x1c0] sm:$0xff]
    %v5924 = vld [vmem:[#allocation11 + $0x1c8] sm:$0xff]
    %v5925 = vld [vmem:[#allocation11 + $0x1d0] sm:$0xff]
    %v5926 = vld [vmem:[#allocation11 + $0x1d8] sm:$0xff]
    %v5927 = vld [vmem:[#allocation11 + $0x1e0] sm:$0xff]
    %v5928 = vld [vmem:[#allocation11 + $0x1e8] sm:$0xff]
    %v5929 = vld [vmem:[#allocation11 + $0x1f0] sm:$0xff]
    %v5930 = vld [vmem:[#allocation11 + $0x1f8] sm:$0xff]
    %v5931 = vld [vmem:[%s7] sm:$0xf]
    %v5933 = vlaneseq
    %v5934 = vshrl.u32 %v5933, 7
    %v5935 = vsub.s32 0, %v5934
    %v5936 = vrot.slane %v5931, %v5935
    %v5937 = vlaneseq
    %v5938 = vshrl.u32 %v5937, 7
    %v5939 = vsub.s32 1, %v5938
    %v5940 = vrot.slane %v5931, %v5939
    %v5941 = vlaneseq
    %v5942 = vshrl.u32 %v5941, 7
    %v5943 = vsub.s32 2, %v5942
    %v5944 = vrot.slane %v5931, %v5943
    %v5945 = vlaneseq
    %v5946 = vshrl.u32 %v5945, 7
    %v5947 = vsub.s32 3, %v5946
    %v5948 = vrot.slane %v5931, %v5947
    %v6017 = vunpack.c.l.b16 %v5867
    %v6018 = vunpack.c.h.b16 %v5867
    %v6019 = vunpack.c.l.b16 %v5868
    %v6020 = vunpack.c.h.b16 %v5868
    %v6021 = vunpack.c.l.b16 %v5869
    %v6022 = vunpack.c.h.b16 %v5869
    %v6023 = vunpack.c.l.b16 %v5870
    %v6024 = vunpack.c.h.b16 %v5870
    %v6025 = vunpack.c.l.b16 %v5871
    %v6026 = vunpack.c.h.b16 %v5871
    %v6027 = vunpack.c.l.b16 %v5872
    %v6028 = vunpack.c.h.b16 %v5872
    %v6029 = vunpack.c.l.b16 %v5873
    %v6030 = vunpack.c.h.b16 %v5873
    %v6031 = vunpack.c.l.b16 %v5874
    %v6032 = vunpack.c.h.b16 %v5874
    %v6033 = vunpack.c.l.b16 %v5875
    %v6034 = vunpack.c.h.b16 %v5875
    %v6035 = vunpack.c.l.b16 %v5876
    %v6036 = vunpack.c.h.b16 %v5876
    %v6037 = vunpack.c.l.b16 %v5877
    %v6038 = vunpack.c.h.b16 %v5877
    %v6039 = vunpack.c.l.b16 %v5878
    %v6040 = vunpack.c.h.b16 %v5878
    %v6041 = vunpack.c.l.b16 %v5879
    %v6042 = vunpack.c.h.b16 %v5879
    %v6043 = vunpack.c.l.b16 %v5880
    %v6044 = vunpack.c.h.b16 %v5880
    %v6045 = vunpack.c.l.b16 %v5881
    %v6046 = vunpack.c.h.b16 %v5881
    %v6047 = vunpack.c.l.b16 %v5882
    %v6048 = vunpack.c.h.b16 %v5882
    %v6049 = vunpack.c.l.b16 %v5883
    %v6050 = vunpack.c.h.b16 %v5883
    %v6051 = vunpack.c.l.b16 %v5884
    %v6052 = vunpack.c.h.b16 %v5884
    %v6053 = vunpack.c.l.b16 %v5885
    %v6054 = vunpack.c.h.b16 %v5885
    %v6055 = vunpack.c.l.b16 %v5886
    %v6056 = vunpack.c.h.b16 %v5886
    %v6057 = vunpack.c.l.b16 %v5887
    %v6058 = vunpack.c.h.b16 %v5887
    %v6059 = vunpack.c.l.b16 %v5888
    %v6060 = vunpack.c.h.b16 %v5888
    %v6061 = vunpack.c.l.b16 %v5889
    %v6062 = vunpack.c.h.b16 %v5889
    %v6063 = vunpack.c.l.b16 %v5890
    %v6064 = vunpack.c.h.b16 %v5890
    %v6065 = vunpack.c.l.b16 %v5891
    %v6066 = vunpack.c.h.b16 %v5891
    %v6067 = vunpack.c.l.b16 %v5892
    %v6068 = vunpack.c.h.b16 %v5892
    %v6069 = vunpack.c.l.b16 %v5893
    %v6070 = vunpack.c.h.b16 %v5893
    %v6071 = vunpack.c.l.b16 %v5894
    %v6072 = vunpack.c.h.b16 %v5894
    %v6073 = vunpack.c.l.b16 %v5895
    %v6074 = vunpack.c.h.b16 %v5895
    %v6075 = vunpack.c.l.b16 %v5896
    %v6076 = vunpack.c.h.b16 %v5896
    %v6077 = vunpack.c.l.b16 %v5897
    %v6078 = vunpack.c.h.b16 %v5897
    %v6079 = vunpack.c.l.b16 %v5898
    %v6080 = vunpack.c.h.b16 %v5898
    %v6081 = vunpack.c.l.b16 %v5899
    %v6082 = vunpack.c.h.b16 %v5899
    %v6083 = vunpack.c.l.b16 %v5900
    %v6084 = vunpack.c.h.b16 %v5900
    %v6085 = vunpack.c.l.b16 %v5901
    %v6086 = vunpack.c.h.b16 %v5901
    %v6087 = vunpack.c.l.b16 %v5902
    %v6088 = vunpack.c.h.b16 %v5902
    %v6089 = vunpack.c.l.b16 %v5903
    %v6090 = vunpack.c.h.b16 %v5903
    %v6091 = vunpack.c.l.b16 %v5904
    %v6092 = vunpack.c.h.b16 %v5904
    %v6093 = vunpack.c.l.b16 %v5905
    %v6094 = vunpack.c.h.b16 %v5905
    %v6095 = vunpack.c.l.b16 %v5906
    %v6096 = vunpack.c.h.b16 %v5906
    %v6097 = vunpack.c.l.b16 %v5907
    %v6098 = vunpack.c.h.b16 %v5907
    %v6099 = vunpack.c.l.b16 %v5908
    %v6100 = vunpack.c.h.b16 %v5908
    %v6101 = vunpack.c.l.b16 %v5909
    %v6102 = vunpack.c.h.b16 %v5909
    %v6103 = vunpack.c.l.b16 %v5910
    %v6104 = vunpack.c.h.b16 %v5910
    %v6105 = vunpack.c.l.b16 %v5911
    %v6106 = vunpack.c.h.b16 %v5911
    %v6107 = vunpack.c.l.b16 %v5912
    %v6108 = vunpack.c.h.b16 %v5912
    %v6109 = vunpack.c.l.b16 %v5913
    %v6110 = vunpack.c.h.b16 %v5913
    %v6111 = vunpack.c.l.b16 %v5914
    %v6112 = vunpack.c.h.b16 %v5914
    %v6113 = vunpack.c.l.b16 %v5915
    %v6114 = vunpack.c.h.b16 %v5915
    %v6115 = vunpack.c.l.b16 %v5916
    %v6116 = vunpack.c.h.b16 %v5916
    %v6117 = vunpack.c.l.b16 %v5917
    %v6118 = vunpack.c.h.b16 %v5917
    %v6119 = vunpack.c.l.b16 %v5918
    %v6120 = vunpack.c.h.b16 %v5918
    %v6121 = vunpack.c.l.b16 %v5919
    %v6122 = vunpack.c.h.b16 %v5919
    %v6123 = vunpack.c.l.b16 %v5920
    %v6124 = vunpack.c.h.b16 %v5920
    %v6125 = vunpack.c.l.b16 %v5921
    %v6126 = vunpack.c.h.b16 %v5921
    %v6127 = vunpack.c.l.b16 %v5922
    %v6128 = vunpack.c.h.b16 %v5922
    %v6129 = vunpack.c.l.b16 %v5923
    %v6130 = vunpack.c.h.b16 %v5923
    %v6131 = vunpack.c.l.b16 %v5924
    %v6132 = vunpack.c.h.b16 %v5924
    %v6133 = vunpack.c.l.b16 %v5925
    %v6134 = vunpack.c.h.b16 %v5925
    %v6135 = vunpack.c.l.b16 %v5926
    %v6136 = vunpack.c.h.b16 %v5926
    %v6137 = vunpack.c.l.b16 %v5927
    %v6138 = vunpack.c.h.b16 %v5927
    %v6139 = vunpack.c.l.b16 %v5928
    %v6140 = vunpack.c.h.b16 %v5928
    %v6141 = vunpack.c.l.b16 %v5929
    %v6142 = vunpack.c.h.b16 %v5929
    %v6143 = vunpack.c.l.b16 %v5930
    %v6144 = vunpack.c.h.b16 %v5930
    %v6145 = vpack.c.b16 %v6021, %v6017
    %v6146 = vpack.c.b16 %v6022, %v6018
    %v6147 = vpack.c.b16 %v6023, %v6019
    %v6148 = vpack.c.b16 %v6024, %v6020
    %v6149 = vpack.c.b16 %v6029, %v6025
    %v6150 = vpack.c.b16 %v6030, %v6026
    %v6151 = vpack.c.b16 %v6031, %v6027
    %v6152 = vpack.c.b16 %v6032, %v6028
    %v6153 = vpack.c.b16 %v6037, %v6033
    %v6154 = vpack.c.b16 %v6038, %v6034
    %v6155 = vpack.c.b16 %v6039, %v6035
    %v6156 = vpack.c.b16 %v6040, %v6036
    %v6157 = vpack.c.b16 %v6045, %v6041
    %v6158 = vpack.c.b16 %v6046, %v6042
    %v6159 = vpack.c.b16 %v6047, %v6043
    %v6160 = vpack.c.b16 %v6048, %v6044
    %v6161 = vpack.c.b16 %v6053, %v6049
    %v6162 = vpack.c.b16 %v6054, %v6050
    %v6163 = vpack.c.b16 %v6055, %v6051
    %v6164 = vpack.c.b16 %v6056, %v6052
    %v6165 = vpack.c.b16 %v6061, %v6057
    %v6166 = vpack.c.b16 %v6062, %v6058
    %v6167 = vpack.c.b16 %v6063, %v6059
    %v6168 = vpack.c.b16 %v6064, %v6060
    %v6169 = vpack.c.b16 %v6069, %v6065
    %v6170 = vpack.c.b16 %v6070, %v6066
    %v6171 = vpack.c.b16 %v6071, %v6067
    %v6172 = vpack.c.b16 %v6072, %v6068
    %v6173 = vpack.c.b16 %v6077, %v6073
    %v6174 = vpack.c.b16 %v6078, %v6074
    %v6175 = vpack.c.b16 %v6079, %v6075
    %v6176 = vpack.c.b16 %v6080, %v6076
    %v6177 = vpack.c.b16 %v6085, %v6081
    %v6178 = vpack.c.b16 %v6086, %v6082
    %v6179 = vpack.c.b16 %v6087, %v6083
    %v6180 = vpack.c.b16 %v6088, %v6084
    %v6181 = vpack.c.b16 %v6093, %v6089
    %v6182 = vpack.c.b16 %v6094, %v6090
    %v6183 = vpack.c.b16 %v6095, %v6091
    %v6184 = vpack.c.b16 %v6096, %v6092
    %v6185 = vpack.c.b16 %v6101, %v6097
    %v6186 = vpack.c.b16 %v6102, %v6098
    %v6187 = vpack.c.b16 %v6103, %v6099
    %v6188 = vpack.c.b16 %v6104, %v6100
    %v6189 = vpack.c.b16 %v6109, %v6105
    %v6190 = vpack.c.b16 %v6110, %v6106
    %v6191 = vpack.c.b16 %v6111, %v6107
    %v6192 = vpack.c.b16 %v6112, %v6108
    %v6193 = vpack.c.b16 %v6117, %v6113
    %v6194 = vpack.c.b16 %v6118, %v6114
    %v6195 = vpack.c.b16 %v6119, %v6115
    %v6196 = vpack.c.b16 %v6120, %v6116
    %v6197 = vpack.c.b16 %v6125, %v6121
    %v6198 = vpack.c.b16 %v6126, %v6122
    %v6199 = vpack.c.b16 %v6127, %v6123
    %v6200 = vpack.c.b16 %v6128, %v6124
    %v6201 = vpack.c.b16 %v6133, %v6129
    %v6202 = vpack.c.b16 %v6134, %v6130
    %v6203 = vpack.c.b16 %v6135, %v6131
    %v6204 = vpack.c.b16 %v6136, %v6132
    %v6205 = vpack.c.b16 %v6141, %v6137
    %v6206 = vpack.c.b16 %v6142, %v6138
    %v6207 = vpack.c.b16 %v6143, %v6139
    %v6208 = vpack.c.b16 %v6144, %v6140
    %6273 = vmatprep.subr.bf16.mxu0 %v6174
    %6274 = vmatpush1.bf16.msra.mxu0 %v6173
    %6275 = vmatprep.subr.bf16.mxu0 %v6170
    %6276 = vmatpush1.bf16.msra.mxu0 %v6169
    %6277 = vmatprep.subr.bf16.mxu0 %v6166
    %6278 = vmatpush1.bf16.msra.mxu0 %v6165
    %6279 = vmatprep.subr.bf16.mxu0 %v6162
    %6280 = vmatpush1.bf16.msra.mxu0 %v6161
    %6281 = vmatprep.subr.bf16.mxu0 %v6158
    %6282 = vmatpush1.bf16.msra.mxu0 %v6157
    %6283 = vmatprep.subr.bf16.mxu0 %v6154
    %6284 = vmatpush1.bf16.msra.mxu0 %v6153
    %6285 = vmatprep.subr.bf16.mxu0 %v6150
    %6286 = vmatpush1.bf16.msra.mxu0 %v6149
    %6287 = vmatprep.subr.bf16.mxu0 %v6146
    %6288 = vmatpush1.bf16.msra.mxu0 %v6145
    %6289 = vmatprep.subr.bf16.mxu0 %v6206
    %6290 = vmatpush2.bf16.msra.mxu0 %v6205
    %6291 = vmatprep.subr.bf16.mxu0 %v6202
    %6292 = vmatpush2.bf16.msra.mxu0 %v6201
    %6293 = vmatprep.subr.bf16.mxu0 %v6198
    %6294 = vmatpush2.bf16.msra.mxu0 %v6197
    %6295 = vmatprep.subr.bf16.mxu0 %v6194
    %6296 = vmatpush2.bf16.msra.mxu0 %v6193
    %6297 = vmatprep.subr.bf16.mxu0 %v6190
    %6298 = vmatpush2.bf16.msra.mxu0 %v6189
    %6299 = vmatprep.subr.bf16.mxu0 %v6186
    %6300 = vmatpush2.bf16.msra.mxu0 %v6185
    %6301 = vmatprep.subr.bf16.mxu0 %v6182
    %6302 = vmatpush2.bf16.msra.mxu0 %v6181
    %6303 = vmatprep.subr.bf16.mxu0 %v6178
    %6304 = vmatpush2.bf16.msra.mxu0 %v6177
    %6305 = vmatprep.mubr.bf16.mxu0 %v5866
    %6306 = vmatmul.mubr.bf16.gmra.mxu0 %v5865
    %v6307 = vpop.f32.mrf.mxu0
    %v6308 = vadd.f32 %v5936, %v6307
    %v6309 = vpop.f32.mrf.mxu0
    %v6310 = vadd.f32 %v5940, %v6309
    %v6311 = vpop.f32.mrf.mxu0
    %v6312 = vadd.f32 %v5936, %v6311
    %v6313 = vpop.f32.mrf.mxu0
    %v6314 = vadd.f32 %v5940, %v6313
    %6315 = vdwg.mxu0
    %6316 = vmatprep.subr.bf16.mxu0 %v6176
    %6317 = vmatpush1.bf16.msra.mxu0 %v6175
    %6318 = vmatprep.subr.bf16.mxu0 %v6172
    %6319 = vmatpush1.bf16.msra.mxu0 %v6171
    %6320 = vmatprep.subr.bf16.mxu0 %v6168
    %6321 = vmatpush1.bf16.msra.mxu0 %v6167
    %6322 = vmatprep.subr.bf16.mxu0 %v6164
    %6323 = vmatpush1.bf16.msra.mxu0 %v6163
    %6324 = vmatprep.subr.bf16.mxu0 %v6160
    %6325 = vmatpush1.bf16.msra.mxu0 %v6159
    %6326 = vmatprep.subr.bf16.mxu0 %v6156
    %6327 = vmatpush1.bf16.msra.mxu0 %v6155
    %6328 = vmatprep.subr.bf16.mxu0 %v6152
    %6329 = vmatpush1.bf16.msra.mxu0 %v6151
    %6330 = vmatprep.subr.bf16.mxu0 %v6148
    %6331 = vmatpush1.bf16.msra.mxu0 %v6147
    %6332 = vmatprep.subr.bf16.mxu0 %v6208
    %6333 = vmatpush2.bf16.msra.mxu0 %v6207
    %6334 = vmatprep.subr.bf16.mxu0 %v6204
    %6335 = vmatpush2.bf16.msra.mxu0 %v6203
    %6336 = vmatprep.subr.bf16.mxu0 %v6200
    %6337 = vmatpush2.bf16.msra.mxu0 %v6199
    %6338 = vmatprep.subr.bf16.mxu0 %v6196
    %6339 = vmatpush2.bf16.msra.mxu0 %v6195
    %6340 = vmatprep.subr.bf16.mxu0 %v6192
    %6341 = vmatpush2.bf16.msra.mxu0 %v6191
    %6342 = vmatprep.subr.bf16.mxu0 %v6188
    %6343 = vmatpush2.bf16.msra.mxu0 %v6187
    %6344 = vmatprep.subr.bf16.mxu0 %v6184
    %6345 = vmatpush2.bf16.msra.mxu0 %v6183
    %6346 = vmatprep.subr.bf16.mxu0 %v6180
    %6347 = vmatpush2.bf16.msra.mxu0 %v6179
    %6348 = vmatprep.mubr.bf16.mxu0 %v5866
    %6349 = vmatmul.mubr.bf16.gmra.mxu0 %v5865
    %v6350 = vpop.f32.mrf.mxu0
    %v6351 = vadd.f32 %v5944, %v6350
    %v6352 = vpop.f32.mrf.mxu0
    %v6353 = vadd.f32 %v5948, %v6352
    %v6354 = vpop.f32.mrf.mxu0
    %v6355 = vadd.f32 %v5944, %v6354
    %v6356 = vpop.f32.mrf.mxu0
    %v6357 = vadd.f32 %v5948, %v6356
    %6358 = vdwg.mxu0
    %6359 = vst [vmem:[#allocation4] sm:$0xff] %v6308
    %6360 = vst [vmem:[#allocation4 + $0x8] sm:$0xff] %v6310
    %6361 = vst [vmem:[#allocation4 + $0x10] sm:$0xff] %v6351
    %6362 = vst [vmem:[#allocation4 + $0x18] sm:$0xff] %v6353
    %6363 = vst [vmem:[#allocation4 + $0x20] sm:$0xff] %v6312
    %6364 = vst [vmem:[#allocation4 + $0x28] sm:$0xff] %v6314
    %6365 = vst [vmem:[#allocation4 + $0x30] sm:$0xff] %v6355
    %6366 = vst [vmem:[#allocation4 + $0x38] sm:$0xff] %v6357
    %v6367 = vld [vmem:[#allocation13] sm:$0xff]
    %v6368 = vld [vmem:[#allocation13 + $0x8] sm:$0xff]
    %v6369 = vld [vmem:[#allocation13 + $0x10] sm:$0xff]
    %v6370 = vld [vmem:[#allocation13 + $0x18] sm:$0xff]
    %v6371 = vld [vmem:[#allocation13 + $0x20] sm:$0xff]
    %v6372 = vld [vmem:[#allocation13 + $0x28] sm:$0xff]
    %v6373 = vld [vmem:[#allocation13 + $0x30] sm:$0xff]
    %v6374 = vld [vmem:[#allocation13 + $0x38] sm:$0xff]
    %v6375 = vld [vmem:[#allocation13 + $0x40] sm:$0xff]
    %v6376 = vld [vmem:[#allocation13 + $0x48] sm:$0xff]
    %v6377 = vld [vmem:[#allocation13 + $0x50] sm:$0xff]
    %v6378 = vld [vmem:[#allocation13 + $0x58] sm:$0xff]
    %v6379 = vld [vmem:[#allocation13 + $0x60] sm:$0xff]
    %v6380 = vld [vmem:[#allocation13 + $0x68] sm:$0xff]
    %v6381 = vld [vmem:[#allocation13 + $0x70] sm:$0xff]
    %v6382 = vld [vmem:[#allocation13 + $0x78] sm:$0xff]
    %v6383 = vld [vmem:[#allocation13 + $0x80] sm:$0xff]
    %v6384 = vld [vmem:[#allocation13 + $0x88] sm:$0xff]
    %v6385 = vld [vmem:[#allocation13 + $0x90] sm:$0xff]
    %v6386 = vld [vmem:[#allocation13 + $0x98] sm:$0xff]
    %v6387 = vld [vmem:[#allocation13 + $0xa0] sm:$0xff]
    %v6388 = vld [vmem:[#allocation13 + $0xa8] sm:$0xff]
    %v6389 = vld [vmem:[#allocation13 + $0xb0] sm:$0xff]
    %v6390 = vld [vmem:[#allocation13 + $0xb8] sm:$0xff]
    %v6391 = vld [vmem:[#allocation13 + $0xc0] sm:$0xff]
    %v6392 = vld [vmem:[#allocation13 + $0xc8] sm:$0xff]
    %v6393 = vld [vmem:[#allocation13 + $0xd0] sm:$0xff]
    %v6394 = vld [vmem:[#allocation13 + $0xd8] sm:$0xff]
    %v6395 = vld [vmem:[#allocation13 + $0xe0] sm:$0xff]
    %v6396 = vld [vmem:[#allocation13 + $0xe8] sm:$0xff]
    %v6397 = vld [vmem:[#allocation13 + $0xf0] sm:$0xff]
    %v6398 = vld [vmem:[#allocation13 + $0xf8] sm:$0xff]
    %v6399 = vld [vmem:[#allocation13 + $0x100] sm:$0xff]
    %v6400 = vld [vmem:[#allocation13 + $0x108] sm:$0xff]
    %v6401 = vld [vmem:[#allocation13 + $0x110] sm:$0xff]
    %v6402 = vld [vmem:[#allocation13 + $0x118] sm:$0xff]
    %v6403 = vld [vmem:[#allocation13 + $0x120] sm:$0xff]
    %v6404 = vld [vmem:[#allocation13 + $0x128] sm:$0xff]
    %v6405 = vld [vmem:[#allocation13 + $0x130] sm:$0xff]
    %v6406 = vld [vmem:[#allocation13 + $0x138] sm:$0xff]
    %v6407 = vld [vmem:[#allocation13 + $0x140] sm:$0xff]
    %v6408 = vld [vmem:[#allocation13 + $0x148] sm:$0xff]
    %v6409 = vld [vmem:[#allocation13 + $0x150] sm:$0xff]
    %v6410 = vld [vmem:[#allocation13 + $0x158] sm:$0xff]
    %v6411 = vld [vmem:[#allocation13 + $0x160] sm:$0xff]
    %v6412 = vld [vmem:[#allocation13 + $0x168] sm:$0xff]
    %v6413 = vld [vmem:[#allocation13 + $0x170] sm:$0xff]
    %v6414 = vld [vmem:[#allocation13 + $0x178] sm:$0xff]
    %v6415 = vld [vmem:[#allocation13 + $0x180] sm:$0xff]
    %v6416 = vld [vmem:[#allocation13 + $0x188] sm:$0xff]
    %v6417 = vld [vmem:[#allocation13 + $0x190] sm:$0xff]
    %v6418 = vld [vmem:[#allocation13 + $0x198] sm:$0xff]
    %v6419 = vld [vmem:[#allocation13 + $0x1a0] sm:$0xff]
    %v6420 = vld [vmem:[#allocation13 + $0x1a8] sm:$0xff]
    %v6421 = vld [vmem:[#allocation13 + $0x1b0] sm:$0xff]
    %v6422 = vld [vmem:[#allocation13 + $0x1b8] sm:$0xff]
    %v6423 = vld [vmem:[#allocation13 + $0x1c0] sm:$0xff]
    %v6424 = vld [vmem:[#allocation13 + $0x1c8] sm:$0xff]
    %v6425 = vld [vmem:[#allocation13 + $0x1d0] sm:$0xff]
    %v6426 = vld [vmem:[#allocation13 + $0x1d8] sm:$0xff]
    %v6427 = vld [vmem:[#allocation13 + $0x1e0] sm:$0xff]
    %v6428 = vld [vmem:[#allocation13 + $0x1e8] sm:$0xff]
    %v6429 = vld [vmem:[#allocation13 + $0x1f0] sm:$0xff]
    %v6430 = vld [vmem:[#allocation13 + $0x1f8] sm:$0xff]
    %v6431 = vld [vmem:[%s8] sm:$0xf]
    %v6433 = vlaneseq
    %v6434 = vshrl.u32 %v6433, 7
    %v6435 = vsub.s32 0, %v6434
    %v6436 = vrot.slane %v6431, %v6435
    %v6437 = vlaneseq
    %v6438 = vshrl.u32 %v6437, 7
    %v6439 = vsub.s32 1, %v6438
    %v6440 = vrot.slane %v6431, %v6439
    %v6441 = vlaneseq
    %v6442 = vshrl.u32 %v6441, 7
    %v6443 = vsub.s32 2, %v6442
    %v6444 = vrot.slane %v6431, %v6443
    %v6445 = vlaneseq
    %v6446 = vshrl.u32 %v6445, 7
    %v6447 = vsub.s32 3, %v6446
    %v6448 = vrot.slane %v6431, %v6447
    %v6455 = vrot.slane %v5865, 7
    %v6456 = vrot.slane %v5866, 7
    %v6523 = vunpack.c.l.b16 %v6367
    %v6524 = vunpack.c.h.b16 %v6367
    %v6525 = vunpack.c.l.b16 %v6368
    %v6526 = vunpack.c.h.b16 %v6368
    %v6527 = vunpack.c.l.b16 %v6369
    %v6528 = vunpack.c.h.b16 %v6369
    %v6529 = vunpack.c.l.b16 %v6370
    %v6530 = vunpack.c.h.b16 %v6370
    %v6531 = vunpack.c.l.b16 %v6371
    %v6532 = vunpack.c.h.b16 %v6371
    %v6533 = vunpack.c.l.b16 %v6372
    %v6534 = vunpack.c.h.b16 %v6372
    %v6535 = vunpack.c.l.b16 %v6373
    %v6536 = vunpack.c.h.b16 %v6373
    %v6537 = vunpack.c.l.b16 %v6374
    %v6538 = vunpack.c.h.b16 %v6374
    %v6539 = vunpack.c.l.b16 %v6375
    %v6540 = vunpack.c.h.b16 %v6375
    %v6541 = vunpack.c.l.b16 %v6376
    %v6542 = vunpack.c.h.b16 %v6376
    %v6543 = vunpack.c.l.b16 %v6377
    %v6544 = vunpack.c.h.b16 %v6377
    %v6545 = vunpack.c.l.b16 %v6378
    %v6546 = vunpack.c.h.b16 %v6378
    %v6547 = vunpack.c.l.b16 %v6379
    %v6548 = vunpack.c.h.b16 %v6379
    %v6549 = vunpack.c.l.b16 %v6380
    %v6550 = vunpack.c.h.b16 %v6380
    %v6551 = vunpack.c.l.b16 %v6381
    %v6552 = vunpack.c.h.b16 %v6381
    %v6553 = vunpack.c.l.b16 %v6382
    %v6554 = vunpack.c.h.b16 %v6382
    %v6555 = vunpack.c.l.b16 %v6383
    %v6556 = vunpack.c.h.b16 %v6383
    %v6557 = vunpack.c.l.b16 %v6384
    %v6558 = vunpack.c.h.b16 %v6384
    %v6559 = vunpack.c.l.b16 %v6385
    %v6560 = vunpack.c.h.b16 %v6385
    %v6561 = vunpack.c.l.b16 %v6386
    %v6562 = vunpack.c.h.b16 %v6386
    %v6563 = vunpack.c.l.b16 %v6387
    %v6564 = vunpack.c.h.b16 %v6387
    %v6565 = vunpack.c.l.b16 %v6388
    %v6566 = vunpack.c.h.b16 %v6388
    %v6567 = vunpack.c.l.b16 %v6389
    %v6568 = vunpack.c.h.b16 %v6389
    %v6569 = vunpack.c.l.b16 %v6390
    %v6570 = vunpack.c.h.b16 %v6390
    %v6571 = vunpack.c.l.b16 %v6391
    %v6572 = vunpack.c.h.b16 %v6391
    %v6573 = vunpack.c.l.b16 %v6392
    %v6574 = vunpack.c.h.b16 %v6392
    %v6575 = vunpack.c.l.b16 %v6393
    %v6576 = vunpack.c.h.b16 %v6393
    %v6577 = vunpack.c.l.b16 %v6394
    %v6578 = vunpack.c.h.b16 %v6394
    %v6579 = vunpack.c.l.b16 %v6395
    %v6580 = vunpack.c.h.b16 %v6395
    %v6581 = vunpack.c.l.b16 %v6396
    %v6582 = vunpack.c.h.b16 %v6396
    %v6583 = vunpack.c.l.b16 %v6397
    %v6584 = vunpack.c.h.b16 %v6397
    %v6585 = vunpack.c.l.b16 %v6398
    %v6586 = vunpack.c.h.b16 %v6398
    %v6587 = vunpack.c.l.b16 %v6399
    %v6588 = vunpack.c.h.b16 %v6399
    %v6589 = vunpack.c.l.b16 %v6400
    %v6590 = vunpack.c.h.b16 %v6400
    %v6591 = vunpack.c.l.b16 %v6401
    %v6592 = vunpack.c.h.b16 %v6401
    %v6593 = vunpack.c.l.b16 %v6402
    %v6594 = vunpack.c.h.b16 %v6402
    %v6595 = vunpack.c.l.b16 %v6403
    %v6596 = vunpack.c.h.b16 %v6403
    %v6597 = vunpack.c.l.b16 %v6404
    %v6598 = vunpack.c.h.b16 %v6404
    %v6599 = vunpack.c.l.b16 %v6405
    %v6600 = vunpack.c.h.b16 %v6405
    %v6601 = vunpack.c.l.b16 %v6406
    %v6602 = vunpack.c.h.b16 %v6406
    %v6603 = vunpack.c.l.b16 %v6407
    %v6604 = vunpack.c.h.b16 %v6407
    %v6605 = vunpack.c.l.b16 %v6408
    %v6606 = vunpack.c.h.b16 %v6408
    %v6607 = vunpack.c.l.b16 %v6409
    %v6608 = vunpack.c.h.b16 %v6409
    %v6609 = vunpack.c.l.b16 %v6410
    %v6610 = vunpack.c.h.b16 %v6410
    %v6611 = vunpack.c.l.b16 %v6411
    %v6612 = vunpack.c.h.b16 %v6411
    %v6613 = vunpack.c.l.b16 %v6412
    %v6614 = vunpack.c.h.b16 %v6412
    %v6615 = vunpack.c.l.b16 %v6413
    %v6616 = vunpack.c.h.b16 %v6413
    %v6617 = vunpack.c.l.b16 %v6414
    %v6618 = vunpack.c.h.b16 %v6414
    %v6619 = vunpack.c.l.b16 %v6415
    %v6620 = vunpack.c.h.b16 %v6415
    %v6621 = vunpack.c.l.b16 %v6416
    %v6622 = vunpack.c.h.b16 %v6416
    %v6623 = vunpack.c.l.b16 %v6417
    %v6624 = vunpack.c.h.b16 %v6417
    %v6625 = vunpack.c.l.b16 %v6418
    %v6626 = vunpack.c.h.b16 %v6418
    %v6627 = vunpack.c.l.b16 %v6419
    %v6628 = vunpack.c.h.b16 %v6419
    %v6629 = vunpack.c.l.b16 %v6420
    %v6630 = vunpack.c.h.b16 %v6420
    %v6631 = vunpack.c.l.b16 %v6421
    %v6632 = vunpack.c.h.b16 %v6421
    %v6633 = vunpack.c.l.b16 %v6422
    %v6634 = vunpack.c.h.b16 %v6422
    %v6635 = vunpack.c.l.b16 %v6423
    %v6636 = vunpack.c.h.b16 %v6423
    %v6637 = vunpack.c.l.b16 %v6424
    %v6638 = vunpack.c.h.b16 %v6424
    %v6639 = vunpack.c.l.b16 %v6425
    %v6640 = vunpack.c.h.b16 %v6425
    %v6641 = vunpack.c.l.b16 %v6426
    %v6642 = vunpack.c.h.b16 %v6426
    %v6643 = vunpack.c.l.b16 %v6427
    %v6644 = vunpack.c.h.b16 %v6427
    %v6645 = vunpack.c.l.b16 %v6428
    %v6646 = vunpack.c.h.b16 %v6428
    %v6647 = vunpack.c.l.b16 %v6429
    %v6648 = vunpack.c.h.b16 %v6429
    %v6649 = vunpack.c.l.b16 %v6430
    %v6650 = vunpack.c.h.b16 %v6430
    %v6651 = vpack.c.b16 %v6527, %v6523
    %v6652 = vpack.c.b16 %v6528, %v6524
    %v6653 = vpack.c.b16 %v6529, %v6525
    %v6654 = vpack.c.b16 %v6530, %v6526
    %v6655 = vpack.c.b16 %v6535, %v6531
    %v6656 = vpack.c.b16 %v6536, %v6532
    %v6657 = vpack.c.b16 %v6537, %v6533
    %v6658 = vpack.c.b16 %v6538, %v6534
    %v6659 = vpack.c.b16 %v6543, %v6539
    %v6660 = vpack.c.b16 %v6544, %v6540
    %v6661 = vpack.c.b16 %v6545, %v6541
    %v6662 = vpack.c.b16 %v6546, %v6542
    %v6663 = vpack.c.b16 %v6551, %v6547
    %v6664 = vpack.c.b16 %v6552, %v6548
    %v6665 = vpack.c.b16 %v6553, %v6549
    %v6666 = vpack.c.b16 %v6554, %v6550
    %v6667 = vpack.c.b16 %v6559, %v6555
    %v6668 = vpack.c.b16 %v6560, %v6556
    %v6669 = vpack.c.b16 %v6561, %v6557
    %v6670 = vpack.c.b16 %v6562, %v6558
    %v6671 = vpack.c.b16 %v6567, %v6563
    %v6672 = vpack.c.b16 %v6568, %v6564
    %v6673 = vpack.c.b16 %v6569, %v6565
    %v6674 = vpack.c.b16 %v6570, %v6566
    %v6675 = vpack.c.b16 %v6575, %v6571
    %v6676 = vpack.c.b16 %v6576, %v6572
    %v6677 = vpack.c.b16 %v6577, %v6573
    %v6678 = vpack.c.b16 %v6578, %v6574
    %v6679 = vpack.c.b16 %v6583, %v6579
    %v6680 = vpack.c.b16 %v6584, %v6580
    %v6681 = vpack.c.b16 %v6585, %v6581
    %v6682 = vpack.c.b16 %v6586, %v6582
    %v6683 = vpack.c.b16 %v6591, %v6587
    %v6684 = vpack.c.b16 %v6592, %v6588
    %v6685 = vpack.c.b16 %v6593, %v6589
    %v6686 = vpack.c.b16 %v6594, %v6590
    %v6687 = vpack.c.b16 %v6599, %v6595
    %v6688 = vpack.c.b16 %v6600, %v6596
    %v6689 = vpack.c.b16 %v6601, %v6597
    %v6690 = vpack.c.b16 %v6602, %v6598
    %v6691 = vpack.c.b16 %v6607, %v6603
    %v6692 = vpack.c.b16 %v6608, %v6604
    %v6693 = vpack.c.b16 %v6609, %v6605
    %v6694 = vpack.c.b16 %v6610, %v6606
    %v6695 = vpack.c.b16 %v6615, %v6611
    %v6696 = vpack.c.b16 %v6616, %v6612
    %v6697 = vpack.c.b16 %v6617, %v6613
    %v6698 = vpack.c.b16 %v6618, %v6614
    %v6699 = vpack.c.b16 %v6623, %v6619
    %v6700 = vpack.c.b16 %v6624, %v6620
    %v6701 = vpack.c.b16 %v6625, %v6621
    %v6702 = vpack.c.b16 %v6626, %v6622
    %v6703 = vpack.c.b16 %v6631, %v6627
    %v6704 = vpack.c.b16 %v6632, %v6628
    %v6705 = vpack.c.b16 %v6633, %v6629
    %v6706 = vpack.c.b16 %v6634, %v6630
    %v6707 = vpack.c.b16 %v6639, %v6635
    %v6708 = vpack.c.b16 %v6640, %v6636
    %v6709 = vpack.c.b16 %v6641, %v6637
    %v6710 = vpack.c.b16 %v6642, %v6638
    %v6711 = vpack.c.b16 %v6647, %v6643
    %v6712 = vpack.c.b16 %v6648, %v6644
    %v6713 = vpack.c.b16 %v6649, %v6645
    %v6714 = vpack.c.b16 %v6650, %v6646
    %6779 = vmatprep.subr.bf16.mxu0 %v6680
    %6780 = vmatpush1.bf16.msra.mxu0 %v6679
    %6781 = vmatprep.subr.bf16.mxu0 %v6676
    %6782 = vmatpush1.bf16.msra.mxu0 %v6675
    %6783 = vmatprep.subr.bf16.mxu0 %v6672
    %6784 = vmatpush1.bf16.msra.mxu0 %v6671
    %6785 = vmatprep.subr.bf16.mxu0 %v6668
    %6786 = vmatpush1.bf16.msra.mxu0 %v6667
    %6787 = vmatprep.subr.bf16.mxu0 %v6664
    %6788 = vmatpush1.bf16.msra.mxu0 %v6663
    %6789 = vmatprep.subr.bf16.mxu0 %v6660
    %6790 = vmatpush1.bf16.msra.mxu0 %v6659
    %6791 = vmatprep.subr.bf16.mxu0 %v6656
    %6792 = vmatpush1.bf16.msra.mxu0 %v6655
    %6793 = vmatprep.subr.bf16.mxu0 %v6652
    %6794 = vmatpush1.bf16.msra.mxu0 %v6651
    %6795 = vmatprep.subr.bf16.mxu0 %v6712
    %6796 = vmatpush2.bf16.msra.mxu0 %v6711
    %6797 = vmatprep.subr.bf16.mxu0 %v6708
    %6798 = vmatpush2.bf16.msra.mxu0 %v6707
    %6799 = vmatprep.subr.bf16.mxu0 %v6704
    %6800 = vmatpush2.bf16.msra.mxu0 %v6703
    %6801 = vmatprep.subr.bf16.mxu0 %v6700
    %6802 = vmatpush2.bf16.msra.mxu0 %v6699
    %6803 = vmatprep.subr.bf16.mxu0 %v6696
    %6804 = vmatpush2.bf16.msra.mxu0 %v6695
    %6805 = vmatprep.subr.bf16.mxu0 %v6692
    %6806 = vmatpush2.bf16.msra.mxu0 %v6691
    %6807 = vmatprep.subr.bf16.mxu0 %v6688
    %6808 = vmatpush2.bf16.msra.mxu0 %v6687
    %6809 = vmatprep.subr.bf16.mxu0 %v6684
    %6810 = vmatpush2.bf16.msra.mxu0 %v6683
    %6811 = vmatprep.mubr.bf16.mxu0 %v6456
    %6812 = vmatmul.mubr.bf16.gmra.mxu0 %v6455
    %v6813 = vpop.f32.mrf.mxu0
    %v6814 = vadd.f32 %v6436, %v6813
    %v6815 = vpop.f32.mrf.mxu0
    %v6816 = vadd.f32 %v6440, %v6815
    %v6817 = vpop.f32.mrf.mxu0
    %v6818 = vpop.f32.mrf.mxu0
    %6819 = vdwg.mxu0
    %6820 = vmatprep.subr.bf16.mxu0 %v6682
    %6821 = vmatpush1.bf16.msra.mxu0 %v6681
    %6822 = vmatprep.subr.bf16.mxu0 %v6678
    %6823 = vmatpush1.bf16.msra.mxu0 %v6677
    %6824 = vmatprep.subr.bf16.mxu0 %v6674
    %6825 = vmatpush1.bf16.msra.mxu0 %v6673
    %6826 = vmatprep.subr.bf16.mxu0 %v6670
    %6827 = vmatpush1.bf16.msra.mxu0 %v6669
    %6828 = vmatprep.subr.bf16.mxu0 %v6666
    %6829 = vmatpush1.bf16.msra.mxu0 %v6665
    %6830 = vmatprep.subr.bf16.mxu0 %v6662
    %6831 = vmatpush1.bf16.msra.mxu0 %v6661
    %6832 = vmatprep.subr.bf16.mxu0 %v6658
    %6833 = vmatpush1.bf16.msra.mxu0 %v6657
    %6834 = vmatprep.subr.bf16.mxu0 %v6654
    %6835 = vmatpush1.bf16.msra.mxu0 %v6653
    %6836 = vmatprep.subr.bf16.mxu0 %v6714
    %6837 = vmatpush2.bf16.msra.mxu0 %v6713
    %6838 = vmatprep.subr.bf16.mxu0 %v6710
    %6839 = vmatpush2.bf16.msra.mxu0 %v6709
    %6840 = vmatprep.subr.bf16.mxu0 %v6706
    %6841 = vmatpush2.bf16.msra.mxu0 %v6705
    %6842 = vmatprep.subr.bf16.mxu0 %v6702
    %6843 = vmatpush2.bf16.msra.mxu0 %v6701
    %6844 = vmatprep.subr.bf16.mxu0 %v6698
    %6845 = vmatpush2.bf16.msra.mxu0 %v6697
    %6846 = vmatprep.subr.bf16.mxu0 %v6694
    %6847 = vmatpush2.bf16.msra.mxu0 %v6693
    %6848 = vmatprep.subr.bf16.mxu0 %v6690
    %6849 = vmatpush2.bf16.msra.mxu0 %v6689
    %6850 = vmatprep.subr.bf16.mxu0 %v6686
    %6851 = vmatpush2.bf16.msra.mxu0 %v6685
    %6852 = vmatprep.mubr.bf16.mxu0 %v6456
    %6853 = vmatmul.mubr.bf16.gmra.mxu0 %v6455
    %v6854 = vpop.f32.mrf.mxu0
    %v6855 = vadd.f32 %v6444, %v6854
    %v6856 = vpop.f32.mrf.mxu0
    %v6857 = vadd.f32 %v6448, %v6856
    %v6858 = vpop.f32.mrf.mxu0
    %v6859 = vpop.f32.mrf.mxu0
    %6860 = vdwg.mxu0
    %v6861 = vxor.u32 %v6814, 2147483648
    %v6862 = vxor.u32 %v6816, 2147483648
    %v6863 = vxor.u32 %v6855, 2147483648
    %v6864 = vmul.f32 %v6861, 1.442695
    %v6865 = vpow.pop %v6864
    %v6866 = vmul.f32 %v6862, 1.442695
    %v6867 = vpow.pop %v6866
    %v6868 = vmul.f32 %v6863, 1.442695
    %v6869 = vpow.pop %v6868
    %v6870 = vadd.f32 %v6865, 1.0
    %v6871 = vadd.f32 %v6867, 1.0
    %v6872 = vadd.f32 %v6869, 1.0
    %v6873 = vrcp.pop %v6870
    %v6874 = vmul.f32 1.0, %v6873
    %v6875 = vrcp.pop %v6871
    %v6876 = vmul.f32 1.0, %v6875
    %v6877 = vrcp.pop %v6872
    %v6878 = vmul.f32 1.0, %v6877
    %v6879 = vtanh.pop %v6857
    %v6880 = vmul.f32 %v6876, 0.0
    %v6881 = vmul.f32 %v6874, %v6879
    %v6882 = vadd.f32 %v6880, %v6881
    %v6883 = vtanh.pop %v6882
    %v6884 = vmul.f32 %v6878, %v6883
    %v6885 = vld [vmem:[#allocation4] sm:$0x3]
    %v6886 = vld [vmem:[#allocation4 + $0x8] sm:$0x3]
    %v6887 = vld [vmem:[#allocation4 + $0x10] sm:$0x3]
    %v6888 = vld [vmem:[#allocation4 + $0x18] sm:$0x3]
    %v6889 = vld [vmem:[#allocation14] sm:$0xff]
    %v6890 = vld [vmem:[#allocation14 + $0x8] sm:$0xff]
    %v6891 = vld [vmem:[#allocation14 + $0x10] sm:$0xff]
    %v6892 = vld [vmem:[#allocation14 + $0x18] sm:$0xff]
    %v6893 = vld [vmem:[#allocation14 + $0x20] sm:$0xff]
    %v6894 = vld [vmem:[#allocation14 + $0x28] sm:$0xff]
    %v6895 = vld [vmem:[#allocation14 + $0x30] sm:$0xff]
    %v6896 = vld [vmem:[#allocation14 + $0x38] sm:$0xff]
    %v6897 = vld [vmem:[#allocation14 + $0x40] sm:$0xff]
    %v6898 = vld [vmem:[#allocation14 + $0x48] sm:$0xff]
    %v6899 = vld [vmem:[#allocation14 + $0x50] sm:$0xff]
    %v6900 = vld [vmem:[#allocation14 + $0x58] sm:$0xff]
    %v6901 = vld [vmem:[#allocation14 + $0x60] sm:$0xff]
    %v6902 = vld [vmem:[#allocation14 + $0x68] sm:$0xff]
    %v6903 = vld [vmem:[#allocation14 + $0x70] sm:$0xff]
    %v6904 = vld [vmem:[#allocation14 + $0x78] sm:$0xff]
    %v6905 = vld [vmem:[#allocation14 + $0x80] sm:$0xff]
    %v6906 = vld [vmem:[#allocation14 + $0x88] sm:$0xff]
    %v6907 = vld [vmem:[#allocation14 + $0x90] sm:$0xff]
    %v6908 = vld [vmem:[#allocation14 + $0x98] sm:$0xff]
    %v6909 = vld [vmem:[#allocation14 + $0xa0] sm:$0xff]
    %v6910 = vld [vmem:[#allocation14 + $0xa8] sm:$0xff]
    %v6911 = vld [vmem:[#allocation14 + $0xb0] sm:$0xff]
    %v6912 = vld [vmem:[#allocation14 + $0xb8] sm:$0xff]
    %v6913 = vld [vmem:[#allocation14 + $0xc0] sm:$0xff]
    %v6914 = vld [vmem:[#allocation14 + $0xc8] sm:$0xff]
    %v6915 = vld [vmem:[#allocation14 + $0xd0] sm:$0xff]
    %v6916 = vld [vmem:[#allocation14 + $0xd8] sm:$0xff]
    %v6917 = vld [vmem:[#allocation14 + $0xe0] sm:$0xff]
    %v6918 = vld [vmem:[#allocation14 + $0xe8] sm:$0xff]
    %v6919 = vld [vmem:[#allocation14 + $0xf0] sm:$0xff]
    %v6920 = vld [vmem:[#allocation14 + $0xf8] sm:$0xff]
    %v6953 = vunpack.c.l.b16 %v6889
    %v6954 = vunpack.c.h.b16 %v6889
    %v6955 = vunpack.c.l.b16 %v6890
    %v6956 = vunpack.c.h.b16 %v6890
    %v6957 = vunpack.c.l.b16 %v6891
    %v6958 = vunpack.c.h.b16 %v6891
    %v6959 = vunpack.c.l.b16 %v6892
    %v6960 = vunpack.c.h.b16 %v6892
    %v6961 = vunpack.c.l.b16 %v6893
    %v6962 = vunpack.c.h.b16 %v6893
    %v6963 = vunpack.c.l.b16 %v6894
    %v6964 = vunpack.c.h.b16 %v6894
    %v6965 = vunpack.c.l.b16 %v6895
    %v6966 = vunpack.c.h.b16 %v6895
    %v6967 = vunpack.c.l.b16 %v6896
    %v6968 = vunpack.c.h.b16 %v6896
    %v6969 = vunpack.c.l.b16 %v6897
    %v6970 = vunpack.c.h.b16 %v6897
    %v6971 = vunpack.c.l.b16 %v6898
    %v6972 = vunpack.c.h.b16 %v6898
    %v6973 = vunpack.c.l.b16 %v6899
    %v6974 = vunpack.c.h.b16 %v6899
    %v6975 = vunpack.c.l.b16 %v6900
    %v6976 = vunpack.c.h.b16 %v6900
    %v6977 = vunpack.c.l.b16 %v6901
    %v6978 = vunpack.c.h.b16 %v6901
    %v6979 = vunpack.c.l.b16 %v6902
    %v6980 = vunpack.c.h.b16 %v6902
    %v6981 = vunpack.c.l.b16 %v6903
    %v6982 = vunpack.c.h.b16 %v6903
    %v6983 = vunpack.c.l.b16 %v6904
    %v6984 = vunpack.c.h.b16 %v6904
    %v6985 = vunpack.c.l.b16 %v6905
    %v6986 = vunpack.c.h.b16 %v6905
    %v6987 = vunpack.c.l.b16 %v6906
    %v6988 = vunpack.c.h.b16 %v6906
    %v6989 = vunpack.c.l.b16 %v6907
    %v6990 = vunpack.c.h.b16 %v6907
    %v6991 = vunpack.c.l.b16 %v6908
    %v6992 = vunpack.c.h.b16 %v6908
    %v6993 = vunpack.c.l.b16 %v6909
    %v6994 = vunpack.c.h.b16 %v6909
    %v6995 = vunpack.c.l.b16 %v6910
    %v6996 = vunpack.c.h.b16 %v6910
    %v6997 = vunpack.c.l.b16 %v6911
    %v6998 = vunpack.c.h.b16 %v6911
    %v6999 = vunpack.c.l.b16 %v6912
    %v7000 = vunpack.c.h.b16 %v6912
    %v7001 = vunpack.c.l.b16 %v6913
    %v7002 = vunpack.c.h.b16 %v6913
    %v7003 = vunpack.c.l.b16 %v6914
    %v7004 = vunpack.c.h.b16 %v6914
    %v7005 = vunpack.c.l.b16 %v6915
    %v7006 = vunpack.c.h.b16 %v6915
    %v7007 = vunpack.c.l.b16 %v6916
    %v7008 = vunpack.c.h.b16 %v6916
    %v7009 = vunpack.c.l.b16 %v6917
    %v7010 = vunpack.c.h.b16 %v6917
    %v7011 = vunpack.c.l.b16 %v6918
    %v7012 = vunpack.c.h.b16 %v6918
    %v7013 = vunpack.c.l.b16 %v6919
    %v7014 = vunpack.c.h.b16 %v6919
    %v7015 = vunpack.c.l.b16 %v6920
    %v7016 = vunpack.c.h.b16 %v6920
    %v7017 = vpack.c.b16 %v6957, %v6953
    %v7018 = vpack.c.b16 %v6958, %v6954
    %v7019 = vpack.c.b16 %v6959, %v6955
    %v7020 = vpack.c.b16 %v6960, %v6956
    %v7021 = vpack.c.b16 %v6965, %v6961
    %v7022 = vpack.c.b16 %v6966, %v6962
    %v7023 = vpack.c.b16 %v6967, %v6963
    %v7024 = vpack.c.b16 %v6968, %v6964
    %v7025 = vpack.c.b16 %v6973, %v6969
    %v7026 = vpack.c.b16 %v6974, %v6970
    %v7027 = vpack.c.b16 %v6975, %v6971
    %v7028 = vpack.c.b16 %v6976, %v6972
    %v7029 = vpack.c.b16 %v6981, %v6977
    %v7030 = vpack.c.b16 %v6982, %v6978
    %v7031 = vpack.c.b16 %v6983, %v6979
    %v7032 = vpack.c.b16 %v6984, %v6980
    %v7033 = vpack.c.b16 %v6989, %v6985
    %v7034 = vpack.c.b16 %v6990, %v6986
    %v7035 = vpack.c.b16 %v6991, %v6987
    %v7036 = vpack.c.b16 %v6992, %v6988
    %v7037 = vpack.c.b16 %v6997, %v6993
    %v7038 = vpack.c.b16 %v6998, %v6994
    %v7039 = vpack.c.b16 %v6999, %v6995
    %v7040 = vpack.c.b16 %v7000, %v6996
    %v7041 = vpack.c.b16 %v7005, %v7001
    %v7042 = vpack.c.b16 %v7006, %v7002
    %v7043 = vpack.c.b16 %v7007, %v7003
    %v7044 = vpack.c.b16 %v7008, %v7004
    %v7045 = vpack.c.b16 %v7013, %v7009
    %v7046 = vpack.c.b16 %v7014, %v7010
    %v7047 = vpack.c.b16 %v7015, %v7011
    %v7048 = vpack.c.b16 %v7016, %v7012
    %7081 = vmatprep.subr.bf16.mxu0 %v7046
    %7082 = vmatpush1.bf16.msra.mxu0 %v7045
    %7083 = vmatprep.subr.bf16.mxu0 %v7042
    %7084 = vmatpush1.bf16.msra.mxu0 %v7041
    %7085 = vmatprep.subr.bf16.mxu0 %v7038
    %7086 = vmatpush1.bf16.msra.mxu0 %v7037
    %7087 = vmatprep.subr.bf16.mxu0 %v7034
    %7088 = vmatpush1.bf16.msra.mxu0 %v7033
    %7089 = vmatprep.subr.bf16.mxu0 %v7030
    %7090 = vmatpush1.bf16.msra.mxu0 %v7029
    %7091 = vmatprep.subr.bf16.mxu0 %v7026
    %7092 = vmatpush1.bf16.msra.mxu0 %v7025
    %7093 = vmatprep.subr.bf16.mxu0 %v7022
    %7094 = vmatpush1.bf16.msra.mxu0 %v7021
    %7095 = vmatprep.subr.bf16.mxu0 %v7018
    %7096 = vmatpush1.bf16.msra.mxu0 %v7017
    %7097 = vmatprep.subr.bf16.mxu0 0
    %7098 = vmatpush2.bf16.msra.mxu0 0
    %7099 = vmatprep.subr.bf16.mxu0 0
    %7100 = vmatpush2.bf16.msra.mxu0 0
    %7101 = vmatprep.subr.bf16.mxu0 0
    %7102 = vmatpush2.bf16.msra.mxu0 0
    %7103 = vmatprep.subr.bf16.mxu0 0
    %7104 = vmatpush2.bf16.msra.mxu0 0
    %7105 = vmatprep.subr.bf16.mxu0 0
    %7106 = vmatpush2.bf16.msra.mxu0 0
    %7107 = vmatprep.subr.bf16.mxu0 0
    %7108 = vmatpush2.bf16.msra.mxu0 0
    %7109 = vmatprep.subr.bf16.mxu0 0
    %7110 = vmatpush2.bf16.msra.mxu0 0
    %7111 = vmatprep.subr.bf16.mxu0 0
    %7112 = vmatpush2.bf16.msra.mxu0 0
    %7113 = vmatprep.mubr.bf16.mxu0 0
    %7114 = vmatmul.mubr.bf16.gmra.mxu0 0
    %v7115 = vpop.f32.mrf.mxu0
    %v7116 = vadd.f32 0.0, %v7115
    %v7117 = vpop.f32.mrf.mxu0
    %v7118 = vadd.f32 0.0, %v7117
    %v7119 = vpop.f32.mrf.mxu0
    %v7120 = vpop.f32.mrf.mxu0
    %7121 = vdwg.mxu0
    %7122 = vmatprep.subr.bf16.mxu0 %v7048
    %7123 = vmatpush1.bf16.msra.mxu0 %v7047
    %7124 = vmatprep.subr.bf16.mxu0 %v7044
    %7125 = vmatpush1.bf16.msra.mxu0 %v7043
    %7126 = vmatprep.subr.bf16.mxu0 %v7040
    %7127 = vmatpush1.bf16.msra.mxu0 %v7039
    %7128 = vmatprep.subr.bf16.mxu0 %v7036
    %7129 = vmatpush1.bf16.msra.mxu0 %v7035
    %7130 = vmatprep.subr.bf16.mxu0 %v7032
    %7131 = vmatpush1.bf16.msra.mxu0 %v7031
    %7132 = vmatprep.subr.bf16.mxu0 %v7028
    %7133 = vmatpush1.bf16.msra.mxu0 %v7027
    %7134 = vmatprep.subr.bf16.mxu0 %v7024
    %7135 = vmatpush1.bf16.msra.mxu0 %v7023
    %7136 = vmatprep.subr.bf16.mxu0 %v7020
    %7137 = vmatpush1.bf16.msra.mxu0 %v7019
    %7138 = vmatprep.subr.bf16.mxu0 0
    %7139 = vmatpush2.bf16.msra.mxu0 0
    %7140 = vmatprep.subr.bf16.mxu0 0
    %7141 = vmatpush2.bf16.msra.mxu0 0
    %7142 = vmatprep.subr.bf16.mxu0 0
    %7143 = vmatpush2.bf16.msra.mxu0 0
    %7144 = vmatprep.subr.bf16.mxu0 0
    %7145 = vmatpush2.bf16.msra.mxu0 0
    %7146 = vmatprep.subr.bf16.mxu0 0
    %7147 = vmatpush2.bf16.msra.mxu0 0
    %7148 = vmatprep.subr.bf16.mxu0 0
    %7149 = vmatpush2.bf16.msra.mxu0 0
    %7150 = vmatprep.subr.bf16.mxu0 0
    %7151 = vmatpush2.bf16.msra.mxu0 0
    %7152 = vmatprep.subr.bf16.mxu0 0
    %7153 = vmatpush2.bf16.msra.mxu0 0
    %7154 = vmatprep.mubr.bf16.mxu0 0
    %7155 = vmatmul.mubr.bf16.gmra.mxu0 0
    %v7156 = vpop.f32.mrf.mxu0
    %v7157 = vadd.f32 0.0, %v7156
    %v7158 = vpop.f32.mrf.mxu0
    %v7159 = vadd.f32 0.0, %v7158
    %v7160 = vpop.f32.mrf.mxu0
    %v7161 = vpop.f32.mrf.mxu0
    %7162 = vdwg.mxu0
    %v7163 = vadd.f32 %v6885, %v7116
    %v7164 = vadd.f32 %v6886, %v7118
    %v7165 = vadd.f32 %v6887, %v7157
    %v7166 = vadd.f32 %v6888, %v7159
    %v7167 = vxor.u32 %v7163, 2147483648
    %v7168 = vxor.u32 %v7164, 2147483648
    %v7169 = vxor.u32 %v7165, 2147483648
    %v7170 = vmul.f32 %v7167, 1.442695
    %v7171 = vpow.pop %v7170
    %v7172 = vmul.f32 %v7168, 1.442695
    %v7173 = vpow.pop %v7172
    %v7174 = vmul.f32 %v7169, 1.442695
    %v7175 = vpow.pop %v7174
    %v7176 = vadd.f32 %v7171, 1.0
    %v7177 = vadd.f32 %v7173, 1.0
    %v7178 = vadd.f32 %v7175, 1.0
    %v7179 = vrcp.pop %v7176
    %v7180 = vmul.f32 1.0, %v7179
    %v7181 = vrcp.pop %v7177
    %v7182 = vmul.f32 1.0, %v7181
    %v7183 = vrcp.pop %v7178
    %v7184 = vmul.f32 1.0, %v7183
    %v7185 = vtanh.pop %v7166
    %v7186 = vmul.f32 %v7182, 0.0
    %v7187 = vmul.f32 %v7180, %v7185
    %v7188 = vadd.f32 %v7186, %v7187
    %v7189 = vtanh.pop %v7188
    %v7190 = vmul.f32 %v7184, %v7189
    %v7191 = vld [vmem:[#allocation4] sm:$0xc]
    %v7192 = vld [vmem:[#allocation4 + $0x8] sm:$0xc]
    %v7193 = vld [vmem:[#allocation4 + $0x10] sm:$0xc]
    %v7194 = vld [vmem:[#allocation4 + $0x18] sm:$0xc]
    %v7195 = vpack.c.bf16 %v7190, %v7190
    %7196 = vmatprep.subr.bf16.mxu0 %v7046
    %7197 = vmatpush1.bf16.msra.mxu0 %v7045
    %7198 = vmatprep.subr.bf16.mxu0 %v7042
    %7199 = vmatpush1.bf16.msra.mxu0 %v7041
    %7200 = vmatprep.subr.bf16.mxu0 %v7038
    %7201 = vmatpush1.bf16.msra.mxu0 %v7037
    %7202 = vmatprep.subr.bf16.mxu0 %v7034
    %7203 = vmatpush1.bf16.msra.mxu0 %v7033
    %7204 = vmatprep.subr.bf16.mxu0 %v7030
    %7205 = vmatpush1.bf16.msra.mxu0 %v7029
    %7206 = vmatprep.subr.bf16.mxu0 %v7026
    %7207 = vmatpush1.bf16.msra.mxu0 %v7025
    %7208 = vmatprep.subr.bf16.mxu0 %v7022
    %7209 = vmatpush1.bf16.msra.mxu0 %v7021
    %7210 = vmatprep.subr.bf16.mxu0 %v7018
    %7211 = vmatpush1.bf16.msra.mxu0 %v7017
    %7212 = vmatprep.subr.bf16.mxu0 0
    %7213 = vmatpush2.bf16.msra.mxu0 0
    %7214 = vmatprep.subr.bf16.mxu0 0
    %7215 = vmatpush2.bf16.msra.mxu0 0
    %7216 = vmatprep.subr.bf16.mxu0 0
    %7217 = vmatpush2.bf16.msra.mxu0 0
    %7218 = vmatprep.subr.bf16.mxu0 0
    %7219 = vmatpush2.bf16.msra.mxu0 0
    %7220 = vmatprep.subr.bf16.mxu0 0
    %7221 = vmatpush2.bf16.msra.mxu0 0
    %7222 = vmatprep.subr.bf16.mxu0 0
    %7223 = vmatpush2.bf16.msra.mxu0 0
    %7224 = vmatprep.subr.bf16.mxu0 0
    %7225 = vmatpush2.bf16.msra.mxu0 0
    %7226 = vmatprep.subr.bf16.mxu0 0
    %7227 = vmatpush2.bf16.msra.mxu0 0
    %7228 = vmatprep.mubr.bf16.mxu0 0
    %7229 = vmatmul.mubr.bf16.gmra.mxu0 %v7195
    %v7230 = vpop.f32.mrf.mxu0
    %v7231 = vadd.f32 0.0, %v7230
    %v7232 = vpop.f32.mrf.mxu0
    %v7233 = vadd.f32 0.0, %v7232
    %v7234 = vpop.f32.mrf.mxu0
    %v7235 = vpop.f32.mrf.mxu0
    %7236 = vdwg.mxu0
    %7237 = vmatprep.subr.bf16.mxu0 %v7048
    %7238 = vmatpush1.bf16.msra.mxu0 %v7047
    %7239 = vmatprep.subr.bf16.mxu0 %v7044
    %7240 = vmatpush1.bf16.msra.mxu0 %v7043
    %7241 = vmatprep.subr.bf16.mxu0 %v7040
    %7242 = vmatpush1.bf16.msra.mxu0 %v7039
    %7243 = vmatprep.subr.bf16.mxu0 %v7036
    %7244 = vmatpush1.bf16.msra.mxu0 %v7035
    %7245 = vmatprep.subr.bf16.mxu0 %v7032
    %7246 = vmatpush1.bf16.msra.mxu0 %v7031
    %7247 = vmatprep.subr.bf16.mxu0 %v7028
    %7248 = vmatpush1.bf16.msra.mxu0 %v7027
    %7249 = vmatprep.subr.bf16.mxu0 %v7024
    %7250 = vmatpush1.bf16.msra.mxu0 %v7023
    %7251 = vmatprep.subr.bf16.mxu0 %v7020
    %7252 = vmatpush1.bf16.msra.mxu0 %v7019
    %7253 = vmatprep.subr.bf16.mxu0 0
    %7254 = vmatpush2.bf16.msra.mxu0 0
    %7255 = vmatprep.subr.bf16.mxu0 0
    %7256 = vmatpush2.bf16.msra.mxu0 0
    %7257 = vmatprep.subr.bf16.mxu0 0
    %7258 = vmatpush2.bf16.msra.mxu0 0
    %7259 = vmatprep.subr.bf16.mxu0 0
    %7260 = vmatpush2.bf16.msra.mxu0 0
    %7261 = vmatprep.subr.bf16.mxu0 0
    %7262 = vmatpush2.bf16.msra.mxu0 0
    %7263 = vmatprep.subr.bf16.mxu0 0
    %7264 = vmatpush2.bf16.msra.mxu0 0
    %7265 = vmatprep.subr.bf16.mxu0 0
    %7266 = vmatpush2.bf16.msra.mxu0 0
    %7267 = vmatprep.subr.bf16.mxu0 0
    %7268 = vmatpush2.bf16.msra.mxu0 0
    %7269 = vmatprep.mubr.bf16.mxu0 0
    %7270 = vmatmul.mubr.bf16.gmra.mxu0 %v7195
    %v7271 = vpop.f32.mrf.mxu0
    %v7272 = vadd.f32 0.0, %v7271
    %v7273 = vpop.f32.mrf.mxu0
    %v7274 = vadd.f32 0.0, %v7273
    %v7275 = vpop.f32.mrf.mxu0
    %v7276 = vpop.f32.mrf.mxu0
    %7277 = vdwg.mxu0
    %v7282 = vrot.slane %v7231, 6
    %v7283 = vrot.slane %v7233, 6
    %v7284 = vrot.slane %v7272, 6
    %v7285 = vrot.slane %v7274, 6
    %v7290 = vadd.f32 %v7191, %v7282
    %v7291 = vadd.f32 %v7192, %v7283
    %v7292 = vadd.f32 %v7193, %v7284
    %v7293 = vadd.f32 %v7194, %v7285
    %v7294 = vxor.u32 %v7290, 2147483648
    %v7295 = vxor.u32 %v7291, 2147483648
    %v7296 = vxor.u32 %v7292, 2147483648
    %v7297 = vmul.f32 %v7294, 1.442695
    %v7298 = vpow.pop %v7297
    %v7299 = vmul.f32 %v7295, 1.442695
    %v7300 = vpow.pop %v7299
    %v7301 = vmul.f32 %v7296, 1.442695
    %v7302 = vpow.pop %v7301
    %v7303 = vadd.f32 %v7298, 1.0
    %v7304 = vadd.f32 %v7300, 1.0
    %v7305 = vadd.f32 %v7302, 1.0
    %v7306 = vrcp.pop %v7303
    %v7307 = vmul.f32 1.0, %v7306
    %v7308 = vrcp.pop %v7304
    %v7309 = vmul.f32 1.0, %v7308
    %v7310 = vrcp.pop %v7305
    %v7311 = vmul.f32 1.0, %v7310
    %v7312 = vtanh.pop %v7293
    %v7314 = vrot.slane %v7188, 6
    %v7316 = vmul.f32 %v7309, %v7314
    %v7317 = vmul.f32 %v7307, %v7312
    %v7318 = vadd.f32 %v7316, %v7317
    %v7319 = vtanh.pop %v7318
    %v7320 = vmul.f32 %v7311, %v7319
    %v7321 = vld [vmem:[#allocation4] sm:$0x30]
    %v7322 = vld [vmem:[#allocation4 + $0x8] sm:$0x30]
    %v7323 = vld [vmem:[#allocation4 + $0x10] sm:$0x30]
    %v7324 = vld [vmem:[#allocation4 + $0x18] sm:$0x30]
    %v7325 = vpack.c.bf16 %v7320, %v7320
    %v7327 = vrot.slane %v7325, 1
    %7329 = vmatprep.subr.bf16.mxu0 %v7046
    %7330 = vmatpush1.bf16.msra.mxu0 %v7045
    %7331 = vmatprep.subr.bf16.mxu0 %v7042
    %7332 = vmatpush1.bf16.msra.mxu0 %v7041
    %7333 = vmatprep.subr.bf16.mxu0 %v7038
    %7334 = vmatpush1.bf16.msra.mxu0 %v7037
    %7335 = vmatprep.subr.bf16.mxu0 %v7034
    %7336 = vmatpush1.bf16.msra.mxu0 %v7033
    %7337 = vmatprep.subr.bf16.mxu0 %v7030
    %7338 = vmatpush1.bf16.msra.mxu0 %v7029
    %7339 = vmatprep.subr.bf16.mxu0 %v7026
    %7340 = vmatpush1.bf16.msra.mxu0 %v7025
    %7341 = vmatprep.subr.bf16.mxu0 %v7022
    %7342 = vmatpush1.bf16.msra.mxu0 %v7021
    %7343 = vmatprep.subr.bf16.mxu0 %v7018
    %7344 = vmatpush1.bf16.msra.mxu0 %v7017
    %7345 = vmatprep.subr.bf16.mxu0 0
    %7346 = vmatpush2.bf16.msra.mxu0 0
    %7347 = vmatprep.subr.bf16.mxu0 0
    %7348 = vmatpush2.bf16.msra.mxu0 0
    %7349 = vmatprep.subr.bf16.mxu0 0
    %7350 = vmatpush2.bf16.msra.mxu0 0
    %7351 = vmatprep.subr.bf16.mxu0 0
    %7352 = vmatpush2.bf16.msra.mxu0 0
    %7353 = vmatprep.subr.bf16.mxu0 0
    %7354 = vmatpush2.bf16.msra.mxu0 0
    %7355 = vmatprep.subr.bf16.mxu0 0
    %7356 = vmatpush2.bf16.msra.mxu0 0
    %7357 = vmatprep.subr.bf16.mxu0 0
    %7358 = vmatpush2.bf16.msra.mxu0 0
    %7359 = vmatprep.subr.bf16.mxu0 0
    %7360 = vmatpush2.bf16.msra.mxu0 0
    %7361 = vmatprep.mubr.bf16.mxu0 0
    %7362 = vmatmul.mubr.bf16.gmra.mxu0 %v7327
    %v7363 = vpop.f32.mrf.mxu0
    %v7364 = vadd.f32 0.0, %v7363
    %v7365 = vpop.f32.mrf.mxu0
    %v7366 = vadd.f32 0.0, %v7365
    %v7367 = vpop.f32.mrf.mxu0
    %v7368 = vpop.f32.mrf.mxu0
    %7369 = vdwg.mxu0
    %7370 = vmatprep.subr.bf16.mxu0 %v7048
    %7371 = vmatpush1.bf16.msra.mxu0 %v7047
    %7372 = vmatprep.subr.bf16.mxu0 %v7044
    %7373 = vmatpush1.bf16.msra.mxu0 %v7043
    %7374 = vmatprep.subr.bf16.mxu0 %v7040
    %7375 = vmatpush1.bf16.msra.mxu0 %v7039
    %7376 = vmatprep.subr.bf16.mxu0 %v7036
    %7377 = vmatpush1.bf16.msra.mxu0 %v7035
    %7378 = vmatprep.subr.bf16.mxu0 %v7032
    %7379 = vmatpush1.bf16.msra.mxu0 %v7031
    %7380 = vmatprep.subr.bf16.mxu0 %v7028
    %7381 = vmatpush1.bf16.msra.mxu0 %v7027
    %7382 = vmatprep.subr.bf16.mxu0 %v7024
    %7383 = vmatpush1.bf16.msra.mxu0 %v7023
    %7384 = vmatprep.subr.bf16.mxu0 %v7020
    %7385 = vmatpush1.bf16.msra.mxu0 %v7019
    %7386 = vmatprep.subr.bf16.mxu0 0
    %7387 = vmatpush2.bf16.msra.mxu0 0
    %7388 = vmatprep.subr.bf16.mxu0 0
    %7389 = vmatpush2.bf16.msra.mxu0 0
    %7390 = vmatprep.subr.bf16.mxu0 0
    %7391 = vmatpush2.bf16.msra.mxu0 0
    %7392 = vmatprep.subr.bf16.mxu0 0
    %7393 = vmatpush2.bf16.msra.mxu0 0
    %7394 = vmatprep.subr.bf16.mxu0 0
    %7395 = vmatpush2.bf16.msra.mxu0 0
    %7396 = vmatprep.subr.bf16.mxu0 0
    %7397 = vmatpush2.bf16.msra.mxu0 0
    %7398 = vmatprep.subr.bf16.mxu0 0
    %7399 = vmatpush2.bf16.msra.mxu0 0
    %7400 = vmatprep.subr.bf16.mxu0 0
    %7401 = vmatpush2.bf16.msra.mxu0 0
    %7402 = vmatprep.mubr.bf16.mxu0 0
    %7403 = vmatmul.mubr.bf16.gmra.mxu0 %v7327
    %v7404 = vpop.f32.mrf.mxu0
    %v7405 = vadd.f32 0.0, %v7404
    %v7406 = vpop.f32.mrf.mxu0
    %v7407 = vadd.f32 0.0, %v7406
    %v7408 = vpop.f32.mrf.mxu0
    %v7409 = vpop.f32.mrf.mxu0
    %7410 = vdwg.mxu0
    %v7415 = vrot.slane %v7364, 4
    %v7416 = vrot.slane %v7366, 4
    %v7417 = vrot.slane %v7405, 4
    %v7418 = vrot.slane %v7407, 4
    %v7423 = vadd.f32 %v7321, %v7415
    %v7424 = vadd.f32 %v7322, %v7416
    %v7425 = vadd.f32 %v7323, %v7417
    %v7426 = vadd.f32 %v7324, %v7418
    %v7427 = vxor.u32 %v7423, 2147483648
    %v7428 = vxor.u32 %v7424, 2147483648
    %v7429 = vxor.u32 %v7425, 2147483648
    %v7430 = vmul.f32 %v7427, 1.442695
    %v7431 = vpow.pop %v7430
    %v7432 = vmul.f32 %v7428, 1.442695
    %v7433 = vpow.pop %v7432
    %v7434 = vmul.f32 %v7429, 1.442695
    %v7435 = vpow.pop %v7434
    %v7436 = vadd.f32 %v7431, 1.0
    %v7437 = vadd.f32 %v7433, 1.0
    %v7438 = vadd.f32 %v7435, 1.0
    %v7439 = vrcp.pop %v7436
    %v7440 = vmul.f32 1.0, %v7439
    %v7441 = vrcp.pop %v7437
    %v7442 = vmul.f32 1.0, %v7441
    %v7443 = vrcp.pop %v7438
    %v7444 = vmul.f32 1.0, %v7443
    %v7445 = vtanh.pop %v7426
    %v7447 = vrot.slane %v7318, 6
    %v7449 = vmul.f32 %v7442, %v7447
    %v7450 = vmul.f32 %v7440, %v7445
    %v7451 = vadd.f32 %v7449, %v7450
    %v7452 = vtanh.pop %v7451
    %v7453 = vmul.f32 %v7444, %v7452
    %v7454 = vld [vmem:[#allocation4] sm:$0xc0]
    %v7455 = vld [vmem:[#allocation4 + $0x8] sm:$0xc0]
    %v7456 = vld [vmem:[#allocation4 + $0x10] sm:$0xc0]
    %v7457 = vld [vmem:[#allocation4 + $0x18] sm:$0xc0]
    %v7458 = vpack.c.bf16 %v7453, %v7453
    %v7460 = vrot.slane %v7458, 2
    %7462 = vmatprep.subr.bf16.mxu0 %v7046
    %7463 = vmatpush1.bf16.msra.mxu0 %v7045
    %7464 = vmatprep.subr.bf16.mxu0 %v7042
    %7465 = vmatpush1.bf16.msra.mxu0 %v7041
    %7466 = vmatprep.subr.bf16.mxu0 %v7038
    %7467 = vmatpush1.bf16.msra.mxu0 %v7037
    %7468 = vmatprep.subr.bf16.mxu0 %v7034
    %7469 = vmatpush1.bf16.msra.mxu0 %v7033
    %7470 = vmatprep.subr.bf16.mxu0 %v7030
    %7471 = vmatpush1.bf16.msra.mxu0 %v7029
    %7472 = vmatprep.subr.bf16.mxu0 %v7026
    %7473 = vmatpush1.bf16.msra.mxu0 %v7025
    %7474 = vmatprep.subr.bf16.mxu0 %v7022
    %7475 = vmatpush1.bf16.msra.mxu0 %v7021
    %7476 = vmatprep.subr.bf16.mxu0 %v7018
    %7477 = vmatpush1.bf16.msra.mxu0 %v7017
    %7478 = vmatprep.subr.bf16.mxu0 0
    %7479 = vmatpush2.bf16.msra.mxu0 0
    %7480 = vmatprep.subr.bf16.mxu0 0
    %7481 = vmatpush2.bf16.msra.mxu0 0
    %7482 = vmatprep.subr.bf16.mxu0 0
    %7483 = vmatpush2.bf16.msra.mxu0 0
    %7484 = vmatprep.subr.bf16.mxu0 0
    %7485 = vmatpush2.bf16.msra.mxu0 0
    %7486 = vmatprep.subr.bf16.mxu0 0
    %7487 = vmatpush2.bf16.msra.mxu0 0
    %7488 = vmatprep.subr.bf16.mxu0 0
    %7489 = vmatpush2.bf16.msra.mxu0 0
    %7490 = vmatprep.subr.bf16.mxu0 0
    %7491 = vmatpush2.bf16.msra.mxu0 0
    %7492 = vmatprep.subr.bf16.mxu0 0
    %7493 = vmatpush2.bf16.msra.mxu0 0
    %7494 = vmatprep.mubr.bf16.mxu0 0
    %7495 = vmatmul.mubr.bf16.gmra.mxu0 %v7460
    %v7496 = vpop.f32.mrf.mxu0
    %v7497 = vadd.f32 0.0, %v7496
    %v7498 = vpop.f32.mrf.mxu0
    %v7499 = vadd.f32 0.0, %v7498
    %v7500 = vpop.f32.mrf.mxu0
    %v7501 = vpop.f32.mrf.mxu0
    %7502 = vdwg.mxu0
    %7503 = vmatprep.subr.bf16.mxu0 %v7048
    %7504 = vmatpush1.bf16.msra.mxu0 %v7047
    %7505 = vmatprep.subr.bf16.mxu0 %v7044
    %7506 = vmatpush1.bf16.msra.mxu0 %v7043
    %7507 = vmatprep.subr.bf16.mxu0 %v7040
    %7508 = vmatpush1.bf16.msra.mxu0 %v7039
    %7509 = vmatprep.subr.bf16.mxu0 %v7036
    %7510 = vmatpush1.bf16.msra.mxu0 %v7035
    %7511 = vmatprep.subr.bf16.mxu0 %v7032
    %7512 = vmatpush1.bf16.msra.mxu0 %v7031
    %7513 = vmatprep.subr.bf16.mxu0 %v7028
    %7514 = vmatpush1.bf16.msra.mxu0 %v7027
    %7515 = vmatprep.subr.bf16.mxu0 %v7024
    %7516 = vmatpush1.bf16.msra.mxu0 %v7023
    %7517 = vmatprep.subr.bf16.mxu0 %v7020
    %7518 = vmatpush1.bf16.msra.mxu0 %v7019
    %7519 = vmatprep.subr.bf16.mxu0 0
    %7520 = vmatpush2.bf16.msra.mxu0 0
    %7521 = vmatprep.subr.bf16.mxu0 0
    %7522 = vmatpush2.bf16.msra.mxu0 0
    %7523 = vmatprep.subr.bf16.mxu0 0
    %7524 = vmatpush2.bf16.msra.mxu0 0
    %7525 = vmatprep.subr.bf16.mxu0 0
    %7526 = vmatpush2.bf16.msra.mxu0 0
    %7527 = vmatprep.subr.bf16.mxu0 0
    %7528 = vmatpush2.bf16.msra.mxu0 0
    %7529 = vmatprep.subr.bf16.mxu0 0
    %7530 = vmatpush2.bf16.msra.mxu0 0
    %7531 = vmatprep.subr.bf16.mxu0 0
    %7532 = vmatpush2.bf16.msra.mxu0 0
    %7533 = vmatprep.subr.bf16.mxu0 0
    %7534 = vmatpush2.bf16.msra.mxu0 0
    %7535 = vmatprep.mubr.bf16.mxu0 0
    %7536 = vmatmul.mubr.bf16.gmra.mxu0 %v7460
    %v7537 = vpop.f32.mrf.mxu0
    %v7538 = vadd.f32 0.0, %v7537
    %v7539 = vpop.f32.mrf.mxu0
    %v7540 = vadd.f32 0.0, %v7539
    %v7541 = vpop.f32.mrf.mxu0
    %v7542 = vpop.f32.mrf.mxu0
    %7543 = vdwg.mxu0
    %v7548 = vrot.slane %v7497, 2
    %v7549 = vrot.slane %v7499, 2
    %v7550 = vrot.slane %v7538, 2
    %v7551 = vrot.slane %v7540, 2
    %v7556 = vadd.f32 %v7454, %v7548
    %v7557 = vadd.f32 %v7455, %v7549
    %v7558 = vadd.f32 %v7456, %v7550
    %v7559 = vadd.f32 %v7457, %v7551
    %v7560 = vxor.u32 %v7556, 2147483648
    %v7561 = vxor.u32 %v7557, 2147483648
    %v7562 = vxor.u32 %v7558, 2147483648
    %v7563 = vmul.f32 %v7560, 1.442695
    %v7564 = vpow.pop %v7563
    %v7565 = vmul.f32 %v7561, 1.442695
    %v7566 = vpow.pop %v7565
    %v7567 = vmul.f32 %v7562, 1.442695
    %v7568 = vpow.pop %v7567
    %v7569 = vadd.f32 %v7564, 1.0
    %v7570 = vadd.f32 %v7566, 1.0
    %v7571 = vadd.f32 %v7568, 1.0
    %v7572 = vrcp.pop %v7569
    %v7573 = vmul.f32 1.0, %v7572
    %v7574 = vrcp.pop %v7570
    %v7575 = vmul.f32 1.0, %v7574
    %v7576 = vrcp.pop %v7571
    %v7577 = vmul.f32 1.0, %v7576
    %v7578 = vtanh.pop %v7559
    %v7580 = vrot.slane %v7451, 6
    %v7582 = vmul.f32 %v7575, %v7580
    %v7583 = vmul.f32 %v7573, %v7578
    %v7584 = vadd.f32 %v7582, %v7583
    %v7585 = vtanh.pop %v7584
    %v7586 = vmul.f32 %v7577, %v7585
    %v7587 = vld [vmem:[#allocation4 + $0x20] sm:$0x3]
    %v7588 = vld [vmem:[#allocation4 + $0x28] sm:$0x3]
    %v7589 = vld [vmem:[#allocation4 + $0x30] sm:$0x3]
    %v7590 = vld [vmem:[#allocation4 + $0x38] sm:$0x3]
    %v7591 = vpack.c.bf16 %v7586, %v7586
    %v7593 = vrot.slane %v7591, 3
    %7595 = vmatprep.subr.bf16.mxu0 %v7046
    %7596 = vmatpush1.bf16.msra.mxu0 %v7045
    %7597 = vmatprep.subr.bf16.mxu0 %v7042
    %7598 = vmatpush1.bf16.msra.mxu0 %v7041
    %7599 = vmatprep.subr.bf16.mxu0 %v7038
    %7600 = vmatpush1.bf16.msra.mxu0 %v7037
    %7601 = vmatprep.subr.bf16.mxu0 %v7034
    %7602 = vmatpush1.bf16.msra.mxu0 %v7033
    %7603 = vmatprep.subr.bf16.mxu0 %v7030
    %7604 = vmatpush1.bf16.msra.mxu0 %v7029
    %7605 = vmatprep.subr.bf16.mxu0 %v7026
    %7606 = vmatpush1.bf16.msra.mxu0 %v7025
    %7607 = vmatprep.subr.bf16.mxu0 %v7022
    %7608 = vmatpush1.bf16.msra.mxu0 %v7021
    %7609 = vmatprep.subr.bf16.mxu0 %v7018
    %7610 = vmatpush1.bf16.msra.mxu0 %v7017
    %7611 = vmatprep.subr.bf16.mxu0 0
    %7612 = vmatpush2.bf16.msra.mxu0 0
    %7613 = vmatprep.subr.bf16.mxu0 0
    %7614 = vmatpush2.bf16.msra.mxu0 0
    %7615 = vmatprep.subr.bf16.mxu0 0
    %7616 = vmatpush2.bf16.msra.mxu0 0
    %7617 = vmatprep.subr.bf16.mxu0 0
    %7618 = vmatpush2.bf16.msra.mxu0 0
    %7619 = vmatprep.subr.bf16.mxu0 0
    %7620 = vmatpush2.bf16.msra.mxu0 0
    %7621 = vmatprep.subr.bf16.mxu0 0
    %7622 = vmatpush2.bf16.msra.mxu0 0
    %7623 = vmatprep.subr.bf16.mxu0 0
    %7624 = vmatpush2.bf16.msra.mxu0 0
    %7625 = vmatprep.subr.bf16.mxu0 0
    %7626 = vmatpush2.bf16.msra.mxu0 0
    %7627 = vmatprep.mubr.bf16.mxu0 0
    %7628 = vmatmul.mubr.bf16.gmra.mxu0 %v7593
    %v7629 = vpop.f32.mrf.mxu0
    %v7630 = vadd.f32 0.0, %v7629
    %v7631 = vpop.f32.mrf.mxu0
    %v7632 = vadd.f32 0.0, %v7631
    %v7633 = vpop.f32.mrf.mxu0
    %v7634 = vpop.f32.mrf.mxu0
    %7635 = vdwg.mxu0
    %7636 = vmatprep.subr.bf16.mxu0 %v7048
    %7637 = vmatpush1.bf16.msra.mxu0 %v7047
    %7638 = vmatprep.subr.bf16.mxu0 %v7044
    %7639 = vmatpush1.bf16.msra.mxu0 %v7043
    %7640 = vmatprep.subr.bf16.mxu0 %v7040
    %7641 = vmatpush1.bf16.msra.mxu0 %v7039
    %7642 = vmatprep.subr.bf16.mxu0 %v7036
    %7643 = vmatpush1.bf16.msra.mxu0 %v7035
    %7644 = vmatprep.subr.bf16.mxu0 %v7032
    %7645 = vmatpush1.bf16.msra.mxu0 %v7031
    %7646 = vmatprep.subr.bf16.mxu0 %v7028
    %7647 = vmatpush1.bf16.msra.mxu0 %v7027
    %7648 = vmatprep.subr.bf16.mxu0 %v7024
    %7649 = vmatpush1.bf16.msra.mxu0 %v7023
    %7650 = vmatprep.subr.bf16.mxu0 %v7020
    %7651 = vmatpush1.bf16.msra.mxu0 %v7019
    %7652 = vmatprep.subr.bf16.mxu0 0
    %7653 = vmatpush2.bf16.msra.mxu0 0
    %7654 = vmatprep.subr.bf16.mxu0 0
    %7655 = vmatpush2.bf16.msra.mxu0 0
    %7656 = vmatprep.subr.bf16.mxu0 0
    %7657 = vmatpush2.bf16.msra.mxu0 0
    %7658 = vmatprep.subr.bf16.mxu0 0
    %7659 = vmatpush2.bf16.msra.mxu0 0
    %7660 = vmatprep.subr.bf16.mxu0 0
    %7661 = vmatpush2.bf16.msra.mxu0 0
    %7662 = vmatprep.subr.bf16.mxu0 0
    %7663 = vmatpush2.bf16.msra.mxu0 0
    %7664 = vmatprep.subr.bf16.mxu0 0
    %7665 = vmatpush2.bf16.msra.mxu0 0
    %7666 = vmatprep.subr.bf16.mxu0 0
    %7667 = vmatpush2.bf16.msra.mxu0 0
    %7668 = vmatprep.mubr.bf16.mxu0 0
    %7669 = vmatmul.mubr.bf16.gmra.mxu0 %v7593
    %v7670 = vpop.f32.mrf.mxu0
    %v7671 = vadd.f32 0.0, %v7670
    %v7672 = vpop.f32.mrf.mxu0
    %v7673 = vadd.f32 0.0, %v7672
    %v7674 = vpop.f32.mrf.mxu0
    %v7675 = vpop.f32.mrf.mxu0
    %7676 = vdwg.mxu0
    %v7677 = vadd.f32 %v7587, %v7630
    %v7678 = vadd.f32 %v7588, %v7632
    %v7679 = vadd.f32 %v7589, %v7671
    %v7680 = vadd.f32 %v7590, %v7673
    %v7681 = vxor.u32 %v7677, 2147483648
    %v7682 = vxor.u32 %v7678, 2147483648
    %v7683 = vxor.u32 %v7679, 2147483648
    %v7684 = vmul.f32 %v7681, 1.442695
    %v7685 = vpow.pop %v7684
    %v7686 = vmul.f32 %v7682, 1.442695
    %v7687 = vpow.pop %v7686
    %v7688 = vmul.f32 %v7683, 1.442695
    %v7689 = vpow.pop %v7688
    %v7690 = vadd.f32 %v7685, 1.0
    %v7691 = vadd.f32 %v7687, 1.0
    %v7692 = vadd.f32 %v7689, 1.0
    %v7693 = vrcp.pop %v7690
    %v7694 = vmul.f32 1.0, %v7693
    %v7695 = vrcp.pop %v7691
    %v7696 = vmul.f32 1.0, %v7695
    %v7697 = vrcp.pop %v7692
    %v7698 = vmul.f32 1.0, %v7697
    %v7699 = vtanh.pop %v7680
    %v7701 = vrot.slane %v7584, 6
    %v7703 = vmul.f32 %v7696, %v7701
    %v7704 = vmul.f32 %v7694, %v7699
    %v7705 = vadd.f32 %v7703, %v7704
    %v7706 = vtanh.pop %v7705
    %v7707 = vmul.f32 %v7698, %v7706
    %v7708 = vld [vmem:[#allocation4 + $0x20] sm:$0xc]
    %v7709 = vld [vmem:[#allocation4 + $0x28] sm:$0xc]
    %v7710 = vld [vmem:[#allocation4 + $0x30] sm:$0xc]
    %v7711 = vld [vmem:[#allocation4 + $0x38] sm:$0xc]
    %v7712 = vpack.c.bf16 %v7707, %v7707
    %7713 = vmatprep.subr.bf16.mxu0 %v7046
    %7714 = vmatpush1.bf16.msra.mxu0 %v7045
    %7715 = vmatprep.subr.bf16.mxu0 %v7042
    %7716 = vmatpush1.bf16.msra.mxu0 %v7041
    %7717 = vmatprep.subr.bf16.mxu0 %v7038
    %7718 = vmatpush1.bf16.msra.mxu0 %v7037
    %7719 = vmatprep.subr.bf16.mxu0 %v7034
    %7720 = vmatpush1.bf16.msra.mxu0 %v7033
    %7721 = vmatprep.subr.bf16.mxu0 %v7030
    %7722 = vmatpush1.bf16.msra.mxu0 %v7029
    %7723 = vmatprep.subr.bf16.mxu0 %v7026
    %7724 = vmatpush1.bf16.msra.mxu0 %v7025
    %7725 = vmatprep.subr.bf16.mxu0 %v7022
    %7726 = vmatpush1.bf16.msra.mxu0 %v7021
    %7727 = vmatprep.subr.bf16.mxu0 %v7018
    %7728 = vmatpush1.bf16.msra.mxu0 %v7017
    %7729 = vmatprep.subr.bf16.mxu0 0
    %7730 = vmatpush2.bf16.msra.mxu0 0
    %7731 = vmatprep.subr.bf16.mxu0 0
    %7732 = vmatpush2.bf16.msra.mxu0 0
    %7733 = vmatprep.subr.bf16.mxu0 0
    %7734 = vmatpush2.bf16.msra.mxu0 0
    %7735 = vmatprep.subr.bf16.mxu0 0
    %7736 = vmatpush2.bf16.msra.mxu0 0
    %7737 = vmatprep.subr.bf16.mxu0 0
    %7738 = vmatpush2.bf16.msra.mxu0 0
    %7739 = vmatprep.subr.bf16.mxu0 0
    %7740 = vmatpush2.bf16.msra.mxu0 0
    %7741 = vmatprep.subr.bf16.mxu0 0
    %7742 = vmatpush2.bf16.msra.mxu0 0
    %7743 = vmatprep.subr.bf16.mxu0 0
    %7744 = vmatpush2.bf16.msra.mxu0 0
    %7745 = vmatprep.mubr.bf16.mxu0 0
    %7746 = vmatmul.mubr.bf16.gmra.mxu0 %v7712
    %v7747 = vpop.f32.mrf.mxu0
    %v7748 = vadd.f32 0.0, %v7747
    %v7749 = vpop.f32.mrf.mxu0
    %v7750 = vadd.f32 0.0, %v7749
    %v7751 = vpop.f32.mrf.mxu0
    %v7752 = vpop.f32.mrf.mxu0
    %7753 = vdwg.mxu0
    %7754 = vmatprep.subr.bf16.mxu0 %v7048
    %7755 = vmatpush1.bf16.msra.mxu0 %v7047
    %7756 = vmatprep.subr.bf16.mxu0 %v7044
    %7757 = vmatpush1.bf16.msra.mxu0 %v7043
    %7758 = vmatprep.subr.bf16.mxu0 %v7040
    %7759 = vmatpush1.bf16.msra.mxu0 %v7039
    %7760 = vmatprep.subr.bf16.mxu0 %v7036
    %7761 = vmatpush1.bf16.msra.mxu0 %v7035
    %7762 = vmatprep.subr.bf16.mxu0 %v7032
    %7763 = vmatpush1.bf16.msra.mxu0 %v7031
    %7764 = vmatprep.subr.bf16.mxu0 %v7028
    %7765 = vmatpush1.bf16.msra.mxu0 %v7027
    %7766 = vmatprep.subr.bf16.mxu0 %v7024
    %7767 = vmatpush1.bf16.msra.mxu0 %v7023
    %7768 = vmatprep.subr.bf16.mxu0 %v7020
    %7769 = vmatpush1.bf16.msra.mxu0 %v7019
    %7770 = vmatprep.subr.bf16.mxu0 0
    %7771 = vmatpush2.bf16.msra.mxu0 0
    %7772 = vmatprep.subr.bf16.mxu0 0
    %7773 = vmatpush2.bf16.msra.mxu0 0
    %7774 = vmatprep.subr.bf16.mxu0 0
    %7775 = vmatpush2.bf16.msra.mxu0 0
    %7776 = vmatprep.subr.bf16.mxu0 0
    %7777 = vmatpush2.bf16.msra.mxu0 0
    %7778 = vmatprep.subr.bf16.mxu0 0
    %7779 = vmatpush2.bf16.msra.mxu0 0
    %7780 = vmatprep.subr.bf16.mxu0 0
    %7781 = vmatpush2.bf16.msra.mxu0 0
    %7782 = vmatprep.subr.bf16.mxu0 0
    %7783 = vmatpush2.bf16.msra.mxu0 0
    %7784 = vmatprep.subr.bf16.mxu0 0
    %7785 = vmatpush2.bf16.msra.mxu0 0
    %7786 = vmatprep.mubr.bf16.mxu0 0
    %7787 = vmatmul.mubr.bf16.gmra.mxu0 %v7712
    %v7788 = vpop.f32.mrf.mxu0
    %v7789 = vadd.f32 0.0, %v7788
    %v7790 = vpop.f32.mrf.mxu0
    %v7791 = vadd.f32 0.0, %v7790
    %v7792 = vpop.f32.mrf.mxu0
    %v7793 = vpop.f32.mrf.mxu0
    %7794 = vdwg.mxu0
    %v7799 = vrot.slane %v7748, 6
    %v7800 = vrot.slane %v7750, 6
    %v7801 = vrot.slane %v7789, 6
    %v7802 = vrot.slane %v7791, 6
    %v7807 = vadd.f32 %v7708, %v7799
    %v7808 = vadd.f32 %v7709, %v7800
    %v7809 = vadd.f32 %v7710, %v7801
    %v7810 = vadd.f32 %v7711, %v7802
    %v7811 = vxor.u32 %v7807, 2147483648
    %v7812 = vxor.u32 %v7808, 2147483648
    %v7813 = vxor.u32 %v7809, 2147483648
    %v7814 = vmul.f32 %v7811, 1.442695
    %v7815 = vpow.pop %v7814
    %v7816 = vmul.f32 %v7812, 1.442695
    %v7817 = vpow.pop %v7816
    %v7818 = vmul.f32 %v7813, 1.442695
    %v7819 = vpow.pop %v7818
    %v7820 = vadd.f32 %v7815, 1.0
    %v7821 = vadd.f32 %v7817, 1.0
    %v7822 = vadd.f32 %v7819, 1.0
    %v7823 = vrcp.pop %v7820
    %v7824 = vmul.f32 1.0, %v7823
    %v7825 = vrcp.pop %v7821
    %v7826 = vmul.f32 1.0, %v7825
    %v7827 = vrcp.pop %v7822
    %v7828 = vmul.f32 1.0, %v7827
    %v7829 = vtanh.pop %v7810
    %v7831 = vrot.slane %v7705, 6
    %v7833 = vmul.f32 %v7826, %v7831
    %v7834 = vmul.f32 %v7824, %v7829
    %v7835 = vadd.f32 %v7833, %v7834
    %v7836 = vtanh.pop %v7835
    %v7837 = vmul.f32 %v7828, %v7836
    %v7838 = vld [vmem:[#allocation4 + $0x20] sm:$0x30]
    %v7839 = vld [vmem:[#allocation4 + $0x28] sm:$0x30]
    %v7840 = vld [vmem:[#allocation4 + $0x30] sm:$0x30]
    %v7841 = vld [vmem:[#allocation4 + $0x38] sm:$0x30]
    %v7842 = vpack.c.bf16 %v7837, %v7837
    %v7844 = vrot.slane %v7842, 1
    %7846 = vmatprep.subr.bf16.mxu0 %v7046
    %7847 = vmatpush1.bf16.msra.mxu0 %v7045
    %7848 = vmatprep.subr.bf16.mxu0 %v7042
    %7849 = vmatpush1.bf16.msra.mxu0 %v7041
    %7850 = vmatprep.subr.bf16.mxu0 %v7038
    %7851 = vmatpush1.bf16.msra.mxu0 %v7037
    %7852 = vmatprep.subr.bf16.mxu0 %v7034
    %7853 = vmatpush1.bf16.msra.mxu0 %v7033
    %7854 = vmatprep.subr.bf16.mxu0 %v7030
    %7855 = vmatpush1.bf16.msra.mxu0 %v7029
    %7856 = vmatprep.subr.bf16.mxu0 %v7026
    %7857 = vmatpush1.bf16.msra.mxu0 %v7025
    %7858 = vmatprep.subr.bf16.mxu0 %v7022
    %7859 = vmatpush1.bf16.msra.mxu0 %v7021
    %7860 = vmatprep.subr.bf16.mxu0 %v7018
    %7861 = vmatpush1.bf16.msra.mxu0 %v7017
    %7862 = vmatprep.subr.bf16.mxu0 0
    %7863 = vmatpush2.bf16.msra.mxu0 0
    %7864 = vmatprep.subr.bf16.mxu0 0
    %7865 = vmatpush2.bf16.msra.mxu0 0
    %7866 = vmatprep.subr.bf16.mxu0 0
    %7867 = vmatpush2.bf16.msra.mxu0 0
    %7868 = vmatprep.subr.bf16.mxu0 0
    %7869 = vmatpush2.bf16.msra.mxu0 0
    %7870 = vmatprep.subr.bf16.mxu0 0
    %7871 = vmatpush2.bf16.msra.mxu0 0
    %7872 = vmatprep.subr.bf16.mxu0 0
    %7873 = vmatpush2.bf16.msra.mxu0 0
    %7874 = vmatprep.subr.bf16.mxu0 0
    %7875 = vmatpush2.bf16.msra.mxu0 0
    %7876 = vmatprep.subr.bf16.mxu0 0
    %7877 = vmatpush2.bf16.msra.mxu0 0
    %7878 = vmatprep.mubr.bf16.mxu0 0
    %7879 = vmatmul.mubr.bf16.gmra.mxu0 %v7844
    %v7880 = vpop.f32.mrf.mxu0
    %v7881 = vadd.f32 0.0, %v7880
    %v7882 = vpop.f32.mrf.mxu0
    %v7883 = vadd.f32 0.0, %v7882
    %v7884 = vpop.f32.mrf.mxu0
    %v7885 = vpop.f32.mrf.mxu0
    %7886 = vdwg.mxu0
    %7887 = vmatprep.subr.bf16.mxu0 %v7048
    %7888 = vmatpush1.bf16.msra.mxu0 %v7047
    %7889 = vmatprep.subr.bf16.mxu0 %v7044
    %7890 = vmatpush1.bf16.msra.mxu0 %v7043
    %7891 = vmatprep.subr.bf16.mxu0 %v7040
    %7892 = vmatpush1.bf16.msra.mxu0 %v7039
    %7893 = vmatprep.subr.bf16.mxu0 %v7036
    %7894 = vmatpush1.bf16.msra.mxu0 %v7035
    %7895 = vmatprep.subr.bf16.mxu0 %v7032
    %7896 = vmatpush1.bf16.msra.mxu0 %v7031
    %7897 = vmatprep.subr.bf16.mxu0 %v7028
    %7898 = vmatpush1.bf16.msra.mxu0 %v7027
    %7899 = vmatprep.subr.bf16.mxu0 %v7024
    %7900 = vmatpush1.bf16.msra.mxu0 %v7023
    %7901 = vmatprep.subr.bf16.mxu0 %v7020
    %7902 = vmatpush1.bf16.msra.mxu0 %v7019
    %7903 = vmatprep.subr.bf16.mxu0 0
    %7904 = vmatpush2.bf16.msra.mxu0 0
    %7905 = vmatprep.subr.bf16.mxu0 0
    %7906 = vmatpush2.bf16.msra.mxu0 0
    %7907 = vmatprep.subr.bf16.mxu0 0
    %7908 = vmatpush2.bf16.msra.mxu0 0
    %7909 = vmatprep.subr.bf16.mxu0 0
    %7910 = vmatpush2.bf16.msra.mxu0 0
    %7911 = vmatprep.subr.bf16.mxu0 0
    %7912 = vmatpush2.bf16.msra.mxu0 0
    %7913 = vmatprep.subr.bf16.mxu0 0
    %7914 = vmatpush2.bf16.msra.mxu0 0
    %7915 = vmatprep.subr.bf16.mxu0 0
    %7916 = vmatpush2.bf16.msra.mxu0 0
    %7917 = vmatprep.subr.bf16.mxu0 0
    %7918 = vmatpush2.bf16.msra.mxu0 0
    %7919 = vmatprep.mubr.bf16.mxu0 0
    %7920 = vmatmul.mubr.bf16.gmra.mxu0 %v7844
    %v7921 = vpop.f32.mrf.mxu0
    %v7922 = vadd.f32 0.0, %v7921
    %v7923 = vpop.f32.mrf.mxu0
    %v7924 = vadd.f32 0.0, %v7923
    %v7925 = vpop.f32.mrf.mxu0
    %v7926 = vpop.f32.mrf.mxu0
    %7927 = vdwg.mxu0
    %v7932 = vrot.slane %v7881, 4
    %v7933 = vrot.slane %v7883, 4
    %v7934 = vrot.slane %v7922, 4
    %v7935 = vrot.slane %v7924, 4
    %v7940 = vadd.f32 %v7838, %v7932
    %v7941 = vadd.f32 %v7839, %v7933
    %v7942 = vadd.f32 %v7840, %v7934
    %v7943 = vadd.f32 %v7841, %v7935
    %v7944 = vxor.u32 %v7940, 2147483648
    %v7945 = vxor.u32 %v7941, 2147483648
    %v7946 = vxor.u32 %v7942, 2147483648
    %v7947 = vmul.f32 %v7944, 1.442695
    %v7948 = vpow.pop %v7947
    %v7949 = vmul.f32 %v7945, 1.442695
    %v7950 = vpow.pop %v7949
    %v7951 = vmul.f32 %v7946, 1.442695
    %v7952 = vpow.pop %v7951
    %v7953 = vadd.f32 %v7948, 1.0
    %v7954 = vadd.f32 %v7950, 1.0
    %v7955 = vadd.f32 %v7952, 1.0
    %v7956 = vrcp.pop %v7953
    %v7957 = vmul.f32 1.0, %v7956
    %v7958 = vrcp.pop %v7954
    %v7959 = vmul.f32 1.0, %v7958
    %v7960 = vrcp.pop %v7955
    %v7961 = vmul.f32 1.0, %v7960
    %v7962 = vtanh.pop %v7943
    %v7964 = vrot.slane %v7835, 6
    %v7966 = vmul.f32 %v7959, %v7964
    %v7967 = vmul.f32 %v7957, %v7962
    %v7968 = vadd.f32 %v7966, %v7967
    %v7969 = vtanh.pop %v7968
    %v7970 = vmul.f32 %v7961, %v7969
    %v7971 = vld [vmem:[#allocation4 + $0x20] sm:$0xc0]
    %v7972 = vld [vmem:[#allocation4 + $0x28] sm:$0xc0]
    %v7973 = vld [vmem:[#allocation4 + $0x30] sm:$0xc0]
    %v7974 = vld [vmem:[#allocation4 + $0x38] sm:$0xc0]
    %v7975 = vpack.c.bf16 %v7970, %v7970
    %v7977 = vrot.slane %v7975, 2
    %7979 = vmatprep.subr.bf16.mxu0 %v7046
    %7980 = vmatpush1.bf16.msra.mxu0 %v7045
    %7981 = vmatprep.subr.bf16.mxu0 %v7042
    %7982 = vmatpush1.bf16.msra.mxu0 %v7041
    %7983 = vmatprep.subr.bf16.mxu0 %v7038
    %7984 = vmatpush1.bf16.msra.mxu0 %v7037
    %7985 = vmatprep.subr.bf16.mxu0 %v7034
    %7986 = vmatpush1.bf16.msra.mxu0 %v7033
    %7987 = vmatprep.subr.bf16.mxu0 %v7030
    %7988 = vmatpush1.bf16.msra.mxu0 %v7029
    %7989 = vmatprep.subr.bf16.mxu0 %v7026
    %7990 = vmatpush1.bf16.msra.mxu0 %v7025
    %7991 = vmatprep.subr.bf16.mxu0 %v7022
    %7992 = vmatpush1.bf16.msra.mxu0 %v7021
    %7993 = vmatprep.subr.bf16.mxu0 %v7018
    %7994 = vmatpush1.bf16.msra.mxu0 %v7017
    %7995 = vmatprep.subr.bf16.mxu0 0
    %7996 = vmatpush2.bf16.msra.mxu0 0
    %7997 = vmatprep.subr.bf16.mxu0 0
    %7998 = vmatpush2.bf16.msra.mxu0 0
    %7999 = vmatprep.subr.bf16.mxu0 0
    %8000 = vmatpush2.bf16.msra.mxu0 0
    %8001 = vmatprep.subr.bf16.mxu0 0
    %8002 = vmatpush2.bf16.msra.mxu0 0
    %8003 = vmatprep.subr.bf16.mxu0 0
    %8004 = vmatpush2.bf16.msra.mxu0 0
    %8005 = vmatprep.subr.bf16.mxu0 0
    %8006 = vmatpush2.bf16.msra.mxu0 0
    %8007 = vmatprep.subr.bf16.mxu0 0
    %8008 = vmatpush2.bf16.msra.mxu0 0
    %8009 = vmatprep.subr.bf16.mxu0 0
    %8010 = vmatpush2.bf16.msra.mxu0 0
    %8011 = vmatprep.mubr.bf16.mxu0 0
    %8012 = vmatmul.mubr.bf16.gmra.mxu0 %v7977
    %v8013 = vpop.f32.mrf.mxu0
    %v8014 = vadd.f32 0.0, %v8013
    %v8015 = vpop.f32.mrf.mxu0
    %v8016 = vadd.f32 0.0, %v8015
    %v8017 = vpop.f32.mrf.mxu0
    %v8018 = vpop.f32.mrf.mxu0
    %8019 = vdwg.mxu0
    %8020 = vmatprep.subr.bf16.mxu0 %v7048
    %8021 = vmatpush1.bf16.msra.mxu0 %v7047
    %8022 = vmatprep.subr.bf16.mxu0 %v7044
    %8023 = vmatpush1.bf16.msra.mxu0 %v7043
    %8024 = vmatprep.subr.bf16.mxu0 %v7040
    %8025 = vmatpush1.bf16.msra.mxu0 %v7039
    %8026 = vmatprep.subr.bf16.mxu0 %v7036
    %8027 = vmatpush1.bf16.msra.mxu0 %v7035
    %8028 = vmatprep.subr.bf16.mxu0 %v7032
    %8029 = vmatpush1.bf16.msra.mxu0 %v7031
    %8030 = vmatprep.subr.bf16.mxu0 %v7028
    %8031 = vmatpush1.bf16.msra.mxu0 %v7027
    %8032 = vmatprep.subr.bf16.mxu0 %v7024
    %8033 = vmatpush1.bf16.msra.mxu0 %v7023
    %8034 = vmatprep.subr.bf16.mxu0 %v7020
    %8035 = vmatpush1.bf16.msra.mxu0 %v7019
    %8036 = vmatprep.subr.bf16.mxu0 0
    %8037 = vmatpush2.bf16.msra.mxu0 0
    %8038 = vmatprep.subr.bf16.mxu0 0
    %8039 = vmatpush2.bf16.msra.mxu0 0
    %8040 = vmatprep.subr.bf16.mxu0 0
    %8041 = vmatpush2.bf16.msra.mxu0 0
    %8042 = vmatprep.subr.bf16.mxu0 0
    %8043 = vmatpush2.bf16.msra.mxu0 0
    %8044 = vmatprep.subr.bf16.mxu0 0
    %8045 = vmatpush2.bf16.msra.mxu0 0
    %8046 = vmatprep.subr.bf16.mxu0 0
    %8047 = vmatpush2.bf16.msra.mxu0 0
    %8048 = vmatprep.subr.bf16.mxu0 0
    %8049 = vmatpush2.bf16.msra.mxu0 0
    %8050 = vmatprep.subr.bf16.mxu0 0
    %8051 = vmatpush2.bf16.msra.mxu0 0
    %8052 = vmatprep.mubr.bf16.mxu0 0
    %8053 = vmatmul.mubr.bf16.gmra.mxu0 %v7977
    %v8054 = vpop.f32.mrf.mxu0
    %v8055 = vadd.f32 0.0, %v8054
    %v8056 = vpop.f32.mrf.mxu0
    %v8057 = vadd.f32 0.0, %v8056
    %v8058 = vpop.f32.mrf.mxu0
    %v8059 = vpop.f32.mrf.mxu0
    %8060 = vdwg.mxu0
    %v8065 = vrot.slane %v8014, 2
    %v8066 = vrot.slane %v8016, 2
    %v8067 = vrot.slane %v8055, 2
    %v8068 = vrot.slane %v8057, 2
    %v8073 = vadd.f32 %v7971, %v8065
    %v8074 = vadd.f32 %v7972, %v8066
    %v8075 = vadd.f32 %v7973, %v8067
    %v8076 = vadd.f32 %v7974, %v8068
    %v8077 = vxor.u32 %v8073, 2147483648
    %v8078 = vxor.u32 %v8074, 2147483648
    %v8079 = vxor.u32 %v8075, 2147483648
    %v8080 = vmul.f32 %v8077, 1.442695
    %v8081 = vpow.pop %v8080
    %v8082 = vmul.f32 %v8078, 1.442695
    %v8083 = vpow.pop %v8082
    %v8084 = vmul.f32 %v8079, 1.442695
    %v8085 = vpow.pop %v8084
    %v8086 = vadd.f32 %v8081, 1.0
    %v8087 = vadd.f32 %v8083, 1.0
    %v8088 = vadd.f32 %v8085, 1.0
    %v8089 = vrcp.pop %v8086
    %v8090 = vmul.f32 1.0, %v8089
    %v8091 = vrcp.pop %v8087
    %v8092 = vmul.f32 1.0, %v8091
    %v8093 = vrcp.pop %v8088
    %v8094 = vmul.f32 1.0, %v8093
    %v8095 = vtanh.pop %v8076
    %v8097 = vrot.slane %v7968, 6
    %v8099 = vmul.f32 %v8092, %v8097
    %v8100 = vmul.f32 %v8090, %v8095
    %v8101 = vadd.f32 %v8099, %v8100
    %v8102 = vtanh.pop %v8101
    %v8103 = vmul.f32 %v8094, %v8102
    %v8104 = vld [vmem:[#allocation16] sm:$0xff]
    %v8105 = vld [vmem:[#allocation16 + $0x8] sm:$0xff]
    %v8106 = vld [vmem:[#allocation16 + $0x10] sm:$0xff]
    %v8107 = vld [vmem:[#allocation16 + $0x18] sm:$0xff]
    %v8108 = vld [vmem:[#allocation16 + $0x20] sm:$0xff]
    %v8109 = vld [vmem:[#allocation16 + $0x28] sm:$0xff]
    %v8110 = vld [vmem:[#allocation16 + $0x30] sm:$0xff]
    %v8111 = vld [vmem:[#allocation16 + $0x38] sm:$0xff]
    %v8112 = vld [vmem:[#allocation16 + $0x40] sm:$0xff]
    %v8113 = vld [vmem:[#allocation16 + $0x48] sm:$0xff]
    %v8114 = vld [vmem:[#allocation16 + $0x50] sm:$0xff]
    %v8115 = vld [vmem:[#allocation16 + $0x58] sm:$0xff]
    %v8116 = vld [vmem:[#allocation16 + $0x60] sm:$0xff]
    %v8117 = vld [vmem:[#allocation16 + $0x68] sm:$0xff]
    %v8118 = vld [vmem:[#allocation16 + $0x70] sm:$0xff]
    %v8119 = vld [vmem:[#allocation16 + $0x78] sm:$0xff]
    %v8120 = vld [vmem:[#allocation16 + $0x80] sm:$0xff]
    %v8121 = vld [vmem:[#allocation16 + $0x88] sm:$0xff]
    %v8122 = vld [vmem:[#allocation16 + $0x90] sm:$0xff]
    %v8123 = vld [vmem:[#allocation16 + $0x98] sm:$0xff]
    %v8124 = vld [vmem:[#allocation16 + $0xa0] sm:$0xff]
    %v8125 = vld [vmem:[#allocation16 + $0xa8] sm:$0xff]
    %v8126 = vld [vmem:[#allocation16 + $0xb0] sm:$0xff]
    %v8127 = vld [vmem:[#allocation16 + $0xb8] sm:$0xff]
    %v8128 = vld [vmem:[#allocation16 + $0xc0] sm:$0xff]
    %v8129 = vld [vmem:[#allocation16 + $0xc8] sm:$0xff]
    %v8130 = vld [vmem:[#allocation16 + $0xd0] sm:$0xff]
    %v8131 = vld [vmem:[#allocation16 + $0xd8] sm:$0xff]
    %v8132 = vld [vmem:[#allocation16 + $0xe0] sm:$0xff]
    %v8133 = vld [vmem:[#allocation16 + $0xe8] sm:$0xff]
    %v8134 = vld [vmem:[#allocation16 + $0xf0] sm:$0xff]
    %v8135 = vld [vmem:[#allocation16 + $0xf8] sm:$0xff]
    %8136 = vmatprep.subr.mxu0 0.0
    %8137 = vmatpush1.msra.mxu0 %v8135
    %8138 = vmatprep.subr.mxu0 0.0
    %8139 = vmatpush1.msra.mxu0 %v8134
    %8140 = vmatprep.subr.mxu0 0.0
    %8141 = vmatpush1.msra.mxu0 %v8133
    %8142 = vmatprep.subr.mxu0 0.0
    %8143 = vmatpush1.msra.mxu0 %v8132
    %8144 = vmatprep.subr.mxu0 0.0
    %8145 = vmatpush1.msra.mxu0 %v8131
    %8146 = vmatprep.subr.mxu0 0.0
    %8147 = vmatpush1.msra.mxu0 %v8130
    %8148 = vmatprep.subr.mxu0 0.0
    %8149 = vmatpush1.msra.mxu0 %v8129
    %8150 = vmatprep.subr.mxu0 0.0
    %8151 = vmatpush1.msra.mxu0 %v8128
    %8152 = vmatprep.subr.mxu0 0.0
    %8153 = vmatpush1.msra.mxu0 %v8127
    %8154 = vmatprep.subr.mxu0 0.0
    %8155 = vmatpush1.msra.mxu0 %v8126
    %8156 = vmatprep.subr.mxu0 0.0
    %8157 = vmatpush1.msra.mxu0 %v8125
    %8158 = vmatprep.subr.mxu0 0.0
    %8159 = vmatpush1.msra.mxu0 %v8124
    %8160 = vmatprep.subr.mxu0 0.0
    %8161 = vmatpush1.msra.mxu0 %v8123
    %8162 = vmatprep.subr.mxu0 0.0
    %8163 = vmatpush1.msra.mxu0 %v8122
    %8164 = vmatprep.subr.mxu0 0.0
    %8165 = vmatpush1.msra.mxu0 %v8121
    %8166 = vmatprep.subr.mxu0 0.0
    %8167 = vmatpush1.msra.mxu0 %v8120
    %8168 = vmatprep.subr.mxu0 0.0
    %8169 = vmatpush2.msra.mxu0 0.0
    %8170 = vmatprep.subr.mxu0 0.0
    %8171 = vmatpush2.msra.mxu0 0.0
    %8172 = vmatprep.subr.mxu0 0.0
    %8173 = vmatpush2.msra.mxu0 0.0
    %8174 = vmatprep.subr.mxu0 0.0
    %8175 = vmatpush2.msra.mxu0 0.0
    %8176 = vmatprep.subr.mxu0 0.0
    %8177 = vmatpush2.msra.mxu0 0.0
    %8178 = vmatprep.subr.mxu0 0.0
    %8179 = vmatpush2.msra.mxu0 0.0
    %8180 = vmatprep.subr.mxu0 0.0
    %8181 = vmatpush2.msra.mxu0 0.0
    %8182 = vmatprep.subr.mxu0 0.0
    %8183 = vmatpush2.msra.mxu0 0.0
    %8184 = vmatprep.subr.mxu0 0.0
    %8185 = vmatpush2.msra.mxu0 0.0
    %8186 = vmatprep.subr.mxu0 0.0
    %8187 = vmatpush2.msra.mxu0 0.0
    %8188 = vmatprep.subr.mxu0 0.0
    %8189 = vmatpush2.msra.mxu0 0.0
    %8190 = vmatprep.subr.mxu0 0.0
    %8191 = vmatpush2.msra.mxu0 0.0
    %8192 = vmatprep.subr.mxu0 0.0
    %8193 = vmatpush2.msra.mxu0 0.0
    %8194 = vmatprep.subr.mxu0 0.0
    %8195 = vmatpush2.msra.mxu0 0.0
    %8196 = vmatprep.subr.mxu0 0.0
    %8197 = vmatpush2.msra.mxu0 0.0
    %8198 = vmatprep.subr.mxu0 0.0
    %8199 = vmatpush2.msra.mxu0 0.0
    %8200 = vmatprep.mubr.f32.mxu0 0.0
    %8201 = vmatmul.mubr.f32.gmra.mxu0 %v6884
    %v8202 = vpop.f32.mrf.mxu0
    %v8203 = vadd.f32 0.0, %v8202
    %v8204 = vpop.f32.mrf.mxu0
    %8205 = vdwg.mxu0
    %v8207 = vrot.slane %v8103, 6
    %8209 = vmatprep.subr.mxu0 0.0
    %8210 = vmatpush1.msra.mxu0 %v8119
    %8211 = vmatprep.subr.mxu0 0.0
    %8212 = vmatpush1.msra.mxu0 %v8118
    %8213 = vmatprep.subr.mxu0 0.0
    %8214 = vmatpush1.msra.mxu0 %v8117
    %8215 = vmatprep.subr.mxu0 0.0
    %8216 = vmatpush1.msra.mxu0 %v8116
    %8217 = vmatprep.subr.mxu0 0.0
    %8218 = vmatpush1.msra.mxu0 %v8115
    %8219 = vmatprep.subr.mxu0 0.0
    %8220 = vmatpush1.msra.mxu0 %v8114
    %8221 = vmatprep.subr.mxu0 0.0
    %8222 = vmatpush1.msra.mxu0 %v8113
    %8223 = vmatprep.subr.mxu0 0.0
    %8224 = vmatpush1.msra.mxu0 %v8112
    %8225 = vmatprep.subr.mxu0 0.0
    %8226 = vmatpush1.msra.mxu0 %v8111
    %8227 = vmatprep.subr.mxu0 0.0
    %8228 = vmatpush1.msra.mxu0 %v8110
    %8229 = vmatprep.subr.mxu0 0.0
    %8230 = vmatpush1.msra.mxu0 %v8109
    %8231 = vmatprep.subr.mxu0 0.0
    %8232 = vmatpush1.msra.mxu0 %v8108
    %8233 = vmatprep.subr.mxu0 0.0
    %8234 = vmatpush1.msra.mxu0 %v8107
    %8235 = vmatprep.subr.mxu0 0.0
    %8236 = vmatpush1.msra.mxu0 %v8106
    %8237 = vmatprep.subr.mxu0 0.0
    %8238 = vmatpush1.msra.mxu0 %v8105
    %8239 = vmatprep.subr.mxu0 0.0
    %8240 = vmatpush1.msra.mxu0 %v8104
    %8241 = vmatprep.subr.mxu0 0.0
    %8242 = vmatpush2.msra.mxu0 0.0
    %8243 = vmatprep.subr.mxu0 0.0
    %8244 = vmatpush2.msra.mxu0 0.0
    %8245 = vmatprep.subr.mxu0 0.0
    %8246 = vmatpush2.msra.mxu0 0.0
    %8247 = vmatprep.subr.mxu0 0.0
    %8248 = vmatpush2.msra.mxu0 0.0
    %8249 = vmatprep.subr.mxu0 0.0
    %8250 = vmatpush2.msra.mxu0 0.0
    %8251 = vmatprep.subr.mxu0 0.0
    %8252 = vmatpush2.msra.mxu0 0.0
    %8253 = vmatprep.subr.mxu0 0.0
    %8254 = vmatpush2.msra.mxu0 0.0
    %8255 = vmatprep.subr.mxu0 0.0
    %8256 = vmatpush2.msra.mxu0 0.0
    %8257 = vmatprep.subr.mxu0 0.0
    %8258 = vmatpush2.msra.mxu0 0.0
    %8259 = vmatprep.subr.mxu0 0.0
    %8260 = vmatpush2.msra.mxu0 0.0
    %8261 = vmatprep.subr.mxu0 0.0
    %8262 = vmatpush2.msra.mxu0 0.0
    %8263 = vmatprep.subr.mxu0 0.0
    %8264 = vmatpush2.msra.mxu0 0.0
    %8265 = vmatprep.subr.mxu0 0.0
    %8266 = vmatpush2.msra.mxu0 0.0
    %8267 = vmatprep.subr.mxu0 0.0
    %8268 = vmatpush2.msra.mxu0 0.0
    %8269 = vmatprep.subr.mxu0 0.0
    %8270 = vmatpush2.msra.mxu0 0.0
    %8271 = vmatprep.subr.mxu0 0.0
    %8272 = vmatpush2.msra.mxu0 0.0
    %8273 = vmatprep.mubr.f32.mxu0 0.0
    %8274 = vmatmul.mubr.f32.gmra.mxu0 %v8207
    %v8275 = vpop.f32.mrf.mxu0
    %v8276 = vadd.f32 %v8203, %v8275
    %v8277 = vpop.f32.mrf.mxu0
    %8278 = vdwg.mxu0
    %v8279 = vld [vmem:[%s10] sm:$0x1]
    %v8281 = vlaneseq
    %v8282 = vshrl.u32 %v8281, 7
    %v8283 = vsub.s32 0, %v8282
    %v8284 = vrot.slane %v8279, %v8283
    %v8286 = vadd.f32 %v8276, %v8284
    %8287 = vst [vmem:[#allocation17] sm:$0x3] %v8286
    // Predicated region
    $region74: #{simple_lstm_model.1} parent=1 // pred_check
      _
    $region75: #{simple_lstm_model.1} parent=1 // pred_check_branch
      %8289 = sbr.rel (0) target = $region77
    $region76: #{simple_lstm_model.1} parent=1 // pred_region
      %s8291 = ssub.s32 32, 32
      %8292 = vsyncadd [#allocation7], %s8291
      %s8294 = sshll.u32 [#allocation17], 4
      %s8295 = int_to_ptr.vmem [resolvable:$true] %s8294
      %8297 = dma.vmem_to_hbm [thread:$0]  %s8295, 32, %s11, [#allocation7]
    $region77: #{simple_lstm_model.1} parent=1 // pred_fallthru
      _
    // Predicated region
    $region78: #{simple_lstm_model.1} parent=1 // pred_check
      _
    $region79: #{simple_lstm_model.1} parent=1 // pred_check_branch
      %8299 = sbr.rel (0) target = $region81
    $region80: #{simple_lstm_model.1} parent=1 // pred_region
      %8300 = dma.done [#allocation7], 32
    $region81: #{simple_lstm_model.1} parent=1 // pred_fallthru
      _
    %8301 = vsyncpa [#allocation6], 1
    %8302 = vsyncpa [#allocation9], 1
    %8303 = vsyncpa [#allocation12], 1
    %8304 = vsyncpa [#allocation15], 1
    %8305 = vsyncpa [#allocation7], 1

</llo_original>
